<compile_context>
chip_gen: v5e
topology: v5e:2x2
jax: 0.10.0
libtpu: 0.0.40
codegen_flags: <defaults>
</compile_context>

<pallas_src>
import functools

import jax
import jax.numpy as jnp
from jax.experimental import pallas as pl
from jax.experimental.pallas import tpu as pltpu


# -----------------------------------------------------------------------------
# Kernel 1: [optional fused BN+ReLU on the input] -> 3x3 "same" conv (no bias)
#           -> raw conv output (bf16) + per-block BN partial statistics (f32).
# -----------------------------------------------------------------------------
def _conv3x3_kernel(x_ref, s_ref, b_ref, w_ref, o_ref, stats_ref, pad_ref, *,
                    apply_bn_relu):
    """One block of batch elements per grid step.

    x_ref    : (NB, H, W, Cin)     bf16 raw (pre-BN) activation / network input
    s_ref    : (1, 1, 1, Cin)      f32 folded BN scale of the *previous* layer
    b_ref    : (1, 1, 1, Cin)      f32 folded BN bias  of the *previous* layer
    w_ref    : (3, 3, Cin, Cout)   bf16 conv weights (HWIO)
    o_ref    : (NB, H, W, Cout)    bf16 raw (pre-BN) conv output
    stats_ref: (1, 2, Cout)        f32 per-block [sum, sum_sq] partials
    pad_ref  : (NB, H+2, W+2, Cin) f32 VMEM scratch: zero-padded, activated input
    """
    NB, H, W, Cin = x_ref.shape
    Cout = o_ref.shape[-1]

    # Zero the scratch (this gives the 1-pixel zero border), then write the
    # (optionally BN+ReLU'd) input into its interior.  Padding never hits HBM,
    # and since the border is re-zeroed every step the grid axis can be
    # megacore-parallel.
    pad_ref[...] = jnp.zeros_like(pad_ref)
    x = x_ref[...]
    if apply_bn_relu:
        x = jnp.maximum(x.astype(jnp.float32) * s_ref[...] + b_ref[...], 0.0)
    pad_ref[:, 1:H + 1, 1:W + 1, :] = x.astype(jnp.float32)

    # 3x3 conv as 9 accumulated MXU matmuls over the flattened spatial block:
    # (NB*H*W, Cin) @ (Cin, Cout), bf16 operands, f32 accumulation.
    acc = jnp.zeros((NB * H * W, Cout), jnp.float32)
    for kh in range(3):
        for kw in range(3):
            win = pad_ref[:, kh:kh + H, kw:kw + W, :].reshape(NB * H * W, Cin)
            acc = acc + jnp.dot(win.astype(jnp.bfloat16), w_ref[kh, kw],
                                preferred_element_type=jnp.float32)

    o_ref[...] = acc.reshape(NB, H, W, Cout).astype(o_ref.dtype)

    # Per-block partial BatchNorm statistics: two plain row stores, reduced in
    # the wrapper.  No cross-iteration accumulator -> no race when parallel.
    stats_ref[0:1, 0:1, :] = jnp.sum(acc, axis=0, keepdims=True).reshape(1, 1, Cout)
    stats_ref[0:1, 1:2, :] = jnp.sum(acc * acc, axis=0, keepdims=True).reshape(1, 1, Cout)


def conv3x3_with_stats(x_nhwc, w, scale_in=None, bias_in=None, *, block_n=None):
    """3x3 'same' conv (no bias) over an NHWC input, optionally applying a fused
    y = relu(x * scale_in + bias_in) to the input first (previous layer's BN+ReLU).

    Returns (raw conv output in bf16, per-channel (sum, sum_sq) of that output)."""
    N, H, W, Cin = x_nhwc.shape
    Cout = w.shape[-1]
    if block_n is None:
        block_n = N if N <= 8 else 8
    assert N % block_n == 0, (N, block_n)
    nblocks = N // block_n

    apply_bn_relu = scale_in is not None
    if not apply_bn_relu:                        # dummies; never read by the kernel
        scale_in = jnp.ones((Cin,), jnp.float32)
        bias_in = jnp.zeros((Cin,), jnp.float32)
    s = scale_in.reshape(1, 1, 1, Cin).astype(jnp.float32)
    b = bias_in.reshape(1, 1, 1, Cin).astype(jnp.float32)

    kernel = functools.partial(_conv3x3_kernel, apply_bn_relu=apply_bn_relu)
    out, stats = pl.pallas_call(
        kernel,
        out_shape=(
            jax.ShapeDtypeStruct((N, H, W, Cout), jnp.bfloat16),
            jax.ShapeDtypeStruct((nblocks, 2, Cout), jnp.float32),
        ),
        grid=(nblocks,),
        in_specs=[
            pl.BlockSpec((block_n, H, W, Cin), lambda n: (n, 0, 0, 0)),
            pl.BlockSpec((1, 1, 1, Cin), lambda n: (0, 0, 0, 0)),
            pl.BlockSpec((1, 1, 1, Cin), lambda n: (0, 0, 0, 0)),
            pl.BlockSpec((3, 3, Cin, Cout), lambda n: (0, 0, 0, 0)),
        ],
        out_specs=(
            pl.BlockSpec((block_n, H, W, Cout), lambda n: (n, 0, 0, 0)),
            pl.BlockSpec((1, 2, Cout), lambda n: (n, 0, 0)),
        ),
        scratch_shapes=[pltpu.VMEM((block_n, H + 2, W + 2, Cin), jnp.float32)],
        compiler_params=pltpu.CompilerParams(
            dimension_semantics=("parallel",),
            vmem_limit_bytes=32 * 1024 * 1024),
    )(x_nhwc.astype(jnp.bfloat16), s, b, w.astype(jnp.bfloat16))
    return out, jnp.sum(stats, axis=0)               # reduce per-block partials


def _bn_scale_bias(stats, count, gamma, beta, eps=1e-5):
    """PyTorch training-mode BatchNorm forward: batch mean, biased variance."""
    mean = stats[0] / count
    var = jnp.maximum(stats[1] / count - mean * mean, 0.0)   # guard cancellation
    scale = gamma.astype(jnp.float32) * jax.lax.rsqrt(var + eps)
    bias = beta.astype(jnp.float32) - mean * scale
    return scale, bias


# -----------------------------------------------------------------------------
# Kernel 2: final BatchNorm affine + ReLU, fully lane-dense ((W*C) on lanes).
# -----------------------------------------------------------------------------
def _bn_relu_kernel(x_ref, s_ref, b_ref, o_ref):
    y = x_ref[...].astype(jnp.float32) * s_ref[...] + b_ref[...]
    o_ref[...] = jnp.maximum(y, 0.0)


def bn_relu_lane_dense(x_nhwc, scale, bias, *, block_n=None):
    N, H, W, C = x_nhwc.shape
    if block_n is None:
        block_n = N if N <= 8 else 8
    assert N % block_n == 0, (N, block_n)
    WC = W * C
    x_flat = x_nhwc.reshape(N, H, WC)       # free: identical row-major bytes
    s = jnp.tile(scale.astype(jnp.float32), W).reshape(1, 1, WC)   # pre-tiled
    b = jnp.tile(bias.astype(jnp.float32), W).reshape(1, 1, WC)
    out = pl.pallas_call(
        _bn_relu_kernel,
        out_shape=jax.ShapeDtypeStruct((N, H, WC), jnp.float32),
        grid=(N // block_n,),
        in_specs=[
            pl.BlockSpec((block_n, H, WC), lambda n: (n, 0, 0)),
            pl.BlockSpec((1, 1, WC), lambda n: (0, 0, 0)),
            pl.BlockSpec((1, 1, WC), lambda n: (0, 0, 0)),
        ],
        out_specs=pl.BlockSpec((block_n, H, WC), lambda n: (n, 0, 0)),
        compiler_params=pltpu.CompilerParams(
            dimension_semantics=("parallel",)),
    )(x_flat, s, b)
    return out.reshape(N, H, W, C)


# -----------------------------------------------------------------------------
# DoubleConv forward: (conv => BN => ReLU) * 2
# -----------------------------------------------------------------------------
@jax.jit
def double_conv(x_nchw, w1, gamma1, beta1, w2, gamma2, beta2):
    eps = 1e-5
    x = jnp.transpose(x_nchw, (0, 2, 3, 1))           # NCHW -> NHWC
    N, H, W, _ = x.shape
    count = N * H * W

    # conv1: raw output + stats for BN1.
    y1, st1 = conv3x3_with_stats(x, w1)
    s1, b1 = _bn_scale_bias(st1, count, gamma1, beta1, eps)

    # BN1 + ReLU fused into conv2's input path; conv2 emits stats for BN2.
    y2, st2 = conv3x3_with_stats(y1, w2, s1, b1)
    s2, b2 = _bn_scale_bias(st2, count, gamma2, beta2, eps)

    # Final BN2 + ReLU, lane-dense, then back to NCHW.
    out = bn_relu_lane_dense(y2, s2, b2)
    return jnp.transpose(out, (0, 3, 1, 2))           # NHWC -> NCHW


if __name__ == "__main__":
    key = jax.random.PRNGKey(0)
    N, Cin, H, W = 2, 4, 16, 16
    Cmid = Cout = 8    # DoubleConv(4, 8) => mid_channels = 8;  W * Cout = 128

    kx, k1, k2 = jax.random.split(key, 3)
    x = jax.random.normal(kx, (N, Cin, H, W), jnp.float32)

    # Deterministic synthetic parameters (conv weights HWIO, no bias;
    # BN affine initialised like PyTorch: gamma=1, beta=0).
    w1 = jax.random.normal(k1, (3, 3, Cin, Cmid), jnp.float32) * 0.1
    gamma1 = jnp.ones((Cmid,), jnp.float32)
    beta1 = jnp.zeros((Cmid,), jnp.float32)
    w2 = jax.random.normal(k2, (3, 3, Cmid, Cout), jnp.float32) * 0.1
    gamma2 = jnp.ones((Cout,), jnp.float32)
    beta2 = jnp.zeros((Cout,), jnp.float32)

    y = double_conv(x, w1, gamma1, beta1, w2, gamma2, beta2)
    y = jax.block_until_ready(y)

    # Pure-JAX f32 reference (XLA conv) as a sanity check; the Pallas path runs
    # activations/weights in bf16, so compare with a loose tolerance.
    def reference(x, w1, g1, be1, w2, g2, be2, eps=1e-5):
        def conv(a, w):
            return jax.lax.conv_general_dilated(
                a, w, window_strides=(1, 1), padding="SAME",
                dimension_numbers=("NHWC", "HWIO", "NHWC"))
        def bn_relu(a, g, be):
            mean = jnp.mean(a, axis=(0, 1, 2))
            var = jnp.mean(jnp.square(a - mean), axis=(0, 1, 2))
            return jnp.maximum((a - mean) * (g * jax.lax.rsqrt(var + eps)) + be, 0.0)
        a = jnp.transpose(x, (0, 2, 3, 1))
        a = bn_relu(conv(a, w1), g1, be1)
        a = bn_relu(conv(a, w2), g2, be2)
        return jnp.transpose(a, (0, 3, 1, 2))

    y_ref = reference(x, w1, gamma1, beta1, w2, gamma2, beta2)
    err = float(jnp.max(jnp.abs(y - y_ref)))

    assert y.shape == (N, Cout, H, W), y.shape
    assert bool(jnp.all(y >= 0.0)), "ReLU output must be non-negative"
    assert err < 0.25, f"mismatch vs f32 reference: max abs err = {err}"
    print("KERNEL_OK")
</pallas_src>

<mosaic_0001>
module attributes {stable_mosaic.version = 11 : i64} {
  func.func @_conv3x3_kernel(%arg0: i32, %arg1: memref<2x16x16x4xbf16, #tpu.memory_space<vmem>>, %arg2: memref<1x1x1x4xf32, #tpu.memory_space<vmem>>, %arg3: memref<1x1x1x4xf32, #tpu.memory_space<vmem>>, %arg4: memref<3x3x4x8xbf16, #tpu.memory_space<vmem>>, %arg5: memref<2x16x16x8xbf16, #tpu.memory_space<vmem>>, %arg6: memref<1x2x8xf32, #tpu.memory_space<vmem>>, %arg7: memref<2x18x18x4xf32, #tpu.memory_space<vmem>>) attributes {dimension_semantics = [#tpu.dimension_semantics<parallel>], iteration_bounds = array<i64: 1>, scalar_prefetch = 0 : i64, scratch_operands = 1 : i64, tpu.core_type = #tpu.core_type<tc>, window_params = [{transform_indices = @transform_0, window_bounds = array<i64: 2, 16, 16, 4>}, {pipeline_mode = #tpu.pipeline_mode<synchronous>, transform_indices = @transform_1, window_bounds = array<i64: 1, 1, 1, 4>}, {pipeline_mode = #tpu.pipeline_mode<synchronous>, transform_indices = @transform_2, window_bounds = array<i64: 1, 1, 1, 4>}, {pipeline_mode = #tpu.pipeline_mode<synchronous>, transform_indices = @transform_3, window_bounds = array<i64: 3, 3, 4, 8>}, {transform_indices = @transform_4, window_bounds = array<i64: 2, 16, 16, 8>}, {transform_indices = @transform_5, window_bounds = array<i64: 1, 2, 8>}]} {
    %cst = arith.constant 0.000000e+00 : f32
    %0 = vector.broadcast %cst : f32 to vector<2x18x18x4xf32>
    %c0 = arith.constant 0 : index
    %c0_0 = arith.constant 0 : index
    %c0_1 = arith.constant 0 : index
    %c0_2 = arith.constant 0 : index
    %1 = vector.load %arg7[%c0, %c0_0, %c0_1, %c0_2] : memref<2x18x18x4xf32, #tpu.memory_space<vmem>>, vector<2x18x18x4xf32>
    tpu.vector_store %arg7[%c0, %c0_0, %c0_1, %c0_2], %0 {strides = array<i32>} : memref<2x18x18x4xf32, #tpu.memory_space<vmem>>, vector<2x18x18x4xf32>,
    %c0_3 = arith.constant 0 : index
    %c0_4 = arith.constant 0 : index
    %c0_5 = arith.constant 0 : index
    %c0_6 = arith.constant 0 : index
    %2 = vector.load %arg1[%c0_3, %c0_4, %c0_5, %c0_6] : memref<2x16x16x4xbf16, #tpu.memory_space<vmem>>, vector<2x16x16x4xbf16>
    %3 = arith.extf %2 : vector<2x16x16x4xbf16> to vector<2x16x16x4xf32>
    %c0_7 = arith.constant 0 : index
    %c1 = arith.constant 1 : index
    %c1_8 = arith.constant 1 : index
    %c0_9 = arith.constant 0 : index
    %4 = vector.load %arg7[%c0_7, %c1, %c1_8, %c0_9] : memref<2x18x18x4xf32, #tpu.memory_space<vmem>>, vector<2x16x16x4xf32>
    tpu.vector_store %arg7[%c0_7, %c1, %c1_8, %c0_9], %3 {strides = array<i32>} : memref<2x18x18x4xf32, #tpu.memory_space<vmem>>, vector<2x16x16x4xf32>,
    %cst_10 = arith.constant 0.000000e+00 : f32
    %5 = vector.broadcast %cst_10 : f32 to vector<512x8xf32>
    %c0_11 = arith.constant 0 : index
    %c0_12 = arith.constant 0 : index
    %c0_13 = arith.constant 0 : index
    %c0_14 = arith.constant 0 : index
    %6 = vector.load %arg7[%c0_11, %c0_12, %c0_13, %c0_14] : memref<2x18x18x4xf32, #tpu.memory_space<vmem>>, vector<2x16x16x4xf32>
    %7 = vector.shape_cast %6 : vector<2x16x16x4xf32> to vector<512x4xf32>
    %8 = arith.truncf %7 : vector<512x4xf32> to vector<512x4xbf16>
    %c0_15 = arith.constant 0 : index
    %c0_16 = arith.constant 0 : index
    %c0_17 = arith.constant 0 : index
    %c0_18 = arith.constant 0 : index
    %9 = vector.load %arg4[%c0_15, %c0_16, %c0_17, %c0_18] : memref<3x3x4x8xbf16, #tpu.memory_space<vmem>>, vector<1x1x4x8xbf16>
    %10 = vector.shape_cast %9 : vector<1x1x4x8xbf16> to vector<4x8xbf16>
    %cst_19 = arith.constant dense<0.000000e+00> : vector<512x8xf32>
    %11 = tpu.matmul %8, %10, %cst_19 {dimension_numbers = #tpu.dot_dimension_numbers<[1], [0], [0], [1], [0, 0, 1, 1], [], []>} : vector<512x4xbf16>, vector<4x8xbf16>, vector<512x8xf32> -> vector<512x8xf32>
    %12 = arith.addf %5, %11 : vector<512x8xf32>
    %c0_20 = arith.constant 0 : index
    %c0_21 = arith.constant 0 : index
    %c1_22 = arith.constant 1 : index
    %c0_23 = arith.constant 0 : index
    %13 = vector.load %arg7[%c0_20, %c0_21, %c1_22, %c0_23] : memref<2x18x18x4xf32, #tpu.memory_space<vmem>>, vector<2x16x16x4xf32>
    %14 = vector.shape_cast %13 : vector<2x16x16x4xf32> to vector<512x4xf32>
    %15 = arith.truncf %14 : vector<512x4xf32> to vector<512x4xbf16>
    %c0_24 = arith.constant 0 : index
    %c1_25 = arith.constant 1 : index
    %c0_26 = arith.constant 0 : index
    %c0_27 = arith.constant 0 : index
    %16 = vector.load %arg4[%c0_24, %c1_25, %c0_26, %c0_27] : memref<3x3x4x8xbf16, #tpu.memory_space<vmem>>, vector<1x1x4x8xbf16>
    %17 = vector.shape_cast %16 : vector<1x1x4x8xbf16> to vector<4x8xbf16>
    %cst_28 = arith.constant dense<0.000000e+00> : vector<512x8xf32>
    %18 = tpu.matmul %15, %17, %cst_28 {dimension_numbers = #tpu.dot_dimension_numbers<[1], [0], [0], [1], [0, 0, 1, 1], [], []>} : vector<512x4xbf16>, vector<4x8xbf16>, vector<512x8xf32> -> vector<512x8xf32>
    %19 = arith.addf %12, %18 : vector<512x8xf32>
    %c0_29 = arith.constant 0 : index
    %c0_30 = arith.constant 0 : index
    %c2 = arith.constant 2 : index
    %c0_31 = arith.constant 0 : index
    %20 = vector.load %arg7[%c0_29, %c0_30, %c2, %c0_31] : memref<2x18x18x4xf32, #tpu.memory_space<vmem>>, vector<2x16x16x4xf32>
    %21 = vector.shape_cast %20 : vector<2x16x16x4xf32> to vector<512x4xf32>
    %22 = arith.truncf %21 : vector<512x4xf32> to vector<512x4xbf16>
    %c0_32 = arith.constant 0 : index
    %c2_33 = arith.constant 2 : index
    %c0_34 = arith.constant 0 : index
    %c0_35 = arith.constant 0 : index
    %23 = vector.load %arg4[%c0_32, %c2_33, %c0_34, %c0_35] : memref<3x3x4x8xbf16, #tpu.memory_space<vmem>>, vector<1x1x4x8xbf16>
    %24 = vector.shape_cast %23 : vector<1x1x4x8xbf16> to vector<4x8xbf16>
    %cst_36 = arith.constant dense<0.000000e+00> : vector<512x8xf32>
    %25 = tpu.matmul %22, %24, %cst_36 {dimension_numbers = #tpu.dot_dimension_numbers<[1], [0], [0], [1], [0, 0, 1, 1], [], []>} : vector<512x4xbf16>, vector<4x8xbf16>, vector<512x8xf32> -> vector<512x8xf32>
    %26 = arith.addf %19, %25 : vector<512x8xf32>
    %c0_37 = arith.constant 0 : index
    %c1_38 = arith.constant 1 : index
    %c0_39 = arith.constant 0 : index
    %c0_40 = arith.constant 0 : index
    %27 = vector.load %arg7[%c0_37, %c1_38, %c0_39, %c0_40] : memref<2x18x18x4xf32, #tpu.memory_space<vmem>>, vector<2x16x16x4xf32>
    %28 = vector.shape_cast %27 : vector<2x16x16x4xf32> to vector<512x4xf32>
    %29 = arith.truncf %28 : vector<512x4xf32> to vector<512x4xbf16>
    %c1_41 = arith.constant 1 : index
    %c0_42 = arith.constant 0 : index
    %c0_43 = arith.constant 0 : index
    %c0_44 = arith.constant 0 : index
    %30 = vector.load %arg4[%c1_41, %c0_42, %c0_43, %c0_44] : memref<3x3x4x8xbf16, #tpu.memory_space<vmem>>, vector<1x1x4x8xbf16>
    %31 = vector.shape_cast %30 : vector<1x1x4x8xbf16> to vector<4x8xbf16>
    %cst_45 = arith.constant dense<0.000000e+00> : vector<512x8xf32>
    %32 = tpu.matmul %29, %31, %cst_45 {dimension_numbers = #tpu.dot_dimension_numbers<[1], [0], [0], [1], [0, 0, 1, 1], [], []>} : vector<512x4xbf16>, vector<4x8xbf16>, vector<512x8xf32> -> vector<512x8xf32>
    %33 = arith.addf %26, %32 : vector<512x8xf32>
    %c0_46 = arith.constant 0 : index
    %c1_47 = arith.constant 1 : index
    %c1_48 = arith.constant 1 : index
    %c0_49 = arith.constant 0 : index
    %34 = vector.load %arg7[%c0_46, %c1_47, %c1_48, %c0_49] : memref<2x18x18x4xf32, #tpu.memory_space<vmem>>, vector<2x16x16x4xf32>
    %35 = vector.shape_cast %34 : vector<2x16x16x4xf32> to vector<512x4xf32>
    %36 = arith.truncf %35 : vector<512x4xf32> to vector<512x4xbf16>
    %c1_50 = arith.constant 1 : index
    %c1_51 = arith.constant 1 : index
    %c0_52 = arith.constant 0 : index
    %c0_53 = arith.constant 0 : index
    %37 = vector.load %arg4[%c1_50, %c1_51, %c0_52, %c0_53] : memref<3x3x4x8xbf16, #tpu.memory_space<vmem>>, vector<1x1x4x8xbf16>
    %38 = vector.shape_cast %37 : vector<1x1x4x8xbf16> to vector<4x8xbf16>
    %cst_54 = arith.constant dense<0.000000e+00> : vector<512x8xf32>
    %39 = tpu.matmul %36, %38, %cst_54 {dimension_numbers = #tpu.dot_dimension_numbers<[1], [0], [0], [1], [0, 0, 1, 1], [], []>} : vector<512x4xbf16>, vector<4x8xbf16>, vector<512x8xf32> -> vector<512x8xf32>
    %40 = arith.addf %33, %39 : vector<512x8xf32>
    %c0_55 = arith.constant 0 : index
    %c1_56 = arith.constant 1 : index
    %c2_57 = arith.constant 2 : index
    %c0_58 = arith.constant 0 : index
    %41 = vector.load %arg7[%c0_55, %c1_56, %c2_57, %c0_58] : memref<2x18x18x4xf32, #tpu.memory_space<vmem>>, vector<2x16x16x4xf32>
    %42 = vector.shape_cast %41 : vector<2x16x16x4xf32> to vector<512x4xf32>
    %43 = arith.truncf %42 : vector<512x4xf32> to vector<512x4xbf16>
    %c1_59 = arith.constant 1 : index
    %c2_60 = arith.constant 2 : index
    %c0_61 = arith.constant 0 : index
    %c0_62 = arith.constant 0 : index
    %44 = vector.load %arg4[%c1_59, %c2_60, %c0_61, %c0_62] : memref<3x3x4x8xbf16, #tpu.memory_space<vmem>>, vector<1x1x4x8xbf16>
    %45 = vector.shape_cast %44 : vector<1x1x4x8xbf16> to vector<4x8xbf16>
    %cst_63 = arith.constant dense<0.000000e+00> : vector<512x8xf32>
    %46 = tpu.matmul %43, %45, %cst_63 {dimension_numbers = #tpu.dot_dimension_numbers<[1], [0], [0], [1], [0, 0, 1, 1], [], []>} : vector<512x4xbf16>, vector<4x8xbf16>, vector<512x8xf32> -> vector<512x8xf32>
    %47 = arith.addf %40, %46 : vector<512x8xf32>
    %c0_64 = arith.constant 0 : index
    %c2_65 = arith.constant 2 : index
    %c0_66 = arith.constant 0 : index
    %c0_67 = arith.constant 0 : index
    %48 = vector.load %arg7[%c0_64, %c2_65, %c0_66, %c0_67] : memref<2x18x18x4xf32, #tpu.memory_space<vmem>>, vector<2x16x16x4xf32>
    %49 = vector.shape_cast %48 : vector<2x16x16x4xf32> to vector<512x4xf32>
    %50 = arith.truncf %49 : vector<512x4xf32> to vector<512x4xbf16>
    %c2_68 = arith.constant 2 : index
    %c0_69 = arith.constant 0 : index
    %c0_70 = arith.constant 0 : index
    %c0_71 = arith.constant 0 : index
    %51 = vector.load %arg4[%c2_68, %c0_69, %c0_70, %c0_71] : memref<3x3x4x8xbf16, #tpu.memory_space<vmem>>, vector<1x1x4x8xbf16>
    %52 = vector.shape_cast %51 : vector<1x1x4x8xbf16> to vector<4x8xbf16>
    %cst_72 = arith.constant dense<0.000000e+00> : vector<512x8xf32>
    %53 = tpu.matmul %50, %52, %cst_72 {dimension_numbers = #tpu.dot_dimension_numbers<[1], [0], [0], [1], [0, 0, 1, 1], [], []>} : vector<512x4xbf16>, vector<4x8xbf16>, vector<512x8xf32> -> vector<512x8xf32>
    %54 = arith.addf %47, %53 : vector<512x8xf32>
    %c0_73 = arith.constant 0 : index
    %c2_74 = arith.constant 2 : index
    %c1_75 = arith.constant 1 : index
    %c0_76 = arith.constant 0 : index
    %55 = vector.load %arg7[%c0_73, %c2_74, %c1_75, %c0_76] : memref<2x18x18x4xf32, #tpu.memory_space<vmem>>, vector<2x16x16x4xf32>
    %56 = vector.shape_cast %55 : vector<2x16x16x4xf32> to vector<512x4xf32>
    %57 = arith.truncf %56 : vector<512x4xf32> to vector<512x4xbf16>
    %c2_77 = arith.constant 2 : index
    %c1_78 = arith.constant 1 : index
    %c0_79 = arith.constant 0 : index
    %c0_80 = arith.constant 0 : index
    %58 = vector.load %arg4[%c2_77, %c1_78, %c0_79, %c0_80] : memref<3x3x4x8xbf16, #tpu.memory_space<vmem>>, vector<1x1x4x8xbf16>
    %59 = vector.shape_cast %58 : vector<1x1x4x8xbf16> to vector<4x8xbf16>
    %cst_81 = arith.constant dense<0.000000e+00> : vector<512x8xf32>
    %60 = tpu.matmul %57, %59, %cst_81 {dimension_numbers = #tpu.dot_dimension_numbers<[1], [0], [0], [1], [0, 0, 1, 1], [], []>} : vector<512x4xbf16>, vector<4x8xbf16>, vector<512x8xf32> -> vector<512x8xf32>
    %61 = arith.addf %54, %60 : vector<512x8xf32>
    %c0_82 = arith.constant 0 : index
    %c2_83 = arith.constant 2 : index
    %c2_84 = arith.constant 2 : index
    %c0_85 = arith.constant 0 : index
    %62 = vector.load %arg7[%c0_82, %c2_83, %c2_84, %c0_85] : memref<2x18x18x4xf32, #tpu.memory_space<vmem>>, vector<2x16x16x4xf32>
    %63 = vector.shape_cast %62 : vector<2x16x16x4xf32> to vector<512x4xf32>
    %64 = arith.truncf %63 : vector<512x4xf32> to vector<512x4xbf16>
    %c2_86 = arith.constant 2 : index
    %c2_87 = arith.constant 2 : index
    %c0_88 = arith.constant 0 : index
    %c0_89 = arith.constant 0 : index
    %65 = vector.load %arg4[%c2_86, %c2_87, %c0_88, %c0_89] : memref<3x3x4x8xbf16, #tpu.memory_space<vmem>>, vector<1x1x4x8xbf16>
    %66 = vector.shape_cast %65 : vector<1x1x4x8xbf16> to vector<4x8xbf16>
    %cst_90 = arith.constant dense<0.000000e+00> : vector<512x8xf32>
    %67 = tpu.matmul %64, %66, %cst_90 {dimension_numbers = #tpu.dot_dimension_numbers<[1], [0], [0], [1], [0, 0, 1, 1], [], []>} : vector<512x4xbf16>, vector<4x8xbf16>, vector<512x8xf32> -> vector<512x8xf32>
    %68 = arith.addf %61, %67 : vector<512x8xf32>
    %69 = vector.shape_cast %68 : vector<512x8xf32> to vector<2x16x16x8xf32>
    %70 = arith.truncf %69 : vector<2x16x16x8xf32> to vector<2x16x16x8xbf16>
    %c0_91 = arith.constant 0 : index
    %c0_92 = arith.constant 0 : index
    %c0_93 = arith.constant 0 : index
    %c0_94 = arith.constant 0 : index
    %71 = vector.load %arg5[%c0_91, %c0_92, %c0_93, %c0_94] : memref<2x16x16x8xbf16, #tpu.memory_space<vmem>>, vector<2x16x16x8xbf16>
    tpu.vector_store %arg5[%c0_91, %c0_92, %c0_93, %c0_94], %70 {strides = array<i32>} : memref<2x16x16x8xbf16, #tpu.memory_space<vmem>>, vector<2x16x16x8xbf16>,
    %cst_95 = arith.constant dense<0.000000e+00> : vector<8xf32>
    %72 = vector.multi_reduction <add>, %68, %cst_95 [0] : vector<512x8xf32> to vector<8xf32>
    %73 = vector.shape_cast %72 : vector<8xf32> to vector<1x8xf32>
    %74 = vector.shape_cast %73 : vector<1x8xf32> to vector<1x1x8xf32>
    %c0_96 = arith.constant 0 : index
    %c0_97 = arith.constant 0 : index
    %c0_98 = arith.constant 0 : index
    %75 = vector.load %arg6[%c0_96, %c0_97, %c0_98] : memref<1x2x8xf32, #tpu.memory_space<vmem>>, vector<1x1x8xf32>
    tpu.vector_store %arg6[%c0_96, %c0_97, %c0_98], %74 {strides = array<i32>} : memref<1x2x8xf32, #tpu.memory_space<vmem>>, vector<1x1x8xf32>,
    %76 = arith.mulf %68, %68 : vector<512x8xf32>
    %cst_99 = arith.constant dense<0.000000e+00> : vector<8xf32>
    %77 = vector.multi_reduction <add>, %76, %cst_99 [0] : vector<512x8xf32> to vector<8xf32>
    %78 = vector.shape_cast %77 : vector<8xf32> to vector<1x8xf32>
    %79 = vector.shape_cast %78 : vector<1x8xf32> to vector<1x1x8xf32>
    %c0_100 = arith.constant 0 : index
    %c1_101 = arith.constant 1 : index
    %c0_102 = arith.constant 0 : index
    %80 = vector.load %arg6[%c0_100, %c1_101, %c0_102] : memref<1x2x8xf32, #tpu.memory_space<vmem>>, vector<1x1x8xf32>
    tpu.vector_store %arg6[%c0_100, %c1_101, %c0_102], %79 {strides = array<i32>} : memref<1x2x8xf32, #tpu.memory_space<vmem>>, vector<1x1x8xf32>,
    return
  }
  func.func @transform_0(%arg0: i32) -> (i32, i32, i32, i32) {
    %c0_i32 = arith.constant 0 : i32
    %c0_i32_0 = arith.constant 0 : i32
    %c0_i32_1 = arith.constant 0 : i32
    %c0_i32_2 = arith.constant 0 : i32
    return %arg0, %c0_i32, %c0_i32_0, %c0_i32_1 : i32, i32, i32, i32
  }
  func.func @transform_1(%arg0: i32) -> (i32, i32, i32, i32) {
    %c0_i32 = arith.constant 0 : i32
    %c0_i32_0 = arith.constant 0 : i32
    %c0_i32_1 = arith.constant 0 : i32
    %c0_i32_2 = arith.constant 0 : i32
    %c0_i32_3 = arith.constant 0 : i32
    return %c0_i32, %c0_i32_0, %c0_i32_1, %c0_i32_2 : i32, i32, i32, i32
  }
  func.func @transform_2(%arg0: i32) -> (i32, i32, i32, i32) {
    %c0_i32 = arith.constant 0 : i32
    %c0_i32_0 = arith.constant 0 : i32
    %c0_i32_1 = arith.constant 0 : i32
    %c0_i32_2 = arith.constant 0 : i32
    %c0_i32_3 = arith.constant 0 : i32
    return %c0_i32, %c0_i32_0, %c0_i32_1, %c0_i32_2 : i32, i32, i32, i32
  }
  func.func @transform_3(%arg0: i32) -> (i32, i32, i32, i32) {
    %c0_i32 = arith.constant 0 : i32
    %c0_i32_0 = arith.constant 0 : i32
    %c0_i32_1 = arith.constant 0 : i32
    %c0_i32_2 = arith.constant 0 : i32
    %c0_i32_3 = arith.constant 0 : i32
    return %c0_i32, %c0_i32_0, %c0_i32_1, %c0_i32_2 : i32, i32, i32, i32
  }
  func.func @transform_4(%arg0: i32) -> (i32, i32, i32, i32) {
    %c0_i32 = arith.constant 0 : i32
    %c0_i32_0 = arith.constant 0 : i32
    %c0_i32_1 = arith.constant 0 : i32
    %c0_i32_2 = arith.constant 0 : i32
    return %arg0, %c0_i32, %c0_i32_0, %c0_i32_1 : i32, i32, i32, i32
  }
  func.func @transform_5(%arg0: i32) -> (i32, i32, i32) {
    %c0_i32 = arith.constant 0 : i32
    %c0_i32_0 = arith.constant 0 : i32
    %c0_i32_1 = arith.constant 0 : i32
    return %arg0, %c0_i32, %c0_i32_0 : i32, i32, i32
  }
}

module attributes {stable_mosaic.version = 11 : i64} {
  func.func @_bn_relu_kernel(%arg0: i32, %arg1: memref<2x16x128xbf16, #tpu.memory_space<vmem>>, %arg2: memref<1x1x128xf32, #tpu.memory_space<vmem>>, %arg3: memref<1x1x128xf32, #tpu.memory_space<vmem>>, %arg4: memref<2x16x128xf32, #tpu.memory_space<vmem>>) attributes {dimension_semantics = [#tpu.dimension_semantics<parallel>], iteration_bounds = array<i64: 1>, scalar_prefetch = 0 : i64, scratch_operands = 0 : i64, tpu.core_type = #tpu.core_type<tc>, window_params = [{transform_indices = @transform_0, window_bounds = array<i64: 2, 16, 128>}, {pipeline_mode = #tpu.pipeline_mode<synchronous>, transform_indices = @transform_1, window_bounds = array<i64: 1, 1, 128>}, {pipeline_mode = #tpu.pipeline_mode<synchronous>, transform_indices = @transform_2, window_bounds = array<i64: 1, 1, 128>}, {transform_indices = @transform_3, window_bounds = array<i64: 2, 16, 128>}]} {
    %c0 = arith.constant 0 : index
    %c0_0 = arith.constant 0 : index
    %c0_1 = arith.constant 0 : index
    %0 = vector.load %arg1[%c0, %c0_0, %c0_1] : memref<2x16x128xbf16, #tpu.memory_space<vmem>>, vector<2x16x128xbf16>
    %1 = arith.extf %0 : vector<2x16x128xbf16> to vector<2x16x128xf32>
    %c0_2 = arith.constant 0 : index
    %c0_3 = arith.constant 0 : index
    %c0_4 = arith.constant 0 : index
    %2 = vector.load %arg2[%c0_2, %c0_3, %c0_4] : memref<1x1x128xf32, #tpu.memory_space<vmem>>, vector<1x1x128xf32>
    %3 = vector.broadcast %2 : vector<1x1x128xf32> to vector<2x16x128xf32>
    %4 = arith.mulf %1, %3 : vector<2x16x128xf32>
    %c0_5 = arith.constant 0 : index
    %c0_6 = arith.constant 0 : index
    %c0_7 = arith.constant 0 : index
    %5 = vector.load %arg3[%c0_5, %c0_6, %c0_7] : memref<1x1x128xf32, #tpu.memory_space<vmem>>, vector<1x1x128xf32>
    %6 = vector.broadcast %5 : vector<1x1x128xf32> to vector<2x16x128xf32>
    %7 = arith.addf %4, %6 : vector<2x16x128xf32>
    %cst = arith.constant 0.000000e+00 : f32
    %8 = vector.broadcast %cst : f32 to vector<2x16x128xf32>
    %9 = arith.maximumf %7, %8 : vector<2x16x128xf32>
    %c0_8 = arith.constant 0 : index
    %c0_9 = arith.constant 0 : index
    %c0_10 = arith.constant 0 : index
    %10 = vector.load %arg4[%c0_8, %c0_9, %c0_10] : memref<2x16x128xf32, #tpu.memory_space<vmem>>, vector<2x16x128xf32>
    tpu.vector_store %arg4[%c0_8, %c0_9, %c0_10], %9 {strides = array<i32>} : memref<2x16x128xf32, #tpu.memory_space<vmem>>, vector<2x16x128xf32>,
    return
  }
  func.func @transform_0(%arg0: i32) -> (i32, i32, i32) {
    %c0_i32 = arith.constant 0 : i32
    %c0_i32_0 = arith.constant 0 : i32
    %c0_i32_1 = arith.constant 0 : i32
    return %arg0, %c0_i32, %c0_i32_0 : i32, i32, i32
  }
  func.func @transform_1(%arg0: i32) -> (i32, i32, i32) {
    %c0_i32 = arith.constant 0 : i32
    %c0_i32_0 = arith.constant 0 : i32
    %c0_i32_1 = arith.constant 0 : i32
    %c0_i32_2 = arith.constant 0 : i32
    return %c0_i32, %c0_i32_0, %c0_i32_1 : i32, i32, i32
  }
  func.func @transform_2(%arg0: i32) -> (i32, i32, i32) {
    %c0_i32 = arith.constant 0 : i32
    %c0_i32_0 = arith.constant 0 : i32
    %c0_i32_1 = arith.constant 0 : i32
    %c0_i32_2 = arith.constant 0 : i32
    return %c0_i32, %c0_i32_0, %c0_i32_1 : i32, i32, i32
  }
  func.func @transform_3(%arg0: i32) -> (i32, i32, i32) {
    %c0_i32 = arith.constant 0 : i32
    %c0_i32_0 = arith.constant 0 : i32
    %c0_i32_1 = arith.constant 0 : i32
    return %arg0, %c0_i32, %c0_i32_0 : i32, i32, i32
  }
}

module attributes {stable_mosaic.version = 11 : i64} {
  func.func @_conv3x3_kernel(%arg0: i32, %arg1: memref<2x16x16x8xbf16, #tpu.memory_space<vmem>>, %arg2: memref<1x1x1x8xf32, #tpu.memory_space<vmem>>, %arg3: memref<1x1x1x8xf32, #tpu.memory_space<vmem>>, %arg4: memref<3x3x8x8xbf16, #tpu.memory_space<vmem>>, %arg5: memref<2x16x16x8xbf16, #tpu.memory_space<vmem>>, %arg6: memref<1x2x8xf32, #tpu.memory_space<vmem>>, %arg7: memref<2x18x18x8xf32, #tpu.memory_space<vmem>>) attributes {dimension_semantics = [#tpu.dimension_semantics<parallel>], iteration_bounds = array<i64: 1>, scalar_prefetch = 0 : i64, scratch_operands = 1 : i64, tpu.core_type = #tpu.core_type<tc>, window_params = [{transform_indices = @transform_0, window_bounds = array<i64: 2, 16, 16, 8>}, {pipeline_mode = #tpu.pipeline_mode<synchronous>, transform_indices = @transform_1, window_bounds = array<i64: 1, 1, 1, 8>}, {pipeline_mode = #tpu.pipeline_mode<synchronous>, transform_indices = @transform_2, window_bounds = array<i64: 1, 1, 1, 8>}, {pipeline_mode = #tpu.pipeline_mode<synchronous>, transform_indices = @transform_3, window_bounds = array<i64: 3, 3, 8, 8>}, {transform_indices = @transform_4, window_bounds = array<i64: 2, 16, 16, 8>}, {transform_indices = @transform_5, window_bounds = array<i64: 1, 2, 8>}]} {
    %cst = arith.constant 0.000000e+00 : f32
    %0 = vector.broadcast %cst : f32 to vector<2x18x18x8xf32>
    %c0 = arith.constant 0 : index
    %c0_0 = arith.constant 0 : index
    %c0_1 = arith.constant 0 : index
    %c0_2 = arith.constant 0 : index
    %1 = vector.load %arg7[%c0, %c0_0, %c0_1, %c0_2] : memref<2x18x18x8xf32, #tpu.memory_space<vmem>>, vector<2x18x18x8xf32>
    tpu.vector_store %arg7[%c0, %c0_0, %c0_1, %c0_2], %0 {strides = array<i32>} : memref<2x18x18x8xf32, #tpu.memory_space<vmem>>, vector<2x18x18x8xf32>,
    %c0_3 = arith.constant 0 : index
    %c0_4 = arith.constant 0 : index
    %c0_5 = arith.constant 0 : index
    %c0_6 = arith.constant 0 : index
    %2 = vector.load %arg1[%c0_3, %c0_4, %c0_5, %c0_6] : memref<2x16x16x8xbf16, #tpu.memory_space<vmem>>, vector<2x16x16x8xbf16>
    %3 = arith.extf %2 : vector<2x16x16x8xbf16> to vector<2x16x16x8xf32>
    %c0_7 = arith.constant 0 : index
    %c0_8 = arith.constant 0 : index
    %c0_9 = arith.constant 0 : index
    %c0_10 = arith.constant 0 : index
    %4 = vector.load %arg2[%c0_7, %c0_8, %c0_9, %c0_10] : memref<1x1x1x8xf32, #tpu.memory_space<vmem>>, vector<1x1x1x8xf32>
    %5 = vector.broadcast %4 : vector<1x1x1x8xf32> to vector<2x16x16x8xf32>
    %6 = arith.mulf %3, %5 : vector<2x16x16x8xf32>
    %c0_11 = arith.constant 0 : index
    %c0_12 = arith.constant 0 : index
    %c0_13 = arith.constant 0 : index
    %c0_14 = arith.constant 0 : index
    %7 = vector.load %arg3[%c0_11, %c0_12, %c0_13, %c0_14] : memref<1x1x1x8xf32, #tpu.memory_space<vmem>>, vector<1x1x1x8xf32>
    %8 = vector.broadcast %7 : vector<1x1x1x8xf32> to vector<2x16x16x8xf32>
    %9 = arith.addf %6, %8 : vector<2x16x16x8xf32>
    %cst_15 = arith.constant 0.000000e+00 : f32
    %10 = vector.broadcast %cst_15 : f32 to vector<2x16x16x8xf32>
    %11 = arith.maximumf %9, %10 : vector<2x16x16x8xf32>
    %c0_16 = arith.constant 0 : index
    %c1 = arith.constant 1 : index
    %c1_17 = arith.constant 1 : index
    %c0_18 = arith.constant 0 : index
    %12 = vector.load %arg7[%c0_16, %c1, %c1_17, %c0_18] : memref<2x18x18x8xf32, #tpu.memory_space<vmem>>, vector<2x16x16x8xf32>
    tpu.vector_store %arg7[%c0_16, %c1, %c1_17, %c0_18], %11 {strides = array<i32>} : memref<2x18x18x8xf32, #tpu.memory_space<vmem>>, vector<2x16x16x8xf32>,
    %cst_19 = arith.constant 0.000000e+00 : f32
    %13 = vector.broadcast %cst_19 : f32 to vector<512x8xf32>
    %c0_20 = arith.constant 0 : index
    %c0_21 = arith.constant 0 : index
    %c0_22 = arith.constant 0 : index
    %c0_23 = arith.constant 0 : index
    %14 = vector.load %arg7[%c0_20, %c0_21, %c0_22, %c0_23] : memref<2x18x18x8xf32, #tpu.memory_space<vmem>>, vector<2x16x16x8xf32>
    %15 = vector.shape_cast %14 : vector<2x16x16x8xf32> to vector<512x8xf32>
    %16 = arith.truncf %15 : vector<512x8xf32> to vector<512x8xbf16>
    %c0_24 = arith.constant 0 : index
    %c0_25 = arith.constant 0 : index
    %c0_26 = arith.constant 0 : index
    %c0_27 = arith.constant 0 : index
    %17 = vector.load %arg4[%c0_24, %c0_25, %c0_26, %c0_27] : memref<3x3x8x8xbf16, #tpu.memory_space<vmem>>, vector<1x1x8x8xbf16>
    %18 = vector.shape_cast %17 : vector<1x1x8x8xbf16> to vector<8x8xbf16>
    %cst_28 = arith.constant dense<0.000000e+00> : vector<512x8xf32>
    %19 = tpu.matmul %16, %18, %cst_28 {dimension_numbers = #tpu.dot_dimension_numbers<[1], [0], [0], [1], [0, 0, 1, 1], [], []>} : vector<512x8xbf16>, vector<8x8xbf16>, vector<512x8xf32> -> vector<512x8xf32>
    %20 = arith.addf %13, %19 : vector<512x8xf32>
    %c0_29 = arith.constant 0 : index
    %c0_30 = arith.constant 0 : index
    %c1_31 = arith.constant 1 : index
    %c0_32 = arith.constant 0 : index
    %21 = vector.load %arg7[%c0_29, %c0_30, %c1_31, %c0_32] : memref<2x18x18x8xf32, #tpu.memory_space<vmem>>, vector<2x16x16x8xf32>
    %22 = vector.shape_cast %21 : vector<2x16x16x8xf32> to vector<512x8xf32>
    %23 = arith.truncf %22 : vector<512x8xf32> to vector<512x8xbf16>
    %c0_33 = arith.constant 0 : index
    %c1_34 = arith.constant 1 : index
    %c0_35 = arith.constant 0 : index
    %c0_36 = arith.constant 0 : index
    %24 = vector.load %arg4[%c0_33, %c1_34, %c0_35, %c0_36] : memref<3x3x8x8xbf16, #tpu.memory_space<vmem>>, vector<1x1x8x8xbf16>
    %25 = vector.shape_cast %24 : vector<1x1x8x8xbf16> to vector<8x8xbf16>
    %cst_37 = arith.constant dense<0.000000e+00> : vector<512x8xf32>
    %26 = tpu.matmul %23, %25, %cst_37 {dimension_numbers = #tpu.dot_dimension_numbers<[1], [0], [0], [1], [0, 0, 1, 1], [], []>} : vector<512x8xbf16>, vector<8x8xbf16>, vector<512x8xf32> -> vector<512x8xf32>
    %27 = arith.addf %20, %26 : vector<512x8xf32>
    %c0_38 = arith.constant 0 : index
    %c0_39 = arith.constant 0 : index
    %c2 = arith.constant 2 : index
    %c0_40 = arith.constant 0 : index
    %28 = vector.load %arg7[%c0_38, %c0_39, %c2, %c0_40] : memref<2x18x18x8xf32, #tpu.memory_space<vmem>>, vector<2x16x16x8xf32>
    %29 = vector.shape_cast %28 : vector<2x16x16x8xf32> to vector<512x8xf32>
    %30 = arith.truncf %29 : vector<512x8xf32> to vector<512x8xbf16>
    %c0_41 = arith.constant 0 : index
    %c2_42 = arith.constant 2 : index
    %c0_43 = arith.constant 0 : index
    %c0_44 = arith.constant 0 : index
    %31 = vector.load %arg4[%c0_41, %c2_42, %c0_43, %c0_44] : memref<3x3x8x8xbf16, #tpu.memory_space<vmem>>, vector<1x1x8x8xbf16>
    %32 = vector.shape_cast %31 : vector<1x1x8x8xbf16> to vector<8x8xbf16>
    %cst_45 = arith.constant dense<0.000000e+00> : vector<512x8xf32>
    %33 = tpu.matmul %30, %32, %cst_45 {dimension_numbers = #tpu.dot_dimension_numbers<[1], [0], [0], [1], [0, 0, 1, 1], [], []>} : vector<512x8xbf16>, vector<8x8xbf16>, vector<512x8xf32> -> vector<512x8xf32>
    %34 = arith.addf %27, %33 : vector<512x8xf32>
    %c0_46 = arith.constant 0 : index
    %c1_47 = arith.constant 1 : index
    %c0_48 = arith.constant 0 : index
    %c0_49 = arith.constant 0 : index
    %35 = vector.load %arg7[%c0_46, %c1_47, %c0_48, %c0_49] : memref<2x18x18x8xf32, #tpu.memory_space<vmem>>, vector<2x16x16x8xf32>
    %36 = vector.shape_cast %35 : vector<2x16x16x8xf32> to vector<512x8xf32>
    %37 = arith.truncf %36 : vector<512x8xf32> to vector<512x8xbf16>
    %c1_50 = arith.constant 1 : index
    %c0_51 = arith.constant 0 : index
    %c0_52 = arith.constant 0 : index
    %c0_53 = arith.constant 0 : index
    %38 = vector.load %arg4[%c1_50, %c0_51, %c0_52, %c0_53] : memref<3x3x8x8xbf16, #tpu.memory_space<vmem>>, vector<1x1x8x8xbf16>
    %39 = vector.shape_cast %38 : vector<1x1x8x8xbf16> to vector<8x8xbf16>
    %cst_54 = arith.constant dense<0.000000e+00> : vector<512x8xf32>
    %40 = tpu.matmul %37, %39, %cst_54 {dimension_numbers = #tpu.dot_dimension_numbers<[1], [0], [0], [1], [0, 0, 1, 1], [], []>} : vector<512x8xbf16>, vector<8x8xbf16>, vector<512x8xf32> -> vector<512x8xf32>
    %41 = arith.addf %34, %40 : vector<512x8xf32>
    %c0_55 = arith.constant 0 : index
    %c1_56 = arith.constant 1 : index
    %c1_57 = arith.constant 1 : index
    %c0_58 = arith.constant 0 : index
    %42 = vector.load %arg7[%c0_55, %c1_56, %c1_57, %c0_58] : memref<2x18x18x8xf32, #tpu.memory_space<vmem>>, vector<2x16x16x8xf32>
    %43 = vector.shape_cast %42 : vector<2x16x16x8xf32> to vector<512x8xf32>
    %44 = arith.truncf %43 : vector<512x8xf32> to vector<512x8xbf16>
    %c1_59 = arith.constant 1 : index
    %c1_60 = arith.constant 1 : index
    %c0_61 = arith.constant 0 : index
    %c0_62 = arith.constant 0 : index
    %45 = vector.load %arg4[%c1_59, %c1_60, %c0_61, %c0_62] : memref<3x3x8x8xbf16, #tpu.memory_space<vmem>>, vector<1x1x8x8xbf16>
    %46 = vector.shape_cast %45 : vector<1x1x8x8xbf16> to vector<8x8xbf16>
    %cst_63 = arith.constant dense<0.000000e+00> : vector<512x8xf32>
    %47 = tpu.matmul %44, %46, %cst_63 {dimension_numbers = #tpu.dot_dimension_numbers<[1], [0], [0], [1], [0, 0, 1, 1], [], []>} : vector<512x8xbf16>, vector<8x8xbf16>, vector<512x8xf32> -> vector<512x8xf32>
    %48 = arith.addf %41, %47 : vector<512x8xf32>
    %c0_64 = arith.constant 0 : index
    %c1_65 = arith.constant 1 : index
    %c2_66 = arith.constant 2 : index
    %c0_67 = arith.constant 0 : index
    %49 = vector.load %arg7[%c0_64, %c1_65, %c2_66, %c0_67] : memref<2x18x18x8xf32, #tpu.memory_space<vmem>>, vector<2x16x16x8xf32>
    %50 = vector.shape_cast %49 : vector<2x16x16x8xf32> to vector<512x8xf32>
    %51 = arith.truncf %50 : vector<512x8xf32> to vector<512x8xbf16>
    %c1_68 = arith.constant 1 : index
    %c2_69 = arith.constant 2 : index
    %c0_70 = arith.constant 0 : index
    %c0_71 = arith.constant 0 : index
    %52 = vector.load %arg4[%c1_68, %c2_69, %c0_70, %c0_71] : memref<3x3x8x8xbf16, #tpu.memory_space<vmem>>, vector<1x1x8x8xbf16>
    %53 = vector.shape_cast %52 : vector<1x1x8x8xbf16> to vector<8x8xbf16>
    %cst_72 = arith.constant dense<0.000000e+00> : vector<512x8xf32>
    %54 = tpu.matmul %51, %53, %cst_72 {dimension_numbers = #tpu.dot_dimension_numbers<[1], [0], [0], [1], [0, 0, 1, 1], [], []>} : vector<512x8xbf16>, vector<8x8xbf16>, vector<512x8xf32> -> vector<512x8xf32>
    %55 = arith.addf %48, %54 : vector<512x8xf32>
    %c0_73 = arith.constant 0 : index
    %c2_74 = arith.constant 2 : index
    %c0_75 = arith.constant 0 : index
    %c0_76 = arith.constant 0 : index
    %56 = vector.load %arg7[%c0_73, %c2_74, %c0_75, %c0_76] : memref<2x18x18x8xf32, #tpu.memory_space<vmem>>, vector<2x16x16x8xf32>
    %57 = vector.shape_cast %56 : vector<2x16x16x8xf32> to vector<512x8xf32>
    %58 = arith.truncf %57 : vector<512x8xf32> to vector<512x8xbf16>
    %c2_77 = arith.constant 2 : index
    %c0_78 = arith.constant 0 : index
    %c0_79 = arith.constant 0 : index
    %c0_80 = arith.constant 0 : index
    %59 = vector.load %arg4[%c2_77, %c0_78, %c0_79, %c0_80] : memref<3x3x8x8xbf16, #tpu.memory_space<vmem>>, vector<1x1x8x8xbf16>
    %60 = vector.shape_cast %59 : vector<1x1x8x8xbf16> to vector<8x8xbf16>
    %cst_81 = arith.constant dense<0.000000e+00> : vector<512x8xf32>
    %61 = tpu.matmul %58, %60, %cst_81 {dimension_numbers = #tpu.dot_dimension_numbers<[1], [0], [0], [1], [0, 0, 1, 1], [], []>} : vector<512x8xbf16>, vector<8x8xbf16>, vector<512x8xf32> -> vector<512x8xf32>
    %62 = arith.addf %55, %61 : vector<512x8xf32>
    %c0_82 = arith.constant 0 : index
    %c2_83 = arith.constant 2 : index
    %c1_84 = arith.constant 1 : index
    %c0_85 = arith.constant 0 : index
    %63 = vector.load %arg7[%c0_82, %c2_83, %c1_84, %c0_85] : memref<2x18x18x8xf32, #tpu.memory_space<vmem>>, vector<2x16x16x8xf32>
    %64 = vector.shape_cast %63 : vector<2x16x16x8xf32> to vector<512x8xf32>
    %65 = arith.truncf %64 : vector<512x8xf32> to vector<512x8xbf16>
    %c2_86 = arith.constant 2 : index
    %c1_87 = arith.constant 1 : index
    %c0_88 = arith.constant 0 : index
    %c0_89 = arith.constant 0 : index
    %66 = vector.load %arg4[%c2_86, %c1_87, %c0_88, %c0_89] : memref<3x3x8x8xbf16, #tpu.memory_space<vmem>>, vector<1x1x8x8xbf16>
    %67 = vector.shape_cast %66 : vector<1x1x8x8xbf16> to vector<8x8xbf16>
    %cst_90 = arith.constant dense<0.000000e+00> : vector<512x8xf32>
    %68 = tpu.matmul %65, %67, %cst_90 {dimension_numbers = #tpu.dot_dimension_numbers<[1], [0], [0], [1], [0, 0, 1, 1], [], []>} : vector<512x8xbf16>, vector<8x8xbf16>, vector<512x8xf32> -> vector<512x8xf32>
    %69 = arith.addf %62, %68 : vector<512x8xf32>
    %c0_91 = arith.constant 0 : index
    %c2_92 = arith.constant 2 : index
    %c2_93 = arith.constant 2 : index
    %c0_94 = arith.constant 0 : index
    %70 = vector.load %arg7[%c0_91, %c2_92, %c2_93, %c0_94] : memref<2x18x18x8xf32, #tpu.memory_space<vmem>>, vector<2x16x16x8xf32>
    %71 = vector.shape_cast %70 : vector<2x16x16x8xf32> to vector<512x8xf32>
    %72 = arith.truncf %71 : vector<512x8xf32> to vector<512x8xbf16>
    %c2_95 = arith.constant 2 : index
    %c2_96 = arith.constant 2 : index
    %c0_97 = arith.constant 0 : index
    %c0_98 = arith.constant 0 : index
    %73 = vector.load %arg4[%c2_95, %c2_96, %c0_97, %c0_98] : memref<3x3x8x8xbf16, #tpu.memory_space<vmem>>, vector<1x1x8x8xbf16>
    %74 = vector.shape_cast %73 : vector<1x1x8x8xbf16> to vector<8x8xbf16>
    %cst_99 = arith.constant dense<0.000000e+00> : vector<512x8xf32>
    %75 = tpu.matmul %72, %74, %cst_99 {dimension_numbers = #tpu.dot_dimension_numbers<[1], [0], [0], [1], [0, 0, 1, 1], [], []>} : vector<512x8xbf16>, vector<8x8xbf16>, vector<512x8xf32> -> vector<512x8xf32>
    %76 = arith.addf %69, %75 : vector<512x8xf32>
    %77 = vector.shape_cast %76 : vector<512x8xf32> to vector<2x16x16x8xf32>
    %78 = arith.truncf %77 : vector<2x16x16x8xf32> to vector<2x16x16x8xbf16>
    %c0_100 = arith.constant 0 : index
    %c0_101 = arith.constant 0 : index
    %c0_102 = arith.constant 0 : index
    %c0_103 = arith.constant 0 : index
    %79 = vector.load %arg5[%c0_100, %c0_101, %c0_102, %c0_103] : memref<2x16x16x8xbf16, #tpu.memory_space<vmem>>, vector<2x16x16x8xbf16>
    tpu.vector_store %arg5[%c0_100, %c0_101, %c0_102, %c0_103], %78 {strides = array<i32>} : memref<2x16x16x8xbf16, #tpu.memory_space<vmem>>, vector<2x16x16x8xbf16>,
    %cst_104 = arith.constant dense<0.000000e+00> : vector<8xf32>
    %80 = vector.multi_reduction <add>, %76, %cst_104 [0] : vector<512x8xf32> to vector<8xf32>
    %81 = vector.shape_cast %80 : vector<8xf32> to vector<1x8xf32>
    %82 = vector.shape_cast %81 : vector<1x8xf32> to vector<1x1x8xf32>
    %c0_105 = arith.constant 0 : index
    %c0_106 = arith.constant 0 : index
    %c0_107 = arith.constant 0 : index
    %83 = vector.load %arg6[%c0_105, %c0_106, %c0_107] : memref<1x2x8xf32, #tpu.memory_space<vmem>>, vector<1x1x8xf32>
    tpu.vector_store %arg6[%c0_105, %c0_106, %c0_107], %82 {strides = array<i32>} : memref<1x2x8xf32, #tpu.memory_space<vmem>>, vector<1x1x8xf32>,
    %84 = arith.mulf %76, %76 : vector<512x8xf32>
    %cst_108 = arith.constant dense<0.000000e+00> : vector<8xf32>
    %85 = vector.multi_reduction <add>, %84, %cst_108 [0] : vector<512x8xf32> to vector<8xf32>
    %86 = vector.shape_cast %85 : vector<8xf32> to vector<1x8xf32>
    %87 = vector.shape_cast %86 : vector<1x8xf32> to vector<1x1x8xf32>
    %c0_109 = arith.constant 0 : index
    %c1_110 = arith.constant 1 : index
    %c0_111 = arith.constant 0 : index
    %88 = vector.load %arg6[%c0_109, %c1_110, %c0_111] : memref<1x2x8xf32, #tpu.memory_space<vmem>>, vector<1x1x8xf32>
    tpu.vector_store %arg6[%c0_109, %c1_110, %c0_111], %87 {strides = array<i32>} : memref<1x2x8xf32, #tpu.memory_space<vmem>>, vector<1x1x8xf32>,
    return
  }
  func.func @transform_0(%arg0: i32) -> (i32, i32, i32, i32) {
    %c0_i32 = arith.constant 0 : i32
    %c0_i32_0 = arith.constant 0 : i32
    %c0_i32_1 = arith.constant 0 : i32
    %c0_i32_2 = arith.constant 0 : i32
    return %arg0, %c0_i32, %c0_i32_0, %c0_i32_1 : i32, i32, i32, i32
  }
  func.func @transform_1(%arg0: i32) -> (i32, i32, i32, i32) {
    %c0_i32 = arith.constant 0 : i32
    %c0_i32_0 = arith.constant 0 : i32
    %c0_i32_1 = arith.constant 0 : i32
    %c0_i32_2 = arith.constant 0 : i32
    %c0_i32_3 = arith.constant 0 : i32
    return %c0_i32, %c0_i32_0, %c0_i32_1, %c0_i32_2 : i32, i32, i32, i32
  }
  func.func @transform_2(%arg0: i32) -> (i32, i32, i32, i32) {
    %c0_i32 = arith.constant 0 : i32
    %c0_i32_0 = arith.constant 0 : i32
    %c0_i32_1 = arith.constant 0 : i32
    %c0_i32_2 = arith.constant 0 : i32
    %c0_i32_3 = arith.constant 0 : i32
    return %c0_i32, %c0_i32_0, %c0_i32_1, %c0_i32_2 : i32, i32, i32, i32
  }
  func.func @transform_3(%arg0: i32) -> (i32, i32, i32, i32) {
    %c0_i32 = arith.constant 0 : i32
    %c0_i32_0 = arith.constant 0 : i32
    %c0_i32_1 = arith.constant 0 : i32
    %c0_i32_2 = arith.constant 0 : i32
    %c0_i32_3 = arith.constant 0 : i32
    return %c0_i32, %c0_i32_0, %c0_i32_1, %c0_i32_2 : i32, i32, i32, i32
  }
  func.func @transform_4(%arg0: i32) -> (i32, i32, i32, i32) {
    %c0_i32 = arith.constant 0 : i32
    %c0_i32_0 = arith.constant 0 : i32
    %c0_i32_1 = arith.constant 0 : i32
    %c0_i32_2 = arith.constant 0 : i32
    return %arg0, %c0_i32, %c0_i32_0, %c0_i32_1 : i32, i32, i32, i32
  }
  func.func @transform_5(%arg0: i32) -> (i32, i32, i32) {
    %c0_i32 = arith.constant 0 : i32
    %c0_i32_0 = arith.constant 0 : i32
    %c0_i32_1 = arith.constant 0 : i32
    return %arg0, %c0_i32, %c0_i32_0 : i32, i32, i32
  }
}

</mosaic_0001>

<llo_original>
// kernel: tile.13
$region0: #{tile.13}
  #allocation0 [shape = 's32[1]{0}', space=sflag, size = 0x4, scoped, tag = 'scoped memory for tile.13']
  %s0 = inlined_call_operand.vmem [shape: f32[8], index: 0, kind: input, shape index: {}]
  %s1 = inlined_call_operand.vmem [shape: f32[16,8], index: 1, kind: output, shape index: {}]
  // Predicated region
  $region2: #{tile.13} parent=0 // pred_check
    _
  $region3: #{tile.13} parent=0 // pred_check_branch
    %3 = sbr.rel (0) target = $region5
  $region4: #{tile.13} parent=0 // pred_region
    _
  $region5: #{tile.13} parent=0 // pred_fallthru
    _
  %v4 = vld [vmem:[%s0] ss:$0 sm:$0xff]
  %5 = vst [vmem:[%s1] sm:$0xff] %v4
  %s6 = scalar_lea.vmem %s1, 8
  %7 = vst [vmem:[%s6] sm:$0xff] %v4

// kernel: tile.14
$region0: #{tile.14}
  %s0 = inlined_call_operand.vmem [shape: f32[16,8], index: 0, kind: input, shape index: {}]
  %s1 = inlined_call_operand.vmem [shape: f32[1,1,128], index: 1, kind: output, shape index: {}]
  $region1: #{tile.14} parent=0
    #allocation0 [shape = 'u8[4096]{0}', space=vmem, size = 0x1000, scoped, tag = 'scoped mem for output reshape']
    %v2 = vld [vmem:[%s0] sm:$0x1]
    %vm3 = vcmask 64512
    %4 = vst.msk [vmem:[#allocation0] sm:$0x1] %vm3, %v2
    %s5 = scalar_lea.vmem %s0, 15
    %v6 = vld [vmem:[%s5] sm:$0x1]
    %7 = vrot.lane.b32.xlu0 %v6, 120
    %v8 = vpop.permute.xlu0 %7
    %vm9 = vcmask 1048512
    %10 = vst.msk [vmem:[#allocation0] sm:$0x1] %vm9, %v8
    %s11 = scalar_lea.vmem %s0, 14
    %v12 = vld [vmem:[%s11] sm:$0x1]
    %13 = vrot.lane.b32.xlu0 %v12, 112
    %v14 = vpop.permute.xlu0 %13
    %vm15 = vcmask 982912
    %16 = vst.msk [vmem:[#allocation0] sm:$0x1] %vm15, %v14
    %s17 = scalar_lea.vmem %s0, 13
    %v18 = vld [vmem:[%s17] sm:$0x1]
    %19 = vrot.lane.b32.xlu0 %v18, 104
    %v20 = vpop.permute.xlu0 %19
    %vm21 = vcmask 917312
    %22 = vst.msk [vmem:[#allocation0] sm:$0x1] %vm21, %v20
    %s23 = scalar_lea.vmem %s0, 12
    %v24 = vld [vmem:[%s23] sm:$0x1]
    %25 = vrot.lane.b32.xlu0 %v24, 96
    %v26 = vpop.permute.xlu0 %25
    %vm27 = vcmask 851712
    %28 = vst.msk [vmem:[#allocation0] sm:$0x1] %vm27, %v26
    %s29 = scalar_lea.vmem %s0, 11
    %v30 = vld [vmem:[%s29] sm:$0x1]
    %31 = vrot.lane.b32.xlu0 %v30, 88
    %v32 = vpop.permute.xlu0 %31
    %vm33 = vcmask 786112
    %34 = vst.msk [vmem:[#allocation0] sm:$0x1] %vm33, %v32
    %s35 = scalar_lea.vmem %s0, 10
    %v36 = vld [vmem:[%s35] sm:$0x1]
    %37 = vrot.lane.b32.xlu0 %v36, 80
    %v38 = vpop.permute.xlu0 %37
    %vm39 = vcmask 720512
    %40 = vst.msk [vmem:[#allocation0] sm:$0x1] %vm39, %v38
    %s41 = scalar_lea.vmem %s0, 9
    %v42 = vld [vmem:[%s41] sm:$0x1]
    %43 = vrot.lane.b32.xlu0 %v42, 72
    %v44 = vpop.permute.xlu0 %43
    %vm45 = vcmask 654912
    %46 = vst.msk [vmem:[#allocation0] sm:$0x1] %vm45, %v44
    %s47 = scalar_lea.vmem %s0, 8
    %v48 = vld [vmem:[%s47] sm:$0x1]
    %49 = vrot.lane.b32.xlu0 %v48, 64
    %v50 = vpop.permute.xlu0 %49
    %vm51 = vcmask 589312
    %52 = vst.msk [vmem:[#allocation0] sm:$0x1] %vm51, %v50
    %s53 = scalar_lea.vmem %s0, 7
    %v54 = vld [vmem:[%s53] sm:$0x1]
    %55 = vrot.lane.b32.xlu0 %v54, 56
    %v56 = vpop.permute.xlu0 %55
    %vm57 = vcmask 523712
    %58 = vst.msk [vmem:[#allocation0] sm:$0x1] %vm57, %v56
    %s59 = scalar_lea.vmem %s0, 6
    %v60 = vld [vmem:[%s59] sm:$0x1]
    %61 = vrot.lane.b32.xlu0 %v60, 48
    %v62 = vpop.permute.xlu0 %61
    %vm63 = vcmask 458112
    %64 = vst.msk [vmem:[#allocation0] sm:$0x1] %vm63, %v62
    %s65 = scalar_lea.vmem %s0, 5
    %v66 = vld [vmem:[%s65] sm:$0x1]
    %67 = vrot.lane.b32.xlu0 %v66, 40
    %v68 = vpop.permute.xlu0 %67
    %vm69 = vcmask 392512
    %70 = vst.msk [vmem:[#allocation0] sm:$0x1] %vm69, %v68
    %s71 = scalar_lea.vmem %s0, 4
    %v72 = vld [vmem:[%s71] sm:$0x1]
    %73 = vrot.lane.b32.xlu0 %v72, 32
    %v74 = vpop.permute.xlu0 %73
    %vm75 = vcmask 326912
    %76 = vst.msk [vmem:[#allocation0] sm:$0x1] %vm75, %v74
    %s77 = scalar_lea.vmem %s0, 3
    %v78 = vld [vmem:[%s77] sm:$0x1]
    %79 = vrot.lane.b32.xlu0 %v78, 24
    %v80 = vpop.permute.xlu0 %79
    %vm81 = vcmask 261312
    %82 = vst.msk [vmem:[#allocation0] sm:$0x1] %vm81, %v80
    %s83 = scalar_lea.vmem %s0, 2
    %v84 = vld [vmem:[%s83] sm:$0x1]
    %85 = vrot.lane.b32.xlu0 %v84, 16
    %v86 = vpop.permute.xlu0 %85
    %vm87 = vcmask 195712
    %88 = vst.msk [vmem:[#allocation0] sm:$0x1] %vm87, %v86
    %s89 = scalar_lea.vmem %s0, 1
    %v90 = vld [vmem:[%s89] sm:$0x1]
    %91 = vrot.lane.b32.xlu0 %v90, 8
    %v92 = vpop.permute.xlu0 %91
    %vm93 = vcmask 130112
    %94 = vst.msk [vmem:[#allocation0] sm:$0x1] %vm93, %v92
    %s96 = ssub.s32 2, 1
    %v97 = vld [vmem:[#allocation0] sm:%s96]
    %s99 = ssub.s32 2, 1
    %100 = vst [vmem:[%s1] sm:%s99] %v97

// kernel: double_conv.5
$region0: #{double_conv.5}
  #allocation0 [shape = 'u32[]', space=smem, size = 0x4, offset = 0x4, fixed_abs, tag = 'smem constant byte address 0x4 - core index']
  #allocation1 [shape = 'u32[72,128]{1,0:T(1,128)}', space=vmem, size = 0x9000, scoped, tag = 'internal scratch']
  %s0 = inlined_call_operand.vmem [shape: bf16[2,16,128], index: 0, kind: input, shape index: {}]
  %s1 = inlined_call_operand.vmem [shape: f32[1,1,128], index: 1, kind: input, shape index: {}]
  %s2 = inlined_call_operand.vmem [shape: f32[1,1,128], index: 2, kind: input, shape index: {}]
  %s3 = inlined_call_operand.vmem [shape: f32[2,16,128], index: 3, kind: output, shape index: {}]
  %s4 = sld [smem:[#allocation0]]
  $region22: #{double_conv.5} parent=0
    _
  %s6 = ssub.s32 1, %s4
  %s7 = scalar_select 0, %s6, %s4
  // Predicated region
  $region2: #{double_conv.5} parent=0 // pred_check
    _
  $region3: #{double_conv.5} parent=0 // pred_check_branch
    %9 = sbr.rel (0) target = $region5
  $region4: #{double_conv.5} parent=0 // pred_region
    _
  $region5: #{double_conv.5} parent=0 // pred_fallthru
    _
  // Predicated region
  $region6: #{double_conv.5} parent=0 // pred_check
    _
  $region7: #{double_conv.5} parent=0 // pred_check_branch
    %11 = sbr.rel (0) target = $region9
  $region8: #{double_conv.5} parent=0 // pred_region
    _
  $region9: #{double_conv.5} parent=0 // pred_fallthru
    _
  // Predicated region
  $region10: #{double_conv.5} parent=0 // pred_check
    _
  $region11: #{double_conv.5} parent=0 // pred_check_branch
    %13 = sbr.rel (0) target = $region13
  $region12: #{double_conv.5} parent=0 // pred_region
    _
  $region13: #{double_conv.5} parent=0 // pred_fallthru
    _
  %v14 = vld [vmem:[%s0] sm:$0xf]
  %v15 = vld [vmem:[%s0 + $0x4] sm:$0xf]
  %v16 = vld [vmem:[%s0 + $0x8] sm:$0xf]
  %v17 = vld [vmem:[%s0 + $0xc] sm:$0xf]
  %v18 = vunpack.c.l.bf16 %v14
  %v19 = vunpack.c.l.bf16 %v15
  %v20 = vunpack.c.l.bf16 %v16
  %v21 = vunpack.c.l.bf16 %v17
  %v22 = vld [vmem:[%s1] sm:$0x1]
  %v24 = vperm.slane %v22, 0
  %v26 = vmul.f32 %v18, %v24
  %v27 = vmul.f32 %v19, %v24
  %v28 = vmul.f32 %v20, %v24
  %v29 = vmul.f32 %v21, %v24
  %v30 = vld [vmem:[%s2] sm:$0x1]
  %v32 = vperm.slane %v30, 0
  %v34 = vadd.f32 %v26, %v32
  %v35 = vadd.f32 %v27, %v32
  %v36 = vadd.f32 %v28, %v32
  %v37 = vadd.f32 %v29, %v32
  %v38 = vmax.f32 %v34, 0.0
  %v39 = vmax.f32 %v35, 0.0
  %v40 = vmax.f32 %v36, 0.0
  %v41 = vmax.f32 %v37, 0.0
  %42 = vst [vmem:[%s3] sm:$0xff] %v38
  %43 = vst [vmem:[%s3 + $0x8] sm:$0xff] %v39
  %44 = vst [vmem:[%s3 + $0x10] sm:$0xff] %v40
  %45 = vst [vmem:[%s3 + $0x18] sm:$0xff] %v41
  // Predicated region
  $region14: #{double_conv.5} parent=0 // pred_check
    _
  $region15: #{double_conv.5} parent=0 // pred_check_branch
    %47 = sbr.rel (0) target = $region17
  $region16: #{double_conv.5} parent=0 // pred_region
    _
  $region17: #{double_conv.5} parent=0 // pred_fallthru
    _
  // Predicated region
  $region18: #{double_conv.5} parent=0 // pred_check
    _
  $region19: #{double_conv.5} parent=0 // pred_check_branch
    %49 = sbr.rel (0) target = $region21
  $region20: #{double_conv.5} parent=0 // pred_region
    _
  $region21: #{double_conv.5} parent=0 // pred_fallthru
    _

// kernel: double_conv.3
$region0: #{double_conv.3}
  #allocation0 [shape = 'u32[]', space=smem, size = 0x4, offset = 0x4, fixed_abs, tag = 'smem constant byte address 0x4 - core index']
  #allocation1 [shape = 'u32[72,128]{1,0:T(1,128)}', space=vmem, size = 0x9000, scoped, tag = 'internal scratch']
  #allocation2 [shape = 'f32[2,18,18,4]{3,2,1,0:T(8,128)}', space=vmem, size = 0x6c000, scoped, tag = 'scratch operand']
  %s0 = inlined_call_operand.vmem [shape: bf16[2,16,16,4], index: 0, kind: input, shape index: {}]
  %s1 = inlined_call_operand.vmem [shape: f32[1,1,1,4], index: 1, kind: input, shape index: {}]
  %s2 = inlined_call_operand.vmem [shape: f32[1,1,1,4], index: 2, kind: input, shape index: {}]
  %s3 = inlined_call_operand.vmem [shape: bf16[3,3,4,8], index: 3, kind: input, shape index: {}]
  %s4 = inlined_call_operand.vmem [shape: bf16[2,16,16,8], index: 4, kind: output, shape index: {0}]
  %s5 = inlined_call_operand.vmem [shape: f32[1,2,8], index: 5, kind: output, shape index: {1}]
  %6 = xla_tuple %s4, %s5
  %s7 = sld [smem:[#allocation0]]
  $region34: #{double_conv.3} parent=0
    _
  %s9 = ssub.s32 1, %s7
  %s10 = scalar_select 0, %s9, %s7
  // Predicated region
  $region2: #{double_conv.3} parent=0 // pred_check
    _
  $region3: #{double_conv.3} parent=0 // pred_check_branch
    %12 = sbr.rel (0) target = $region5
  $region4: #{double_conv.3} parent=0 // pred_region
    _
  $region5: #{double_conv.3} parent=0 // pred_fallthru
    _
  // Predicated region
  $region6: #{double_conv.3} parent=0 // pred_check
    _
  $region7: #{double_conv.3} parent=0 // pred_check_branch
    %14 = sbr.rel (0) target = $region9
  $region8: #{double_conv.3} parent=0 // pred_region
    _
  $region9: #{double_conv.3} parent=0 // pred_fallthru
    _
  // Predicated region
  $region10: #{double_conv.3} parent=0 // pred_check
    _
  $region11: #{double_conv.3} parent=0 // pred_check_branch
    %16 = sbr.rel (0) target = $region13
  $region12: #{double_conv.3} parent=0 // pred_region
    _
  $region13: #{double_conv.3} parent=0 // pred_fallthru
    _
  // Predicated region
  $region14: #{double_conv.3} parent=0 // pred_check
    _
  $region15: #{double_conv.3} parent=0 // pred_check_branch
    %18 = sbr.rel (0) target = $region17
  $region16: #{double_conv.3} parent=0 // pred_region
    _
  $region17: #{double_conv.3} parent=0 // pred_fallthru
    _
  %vm20 = vcmask 31744
  %21 = vst.msk [vmem:[#allocation2] sm:$0xff] %vm20, 0.0
  %22 = vst.msk [vmem:[#allocation2 + $0x8] sm:$0xff] %vm20, 0.0
  %vm23 = vcmask 25600
  %24 = vst.msk [vmem:[#allocation2 + $0x10] sm:$0x3] %vm23, 0.0
  %25 = vst.msk [vmem:[#allocation2 + $0x18] sm:$0xff] %vm20, 0.0
  %26 = vst.msk [vmem:[#allocation2 + $0x20] sm:$0xff] %vm20, 0.0
  %27 = vst.msk [vmem:[#allocation2 + $0x28] sm:$0x3] %vm23, 0.0
  %28 = vst.msk [vmem:[#allocation2 + $0x30] sm:$0xff] %vm20, 0.0
  %29 = vst.msk [vmem:[#allocation2 + $0x38] sm:$0xff] %vm20, 0.0
  %30 = vst.msk [vmem:[#allocation2 + $0x40] sm:$0x3] %vm23, 0.0
  %31 = vst.msk [vmem:[#allocation2 + $0x48] sm:$0xff] %vm20, 0.0
  %32 = vst.msk [vmem:[#allocation2 + $0x50] sm:$0xff] %vm20, 0.0
  %33 = vst.msk [vmem:[#allocation2 + $0x58] sm:$0x3] %vm23, 0.0
  %34 = vst.msk [vmem:[#allocation2 + $0x60] sm:$0xff] %vm20, 0.0
  %35 = vst.msk [vmem:[#allocation2 + $0x68] sm:$0xff] %vm20, 0.0
  %36 = vst.msk [vmem:[#allocation2 + $0x70] sm:$0x3] %vm23, 0.0
  %37 = vst.msk [vmem:[#allocation2 + $0x78] sm:$0xff] %vm20, 0.0
  %38 = vst.msk [vmem:[#allocation2 + $0x80] sm:$0xff] %vm20, 0.0
  %39 = vst.msk [vmem:[#allocation2 + $0x88] sm:$0x3] %vm23, 0.0
  %40 = vst.msk [vmem:[#allocation2 + $0x90] sm:$0xff] %vm20, 0.0
  %41 = vst.msk [vmem:[#allocation2 + $0x98] sm:$0xff] %vm20, 0.0
  %42 = vst.msk [vmem:[#allocation2 + $0xa0] sm:$0x3] %vm23, 0.0
  %43 = vst.msk [vmem:[#allocation2 + $0xa8] sm:$0xff] %vm20, 0.0
  %44 = vst.msk [vmem:[#allocation2 + $0xb0] sm:$0xff] %vm20, 0.0
  %45 = vst.msk [vmem:[#allocation2 + $0xb8] sm:$0x3] %vm23, 0.0
  %46 = vst.msk [vmem:[#allocation2 + $0xc0] sm:$0xff] %vm20, 0.0
  %47 = vst.msk [vmem:[#allocation2 + $0xc8] sm:$0xff] %vm20, 0.0
  %48 = vst.msk [vmem:[#allocation2 + $0xd0] sm:$0x3] %vm23, 0.0
  %49 = vst.msk [vmem:[#allocation2 + $0xd8] sm:$0xff] %vm20, 0.0
  %50 = vst.msk [vmem:[#allocation2 + $0xe0] sm:$0xff] %vm20, 0.0
  %51 = vst.msk [vmem:[#allocation2 + $0xe8] sm:$0x3] %vm23, 0.0
  %52 = vst.msk [vmem:[#allocation2 + $0xf0] sm:$0xff] %vm20, 0.0
  %53 = vst.msk [vmem:[#allocation2 + $0xf8] sm:$0xff] %vm20, 0.0
  %54 = vst.msk [vmem:[#allocation2 + $0x100] sm:$0x3] %vm23, 0.0
  %55 = vst.msk [vmem:[#allocation2 + $0x108] sm:$0xff] %vm20, 0.0
  %56 = vst.msk [vmem:[#allocation2 + $0x110] sm:$0xff] %vm20, 0.0
  %57 = vst.msk [vmem:[#allocation2 + $0x118] sm:$0x3] %vm23, 0.0
  %58 = vst.msk [vmem:[#allocation2 + $0x120] sm:$0xff] %vm20, 0.0
  %59 = vst.msk [vmem:[#allocation2 + $0x128] sm:$0xff] %vm20, 0.0
  %60 = vst.msk [vmem:[#allocation2 + $0x130] sm:$0x3] %vm23, 0.0
  %61 = vst.msk [vmem:[#allocation2 + $0x138] sm:$0xff] %vm20, 0.0
  %62 = vst.msk [vmem:[#allocation2 + $0x140] sm:$0xff] %vm20, 0.0
  %63 = vst.msk [vmem:[#allocation2 + $0x148] sm:$0x3] %vm23, 0.0
  %64 = vst.msk [vmem:[#allocation2 + $0x150] sm:$0xff] %vm20, 0.0
  %65 = vst.msk [vmem:[#allocation2 + $0x158] sm:$0xff] %vm20, 0.0
  %66 = vst.msk [vmem:[#allocation2 + $0x160] sm:$0x3] %vm23, 0.0
  %67 = vst.msk [vmem:[#allocation2 + $0x168] sm:$0xff] %vm20, 0.0
  %68 = vst.msk [vmem:[#allocation2 + $0x170] sm:$0xff] %vm20, 0.0
  %69 = vst.msk [vmem:[#allocation2 + $0x178] sm:$0x3] %vm23, 0.0
  %70 = vst.msk [vmem:[#allocation2 + $0x180] sm:$0xff] %vm20, 0.0
  %71 = vst.msk [vmem:[#allocation2 + $0x188] sm:$0xff] %vm20, 0.0
  %72 = vst.msk [vmem:[#allocation2 + $0x190] sm:$0x3] %vm23, 0.0
  %73 = vst.msk [vmem:[#allocation2 + $0x198] sm:$0xff] %vm20, 0.0
  %74 = vst.msk [vmem:[#allocation2 + $0x1a0] sm:$0xff] %vm20, 0.0
  %75 = vst.msk [vmem:[#allocation2 + $0x1a8] sm:$0x3] %vm23, 0.0
  %76 = vst.msk [vmem:[#allocation2 + $0x1b0] sm:$0xff] %vm20, 0.0
  %77 = vst.msk [vmem:[#allocation2 + $0x1b8] sm:$0xff] %vm20, 0.0
  %78 = vst.msk [vmem:[#allocation2 + $0x1c0] sm:$0x3] %vm23, 0.0
  %79 = vst.msk [vmem:[#allocation2 + $0x1c8] sm:$0xff] %vm20, 0.0
  %80 = vst.msk [vmem:[#allocation2 + $0x1d0] sm:$0xff] %vm20, 0.0
  %81 = vst.msk [vmem:[#allocation2 + $0x1d8] sm:$0x3] %vm23, 0.0
  %82 = vst.msk [vmem:[#allocation2 + $0x1e0] sm:$0xff] %vm20, 0.0
  %83 = vst.msk [vmem:[#allocation2 + $0x1e8] sm:$0xff] %vm20, 0.0
  %84 = vst.msk [vmem:[#allocation2 + $0x1f0] sm:$0x3] %vm23, 0.0
  %85 = vst.msk [vmem:[#allocation2 + $0x1f8] sm:$0xff] %vm20, 0.0
  %86 = vst.msk [vmem:[#allocation2 + $0x200] sm:$0xff] %vm20, 0.0
  %87 = vst.msk [vmem:[#allocation2 + $0x208] sm:$0x3] %vm23, 0.0
  %88 = vst.msk [vmem:[#allocation2 + $0x210] sm:$0xff] %vm20, 0.0
  %89 = vst.msk [vmem:[#allocation2 + $0x218] sm:$0xff] %vm20, 0.0
  %90 = vst.msk [vmem:[#allocation2 + $0x220] sm:$0x3] %vm23, 0.0
  %91 = vst.msk [vmem:[#allocation2 + $0x228] sm:$0xff] %vm20, 0.0
  %92 = vst.msk [vmem:[#allocation2 + $0x230] sm:$0xff] %vm20, 0.0
  %93 = vst.msk [vmem:[#allocation2 + $0x238] sm:$0x3] %vm23, 0.0
  %94 = vst.msk [vmem:[#allocation2 + $0x240] sm:$0xff] %vm20, 0.0
  %95 = vst.msk [vmem:[#allocation2 + $0x248] sm:$0xff] %vm20, 0.0
  %96 = vst.msk [vmem:[#allocation2 + $0x250] sm:$0x3] %vm23, 0.0
  %97 = vst.msk [vmem:[#allocation2 + $0x258] sm:$0xff] %vm20, 0.0
  %98 = vst.msk [vmem:[#allocation2 + $0x260] sm:$0xff] %vm20, 0.0
  %99 = vst.msk [vmem:[#allocation2 + $0x268] sm:$0x3] %vm23, 0.0
  %100 = vst.msk [vmem:[#allocation2 + $0x270] sm:$0xff] %vm20, 0.0
  %101 = vst.msk [vmem:[#allocation2 + $0x278] sm:$0xff] %vm20, 0.0
  %102 = vst.msk [vmem:[#allocation2 + $0x280] sm:$0x3] %vm23, 0.0
  %103 = vst.msk [vmem:[#allocation2 + $0x288] sm:$0xff] %vm20, 0.0
  %104 = vst.msk [vmem:[#allocation2 + $0x290] sm:$0xff] %vm20, 0.0
  %105 = vst.msk [vmem:[#allocation2 + $0x298] sm:$0x3] %vm23, 0.0
  %106 = vst.msk [vmem:[#allocation2 + $0x2a0] sm:$0xff] %vm20, 0.0
  %107 = vst.msk [vmem:[#allocation2 + $0x2a8] sm:$0xff] %vm20, 0.0
  %108 = vst.msk [vmem:[#allocation2 + $0x2b0] sm:$0x3] %vm23, 0.0
  %109 = vst.msk [vmem:[#allocation2 + $0x2b8] sm:$0xff] %vm20, 0.0
  %110 = vst.msk [vmem:[#allocation2 + $0x2c0] sm:$0xff] %vm20, 0.0
  %111 = vst.msk [vmem:[#allocation2 + $0x2c8] sm:$0x3] %vm23, 0.0
  %112 = vst.msk [vmem:[#allocation2 + $0x2d0] sm:$0xff] %vm20, 0.0
  %113 = vst.msk [vmem:[#allocation2 + $0x2d8] sm:$0xff] %vm20, 0.0
  %114 = vst.msk [vmem:[#allocation2 + $0x2e0] sm:$0x3] %vm23, 0.0
  %115 = vst.msk [vmem:[#allocation2 + $0x2e8] sm:$0xff] %vm20, 0.0
  %116 = vst.msk [vmem:[#allocation2 + $0x2f0] sm:$0xff] %vm20, 0.0
  %117 = vst.msk [vmem:[#allocation2 + $0x2f8] sm:$0x3] %vm23, 0.0
  %118 = vst.msk [vmem:[#allocation2 + $0x300] sm:$0xff] %vm20, 0.0
  %119 = vst.msk [vmem:[#allocation2 + $0x308] sm:$0xff] %vm20, 0.0
  %120 = vst.msk [vmem:[#allocation2 + $0x310] sm:$0x3] %vm23, 0.0
  %121 = vst.msk [vmem:[#allocation2 + $0x318] sm:$0xff] %vm20, 0.0
  %122 = vst.msk [vmem:[#allocation2 + $0x320] sm:$0xff] %vm20, 0.0
  %123 = vst.msk [vmem:[#allocation2 + $0x328] sm:$0x3] %vm23, 0.0
  %124 = vst.msk [vmem:[#allocation2 + $0x330] sm:$0xff] %vm20, 0.0
  %125 = vst.msk [vmem:[#allocation2 + $0x338] sm:$0xff] %vm20, 0.0
  %126 = vst.msk [vmem:[#allocation2 + $0x340] sm:$0x3] %vm23, 0.0
  %127 = vst.msk [vmem:[#allocation2 + $0x348] sm:$0xff] %vm20, 0.0
  %128 = vst.msk [vmem:[#allocation2 + $0x350] sm:$0xff] %vm20, 0.0
  %129 = vst.msk [vmem:[#allocation2 + $0x358] sm:$0x3] %vm23, 0.0
  %v130 = vld [vmem:[%s0] sm:$0xf]
  %v131 = vld [vmem:[%s0 + $0x4] sm:$0xf]
  %v132 = vld [vmem:[%s0 + $0x8] sm:$0xf]
  %v133 = vld [vmem:[%s0 + $0xc] sm:$0xf]
  %v134 = vld [vmem:[%s0 + $0x10] sm:$0xf]
  %v135 = vld [vmem:[%s0 + $0x14] sm:$0xf]
  %v136 = vld [vmem:[%s0 + $0x18] sm:$0xf]
  %v137 = vld [vmem:[%s0 + $0x1c] sm:$0xf]
  %v138 = vld [vmem:[%s0 + $0x20] sm:$0xf]
  %v139 = vld [vmem:[%s0 + $0x24] sm:$0xf]
  %v140 = vld [vmem:[%s0 + $0x28] sm:$0xf]
  %v141 = vld [vmem:[%s0 + $0x2c] sm:$0xf]
  %v142 = vld [vmem:[%s0 + $0x30] sm:$0xf]
  %v143 = vld [vmem:[%s0 + $0x34] sm:$0xf]
  %v144 = vld [vmem:[%s0 + $0x38] sm:$0xf]
  %v145 = vld [vmem:[%s0 + $0x3c] sm:$0xf]
  %v146 = vld [vmem:[%s0 + $0x40] sm:$0xf]
  %v147 = vld [vmem:[%s0 + $0x44] sm:$0xf]
  %v148 = vld [vmem:[%s0 + $0x48] sm:$0xf]
  %v149 = vld [vmem:[%s0 + $0x4c] sm:$0xf]
  %v150 = vld [vmem:[%s0 + $0x50] sm:$0xf]
  %v151 = vld [vmem:[%s0 + $0x54] sm:$0xf]
  %v152 = vld [vmem:[%s0 + $0x58] sm:$0xf]
  %v153 = vld [vmem:[%s0 + $0x5c] sm:$0xf]
  %v154 = vld [vmem:[%s0 + $0x60] sm:$0xf]
  %v155 = vld [vmem:[%s0 + $0x64] sm:$0xf]
  %v156 = vld [vmem:[%s0 + $0x68] sm:$0xf]
  %v157 = vld [vmem:[%s0 + $0x6c] sm:$0xf]
  %v158 = vld [vmem:[%s0 + $0x70] sm:$0xf]
  %v159 = vld [vmem:[%s0 + $0x74] sm:$0xf]
  %v160 = vld [vmem:[%s0 + $0x78] sm:$0xf]
  %v161 = vld [vmem:[%s0 + $0x7c] sm:$0xf]
  %v162 = vld [vmem:[%s0 + $0x80] sm:$0xf]
  %v163 = vld [vmem:[%s0 + $0x84] sm:$0xf]
  %v164 = vld [vmem:[%s0 + $0x88] sm:$0xf]
  %v165 = vld [vmem:[%s0 + $0x8c] sm:$0xf]
  %v166 = vld [vmem:[%s0 + $0x90] sm:$0xf]
  %v167 = vld [vmem:[%s0 + $0x94] sm:$0xf]
  %v168 = vld [vmem:[%s0 + $0x98] sm:$0xf]
  %v169 = vld [vmem:[%s0 + $0x9c] sm:$0xf]
  %v170 = vld [vmem:[%s0 + $0xa0] sm:$0xf]
  %v171 = vld [vmem:[%s0 + $0xa4] sm:$0xf]
  %v172 = vld [vmem:[%s0 + $0xa8] sm:$0xf]
  %v173 = vld [vmem:[%s0 + $0xac] sm:$0xf]
  %v174 = vld [vmem:[%s0 + $0xb0] sm:$0xf]
  %v175 = vld [vmem:[%s0 + $0xb4] sm:$0xf]
  %v176 = vld [vmem:[%s0 + $0xb8] sm:$0xf]
  %v177 = vld [vmem:[%s0 + $0xbc] sm:$0xf]
  %v178 = vld [vmem:[%s0 + $0xc0] sm:$0xf]
  %v179 = vld [vmem:[%s0 + $0xc4] sm:$0xf]
  %v180 = vld [vmem:[%s0 + $0xc8] sm:$0xf]
  %v181 = vld [vmem:[%s0 + $0xcc] sm:$0xf]
  %v182 = vld [vmem:[%s0 + $0xd0] sm:$0xf]
  %v183 = vld [vmem:[%s0 + $0xd4] sm:$0xf]
  %v184 = vld [vmem:[%s0 + $0xd8] sm:$0xf]
  %v185 = vld [vmem:[%s0 + $0xdc] sm:$0xf]
  %v186 = vld [vmem:[%s0 + $0xe0] sm:$0xf]
  %v187 = vld [vmem:[%s0 + $0xe4] sm:$0xf]
  %v188 = vld [vmem:[%s0 + $0xe8] sm:$0xf]
  %v189 = vld [vmem:[%s0 + $0xec] sm:$0xf]
  %v190 = vld [vmem:[%s0 + $0xf0] sm:$0xf]
  %v191 = vld [vmem:[%s0 + $0xf4] sm:$0xf]
  %v192 = vld [vmem:[%s0 + $0xf8] sm:$0xf]
  %v193 = vld [vmem:[%s0 + $0xfc] sm:$0xf]
  %v194 = vunpack.c.l.bf16 %v130
  %v195 = vunpack.c.l.bf16 %v131
  %v196 = vunpack.c.l.bf16 %v132
  %v197 = vunpack.c.l.bf16 %v133
  %v198 = vunpack.c.l.bf16 %v134
  %v199 = vunpack.c.l.bf16 %v135
  %v200 = vunpack.c.l.bf16 %v136
  %v201 = vunpack.c.l.bf16 %v137
  %v202 = vunpack.c.l.bf16 %v138
  %v203 = vunpack.c.l.bf16 %v139
  %v204 = vunpack.c.l.bf16 %v140
  %v205 = vunpack.c.l.bf16 %v141
  %v206 = vunpack.c.l.bf16 %v142
  %v207 = vunpack.c.l.bf16 %v143
  %v208 = vunpack.c.l.bf16 %v144
  %v209 = vunpack.c.l.bf16 %v145
  %v210 = vunpack.c.l.bf16 %v146
  %v211 = vunpack.c.l.bf16 %v147
  %v212 = vunpack.c.l.bf16 %v148
  %v213 = vunpack.c.l.bf16 %v149
  %v214 = vunpack.c.l.bf16 %v150
  %v215 = vunpack.c.l.bf16 %v151
  %v216 = vunpack.c.l.bf16 %v152
  %v217 = vunpack.c.l.bf16 %v153
  %v218 = vunpack.c.l.bf16 %v154
  %v219 = vunpack.c.l.bf16 %v155
  %v220 = vunpack.c.l.bf16 %v156
  %v221 = vunpack.c.l.bf16 %v157
  %v222 = vunpack.c.l.bf16 %v158
  %v223 = vunpack.c.l.bf16 %v159
  %v224 = vunpack.c.l.bf16 %v160
  %v225 = vunpack.c.l.bf16 %v161
  %v226 = vunpack.c.l.bf16 %v162
  %v227 = vunpack.c.l.bf16 %v163
  %v228 = vunpack.c.l.bf16 %v164
  %v229 = vunpack.c.l.bf16 %v165
  %v230 = vunpack.c.l.bf16 %v166
  %v231 = vunpack.c.l.bf16 %v167
  %v232 = vunpack.c.l.bf16 %v168
  %v233 = vunpack.c.l.bf16 %v169
  %v234 = vunpack.c.l.bf16 %v170
  %v235 = vunpack.c.l.bf16 %v171
  %v236 = vunpack.c.l.bf16 %v172
  %v237 = vunpack.c.l.bf16 %v173
  %v238 = vunpack.c.l.bf16 %v174
  %v239 = vunpack.c.l.bf16 %v175
  %v240 = vunpack.c.l.bf16 %v176
  %v241 = vunpack.c.l.bf16 %v177
  %v242 = vunpack.c.l.bf16 %v178
  %v243 = vunpack.c.l.bf16 %v179
  %v244 = vunpack.c.l.bf16 %v180
  %v245 = vunpack.c.l.bf16 %v181
  %v246 = vunpack.c.l.bf16 %v182
  %v247 = vunpack.c.l.bf16 %v183
  %v248 = vunpack.c.l.bf16 %v184
  %v249 = vunpack.c.l.bf16 %v185
  %v250 = vunpack.c.l.bf16 %v186
  %v251 = vunpack.c.l.bf16 %v187
  %v252 = vunpack.c.l.bf16 %v188
  %v253 = vunpack.c.l.bf16 %v189
  %v254 = vunpack.c.l.bf16 %v190
  %v255 = vunpack.c.l.bf16 %v191
  %v256 = vunpack.c.l.bf16 %v192
  %v257 = vunpack.c.l.bf16 %v193
  %s258 = scalar_lea.vmem [#allocation2], 24
  %259 = vst.msk [vmem:[%s258 + $0x1] sm:$0xff] %vm20, %v194
  %260 = vst.msk [vmem:[%s258 + $0x9] sm:$0xff] %vm20, %v195
  %261 = vst.msk [vmem:[%s258 + $0x19] sm:$0xff] %vm20, %v196
  %262 = vst.msk [vmem:[%s258 + $0x21] sm:$0xff] %vm20, %v197
  %263 = vst.msk [vmem:[%s258 + $0x31] sm:$0xff] %vm20, %v198
  %264 = vst.msk [vmem:[%s258 + $0x39] sm:$0xff] %vm20, %v199
  %265 = vst.msk [vmem:[%s258 + $0x49] sm:$0xff] %vm20, %v200
  %266 = vst.msk [vmem:[%s258 + $0x51] sm:$0xff] %vm20, %v201
  %267 = vst.msk [vmem:[%s258 + $0x61] sm:$0xff] %vm20, %v202
  %268 = vst.msk [vmem:[%s258 + $0x69] sm:$0xff] %vm20, %v203
  %269 = vst.msk [vmem:[%s258 + $0x79] sm:$0xff] %vm20, %v204
  %270 = vst.msk [vmem:[%s258 + $0x81] sm:$0xff] %vm20, %v205
  %271 = vst.msk [vmem:[%s258 + $0x91] sm:$0xff] %vm20, %v206
  %272 = vst.msk [vmem:[%s258 + $0x99] sm:$0xff] %vm20, %v207
  %273 = vst.msk [vmem:[%s258 + $0xa9] sm:$0xff] %vm20, %v208
  %274 = vst.msk [vmem:[%s258 + $0xb1] sm:$0xff] %vm20, %v209
  %275 = vst.msk [vmem:[%s258 + $0xc1] sm:$0xff] %vm20, %v210
  %276 = vst.msk [vmem:[%s258 + $0xc9] sm:$0xff] %vm20, %v211
  %277 = vst.msk [vmem:[%s258 + $0xd9] sm:$0xff] %vm20, %v212
  %278 = vst.msk [vmem:[%s258 + $0xe1] sm:$0xff] %vm20, %v213
  %279 = vst.msk [vmem:[%s258 + $0xf1] sm:$0xff] %vm20, %v214
  %280 = vst.msk [vmem:[%s258 + $0xf9] sm:$0xff] %vm20, %v215
  %281 = vst.msk [vmem:[%s258 + $0x109] sm:$0xff] %vm20, %v216
  %282 = vst.msk [vmem:[%s258 + $0x111] sm:$0xff] %vm20, %v217
  %283 = vst.msk [vmem:[%s258 + $0x121] sm:$0xff] %vm20, %v218
  %284 = vst.msk [vmem:[%s258 + $0x129] sm:$0xff] %vm20, %v219
  %285 = vst.msk [vmem:[%s258 + $0x139] sm:$0xff] %vm20, %v220
  %286 = vst.msk [vmem:[%s258 + $0x141] sm:$0xff] %vm20, %v221
  %287 = vst.msk [vmem:[%s258 + $0x151] sm:$0xff] %vm20, %v222
  %288 = vst.msk [vmem:[%s258 + $0x159] sm:$0xff] %vm20, %v223
  %289 = vst.msk [vmem:[%s258 + $0x169] sm:$0xff] %vm20, %v224
  %290 = vst.msk [vmem:[%s258 + $0x171] sm:$0xff] %vm20, %v225
  %291 = vst.msk [vmem:[%s258 + $0x1b1] sm:$0xff] %vm20, %v226
  %292 = vst.msk [vmem:[%s258 + $0x1b9] sm:$0xff] %vm20, %v227
  %293 = vst.msk [vmem:[%s258 + $0x1c9] sm:$0xff] %vm20, %v228
  %294 = vst.msk [vmem:[%s258 + $0x1d1] sm:$0xff] %vm20, %v229
  %295 = vst.msk [vmem:[%s258 + $0x1e1] sm:$0xff] %vm20, %v230
  %296 = vst.msk [vmem:[%s258 + $0x1e9] sm:$0xff] %vm20, %v231
  %297 = vst.msk [vmem:[%s258 + $0x1f9] sm:$0xff] %vm20, %v232
  %298 = vst.msk [vmem:[%s258 + $0x201] sm:$0xff] %vm20, %v233
  %299 = vst.msk [vmem:[%s258 + $0x211] sm:$0xff] %vm20, %v234
  %300 = vst.msk [vmem:[%s258 + $0x219] sm:$0xff] %vm20, %v235
  %301 = vst.msk [vmem:[%s258 + $0x229] sm:$0xff] %vm20, %v236
  %302 = vst.msk [vmem:[%s258 + $0x231] sm:$0xff] %vm20, %v237
  %303 = vst.msk [vmem:[%s258 + $0x241] sm:$0xff] %vm20, %v238
  %304 = vst.msk [vmem:[%s258 + $0x249] sm:$0xff] %vm20, %v239
  %305 = vst.msk [vmem:[%s258 + $0x259] sm:$0xff] %vm20, %v240
  %306 = vst.msk [vmem:[%s258 + $0x261] sm:$0xff] %vm20, %v241
  %307 = vst.msk [vmem:[%s258 + $0x271] sm:$0xff] %vm20, %v242
  %308 = vst.msk [vmem:[%s258 + $0x279] sm:$0xff] %vm20, %v243
  %309 = vst.msk [vmem:[%s258 + $0x289] sm:$0xff] %vm20, %v244
  %310 = vst.msk [vmem:[%s258 + $0x291] sm:$0xff] %vm20, %v245
  %311 = vst.msk [vmem:[%s258 + $0x2a1] sm:$0xff] %vm20, %v246
  %312 = vst.msk [vmem:[%s258 + $0x2a9] sm:$0xff] %vm20, %v247
  %313 = vst.msk [vmem:[%s258 + $0x2b9] sm:$0xff] %vm20, %v248
  %314 = vst.msk [vmem:[%s258 + $0x2c1] sm:$0xff] %vm20, %v249
  %315 = vst.msk [vmem:[%s258 + $0x2d1] sm:$0xff] %vm20, %v250
  %316 = vst.msk [vmem:[%s258 + $0x2d9] sm:$0xff] %vm20, %v251
  %317 = vst.msk [vmem:[%s258 + $0x2e9] sm:$0xff] %vm20, %v252
  %318 = vst.msk [vmem:[%s258 + $0x2f1] sm:$0xff] %vm20, %v253
  %319 = vst.msk [vmem:[%s258 + $0x301] sm:$0xff] %vm20, %v254
  %320 = vst.msk [vmem:[%s258 + $0x309] sm:$0xff] %vm20, %v255
  %321 = vst.msk [vmem:[%s258 + $0x319] sm:$0xff] %vm20, %v256
  %322 = vst.msk [vmem:[%s258 + $0x321] sm:$0xff] %vm20, %v257
  %v323 = vld [vmem:[#allocation2] sm:$0xff]
  %v324 = vld [vmem:[#allocation2 + $0x8] sm:$0xff]
  %v325 = vld [vmem:[#allocation2 + $0x18] sm:$0xff]
  %v326 = vld [vmem:[#allocation2 + $0x20] sm:$0xff]
  %v327 = vld [vmem:[#allocation2 + $0x30] sm:$0xff]
  %v328 = vld [vmem:[#allocation2 + $0x38] sm:$0xff]
  %v329 = vld [vmem:[#allocation2 + $0x48] sm:$0xff]
  %v330 = vld [vmem:[#allocation2 + $0x50] sm:$0xff]
  %v331 = vld [vmem:[#allocation2 + $0x60] sm:$0xff]
  %v332 = vld [vmem:[#allocation2 + $0x68] sm:$0xff]
  %v333 = vld [vmem:[#allocation2 + $0x78] sm:$0xff]
  %v334 = vld [vmem:[#allocation2 + $0x80] sm:$0xff]
  %v335 = vld [vmem:[#allocation2 + $0x90] sm:$0xff]
  %v336 = vld [vmem:[#allocation2 + $0x98] sm:$0xff]
  %v337 = vld [vmem:[#allocation2 + $0xa8] sm:$0xff]
  %v338 = vld [vmem:[#allocation2 + $0xb0] sm:$0xff]
  %v339 = vld [vmem:[#allocation2 + $0xc0] sm:$0xff]
  %v340 = vld [vmem:[#allocation2 + $0xc8] sm:$0xff]
  %v341 = vld [vmem:[#allocation2 + $0xd8] sm:$0xff]
  %v342 = vld [vmem:[#allocation2 + $0xe0] sm:$0xff]
  %v343 = vld [vmem:[#allocation2 + $0xf0] sm:$0xff]
  %v344 = vld [vmem:[#allocation2 + $0xf8] sm:$0xff]
  %v345 = vld [vmem:[#allocation2 + $0x108] sm:$0xff]
  %v346 = vld [vmem:[#allocation2 + $0x110] sm:$0xff]
  %v347 = vld [vmem:[#allocation2 + $0x120] sm:$0xff]
  %v348 = vld [vmem:[#allocation2 + $0x128] sm:$0xff]
  %v349 = vld [vmem:[#allocation2 + $0x138] sm:$0xff]
  %v350 = vld [vmem:[#allocation2 + $0x140] sm:$0xff]
  %v351 = vld [vmem:[#allocation2 + $0x150] sm:$0xff]
  %v352 = vld [vmem:[#allocation2 + $0x158] sm:$0xff]
  %v353 = vld [vmem:[#allocation2 + $0x168] sm:$0xff]
  %v354 = vld [vmem:[#allocation2 + $0x170] sm:$0xff]
  %v355 = vld [vmem:[#allocation2 + $0x1b0] sm:$0xff]
  %v356 = vld [vmem:[#allocation2 + $0x1b8] sm:$0xff]
  %v357 = vld [vmem:[#allocation2 + $0x1c8] sm:$0xff]
  %v358 = vld [vmem:[#allocation2 + $0x1d0] sm:$0xff]
  %v359 = vld [vmem:[#allocation2 + $0x1e0] sm:$0xff]
  %v360 = vld [vmem:[#allocation2 + $0x1e8] sm:$0xff]
  %v361 = vld [vmem:[#allocation2 + $0x1f8] sm:$0xff]
  %v362 = vld [vmem:[#allocation2 + $0x200] sm:$0xff]
  %v363 = vld [vmem:[#allocation2 + $0x210] sm:$0xff]
  %v364 = vld [vmem:[#allocation2 + $0x218] sm:$0xff]
  %v365 = vld [vmem:[#allocation2 + $0x228] sm:$0xff]
  %v366 = vld [vmem:[#allocation2 + $0x230] sm:$0xff]
  %v367 = vld [vmem:[#allocation2 + $0x240] sm:$0xff]
  %v368 = vld [vmem:[#allocation2 + $0x248] sm:$0xff]
  %v369 = vld [vmem:[#allocation2 + $0x258] sm:$0xff]
  %v370 = vld [vmem:[#allocation2 + $0x260] sm:$0xff]
  %v371 = vld [vmem:[#allocation2 + $0x270] sm:$0xff]
  %v372 = vld [vmem:[#allocation2 + $0x278] sm:$0xff]
  %v373 = vld [vmem:[#allocation2 + $0x288] sm:$0xff]
  %v374 = vld [vmem:[#allocation2 + $0x290] sm:$0xff]
  %v375 = vld [vmem:[#allocation2 + $0x2a0] sm:$0xff]
  %v376 = vld [vmem:[#allocation2 + $0x2a8] sm:$0xff]
  %v377 = vld [vmem:[#allocation2 + $0x2b8] sm:$0xff]
  %v378 = vld [vmem:[#allocation2 + $0x2c0] sm:$0xff]
  %v379 = vld [vmem:[#allocation2 + $0x2d0] sm:$0xff]
  %v380 = vld [vmem:[#allocation2 + $0x2d8] sm:$0xff]
  %v381 = vld [vmem:[#allocation2 + $0x2e8] sm:$0xff]
  %v382 = vld [vmem:[#allocation2 + $0x2f0] sm:$0xff]
  %v383 = vld [vmem:[#allocation2 + $0x300] sm:$0xff]
  %v384 = vld [vmem:[#allocation2 + $0x308] sm:$0xff]
  %v385 = vld [vmem:[#allocation2 + $0x318] sm:$0xff]
  %v386 = vld [vmem:[#allocation2 + $0x320] sm:$0xff]
  %v387 = vpack.c.bf16 %v324, %v323
  %v388 = vpack.c.bf16 %v326, %v325
  %v389 = vpack.c.bf16 %v328, %v327
  %v390 = vpack.c.bf16 %v330, %v329
  %v391 = vpack.c.bf16 %v332, %v331
  %v392 = vpack.c.bf16 %v334, %v333
  %v393 = vpack.c.bf16 %v336, %v335
  %v394 = vpack.c.bf16 %v338, %v337
  %v395 = vpack.c.bf16 %v340, %v339
  %v396 = vpack.c.bf16 %v342, %v341
  %v397 = vpack.c.bf16 %v344, %v343
  %v398 = vpack.c.bf16 %v346, %v345
  %v399 = vpack.c.bf16 %v348, %v347
  %v400 = vpack.c.bf16 %v350, %v349
  %v401 = vpack.c.bf16 %v352, %v351
  %v402 = vpack.c.bf16 %v354, %v353
  %v403 = vpack.c.bf16 %v356, %v355
  %v404 = vpack.c.bf16 %v358, %v357
  %v405 = vpack.c.bf16 %v360, %v359
  %v406 = vpack.c.bf16 %v362, %v361
  %v407 = vpack.c.bf16 %v364, %v363
  %v408 = vpack.c.bf16 %v366, %v365
  %v409 = vpack.c.bf16 %v368, %v367
  %v410 = vpack.c.bf16 %v370, %v369
  %v411 = vpack.c.bf16 %v372, %v371
  %v412 = vpack.c.bf16 %v374, %v373
  %v413 = vpack.c.bf16 %v376, %v375
  %v414 = vpack.c.bf16 %v378, %v377
  %v415 = vpack.c.bf16 %v380, %v379
  %v416 = vpack.c.bf16 %v382, %v381
  %v417 = vpack.c.bf16 %v384, %v383
  %v418 = vpack.c.bf16 %v386, %v385
  %v419 = vld [vmem:[%s3] sm:$0x3]
  %v420 = vld [vmem:[#allocation2 + $0x1] sm:$0xff]
  %v421 = vld [vmem:[#allocation2 + $0x9] sm:$0xff]
  %v422 = vld [vmem:[#allocation2 + $0x19] sm:$0xff]
  %v423 = vld [vmem:[#allocation2 + $0x21] sm:$0xff]
  %v424 = vld [vmem:[#allocation2 + $0x31] sm:$0xff]
  %v425 = vld [vmem:[#allocation2 + $0x39] sm:$0xff]
  %v426 = vld [vmem:[#allocation2 + $0x49] sm:$0xff]
  %v427 = vld [vmem:[#allocation2 + $0x51] sm:$0xff]
  %v428 = vld [vmem:[#allocation2 + $0x61] sm:$0xff]
  %v429 = vld [vmem:[#allocation2 + $0x69] sm:$0xff]
  %v430 = vld [vmem:[#allocation2 + $0x79] sm:$0xff]
  %v431 = vld [vmem:[#allocation2 + $0x81] sm:$0xff]
  %v432 = vld [vmem:[#allocation2 + $0x91] sm:$0xff]
  %v433 = vld [vmem:[#allocation2 + $0x99] sm:$0xff]
  %v434 = vld [vmem:[#allocation2 + $0xa9] sm:$0xff]
  %v435 = vld [vmem:[#allocation2 + $0xb1] sm:$0xff]
  %v436 = vld [vmem:[#allocation2 + $0xc1] sm:$0xff]
  %v437 = vld [vmem:[#allocation2 + $0xc9] sm:$0xff]
  %v438 = vld [vmem:[#allocation2 + $0xd9] sm:$0xff]
  %v439 = vld [vmem:[#allocation2 + $0xe1] sm:$0xff]
  %v440 = vld [vmem:[#allocation2 + $0xf1] sm:$0xff]
  %v441 = vld [vmem:[#allocation2 + $0xf9] sm:$0xff]
  %v442 = vld [vmem:[#allocation2 + $0x109] sm:$0xff]
  %v443 = vld [vmem:[#allocation2 + $0x111] sm:$0xff]
  %v444 = vld [vmem:[#allocation2 + $0x121] sm:$0xff]
  %v445 = vld [vmem:[#allocation2 + $0x129] sm:$0xff]
  %v446 = vld [vmem:[#allocation2 + $0x139] sm:$0xff]
  %v447 = vld [vmem:[#allocation2 + $0x141] sm:$0xff]
  %v448 = vld [vmem:[#allocation2 + $0x151] sm:$0xff]
  %v449 = vld [vmem:[#allocation2 + $0x159] sm:$0xff]
  %v450 = vld [vmem:[#allocation2 + $0x169] sm:$0xff]
  %v451 = vld [vmem:[#allocation2 + $0x171] sm:$0xff]
  %v452 = vld [vmem:[#allocation2 + $0x1b1] sm:$0xff]
  %v453 = vld [vmem:[#allocation2 + $0x1b9] sm:$0xff]
  %v454 = vld [vmem:[#allocation2 + $0x1c9] sm:$0xff]
  %v455 = vld [vmem:[#allocation2 + $0x1d1] sm:$0xff]
  %v456 = vld [vmem:[#allocation2 + $0x1e1] sm:$0xff]
  %v457 = vld [vmem:[#allocation2 + $0x1e9] sm:$0xff]
  %v458 = vld [vmem:[#allocation2 + $0x1f9] sm:$0xff]
  %v459 = vld [vmem:[#allocation2 + $0x201] sm:$0xff]
  %v460 = vld [vmem:[#allocation2 + $0x211] sm:$0xff]
  %v461 = vld [vmem:[#allocation2 + $0x219] sm:$0xff]
  %v462 = vld [vmem:[#allocation2 + $0x229] sm:$0xff]
  %v463 = vld [vmem:[#allocation2 + $0x231] sm:$0xff]
  %v464 = vld [vmem:[#allocation2 + $0x241] sm:$0xff]
  %v465 = vld [vmem:[#allocation2 + $0x249] sm:$0xff]
  %v466 = vld [vmem:[#allocation2 + $0x259] sm:$0xff]
  %v467 = vld [vmem:[#allocation2 + $0x261] sm:$0xff]
  %v468 = vld [vmem:[#allocation2 + $0x271] sm:$0xff]
  %v469 = vld [vmem:[#allocation2 + $0x279] sm:$0xff]
  %v470 = vld [vmem:[#allocation2 + $0x289] sm:$0xff]
  %v471 = vld [vmem:[#allocation2 + $0x291] sm:$0xff]
  %v472 = vld [vmem:[#allocation2 + $0x2a1] sm:$0xff]
  %v473 = vld [vmem:[#allocation2 + $0x2a9] sm:$0xff]
  %v474 = vld [vmem:[#allocation2 + $0x2b9] sm:$0xff]
  %v475 = vld [vmem:[#allocation2 + $0x2c1] sm:$0xff]
  %v476 = vld [vmem:[#allocation2 + $0x2d1] sm:$0xff]
  %v477 = vld [vmem:[#allocation2 + $0x2d9] sm:$0xff]
  %v478 = vld [vmem:[#allocation2 + $0x2e9] sm:$0xff]
  %v479 = vld [vmem:[#allocation2 + $0x2f1] sm:$0xff]
  %v480 = vld [vmem:[#allocation2 + $0x301] sm:$0xff]
  %v481 = vld [vmem:[#allocation2 + $0x309] sm:$0xff]
  %v482 = vld [vmem:[#allocation2 + $0x319] sm:$0xff]
  %v483 = vld [vmem:[#allocation2 + $0x321] sm:$0xff]
  %v484 = vpack.c.bf16 %v421, %v420
  %v485 = vpack.c.bf16 %v423, %v422
  %v486 = vpack.c.bf16 %v425, %v424
  %v487 = vpack.c.bf16 %v427, %v426
  %v488 = vpack.c.bf16 %v429, %v428
  %v489 = vpack.c.bf16 %v431, %v430
  %v490 = vpack.c.bf16 %v433, %v432
  %v491 = vpack.c.bf16 %v435, %v434
  %v492 = vpack.c.bf16 %v437, %v436
  %v493 = vpack.c.bf16 %v439, %v438
  %v494 = vpack.c.bf16 %v441, %v440
  %v495 = vpack.c.bf16 %v443, %v442
  %v496 = vpack.c.bf16 %v445, %v444
  %v497 = vpack.c.bf16 %v447, %v446
  %v498 = vpack.c.bf16 %v449, %v448
  %v499 = vpack.c.bf16 %v451, %v450
  %v500 = vpack.c.bf16 %v453, %v452
  %v501 = vpack.c.bf16 %v455, %v454
  %v502 = vpack.c.bf16 %v457, %v456
  %v503 = vpack.c.bf16 %v459, %v458
  %v504 = vpack.c.bf16 %v461, %v460
  %v505 = vpack.c.bf16 %v463, %v462
  %v506 = vpack.c.bf16 %v465, %v464
  %v507 = vpack.c.bf16 %v467, %v466
  %v508 = vpack.c.bf16 %v469, %v468
  %v509 = vpack.c.bf16 %v471, %v470
  %v510 = vpack.c.bf16 %v473, %v472
  %v511 = vpack.c.bf16 %v475, %v474
  %v512 = vpack.c.bf16 %v477, %v476
  %v513 = vpack.c.bf16 %v479, %v478
  %v514 = vpack.c.bf16 %v481, %v480
  %v515 = vpack.c.bf16 %v483, %v482
  %s516 = scalar_lea.vmem %s3, 2
  %v517 = vld [vmem:[%s516] sm:$0x3]
  %v519 = vsel %vm20, %v484, 0
  %v522 = vsel %vm20, %v485, 0
  %v525 = vsel %vm20, %v486, 0
  %v528 = vsel %vm20, %v487, 0
  %v531 = vsel %vm20, %v488, 0
  %v534 = vsel %vm20, %v489, 0
  %v537 = vsel %vm20, %v490, 0
  %v540 = vsel %vm20, %v491, 0
  %v543 = vsel %vm20, %v492, 0
  %v546 = vsel %vm20, %v493, 0
  %v549 = vsel %vm20, %v494, 0
  %v552 = vsel %vm20, %v495, 0
  %v555 = vsel %vm20, %v496, 0
  %v558 = vsel %vm20, %v497, 0
  %v561 = vsel %vm20, %v498, 0
  %v564 = vsel %vm20, %v499, 0
  %v567 = vsel %vm20, %v500, 0
  %v570 = vsel %vm20, %v501, 0
  %v573 = vsel %vm20, %v502, 0
  %v576 = vsel %vm20, %v503, 0
  %v579 = vsel %vm20, %v504, 0
  %v582 = vsel %vm20, %v505, 0
  %v585 = vsel %vm20, %v506, 0
  %v588 = vsel %vm20, %v507, 0
  %v591 = vsel %vm20, %v508, 0
  %v594 = vsel %vm20, %v509, 0
  %v597 = vsel %vm20, %v510, 0
  %v600 = vsel %vm20, %v511, 0
  %v603 = vsel %vm20, %v512, 0
  %v606 = vsel %vm20, %v513, 0
  %v609 = vsel %vm20, %v514, 0
  %v612 = vsel %vm20, %v515, 0
  %vm614 = vcmask 1041408
  %v616 = vsel %vm614, %v517, 0
  %618 = vmatpush.bf16.msra.mxu0 0
  %619 = vmatpush.bf16.msra.mxu0 0
  %620 = vmatpush.bf16.msra.mxu0 0
  %621 = vmatpush.bf16.msra.mxu0 0
  %622 = vmatpush.bf16.msra.mxu0 0
  %623 = vmatpush.bf16.msra.mxu0 0
  %624 = vmatpush.bf16.msra.mxu0 0
  %625 = vmatpush.bf16.msra.mxu0 %v616
  %626 = vmatmul.bf16.gmra.mxu0 %v519
  %v627 = vpop.f32.mrf.mxu0
  %v628 = vadd.f32 0.0, %v627
  %v629 = vpop.f32.mrf.mxu0
  %v630 = vadd.f32 0.0, %v629
  %631 = vmatmul.bf16.gmra.mxu0 %v522
  %v632 = vpop.f32.mrf.mxu0
  %v633 = vadd.f32 0.0, %v632
  %v634 = vpop.f32.mrf.mxu0
  %v635 = vadd.f32 0.0, %v634
  %636 = vmatmul.bf16.gmra.mxu0 %v525
  %v637 = vpop.f32.mrf.mxu0
  %v638 = vadd.f32 0.0, %v637
  %v639 = vpop.f32.mrf.mxu0
  %v640 = vadd.f32 0.0, %v639
  %641 = vmatmul.bf16.gmra.mxu0 %v528
  %v642 = vpop.f32.mrf.mxu0
  %v643 = vadd.f32 0.0, %v642
  %v644 = vpop.f32.mrf.mxu0
  %v645 = vadd.f32 0.0, %v644
  %646 = vmatmul.bf16.gmra.mxu0 %v531
  %v647 = vpop.f32.mrf.mxu0
  %v648 = vadd.f32 0.0, %v647
  %v649 = vpop.f32.mrf.mxu0
  %v650 = vadd.f32 0.0, %v649
  %651 = vmatmul.bf16.gmra.mxu0 %v534
  %v652 = vpop.f32.mrf.mxu0
  %v653 = vadd.f32 0.0, %v652
  %v654 = vpop.f32.mrf.mxu0
  %v655 = vadd.f32 0.0, %v654
  %656 = vmatmul.bf16.gmra.mxu0 %v537
  %v657 = vpop.f32.mrf.mxu0
  %v658 = vadd.f32 0.0, %v657
  %v659 = vpop.f32.mrf.mxu0
  %v660 = vadd.f32 0.0, %v659
  %661 = vmatmul.bf16.gmra.mxu0 %v540
  %v662 = vpop.f32.mrf.mxu0
  %v663 = vadd.f32 0.0, %v662
  %v664 = vpop.f32.mrf.mxu0
  %v665 = vadd.f32 0.0, %v664
  %666 = vmatmul.bf16.gmra.mxu0 %v543
  %v667 = vpop.f32.mrf.mxu0
  %v668 = vadd.f32 0.0, %v667
  %v669 = vpop.f32.mrf.mxu0
  %v670 = vadd.f32 0.0, %v669
  %671 = vmatmul.bf16.gmra.mxu0 %v546
  %v672 = vpop.f32.mrf.mxu0
  %v673 = vadd.f32 0.0, %v672
  %v674 = vpop.f32.mrf.mxu0
  %v675 = vadd.f32 0.0, %v674
  %676 = vmatmul.bf16.gmra.mxu0 %v549
  %v677 = vpop.f32.mrf.mxu0
  %v678 = vadd.f32 0.0, %v677
  %v679 = vpop.f32.mrf.mxu0
  %v680 = vadd.f32 0.0, %v679
  %681 = vmatmul.bf16.gmra.mxu0 %v552
  %v682 = vpop.f32.mrf.mxu0
  %v683 = vadd.f32 0.0, %v682
  %v684 = vpop.f32.mrf.mxu0
  %v685 = vadd.f32 0.0, %v684
  %686 = vmatmul.bf16.gmra.mxu0 %v555
  %v687 = vpop.f32.mrf.mxu0
  %v688 = vadd.f32 0.0, %v687
  %v689 = vpop.f32.mrf.mxu0
  %v690 = vadd.f32 0.0, %v689
  %691 = vmatmul.bf16.gmra.mxu0 %v558
  %v692 = vpop.f32.mrf.mxu0
  %v693 = vadd.f32 0.0, %v692
  %v694 = vpop.f32.mrf.mxu0
  %v695 = vadd.f32 0.0, %v694
  %696 = vmatmul.bf16.gmra.mxu0 %v561
  %v697 = vpop.f32.mrf.mxu0
  %v698 = vadd.f32 0.0, %v697
  %v699 = vpop.f32.mrf.mxu0
  %v700 = vadd.f32 0.0, %v699
  %701 = vmatmul.bf16.gmra.mxu0 %v564
  %v702 = vpop.f32.mrf.mxu0
  %v703 = vadd.f32 0.0, %v702
  %v704 = vpop.f32.mrf.mxu0
  %v705 = vadd.f32 0.0, %v704
  %706 = vmatmul.bf16.gmra.mxu0 %v567
  %v707 = vpop.f32.mrf.mxu0
  %v708 = vadd.f32 0.0, %v707
  %v709 = vpop.f32.mrf.mxu0
  %v710 = vadd.f32 0.0, %v709
  %711 = vmatmul.bf16.gmra.mxu0 %v570
  %v712 = vpop.f32.mrf.mxu0
  %v713 = vadd.f32 0.0, %v712
  %v714 = vpop.f32.mrf.mxu0
  %v715 = vadd.f32 0.0, %v714
  %716 = vmatmul.bf16.gmra.mxu0 %v573
  %v717 = vpop.f32.mrf.mxu0
  %v718 = vadd.f32 0.0, %v717
  %v719 = vpop.f32.mrf.mxu0
  %v720 = vadd.f32 0.0, %v719
  %721 = vmatmul.bf16.gmra.mxu0 %v576
  %v722 = vpop.f32.mrf.mxu0
  %v723 = vadd.f32 0.0, %v722
  %v724 = vpop.f32.mrf.mxu0
  %v725 = vadd.f32 0.0, %v724
  %726 = vmatmul.bf16.gmra.mxu0 %v579
  %v727 = vpop.f32.mrf.mxu0
  %v728 = vadd.f32 0.0, %v727
  %v729 = vpop.f32.mrf.mxu0
  %v730 = vadd.f32 0.0, %v729
  %731 = vmatmul.bf16.gmra.mxu0 %v582
  %v732 = vpop.f32.mrf.mxu0
  %v733 = vadd.f32 0.0, %v732
  %v734 = vpop.f32.mrf.mxu0
  %v735 = vadd.f32 0.0, %v734
  %736 = vmatmul.bf16.gmra.mxu0 %v585
  %v737 = vpop.f32.mrf.mxu0
  %v738 = vadd.f32 0.0, %v737
  %v739 = vpop.f32.mrf.mxu0
  %v740 = vadd.f32 0.0, %v739
  %741 = vmatmul.bf16.gmra.mxu0 %v588
  %v742 = vpop.f32.mrf.mxu0
  %v743 = vadd.f32 0.0, %v742
  %v744 = vpop.f32.mrf.mxu0
  %v745 = vadd.f32 0.0, %v744
  %746 = vmatmul.bf16.gmra.mxu0 %v591
  %v747 = vpop.f32.mrf.mxu0
  %v748 = vadd.f32 0.0, %v747
  %v749 = vpop.f32.mrf.mxu0
  %v750 = vadd.f32 0.0, %v749
  %751 = vmatmul.bf16.gmra.mxu0 %v594
  %v752 = vpop.f32.mrf.mxu0
  %v753 = vadd.f32 0.0, %v752
  %v754 = vpop.f32.mrf.mxu0
  %v755 = vadd.f32 0.0, %v754
  %756 = vmatmul.bf16.gmra.mxu0 %v597
  %v757 = vpop.f32.mrf.mxu0
  %v758 = vadd.f32 0.0, %v757
  %v759 = vpop.f32.mrf.mxu0
  %v760 = vadd.f32 0.0, %v759
  %761 = vmatmul.bf16.gmra.mxu0 %v600
  %v762 = vpop.f32.mrf.mxu0
  %v763 = vadd.f32 0.0, %v762
  %v764 = vpop.f32.mrf.mxu0
  %v765 = vadd.f32 0.0, %v764
  %766 = vmatmul.bf16.gmra.mxu0 %v603
  %v767 = vpop.f32.mrf.mxu0
  %v768 = vadd.f32 0.0, %v767
  %v769 = vpop.f32.mrf.mxu0
  %v770 = vadd.f32 0.0, %v769
  %771 = vmatmul.bf16.gmra.mxu0 %v606
  %v772 = vpop.f32.mrf.mxu0
  %v773 = vadd.f32 0.0, %v772
  %v774 = vpop.f32.mrf.mxu0
  %v775 = vadd.f32 0.0, %v774
  %776 = vmatmul.bf16.gmra.mxu0 %v609
  %v777 = vpop.f32.mrf.mxu0
  %v778 = vadd.f32 0.0, %v777
  %v779 = vpop.f32.mrf.mxu0
  %v780 = vadd.f32 0.0, %v779
  %781 = vmatmul.bf16.gmra.mxu0 %v612
  %v782 = vpop.f32.mrf.mxu0
  %v783 = vadd.f32 0.0, %v782
  %v784 = vpop.f32.mrf.mxu0
  %v785 = vadd.f32 0.0, %v784
  %786 = vdwg.mxu0
  %v788 = vsel %vm20, %v387, 0
  %v791 = vsel %vm20, %v388, 0
  %v794 = vsel %vm20, %v389, 0
  %v797 = vsel %vm20, %v390, 0
  %v800 = vsel %vm20, %v391, 0
  %v803 = vsel %vm20, %v392, 0
  %v806 = vsel %vm20, %v393, 0
  %v809 = vsel %vm20, %v394, 0
  %v812 = vsel %vm20, %v395, 0
  %v815 = vsel %vm20, %v396, 0
  %v818 = vsel %vm20, %v397, 0
  %v821 = vsel %vm20, %v398, 0
  %v824 = vsel %vm20, %v399, 0
  %v827 = vsel %vm20, %v400, 0
  %v830 = vsel %vm20, %v401, 0
  %v833 = vsel %vm20, %v402, 0
  %v836 = vsel %vm20, %v403, 0
  %v839 = vsel %vm20, %v404, 0
  %v842 = vsel %vm20, %v405, 0
  %v845 = vsel %vm20, %v406, 0
  %v848 = vsel %vm20, %v407, 0
  %v851 = vsel %vm20, %v408, 0
  %v854 = vsel %vm20, %v409, 0
  %v857 = vsel %vm20, %v410, 0
  %v860 = vsel %vm20, %v411, 0
  %v863 = vsel %vm20, %v412, 0
  %v866 = vsel %vm20, %v413, 0
  %v869 = vsel %vm20, %v414, 0
  %v872 = vsel %vm20, %v415, 0
  %v875 = vsel %vm20, %v416, 0
  %v878 = vsel %vm20, %v417, 0
  %v881 = vsel %vm20, %v418, 0
  %v884 = vsel %vm614, %v419, 0
  %886 = vmatpush.bf16.msra.mxu0 0
  %887 = vmatpush.bf16.msra.mxu0 0
  %888 = vmatpush.bf16.msra.mxu0 0
  %889 = vmatpush.bf16.msra.mxu0 0
  %890 = vmatpush.bf16.msra.mxu0 0
  %891 = vmatpush.bf16.msra.mxu0 0
  %892 = vmatpush.bf16.msra.mxu0 0
  %893 = vmatpush.bf16.msra.mxu0 %v884
  %894 = vmatmul.bf16.gmra.mxu0 %v788
  %v895 = vpop.f32.mrf.mxu0
  %v896 = vadd.f32 %v628, %v895
  %v897 = vpop.f32.mrf.mxu0
  %v898 = vadd.f32 %v630, %v897
  %899 = vmatmul.bf16.gmra.mxu0 %v791
  %v900 = vpop.f32.mrf.mxu0
  %v901 = vadd.f32 %v633, %v900
  %v902 = vpop.f32.mrf.mxu0
  %v903 = vadd.f32 %v635, %v902
  %904 = vmatmul.bf16.gmra.mxu0 %v794
  %v905 = vpop.f32.mrf.mxu0
  %v906 = vadd.f32 %v638, %v905
  %v907 = vpop.f32.mrf.mxu0
  %v908 = vadd.f32 %v640, %v907
  %909 = vmatmul.bf16.gmra.mxu0 %v797
  %v910 = vpop.f32.mrf.mxu0
  %v911 = vadd.f32 %v643, %v910
  %v912 = vpop.f32.mrf.mxu0
  %v913 = vadd.f32 %v645, %v912
  %914 = vmatmul.bf16.gmra.mxu0 %v800
  %v915 = vpop.f32.mrf.mxu0
  %v916 = vadd.f32 %v648, %v915
  %v917 = vpop.f32.mrf.mxu0
  %v918 = vadd.f32 %v650, %v917
  %919 = vmatmul.bf16.gmra.mxu0 %v803
  %v920 = vpop.f32.mrf.mxu0
  %v921 = vadd.f32 %v653, %v920
  %v922 = vpop.f32.mrf.mxu0
  %v923 = vadd.f32 %v655, %v922
  %924 = vmatmul.bf16.gmra.mxu0 %v806
  %v925 = vpop.f32.mrf.mxu0
  %v926 = vadd.f32 %v658, %v925
  %v927 = vpop.f32.mrf.mxu0
  %v928 = vadd.f32 %v660, %v927
  %929 = vmatmul.bf16.gmra.mxu0 %v809
  %v930 = vpop.f32.mrf.mxu0
  %v931 = vadd.f32 %v663, %v930
  %v932 = vpop.f32.mrf.mxu0
  %v933 = vadd.f32 %v665, %v932
  %934 = vmatmul.bf16.gmra.mxu0 %v812
  %v935 = vpop.f32.mrf.mxu0
  %v936 = vadd.f32 %v668, %v935
  %v937 = vpop.f32.mrf.mxu0
  %v938 = vadd.f32 %v670, %v937
  %939 = vmatmul.bf16.gmra.mxu0 %v815
  %v940 = vpop.f32.mrf.mxu0
  %v941 = vadd.f32 %v673, %v940
  %v942 = vpop.f32.mrf.mxu0
  %v943 = vadd.f32 %v675, %v942
  %944 = vmatmul.bf16.gmra.mxu0 %v818
  %v945 = vpop.f32.mrf.mxu0
  %v946 = vadd.f32 %v678, %v945
  %v947 = vpop.f32.mrf.mxu0
  %v948 = vadd.f32 %v680, %v947
  %949 = vmatmul.bf16.gmra.mxu0 %v821
  %v950 = vpop.f32.mrf.mxu0
  %v951 = vadd.f32 %v683, %v950
  %v952 = vpop.f32.mrf.mxu0
  %v953 = vadd.f32 %v685, %v952
  %954 = vmatmul.bf16.gmra.mxu0 %v824
  %v955 = vpop.f32.mrf.mxu0
  %v956 = vadd.f32 %v688, %v955
  %v957 = vpop.f32.mrf.mxu0
  %v958 = vadd.f32 %v690, %v957
  %959 = vmatmul.bf16.gmra.mxu0 %v827
  %v960 = vpop.f32.mrf.mxu0
  %v961 = vadd.f32 %v693, %v960
  %v962 = vpop.f32.mrf.mxu0
  %v963 = vadd.f32 %v695, %v962
  %964 = vmatmul.bf16.gmra.mxu0 %v830
  %v965 = vpop.f32.mrf.mxu0
  %v966 = vadd.f32 %v698, %v965
  %v967 = vpop.f32.mrf.mxu0
  %v968 = vadd.f32 %v700, %v967
  %969 = vmatmul.bf16.gmra.mxu0 %v833
  %v970 = vpop.f32.mrf.mxu0
  %v971 = vadd.f32 %v703, %v970
  %v972 = vpop.f32.mrf.mxu0
  %v973 = vadd.f32 %v705, %v972
  %974 = vmatmul.bf16.gmra.mxu0 %v836
  %v975 = vpop.f32.mrf.mxu0
  %v976 = vadd.f32 %v708, %v975
  %v977 = vpop.f32.mrf.mxu0
  %v978 = vadd.f32 %v710, %v977
  %979 = vmatmul.bf16.gmra.mxu0 %v839
  %v980 = vpop.f32.mrf.mxu0
  %v981 = vadd.f32 %v713, %v980
  %v982 = vpop.f32.mrf.mxu0
  %v983 = vadd.f32 %v715, %v982
  %984 = vmatmul.bf16.gmra.mxu0 %v842
  %v985 = vpop.f32.mrf.mxu0
  %v986 = vadd.f32 %v718, %v985
  %v987 = vpop.f32.mrf.mxu0
  %v988 = vadd.f32 %v720, %v987
  %989 = vmatmul.bf16.gmra.mxu0 %v845
  %v990 = vpop.f32.mrf.mxu0
  %v991 = vadd.f32 %v723, %v990
  %v992 = vpop.f32.mrf.mxu0
  %v993 = vadd.f32 %v725, %v992
  %994 = vmatmul.bf16.gmra.mxu0 %v848
  %v995 = vpop.f32.mrf.mxu0
  %v996 = vadd.f32 %v728, %v995
  %v997 = vpop.f32.mrf.mxu0
  %v998 = vadd.f32 %v730, %v997
  %999 = vmatmul.bf16.gmra.mxu0 %v851
  %v1000 = vpop.f32.mrf.mxu0
  %v1001 = vadd.f32 %v733, %v1000
  %v1002 = vpop.f32.mrf.mxu0
  %v1003 = vadd.f32 %v735, %v1002
  %1004 = vmatmul.bf16.gmra.mxu0 %v854
  %v1005 = vpop.f32.mrf.mxu0
  %v1006 = vadd.f32 %v738, %v1005
  %v1007 = vpop.f32.mrf.mxu0
  %v1008 = vadd.f32 %v740, %v1007
  %1009 = vmatmul.bf16.gmra.mxu0 %v857
  %v1010 = vpop.f32.mrf.mxu0
  %v1011 = vadd.f32 %v743, %v1010
  %v1012 = vpop.f32.mrf.mxu0
  %v1013 = vadd.f32 %v745, %v1012
  %1014 = vmatmul.bf16.gmra.mxu0 %v860
  %v1015 = vpop.f32.mrf.mxu0
  %v1016 = vadd.f32 %v748, %v1015
  %v1017 = vpop.f32.mrf.mxu0
  %v1018 = vadd.f32 %v750, %v1017
  %1019 = vmatmul.bf16.gmra.mxu0 %v863
  %v1020 = vpop.f32.mrf.mxu0
  %v1021 = vadd.f32 %v753, %v1020
  %v1022 = vpop.f32.mrf.mxu0
  %v1023 = vadd.f32 %v755, %v1022
  %1024 = vmatmul.bf16.gmra.mxu0 %v866
  %v1025 = vpop.f32.mrf.mxu0
  %v1026 = vadd.f32 %v758, %v1025
  %v1027 = vpop.f32.mrf.mxu0
  %v1028 = vadd.f32 %v760, %v1027
  %1029 = vmatmul.bf16.gmra.mxu0 %v869
  %v1030 = vpop.f32.mrf.mxu0
  %v1031 = vadd.f32 %v763, %v1030
  %v1032 = vpop.f32.mrf.mxu0
  %v1033 = vadd.f32 %v765, %v1032
  %1034 = vmatmul.bf16.gmra.mxu0 %v872
  %v1035 = vpop.f32.mrf.mxu0
  %v1036 = vadd.f32 %v768, %v1035
  %v1037 = vpop.f32.mrf.mxu0
  %v1038 = vadd.f32 %v770, %v1037
  %1039 = vmatmul.bf16.gmra.mxu0 %v875
  %v1040 = vpop.f32.mrf.mxu0
  %v1041 = vadd.f32 %v773, %v1040
  %v1042 = vpop.f32.mrf.mxu0
  %v1043 = vadd.f32 %v775, %v1042
  %1044 = vmatmul.bf16.gmra.mxu0 %v878
  %v1045 = vpop.f32.mrf.mxu0
  %v1046 = vadd.f32 %v778, %v1045
  %v1047 = vpop.f32.mrf.mxu0
  %v1048 = vadd.f32 %v780, %v1047
  %1049 = vmatmul.bf16.gmra.mxu0 %v881
  %v1050 = vpop.f32.mrf.mxu0
  %v1051 = vadd.f32 %v783, %v1050
  %v1052 = vpop.f32.mrf.mxu0
  %v1053 = vadd.f32 %v785, %v1052
  %1054 = vdwg.mxu0
  %v1055 = vld [vmem:[#allocation2 + $0x2] sm:$0xff]
  %v1056 = vld [vmem:[#allocation2 + $0xa] sm:$0xff]
  %v1057 = vld [vmem:[#allocation2 + $0x1a] sm:$0xff]
  %v1058 = vld [vmem:[#allocation2 + $0x22] sm:$0xff]
  %v1059 = vld [vmem:[#allocation2 + $0x32] sm:$0xff]
  %v1060 = vld [vmem:[#allocation2 + $0x3a] sm:$0xff]
  %v1061 = vld [vmem:[#allocation2 + $0x4a] sm:$0xff]
  %v1062 = vld [vmem:[#allocation2 + $0x52] sm:$0xff]
  %v1063 = vld [vmem:[#allocation2 + $0x62] sm:$0xff]
  %v1064 = vld [vmem:[#allocation2 + $0x6a] sm:$0xff]
  %v1065 = vld [vmem:[#allocation2 + $0x7a] sm:$0xff]
  %v1066 = vld [vmem:[#allocation2 + $0x82] sm:$0xff]
  %v1067 = vld [vmem:[#allocation2 + $0x92] sm:$0xff]
  %v1068 = vld [vmem:[#allocation2 + $0x9a] sm:$0xff]
  %v1069 = vld [vmem:[#allocation2 + $0xaa] sm:$0xff]
  %v1070 = vld [vmem:[#allocation2 + $0xb2] sm:$0xff]
  %v1071 = vld [vmem:[#allocation2 + $0xc2] sm:$0xff]
  %v1072 = vld [vmem:[#allocation2 + $0xca] sm:$0xff]
  %v1073 = vld [vmem:[#allocation2 + $0xda] sm:$0xff]
  %v1074 = vld [vmem:[#allocation2 + $0xe2] sm:$0xff]
  %v1075 = vld [vmem:[#allocation2 + $0xf2] sm:$0xff]
  %v1076 = vld [vmem:[#allocation2 + $0xfa] sm:$0xff]
  %v1077 = vld [vmem:[#allocation2 + $0x10a] sm:$0xff]
  %v1078 = vld [vmem:[#allocation2 + $0x112] sm:$0xff]
  %v1079 = vld [vmem:[#allocation2 + $0x122] sm:$0xff]
  %v1080 = vld [vmem:[#allocation2 + $0x12a] sm:$0xff]
  %v1081 = vld [vmem:[#allocation2 + $0x13a] sm:$0xff]
  %v1082 = vld [vmem:[#allocation2 + $0x142] sm:$0xff]
  %v1083 = vld [vmem:[#allocation2 + $0x152] sm:$0xff]
  %v1084 = vld [vmem:[#allocation2 + $0x15a] sm:$0xff]
  %v1085 = vld [vmem:[#allocation2 + $0x16a] sm:$0xff]
  %v1086 = vld [vmem:[#allocation2 + $0x172] sm:$0xff]
  %v1087 = vld [vmem:[#allocation2 + $0x1b2] sm:$0xff]
  %v1088 = vld [vmem:[#allocation2 + $0x1ba] sm:$0xff]
  %v1089 = vld [vmem:[#allocation2 + $0x1ca] sm:$0xff]
  %v1090 = vld [vmem:[#allocation2 + $0x1d2] sm:$0xff]
  %v1091 = vld [vmem:[#allocation2 + $0x1e2] sm:$0xff]
  %v1092 = vld [vmem:[#allocation2 + $0x1ea] sm:$0xff]
  %v1093 = vld [vmem:[#allocation2 + $0x1fa] sm:$0xff]
  %v1094 = vld [vmem:[#allocation2 + $0x202] sm:$0xff]
  %v1095 = vld [vmem:[#allocation2 + $0x212] sm:$0xff]
  %v1096 = vld [vmem:[#allocation2 + $0x21a] sm:$0xff]
  %v1097 = vld [vmem:[#allocation2 + $0x22a] sm:$0xff]
  %v1098 = vld [vmem:[#allocation2 + $0x232] sm:$0xff]
  %v1099 = vld [vmem:[#allocation2 + $0x242] sm:$0xff]
  %v1100 = vld [vmem:[#allocation2 + $0x24a] sm:$0xff]
  %v1101 = vld [vmem:[#allocation2 + $0x25a] sm:$0xff]
  %v1102 = vld [vmem:[#allocation2 + $0x262] sm:$0xff]
  %v1103 = vld [vmem:[#allocation2 + $0x272] sm:$0xff]
  %v1104 = vld [vmem:[#allocation2 + $0x27a] sm:$0xff]
  %v1105 = vld [vmem:[#allocation2 + $0x28a] sm:$0xff]
  %v1106 = vld [vmem:[#allocation2 + $0x292] sm:$0xff]
  %v1107 = vld [vmem:[#allocation2 + $0x2a2] sm:$0xff]
  %v1108 = vld [vmem:[#allocation2 + $0x2aa] sm:$0xff]
  %v1109 = vld [vmem:[#allocation2 + $0x2ba] sm:$0xff]
  %v1110 = vld [vmem:[#allocation2 + $0x2c2] sm:$0xff]
  %v1111 = vld [vmem:[#allocation2 + $0x2d2] sm:$0xff]
  %v1112 = vld [vmem:[#allocation2 + $0x2da] sm:$0xff]
  %v1113 = vld [vmem:[#allocation2 + $0x2ea] sm:$0xff]
  %v1114 = vld [vmem:[#allocation2 + $0x2f2] sm:$0xff]
  %v1115 = vld [vmem:[#allocation2 + $0x302] sm:$0xff]
  %v1116 = vld [vmem:[#allocation2 + $0x30a] sm:$0xff]
  %v1117 = vld [vmem:[#allocation2 + $0x31a] sm:$0xff]
  %v1118 = vld [vmem:[#allocation2 + $0x322] sm:$0xff]
  %v1119 = vpack.c.bf16 %v1056, %v1055
  %v1120 = vpack.c.bf16 %v1058, %v1057
  %v1121 = vpack.c.bf16 %v1060, %v1059
  %v1122 = vpack.c.bf16 %v1062, %v1061
  %v1123 = vpack.c.bf16 %v1064, %v1063
  %v1124 = vpack.c.bf16 %v1066, %v1065
  %v1125 = vpack.c.bf16 %v1068, %v1067
  %v1126 = vpack.c.bf16 %v1070, %v1069
  %v1127 = vpack.c.bf16 %v1072, %v1071
  %v1128 = vpack.c.bf16 %v1074, %v1073
  %v1129 = vpack.c.bf16 %v1076, %v1075
  %v1130 = vpack.c.bf16 %v1078, %v1077
  %v1131 = vpack.c.bf16 %v1080, %v1079
  %v1132 = vpack.c.bf16 %v1082, %v1081
  %v1133 = vpack.c.bf16 %v1084, %v1083
  %v1134 = vpack.c.bf16 %v1086, %v1085
  %v1135 = vpack.c.bf16 %v1088, %v1087
  %v1136 = vpack.c.bf16 %v1090, %v1089
  %v1137 = vpack.c.bf16 %v1092, %v1091
  %v1138 = vpack.c.bf16 %v1094, %v1093
  %v1139 = vpack.c.bf16 %v1096, %v1095
  %v1140 = vpack.c.bf16 %v1098, %v1097
  %v1141 = vpack.c.bf16 %v1100, %v1099
  %v1142 = vpack.c.bf16 %v1102, %v1101
  %v1143 = vpack.c.bf16 %v1104, %v1103
  %v1144 = vpack.c.bf16 %v1106, %v1105
  %v1145 = vpack.c.bf16 %v1108, %v1107
  %v1146 = vpack.c.bf16 %v1110, %v1109
  %v1147 = vpack.c.bf16 %v1112, %v1111
  %v1148 = vpack.c.bf16 %v1114, %v1113
  %v1149 = vpack.c.bf16 %v1116, %v1115
  %v1150 = vpack.c.bf16 %v1118, %v1117
  %s1151 = scalar_lea.vmem %s3, 4
  %v1152 = vld [vmem:[%s1151] sm:$0x3]
  %v1154 = vsel %vm20, %v1119, 0
  %v1157 = vsel %vm20, %v1120, 0
  %v1160 = vsel %vm20, %v1121, 0
  %v1163 = vsel %vm20, %v1122, 0
  %v1166 = vsel %vm20, %v1123, 0
  %v1169 = vsel %vm20, %v1124, 0
  %v1172 = vsel %vm20, %v1125, 0
  %v1175 = vsel %vm20, %v1126, 0
  %v1178 = vsel %vm20, %v1127, 0
  %v1181 = vsel %vm20, %v1128, 0
  %v1184 = vsel %vm20, %v1129, 0
  %v1187 = vsel %vm20, %v1130, 0
  %v1190 = vsel %vm20, %v1131, 0
  %v1193 = vsel %vm20, %v1132, 0
  %v1196 = vsel %vm20, %v1133, 0
  %v1199 = vsel %vm20, %v1134, 0
  %v1202 = vsel %vm20, %v1135, 0
  %v1205 = vsel %vm20, %v1136, 0
  %v1208 = vsel %vm20, %v1137, 0
  %v1211 = vsel %vm20, %v1138, 0
  %v1214 = vsel %vm20, %v1139, 0
  %v1217 = vsel %vm20, %v1140, 0
  %v1220 = vsel %vm20, %v1141, 0
  %v1223 = vsel %vm20, %v1142, 0
  %v1226 = vsel %vm20, %v1143, 0
  %v1229 = vsel %vm20, %v1144, 0
  %v1232 = vsel %vm20, %v1145, 0
  %v1235 = vsel %vm20, %v1146, 0
  %v1238 = vsel %vm20, %v1147, 0
  %v1241 = vsel %vm20, %v1148, 0
  %v1244 = vsel %vm20, %v1149, 0
  %v1247 = vsel %vm20, %v1150, 0
  %v1250 = vsel %vm614, %v1152, 0
  %1252 = vmatpush.bf16.msra.mxu0 0
  %1253 = vmatpush.bf16.msra.mxu0 0
  %1254 = vmatpush.bf16.msra.mxu0 0
  %1255 = vmatpush.bf16.msra.mxu0 0
  %1256 = vmatpush.bf16.msra.mxu0 0
  %1257 = vmatpush.bf16.msra.mxu0 0
  %1258 = vmatpush.bf16.msra.mxu0 0
  %1259 = vmatpush.bf16.msra.mxu0 %v1250
  %1260 = vmatmul.bf16.gmra.mxu0 %v1154
  %v1261 = vpop.f32.mrf.mxu0
  %v1262 = vadd.f32 0.0, %v1261
  %v1263 = vpop.f32.mrf.mxu0
  %v1264 = vadd.f32 0.0, %v1263
  %1265 = vmatmul.bf16.gmra.mxu0 %v1157
  %v1266 = vpop.f32.mrf.mxu0
  %v1267 = vadd.f32 0.0, %v1266
  %v1268 = vpop.f32.mrf.mxu0
  %v1269 = vadd.f32 0.0, %v1268
  %1270 = vmatmul.bf16.gmra.mxu0 %v1160
  %v1271 = vpop.f32.mrf.mxu0
  %v1272 = vadd.f32 0.0, %v1271
  %v1273 = vpop.f32.mrf.mxu0
  %v1274 = vadd.f32 0.0, %v1273
  %1275 = vmatmul.bf16.gmra.mxu0 %v1163
  %v1276 = vpop.f32.mrf.mxu0
  %v1277 = vadd.f32 0.0, %v1276
  %v1278 = vpop.f32.mrf.mxu0
  %v1279 = vadd.f32 0.0, %v1278
  %1280 = vmatmul.bf16.gmra.mxu0 %v1166
  %v1281 = vpop.f32.mrf.mxu0
  %v1282 = vadd.f32 0.0, %v1281
  %v1283 = vpop.f32.mrf.mxu0
  %v1284 = vadd.f32 0.0, %v1283
  %1285 = vmatmul.bf16.gmra.mxu0 %v1169
  %v1286 = vpop.f32.mrf.mxu0
  %v1287 = vadd.f32 0.0, %v1286
  %v1288 = vpop.f32.mrf.mxu0
  %v1289 = vadd.f32 0.0, %v1288
  %1290 = vmatmul.bf16.gmra.mxu0 %v1172
  %v1291 = vpop.f32.mrf.mxu0
  %v1292 = vadd.f32 0.0, %v1291
  %v1293 = vpop.f32.mrf.mxu0
  %v1294 = vadd.f32 0.0, %v1293
  %1295 = vmatmul.bf16.gmra.mxu0 %v1175
  %v1296 = vpop.f32.mrf.mxu0
  %v1297 = vadd.f32 0.0, %v1296
  %v1298 = vpop.f32.mrf.mxu0
  %v1299 = vadd.f32 0.0, %v1298
  %1300 = vmatmul.bf16.gmra.mxu0 %v1178
  %v1301 = vpop.f32.mrf.mxu0
  %v1302 = vadd.f32 0.0, %v1301
  %v1303 = vpop.f32.mrf.mxu0
  %v1304 = vadd.f32 0.0, %v1303
  %1305 = vmatmul.bf16.gmra.mxu0 %v1181
  %v1306 = vpop.f32.mrf.mxu0
  %v1307 = vadd.f32 0.0, %v1306
  %v1308 = vpop.f32.mrf.mxu0
  %v1309 = vadd.f32 0.0, %v1308
  %1310 = vmatmul.bf16.gmra.mxu0 %v1184
  %v1311 = vpop.f32.mrf.mxu0
  %v1312 = vadd.f32 0.0, %v1311
  %v1313 = vpop.f32.mrf.mxu0
  %v1314 = vadd.f32 0.0, %v1313
  %1315 = vmatmul.bf16.gmra.mxu0 %v1187
  %v1316 = vpop.f32.mrf.mxu0
  %v1317 = vadd.f32 0.0, %v1316
  %v1318 = vpop.f32.mrf.mxu0
  %v1319 = vadd.f32 0.0, %v1318
  %1320 = vmatmul.bf16.gmra.mxu0 %v1190
  %v1321 = vpop.f32.mrf.mxu0
  %v1322 = vadd.f32 0.0, %v1321
  %v1323 = vpop.f32.mrf.mxu0
  %v1324 = vadd.f32 0.0, %v1323
  %1325 = vmatmul.bf16.gmra.mxu0 %v1193
  %v1326 = vpop.f32.mrf.mxu0
  %v1327 = vadd.f32 0.0, %v1326
  %v1328 = vpop.f32.mrf.mxu0
  %v1329 = vadd.f32 0.0, %v1328
  %1330 = vmatmul.bf16.gmra.mxu0 %v1196
  %v1331 = vpop.f32.mrf.mxu0
  %v1332 = vadd.f32 0.0, %v1331
  %v1333 = vpop.f32.mrf.mxu0
  %v1334 = vadd.f32 0.0, %v1333
  %1335 = vmatmul.bf16.gmra.mxu0 %v1199
  %v1336 = vpop.f32.mrf.mxu0
  %v1337 = vadd.f32 0.0, %v1336
  %v1338 = vpop.f32.mrf.mxu0
  %v1339 = vadd.f32 0.0, %v1338
  %1340 = vmatmul.bf16.gmra.mxu0 %v1202
  %v1341 = vpop.f32.mrf.mxu0
  %v1342 = vadd.f32 0.0, %v1341
  %v1343 = vpop.f32.mrf.mxu0
  %v1344 = vadd.f32 0.0, %v1343
  %1345 = vmatmul.bf16.gmra.mxu0 %v1205
  %v1346 = vpop.f32.mrf.mxu0
  %v1347 = vadd.f32 0.0, %v1346
  %v1348 = vpop.f32.mrf.mxu0
  %v1349 = vadd.f32 0.0, %v1348
  %1350 = vmatmul.bf16.gmra.mxu0 %v1208
  %v1351 = vpop.f32.mrf.mxu0
  %v1352 = vadd.f32 0.0, %v1351
  %v1353 = vpop.f32.mrf.mxu0
  %v1354 = vadd.f32 0.0, %v1353
  %1355 = vmatmul.bf16.gmra.mxu0 %v1211
  %v1356 = vpop.f32.mrf.mxu0
  %v1357 = vadd.f32 0.0, %v1356
  %v1358 = vpop.f32.mrf.mxu0
  %v1359 = vadd.f32 0.0, %v1358
  %1360 = vmatmul.bf16.gmra.mxu0 %v1214
  %v1361 = vpop.f32.mrf.mxu0
  %v1362 = vadd.f32 0.0, %v1361
  %v1363 = vpop.f32.mrf.mxu0
  %v1364 = vadd.f32 0.0, %v1363
  %1365 = vmatmul.bf16.gmra.mxu0 %v1217
  %v1366 = vpop.f32.mrf.mxu0
  %v1367 = vadd.f32 0.0, %v1366
  %v1368 = vpop.f32.mrf.mxu0
  %v1369 = vadd.f32 0.0, %v1368
  %1370 = vmatmul.bf16.gmra.mxu0 %v1220
  %v1371 = vpop.f32.mrf.mxu0
  %v1372 = vadd.f32 0.0, %v1371
  %v1373 = vpop.f32.mrf.mxu0
  %v1374 = vadd.f32 0.0, %v1373
  %1375 = vmatmul.bf16.gmra.mxu0 %v1223
  %v1376 = vpop.f32.mrf.mxu0
  %v1377 = vadd.f32 0.0, %v1376
  %v1378 = vpop.f32.mrf.mxu0
  %v1379 = vadd.f32 0.0, %v1378
  %1380 = vmatmul.bf16.gmra.mxu0 %v1226
  %v1381 = vpop.f32.mrf.mxu0
  %v1382 = vadd.f32 0.0, %v1381
  %v1383 = vpop.f32.mrf.mxu0
  %v1384 = vadd.f32 0.0, %v1383
  %1385 = vmatmul.bf16.gmra.mxu0 %v1229
  %v1386 = vpop.f32.mrf.mxu0
  %v1387 = vadd.f32 0.0, %v1386
  %v1388 = vpop.f32.mrf.mxu0
  %v1389 = vadd.f32 0.0, %v1388
  %1390 = vmatmul.bf16.gmra.mxu0 %v1232
  %v1391 = vpop.f32.mrf.mxu0
  %v1392 = vadd.f32 0.0, %v1391
  %v1393 = vpop.f32.mrf.mxu0
  %v1394 = vadd.f32 0.0, %v1393
  %1395 = vmatmul.bf16.gmra.mxu0 %v1235
  %v1396 = vpop.f32.mrf.mxu0
  %v1397 = vadd.f32 0.0, %v1396
  %v1398 = vpop.f32.mrf.mxu0
  %v1399 = vadd.f32 0.0, %v1398
  %1400 = vmatmul.bf16.gmra.mxu0 %v1238
  %v1401 = vpop.f32.mrf.mxu0
  %v1402 = vadd.f32 0.0, %v1401
  %v1403 = vpop.f32.mrf.mxu0
  %v1404 = vadd.f32 0.0, %v1403
  %1405 = vmatmul.bf16.gmra.mxu0 %v1241
  %v1406 = vpop.f32.mrf.mxu0
  %v1407 = vadd.f32 0.0, %v1406
  %v1408 = vpop.f32.mrf.mxu0
  %v1409 = vadd.f32 0.0, %v1408
  %1410 = vmatmul.bf16.gmra.mxu0 %v1244
  %v1411 = vpop.f32.mrf.mxu0
  %v1412 = vadd.f32 0.0, %v1411
  %v1413 = vpop.f32.mrf.mxu0
  %v1414 = vadd.f32 0.0, %v1413
  %1415 = vmatmul.bf16.gmra.mxu0 %v1247
  %v1416 = vpop.f32.mrf.mxu0
  %v1417 = vadd.f32 0.0, %v1416
  %v1418 = vpop.f32.mrf.mxu0
  %v1419 = vadd.f32 0.0, %v1418
  %1420 = vdwg.mxu0
  %v1421 = vadd.f32 %v896, %v1262
  %v1422 = vadd.f32 %v898, %v1264
  %v1423 = vadd.f32 %v901, %v1267
  %v1424 = vadd.f32 %v903, %v1269
  %v1425 = vadd.f32 %v906, %v1272
  %v1426 = vadd.f32 %v908, %v1274
  %v1427 = vadd.f32 %v911, %v1277
  %v1428 = vadd.f32 %v913, %v1279
  %v1429 = vadd.f32 %v916, %v1282
  %v1430 = vadd.f32 %v918, %v1284
  %v1431 = vadd.f32 %v921, %v1287
  %v1432 = vadd.f32 %v923, %v1289
  %v1433 = vadd.f32 %v926, %v1292
  %v1434 = vadd.f32 %v928, %v1294
  %v1435 = vadd.f32 %v931, %v1297
  %v1436 = vadd.f32 %v933, %v1299
  %v1437 = vadd.f32 %v936, %v1302
  %v1438 = vadd.f32 %v938, %v1304
  %v1439 = vadd.f32 %v941, %v1307
  %v1440 = vadd.f32 %v943, %v1309
  %v1441 = vadd.f32 %v946, %v1312
  %v1442 = vadd.f32 %v948, %v1314
  %v1443 = vadd.f32 %v951, %v1317
  %v1444 = vadd.f32 %v953, %v1319
  %v1445 = vadd.f32 %v956, %v1322
  %v1446 = vadd.f32 %v958, %v1324
  %v1447 = vadd.f32 %v961, %v1327
  %v1448 = vadd.f32 %v963, %v1329
  %v1449 = vadd.f32 %v966, %v1332
  %v1450 = vadd.f32 %v968, %v1334
  %v1451 = vadd.f32 %v971, %v1337
  %v1452 = vadd.f32 %v973, %v1339
  %v1453 = vadd.f32 %v976, %v1342
  %v1454 = vadd.f32 %v978, %v1344
  %v1455 = vadd.f32 %v981, %v1347
  %v1456 = vadd.f32 %v983, %v1349
  %v1457 = vadd.f32 %v986, %v1352
  %v1458 = vadd.f32 %v988, %v1354
  %v1459 = vadd.f32 %v991, %v1357
  %v1460 = vadd.f32 %v993, %v1359
  %v1461 = vadd.f32 %v996, %v1362
  %v1462 = vadd.f32 %v998, %v1364
  %v1463 = vadd.f32 %v1001, %v1367
  %v1464 = vadd.f32 %v1003, %v1369
  %v1465 = vadd.f32 %v1006, %v1372
  %v1466 = vadd.f32 %v1008, %v1374
  %v1467 = vadd.f32 %v1011, %v1377
  %v1468 = vadd.f32 %v1013, %v1379
  %v1469 = vadd.f32 %v1016, %v1382
  %v1470 = vadd.f32 %v1018, %v1384
  %v1471 = vadd.f32 %v1021, %v1387
  %v1472 = vadd.f32 %v1023, %v1389
  %v1473 = vadd.f32 %v1026, %v1392
  %v1474 = vadd.f32 %v1028, %v1394
  %v1475 = vadd.f32 %v1031, %v1397
  %v1476 = vadd.f32 %v1033, %v1399
  %v1477 = vadd.f32 %v1036, %v1402
  %v1478 = vadd.f32 %v1038, %v1404
  %v1479 = vadd.f32 %v1041, %v1407
  %v1480 = vadd.f32 %v1043, %v1409
  %v1481 = vadd.f32 %v1046, %v1412
  %v1482 = vadd.f32 %v1048, %v1414
  %v1483 = vadd.f32 %v1051, %v1417
  %v1484 = vadd.f32 %v1053, %v1419
  %v1485 = vld [vmem:[%s258] sm:$0xff]
  %v1486 = vld [vmem:[%s258 + $0x8] sm:$0xff]
  %v1487 = vld [vmem:[%s258 + $0x18] sm:$0xff]
  %v1488 = vld [vmem:[%s258 + $0x20] sm:$0xff]
  %v1489 = vld [vmem:[%s258 + $0x30] sm:$0xff]
  %v1490 = vld [vmem:[%s258 + $0x38] sm:$0xff]
  %v1491 = vld [vmem:[%s258 + $0x48] sm:$0xff]
  %v1492 = vld [vmem:[%s258 + $0x50] sm:$0xff]
  %v1493 = vld [vmem:[%s258 + $0x60] sm:$0xff]
  %v1494 = vld [vmem:[%s258 + $0x68] sm:$0xff]
  %v1495 = vld [vmem:[%s258 + $0x78] sm:$0xff]
  %v1496 = vld [vmem:[%s258 + $0x80] sm:$0xff]
  %v1497 = vld [vmem:[%s258 + $0x90] sm:$0xff]
  %v1498 = vld [vmem:[%s258 + $0x98] sm:$0xff]
  %v1499 = vld [vmem:[%s258 + $0xa8] sm:$0xff]
  %v1500 = vld [vmem:[%s258 + $0xb0] sm:$0xff]
  %v1501 = vld [vmem:[%s258 + $0xc0] sm:$0xff]
  %v1502 = vld [vmem:[%s258 + $0xc8] sm:$0xff]
  %v1503 = vld [vmem:[%s258 + $0xd8] sm:$0xff]
  %v1504 = vld [vmem:[%s258 + $0xe0] sm:$0xff]
  %v1505 = vld [vmem:[%s258 + $0xf0] sm:$0xff]
  %v1506 = vld [vmem:[%s258 + $0xf8] sm:$0xff]
  %v1507 = vld [vmem:[%s258 + $0x108] sm:$0xff]
  %v1508 = vld [vmem:[%s258 + $0x110] sm:$0xff]
  %v1509 = vld [vmem:[%s258 + $0x120] sm:$0xff]
  %v1510 = vld [vmem:[%s258 + $0x128] sm:$0xff]
  %v1511 = vld [vmem:[%s258 + $0x138] sm:$0xff]
  %v1512 = vld [vmem:[%s258 + $0x140] sm:$0xff]
  %v1513 = vld [vmem:[%s258 + $0x150] sm:$0xff]
  %v1514 = vld [vmem:[%s258 + $0x158] sm:$0xff]
  %v1515 = vld [vmem:[%s258 + $0x168] sm:$0xff]
  %v1516 = vld [vmem:[%s258 + $0x170] sm:$0xff]
  %v1517 = vld [vmem:[%s258 + $0x1b0] sm:$0xff]
  %v1518 = vld [vmem:[%s258 + $0x1b8] sm:$0xff]
  %v1519 = vld [vmem:[%s258 + $0x1c8] sm:$0xff]
  %v1520 = vld [vmem:[%s258 + $0x1d0] sm:$0xff]
  %v1521 = vld [vmem:[%s258 + $0x1e0] sm:$0xff]
  %v1522 = vld [vmem:[%s258 + $0x1e8] sm:$0xff]
  %v1523 = vld [vmem:[%s258 + $0x1f8] sm:$0xff]
  %v1524 = vld [vmem:[%s258 + $0x200] sm:$0xff]
  %v1525 = vld [vmem:[%s258 + $0x210] sm:$0xff]
  %v1526 = vld [vmem:[%s258 + $0x218] sm:$0xff]
  %v1527 = vld [vmem:[%s258 + $0x228] sm:$0xff]
  %v1528 = vld [vmem:[%s258 + $0x230] sm:$0xff]
  %v1529 = vld [vmem:[%s258 + $0x240] sm:$0xff]
  %v1530 = vld [vmem:[%s258 + $0x248] sm:$0xff]
  %v1531 = vld [vmem:[%s258 + $0x258] sm:$0xff]
  %v1532 = vld [vmem:[%s258 + $0x260] sm:$0xff]
  %v1533 = vld [vmem:[%s258 + $0x270] sm:$0xff]
  %v1534 = vld [vmem:[%s258 + $0x278] sm:$0xff]
  %v1535 = vld [vmem:[%s258 + $0x288] sm:$0xff]
  %v1536 = vld [vmem:[%s258 + $0x290] sm:$0xff]
  %v1537 = vld [vmem:[%s258 + $0x2a0] sm:$0xff]
  %v1538 = vld [vmem:[%s258 + $0x2a8] sm:$0xff]
  %v1539 = vld [vmem:[%s258 + $0x2b8] sm:$0xff]
  %v1540 = vld [vmem:[%s258 + $0x2c0] sm:$0xff]
  %v1541 = vld [vmem:[%s258 + $0x2d0] sm:$0xff]
  %v1542 = vld [vmem:[%s258 + $0x2d8] sm:$0xff]
  %v1543 = vld [vmem:[%s258 + $0x2e8] sm:$0xff]
  %v1544 = vld [vmem:[%s258 + $0x2f0] sm:$0xff]
  %v1545 = vld [vmem:[%s258 + $0x300] sm:$0xff]
  %v1546 = vld [vmem:[%s258 + $0x308] sm:$0xff]
  %v1547 = vld [vmem:[%s258 + $0x318] sm:$0xff]
  %v1548 = vld [vmem:[%s258 + $0x320] sm:$0xff]
  %v1549 = vpack.c.bf16 %v1486, %v1485
  %v1550 = vpack.c.bf16 %v1488, %v1487
  %v1551 = vpack.c.bf16 %v1490, %v1489
  %v1552 = vpack.c.bf16 %v1492, %v1491
  %v1553 = vpack.c.bf16 %v1494, %v1493
  %v1554 = vpack.c.bf16 %v1496, %v1495
  %v1555 = vpack.c.bf16 %v1498, %v1497
  %v1556 = vpack.c.bf16 %v1500, %v1499
  %v1557 = vpack.c.bf16 %v1502, %v1501
  %v1558 = vpack.c.bf16 %v1504, %v1503
  %v1559 = vpack.c.bf16 %v1506, %v1505
  %v1560 = vpack.c.bf16 %v1508, %v1507
  %v1561 = vpack.c.bf16 %v1510, %v1509
  %v1562 = vpack.c.bf16 %v1512, %v1511
  %v1563 = vpack.c.bf16 %v1514, %v1513
  %v1564 = vpack.c.bf16 %v1516, %v1515
  %v1565 = vpack.c.bf16 %v1518, %v1517
  %v1566 = vpack.c.bf16 %v1520, %v1519
  %v1567 = vpack.c.bf16 %v1522, %v1521
  %v1568 = vpack.c.bf16 %v1524, %v1523
  %v1569 = vpack.c.bf16 %v1526, %v1525
  %v1570 = vpack.c.bf16 %v1528, %v1527
  %v1571 = vpack.c.bf16 %v1530, %v1529
  %v1572 = vpack.c.bf16 %v1532, %v1531
  %v1573 = vpack.c.bf16 %v1534, %v1533
  %v1574 = vpack.c.bf16 %v1536, %v1535
  %v1575 = vpack.c.bf16 %v1538, %v1537
  %v1576 = vpack.c.bf16 %v1540, %v1539
  %v1577 = vpack.c.bf16 %v1542, %v1541
  %v1578 = vpack.c.bf16 %v1544, %v1543
  %v1579 = vpack.c.bf16 %v1546, %v1545
  %v1580 = vpack.c.bf16 %v1548, %v1547
  %s1581 = scalar_lea.vmem %s3, 6
  %v1582 = vld [vmem:[%s1581] sm:$0x3]
  %v1584 = vsel %vm20, %v1549, 0
  %v1587 = vsel %vm20, %v1550, 0
  %v1590 = vsel %vm20, %v1551, 0
  %v1593 = vsel %vm20, %v1552, 0
  %v1596 = vsel %vm20, %v1553, 0
  %v1599 = vsel %vm20, %v1554, 0
  %v1602 = vsel %vm20, %v1555, 0
  %v1605 = vsel %vm20, %v1556, 0
  %v1608 = vsel %vm20, %v1557, 0
  %v1611 = vsel %vm20, %v1558, 0
  %v1614 = vsel %vm20, %v1559, 0
  %v1617 = vsel %vm20, %v1560, 0
  %v1620 = vsel %vm20, %v1561, 0
  %v1623 = vsel %vm20, %v1562, 0
  %v1626 = vsel %vm20, %v1563, 0
  %v1629 = vsel %vm20, %v1564, 0
  %v1632 = vsel %vm20, %v1565, 0
  %v1635 = vsel %vm20, %v1566, 0
  %v1638 = vsel %vm20, %v1567, 0
  %v1641 = vsel %vm20, %v1568, 0
  %v1644 = vsel %vm20, %v1569, 0
  %v1647 = vsel %vm20, %v1570, 0
  %v1650 = vsel %vm20, %v1571, 0
  %v1653 = vsel %vm20, %v1572, 0
  %v1656 = vsel %vm20, %v1573, 0
  %v1659 = vsel %vm20, %v1574, 0
  %v1662 = vsel %vm20, %v1575, 0
  %v1665 = vsel %vm20, %v1576, 0
  %v1668 = vsel %vm20, %v1577, 0
  %v1671 = vsel %vm20, %v1578, 0
  %v1674 = vsel %vm20, %v1579, 0
  %v1677 = vsel %vm20, %v1580, 0
  %v1680 = vsel %vm614, %v1582, 0
  %1682 = vmatpush.bf16.msra.mxu0 0
  %1683 = vmatpush.bf16.msra.mxu0 0
  %1684 = vmatpush.bf16.msra.mxu0 0
  %1685 = vmatpush.bf16.msra.mxu0 0
  %1686 = vmatpush.bf16.msra.mxu0 0
  %1687 = vmatpush.bf16.msra.mxu0 0
  %1688 = vmatpush.bf16.msra.mxu0 0
  %1689 = vmatpush.bf16.msra.mxu0 %v1680
  %1690 = vmatmul.bf16.gmra.mxu0 %v1584
  %v1691 = vpop.f32.mrf.mxu0
  %v1692 = vadd.f32 0.0, %v1691
  %v1693 = vpop.f32.mrf.mxu0
  %v1694 = vadd.f32 0.0, %v1693
  %1695 = vmatmul.bf16.gmra.mxu0 %v1587
  %v1696 = vpop.f32.mrf.mxu0
  %v1697 = vadd.f32 0.0, %v1696
  %v1698 = vpop.f32.mrf.mxu0
  %v1699 = vadd.f32 0.0, %v1698
  %1700 = vmatmul.bf16.gmra.mxu0 %v1590
  %v1701 = vpop.f32.mrf.mxu0
  %v1702 = vadd.f32 0.0, %v1701
  %v1703 = vpop.f32.mrf.mxu0
  %v1704 = vadd.f32 0.0, %v1703
  %1705 = vmatmul.bf16.gmra.mxu0 %v1593
  %v1706 = vpop.f32.mrf.mxu0
  %v1707 = vadd.f32 0.0, %v1706
  %v1708 = vpop.f32.mrf.mxu0
  %v1709 = vadd.f32 0.0, %v1708
  %1710 = vmatmul.bf16.gmra.mxu0 %v1596
  %v1711 = vpop.f32.mrf.mxu0
  %v1712 = vadd.f32 0.0, %v1711
  %v1713 = vpop.f32.mrf.mxu0
  %v1714 = vadd.f32 0.0, %v1713
  %1715 = vmatmul.bf16.gmra.mxu0 %v1599
  %v1716 = vpop.f32.mrf.mxu0
  %v1717 = vadd.f32 0.0, %v1716
  %v1718 = vpop.f32.mrf.mxu0
  %v1719 = vadd.f32 0.0, %v1718
  %1720 = vmatmul.bf16.gmra.mxu0 %v1602
  %v1721 = vpop.f32.mrf.mxu0
  %v1722 = vadd.f32 0.0, %v1721
  %v1723 = vpop.f32.mrf.mxu0
  %v1724 = vadd.f32 0.0, %v1723
  %1725 = vmatmul.bf16.gmra.mxu0 %v1605
  %v1726 = vpop.f32.mrf.mxu0
  %v1727 = vadd.f32 0.0, %v1726
  %v1728 = vpop.f32.mrf.mxu0
  %v1729 = vadd.f32 0.0, %v1728
  %1730 = vmatmul.bf16.gmra.mxu0 %v1608
  %v1731 = vpop.f32.mrf.mxu0
  %v1732 = vadd.f32 0.0, %v1731
  %v1733 = vpop.f32.mrf.mxu0
  %v1734 = vadd.f32 0.0, %v1733
  %1735 = vmatmul.bf16.gmra.mxu0 %v1611
  %v1736 = vpop.f32.mrf.mxu0
  %v1737 = vadd.f32 0.0, %v1736
  %v1738 = vpop.f32.mrf.mxu0
  %v1739 = vadd.f32 0.0, %v1738
  %1740 = vmatmul.bf16.gmra.mxu0 %v1614
  %v1741 = vpop.f32.mrf.mxu0
  %v1742 = vadd.f32 0.0, %v1741
  %v1743 = vpop.f32.mrf.mxu0
  %v1744 = vadd.f32 0.0, %v1743
  %1745 = vmatmul.bf16.gmra.mxu0 %v1617
  %v1746 = vpop.f32.mrf.mxu0
  %v1747 = vadd.f32 0.0, %v1746
  %v1748 = vpop.f32.mrf.mxu0
  %v1749 = vadd.f32 0.0, %v1748
  %1750 = vmatmul.bf16.gmra.mxu0 %v1620
  %v1751 = vpop.f32.mrf.mxu0
  %v1752 = vadd.f32 0.0, %v1751
  %v1753 = vpop.f32.mrf.mxu0
  %v1754 = vadd.f32 0.0, %v1753
  %1755 = vmatmul.bf16.gmra.mxu0 %v1623
  %v1756 = vpop.f32.mrf.mxu0
  %v1757 = vadd.f32 0.0, %v1756
  %v1758 = vpop.f32.mrf.mxu0
  %v1759 = vadd.f32 0.0, %v1758
  %1760 = vmatmul.bf16.gmra.mxu0 %v1626
  %v1761 = vpop.f32.mrf.mxu0
  %v1762 = vadd.f32 0.0, %v1761
  %v1763 = vpop.f32.mrf.mxu0
  %v1764 = vadd.f32 0.0, %v1763
  %1765 = vmatmul.bf16.gmra.mxu0 %v1629
  %v1766 = vpop.f32.mrf.mxu0
  %v1767 = vadd.f32 0.0, %v1766
  %v1768 = vpop.f32.mrf.mxu0
  %v1769 = vadd.f32 0.0, %v1768
  %1770 = vmatmul.bf16.gmra.mxu0 %v1632
  %v1771 = vpop.f32.mrf.mxu0
  %v1772 = vadd.f32 0.0, %v1771
  %v1773 = vpop.f32.mrf.mxu0
  %v1774 = vadd.f32 0.0, %v1773
  %1775 = vmatmul.bf16.gmra.mxu0 %v1635
  %v1776 = vpop.f32.mrf.mxu0
  %v1777 = vadd.f32 0.0, %v1776
  %v1778 = vpop.f32.mrf.mxu0
  %v1779 = vadd.f32 0.0, %v1778
  %1780 = vmatmul.bf16.gmra.mxu0 %v1638
  %v1781 = vpop.f32.mrf.mxu0
  %v1782 = vadd.f32 0.0, %v1781
  %v1783 = vpop.f32.mrf.mxu0
  %v1784 = vadd.f32 0.0, %v1783
  %1785 = vmatmul.bf16.gmra.mxu0 %v1641
  %v1786 = vpop.f32.mrf.mxu0
  %v1787 = vadd.f32 0.0, %v1786
  %v1788 = vpop.f32.mrf.mxu0
  %v1789 = vadd.f32 0.0, %v1788
  %1790 = vmatmul.bf16.gmra.mxu0 %v1644
  %v1791 = vpop.f32.mrf.mxu0
  %v1792 = vadd.f32 0.0, %v1791
  %v1793 = vpop.f32.mrf.mxu0
  %v1794 = vadd.f32 0.0, %v1793
  %1795 = vmatmul.bf16.gmra.mxu0 %v1647
  %v1796 = vpop.f32.mrf.mxu0
  %v1797 = vadd.f32 0.0, %v1796
  %v1798 = vpop.f32.mrf.mxu0
  %v1799 = vadd.f32 0.0, %v1798
  %1800 = vmatmul.bf16.gmra.mxu0 %v1650
  %v1801 = vpop.f32.mrf.mxu0
  %v1802 = vadd.f32 0.0, %v1801
  %v1803 = vpop.f32.mrf.mxu0
  %v1804 = vadd.f32 0.0, %v1803
  %1805 = vmatmul.bf16.gmra.mxu0 %v1653
  %v1806 = vpop.f32.mrf.mxu0
  %v1807 = vadd.f32 0.0, %v1806
  %v1808 = vpop.f32.mrf.mxu0
  %v1809 = vadd.f32 0.0, %v1808
  %1810 = vmatmul.bf16.gmra.mxu0 %v1656
  %v1811 = vpop.f32.mrf.mxu0
  %v1812 = vadd.f32 0.0, %v1811
  %v1813 = vpop.f32.mrf.mxu0
  %v1814 = vadd.f32 0.0, %v1813
  %1815 = vmatmul.bf16.gmra.mxu0 %v1659
  %v1816 = vpop.f32.mrf.mxu0
  %v1817 = vadd.f32 0.0, %v1816
  %v1818 = vpop.f32.mrf.mxu0
  %v1819 = vadd.f32 0.0, %v1818
  %1820 = vmatmul.bf16.gmra.mxu0 %v1662
  %v1821 = vpop.f32.mrf.mxu0
  %v1822 = vadd.f32 0.0, %v1821
  %v1823 = vpop.f32.mrf.mxu0
  %v1824 = vadd.f32 0.0, %v1823
  %1825 = vmatmul.bf16.gmra.mxu0 %v1665
  %v1826 = vpop.f32.mrf.mxu0
  %v1827 = vadd.f32 0.0, %v1826
  %v1828 = vpop.f32.mrf.mxu0
  %v1829 = vadd.f32 0.0, %v1828
  %1830 = vmatmul.bf16.gmra.mxu0 %v1668
  %v1831 = vpop.f32.mrf.mxu0
  %v1832 = vadd.f32 0.0, %v1831
  %v1833 = vpop.f32.mrf.mxu0
  %v1834 = vadd.f32 0.0, %v1833
  %1835 = vmatmul.bf16.gmra.mxu0 %v1671
  %v1836 = vpop.f32.mrf.mxu0
  %v1837 = vadd.f32 0.0, %v1836
  %v1838 = vpop.f32.mrf.mxu0
  %v1839 = vadd.f32 0.0, %v1838
  %1840 = vmatmul.bf16.gmra.mxu0 %v1674
  %v1841 = vpop.f32.mrf.mxu0
  %v1842 = vadd.f32 0.0, %v1841
  %v1843 = vpop.f32.mrf.mxu0
  %v1844 = vadd.f32 0.0, %v1843
  %1845 = vmatmul.bf16.gmra.mxu0 %v1677
  %v1846 = vpop.f32.mrf.mxu0
  %v1847 = vadd.f32 0.0, %v1846
  %v1848 = vpop.f32.mrf.mxu0
  %v1849 = vadd.f32 0.0, %v1848
  %1850 = vdwg.mxu0
  %v1851 = vadd.f32 %v1421, %v1692
  %v1852 = vadd.f32 %v1422, %v1694
  %v1853 = vadd.f32 %v1423, %v1697
  %v1854 = vadd.f32 %v1424, %v1699
  %v1855 = vadd.f32 %v1425, %v1702
  %v1856 = vadd.f32 %v1426, %v1704
  %v1857 = vadd.f32 %v1427, %v1707
  %v1858 = vadd.f32 %v1428, %v1709
  %v1859 = vadd.f32 %v1429, %v1712
  %v1860 = vadd.f32 %v1430, %v1714
  %v1861 = vadd.f32 %v1431, %v1717
  %v1862 = vadd.f32 %v1432, %v1719
  %v1863 = vadd.f32 %v1433, %v1722
  %v1864 = vadd.f32 %v1434, %v1724
  %v1865 = vadd.f32 %v1435, %v1727
  %v1866 = vadd.f32 %v1436, %v1729
  %v1867 = vadd.f32 %v1437, %v1732
  %v1868 = vadd.f32 %v1438, %v1734
  %v1869 = vadd.f32 %v1439, %v1737
  %v1870 = vadd.f32 %v1440, %v1739
  %v1871 = vadd.f32 %v1441, %v1742
  %v1872 = vadd.f32 %v1442, %v1744
  %v1873 = vadd.f32 %v1443, %v1747
  %v1874 = vadd.f32 %v1444, %v1749
  %v1875 = vadd.f32 %v1445, %v1752
  %v1876 = vadd.f32 %v1446, %v1754
  %v1877 = vadd.f32 %v1447, %v1757
  %v1878 = vadd.f32 %v1448, %v1759
  %v1879 = vadd.f32 %v1449, %v1762
  %v1880 = vadd.f32 %v1450, %v1764
  %v1881 = vadd.f32 %v1451, %v1767
  %v1882 = vadd.f32 %v1452, %v1769
  %v1883 = vadd.f32 %v1453, %v1772
  %v1884 = vadd.f32 %v1454, %v1774
  %v1885 = vadd.f32 %v1455, %v1777
  %v1886 = vadd.f32 %v1456, %v1779
  %v1887 = vadd.f32 %v1457, %v1782
  %v1888 = vadd.f32 %v1458, %v1784
  %v1889 = vadd.f32 %v1459, %v1787
  %v1890 = vadd.f32 %v1460, %v1789
  %v1891 = vadd.f32 %v1461, %v1792
  %v1892 = vadd.f32 %v1462, %v1794
  %v1893 = vadd.f32 %v1463, %v1797
  %v1894 = vadd.f32 %v1464, %v1799
  %v1895 = vadd.f32 %v1465, %v1802
  %v1896 = vadd.f32 %v1466, %v1804
  %v1897 = vadd.f32 %v1467, %v1807
  %v1898 = vadd.f32 %v1468, %v1809
  %v1899 = vadd.f32 %v1469, %v1812
  %v1900 = vadd.f32 %v1470, %v1814
  %v1901 = vadd.f32 %v1471, %v1817
  %v1902 = vadd.f32 %v1472, %v1819
  %v1903 = vadd.f32 %v1473, %v1822
  %v1904 = vadd.f32 %v1474, %v1824
  %v1905 = vadd.f32 %v1475, %v1827
  %v1906 = vadd.f32 %v1476, %v1829
  %v1907 = vadd.f32 %v1477, %v1832
  %v1908 = vadd.f32 %v1478, %v1834
  %v1909 = vadd.f32 %v1479, %v1837
  %v1910 = vadd.f32 %v1480, %v1839
  %v1911 = vadd.f32 %v1481, %v1842
  %v1912 = vadd.f32 %v1482, %v1844
  %v1913 = vadd.f32 %v1483, %v1847
  %v1914 = vadd.f32 %v1484, %v1849
  %v1915 = vld [vmem:[%s258 + $0x1] sm:$0xff]
  %v1916 = vld [vmem:[%s258 + $0x9] sm:$0xff]
  %v1917 = vld [vmem:[%s258 + $0x19] sm:$0xff]
  %v1918 = vld [vmem:[%s258 + $0x21] sm:$0xff]
  %v1919 = vld [vmem:[%s258 + $0x31] sm:$0xff]
  %v1920 = vld [vmem:[%s258 + $0x39] sm:$0xff]
  %v1921 = vld [vmem:[%s258 + $0x49] sm:$0xff]
  %v1922 = vld [vmem:[%s258 + $0x51] sm:$0xff]
  %v1923 = vld [vmem:[%s258 + $0x61] sm:$0xff]
  %v1924 = vld [vmem:[%s258 + $0x69] sm:$0xff]
  %v1925 = vld [vmem:[%s258 + $0x79] sm:$0xff]
  %v1926 = vld [vmem:[%s258 + $0x81] sm:$0xff]
  %v1927 = vld [vmem:[%s258 + $0x91] sm:$0xff]
  %v1928 = vld [vmem:[%s258 + $0x99] sm:$0xff]
  %v1929 = vld [vmem:[%s258 + $0xa9] sm:$0xff]
  %v1930 = vld [vmem:[%s258 + $0xb1] sm:$0xff]
  %v1931 = vld [vmem:[%s258 + $0xc1] sm:$0xff]
  %v1932 = vld [vmem:[%s258 + $0xc9] sm:$0xff]
  %v1933 = vld [vmem:[%s258 + $0xd9] sm:$0xff]
  %v1934 = vld [vmem:[%s258 + $0xe1] sm:$0xff]
  %v1935 = vld [vmem:[%s258 + $0xf1] sm:$0xff]
  %v1936 = vld [vmem:[%s258 + $0xf9] sm:$0xff]
  %v1937 = vld [vmem:[%s258 + $0x109] sm:$0xff]
  %v1938 = vld [vmem:[%s258 + $0x111] sm:$0xff]
  %v1939 = vld [vmem:[%s258 + $0x121] sm:$0xff]
  %v1940 = vld [vmem:[%s258 + $0x129] sm:$0xff]
  %v1941 = vld [vmem:[%s258 + $0x139] sm:$0xff]
  %v1942 = vld [vmem:[%s258 + $0x141] sm:$0xff]
  %v1943 = vld [vmem:[%s258 + $0x151] sm:$0xff]
  %v1944 = vld [vmem:[%s258 + $0x159] sm:$0xff]
  %v1945 = vld [vmem:[%s258 + $0x169] sm:$0xff]
  %v1946 = vld [vmem:[%s258 + $0x171] sm:$0xff]
  %v1947 = vld [vmem:[%s258 + $0x1b1] sm:$0xff]
  %v1948 = vld [vmem:[%s258 + $0x1b9] sm:$0xff]
  %v1949 = vld [vmem:[%s258 + $0x1c9] sm:$0xff]
  %v1950 = vld [vmem:[%s258 + $0x1d1] sm:$0xff]
  %v1951 = vld [vmem:[%s258 + $0x1e1] sm:$0xff]
  %v1952 = vld [vmem:[%s258 + $0x1e9] sm:$0xff]
  %v1953 = vld [vmem:[%s258 + $0x1f9] sm:$0xff]
  %v1954 = vld [vmem:[%s258 + $0x201] sm:$0xff]
  %v1955 = vld [vmem:[%s258 + $0x211] sm:$0xff]
  %v1956 = vld [vmem:[%s258 + $0x219] sm:$0xff]
  %v1957 = vld [vmem:[%s258 + $0x229] sm:$0xff]
  %v1958 = vld [vmem:[%s258 + $0x231] sm:$0xff]
  %v1959 = vld [vmem:[%s258 + $0x241] sm:$0xff]
  %v1960 = vld [vmem:[%s258 + $0x249] sm:$0xff]
  %v1961 = vld [vmem:[%s258 + $0x259] sm:$0xff]
  %v1962 = vld [vmem:[%s258 + $0x261] sm:$0xff]
  %v1963 = vld [vmem:[%s258 + $0x271] sm:$0xff]
  %v1964 = vld [vmem:[%s258 + $0x279] sm:$0xff]
  %v1965 = vld [vmem:[%s258 + $0x289] sm:$0xff]
  %v1966 = vld [vmem:[%s258 + $0x291] sm:$0xff]
  %v1967 = vld [vmem:[%s258 + $0x2a1] sm:$0xff]
  %v1968 = vld [vmem:[%s258 + $0x2a9] sm:$0xff]
  %v1969 = vld [vmem:[%s258 + $0x2b9] sm:$0xff]
  %v1970 = vld [vmem:[%s258 + $0x2c1] sm:$0xff]
  %v1971 = vld [vmem:[%s258 + $0x2d1] sm:$0xff]
  %v1972 = vld [vmem:[%s258 + $0x2d9] sm:$0xff]
  %v1973 = vld [vmem:[%s258 + $0x2e9] sm:$0xff]
  %v1974 = vld [vmem:[%s258 + $0x2f1] sm:$0xff]
  %v1975 = vld [vmem:[%s258 + $0x301] sm:$0xff]
  %v1976 = vld [vmem:[%s258 + $0x309] sm:$0xff]
  %v1977 = vld [vmem:[%s258 + $0x319] sm:$0xff]
  %v1978 = vld [vmem:[%s258 + $0x321] sm:$0xff]
  %v1979 = vpack.c.bf16 %v1916, %v1915
  %v1980 = vpack.c.bf16 %v1918, %v1917
  %v1981 = vpack.c.bf16 %v1920, %v1919
  %v1982 = vpack.c.bf16 %v1922, %v1921
  %v1983 = vpack.c.bf16 %v1924, %v1923
  %v1984 = vpack.c.bf16 %v1926, %v1925
  %v1985 = vpack.c.bf16 %v1928, %v1927
  %v1986 = vpack.c.bf16 %v1930, %v1929
  %v1987 = vpack.c.bf16 %v1932, %v1931
  %v1988 = vpack.c.bf16 %v1934, %v1933
  %v1989 = vpack.c.bf16 %v1936, %v1935
  %v1990 = vpack.c.bf16 %v1938, %v1937
  %v1991 = vpack.c.bf16 %v1940, %v1939
  %v1992 = vpack.c.bf16 %v1942, %v1941
  %v1993 = vpack.c.bf16 %v1944, %v1943
  %v1994 = vpack.c.bf16 %v1946, %v1945
  %v1995 = vpack.c.bf16 %v1948, %v1947
  %v1996 = vpack.c.bf16 %v1950, %v1949
  %v1997 = vpack.c.bf16 %v1952, %v1951
  %v1998 = vpack.c.bf16 %v1954, %v1953
  %v1999 = vpack.c.bf16 %v1956, %v1955
  %v2000 = vpack.c.bf16 %v1958, %v1957
  %v2001 = vpack.c.bf16 %v1960, %v1959
  %v2002 = vpack.c.bf16 %v1962, %v1961
  %v2003 = vpack.c.bf16 %v1964, %v1963
  %v2004 = vpack.c.bf16 %v1966, %v1965
  %v2005 = vpack.c.bf16 %v1968, %v1967
  %v2006 = vpack.c.bf16 %v1970, %v1969
  %v2007 = vpack.c.bf16 %v1972, %v1971
  %v2008 = vpack.c.bf16 %v1974, %v1973
  %v2009 = vpack.c.bf16 %v1976, %v1975
  %v2010 = vpack.c.bf16 %v1978, %v1977
  %s2011 = scalar_lea.vmem %s3, 8
  %v2012 = vld [vmem:[%s2011] sm:$0x3]
  %v2014 = vsel %vm20, %v1979, 0
  %v2017 = vsel %vm20, %v1980, 0
  %v2020 = vsel %vm20, %v1981, 0
  %v2023 = vsel %vm20, %v1982, 0
  %v2026 = vsel %vm20, %v1983, 0
  %v2029 = vsel %vm20, %v1984, 0
  %v2032 = vsel %vm20, %v1985, 0
  %v2035 = vsel %vm20, %v1986, 0
  %v2038 = vsel %vm20, %v1987, 0
  %v2041 = vsel %vm20, %v1988, 0
  %v2044 = vsel %vm20, %v1989, 0
  %v2047 = vsel %vm20, %v1990, 0
  %v2050 = vsel %vm20, %v1991, 0
  %v2053 = vsel %vm20, %v1992, 0
  %v2056 = vsel %vm20, %v1993, 0
  %v2059 = vsel %vm20, %v1994, 0
  %v2062 = vsel %vm20, %v1995, 0
  %v2065 = vsel %vm20, %v1996, 0
  %v2068 = vsel %vm20, %v1997, 0
  %v2071 = vsel %vm20, %v1998, 0
  %v2074 = vsel %vm20, %v1999, 0
  %v2077 = vsel %vm20, %v2000, 0
  %v2080 = vsel %vm20, %v2001, 0
  %v2083 = vsel %vm20, %v2002, 0
  %v2086 = vsel %vm20, %v2003, 0
  %v2089 = vsel %vm20, %v2004, 0
  %v2092 = vsel %vm20, %v2005, 0
  %v2095 = vsel %vm20, %v2006, 0
  %v2098 = vsel %vm20, %v2007, 0
  %v2101 = vsel %vm20, %v2008, 0
  %v2104 = vsel %vm20, %v2009, 0
  %v2107 = vsel %vm20, %v2010, 0
  %v2110 = vsel %vm614, %v2012, 0
  %2112 = vmatpush.bf16.msra.mxu0 0
  %2113 = vmatpush.bf16.msra.mxu0 0
  %2114 = vmatpush.bf16.msra.mxu0 0
  %2115 = vmatpush.bf16.msra.mxu0 0
  %2116 = vmatpush.bf16.msra.mxu0 0
  %2117 = vmatpush.bf16.msra.mxu0 0
  %2118 = vmatpush.bf16.msra.mxu0 0
  %2119 = vmatpush.bf16.msra.mxu0 %v2110
  %2120 = vmatmul.bf16.gmra.mxu0 %v2014
  %v2121 = vpop.f32.mrf.mxu0
  %v2122 = vadd.f32 0.0, %v2121
  %v2123 = vpop.f32.mrf.mxu0
  %v2124 = vadd.f32 0.0, %v2123
  %2125 = vmatmul.bf16.gmra.mxu0 %v2017
  %v2126 = vpop.f32.mrf.mxu0
  %v2127 = vadd.f32 0.0, %v2126
  %v2128 = vpop.f32.mrf.mxu0
  %v2129 = vadd.f32 0.0, %v2128
  %2130 = vmatmul.bf16.gmra.mxu0 %v2020
  %v2131 = vpop.f32.mrf.mxu0
  %v2132 = vadd.f32 0.0, %v2131
  %v2133 = vpop.f32.mrf.mxu0
  %v2134 = vadd.f32 0.0, %v2133
  %2135 = vmatmul.bf16.gmra.mxu0 %v2023
  %v2136 = vpop.f32.mrf.mxu0
  %v2137 = vadd.f32 0.0, %v2136
  %v2138 = vpop.f32.mrf.mxu0
  %v2139 = vadd.f32 0.0, %v2138
  %2140 = vmatmul.bf16.gmra.mxu0 %v2026
  %v2141 = vpop.f32.mrf.mxu0
  %v2142 = vadd.f32 0.0, %v2141
  %v2143 = vpop.f32.mrf.mxu0
  %v2144 = vadd.f32 0.0, %v2143
  %2145 = vmatmul.bf16.gmra.mxu0 %v2029
  %v2146 = vpop.f32.mrf.mxu0
  %v2147 = vadd.f32 0.0, %v2146
  %v2148 = vpop.f32.mrf.mxu0
  %v2149 = vadd.f32 0.0, %v2148
  %2150 = vmatmul.bf16.gmra.mxu0 %v2032
  %v2151 = vpop.f32.mrf.mxu0
  %v2152 = vadd.f32 0.0, %v2151
  %v2153 = vpop.f32.mrf.mxu0
  %v2154 = vadd.f32 0.0, %v2153
  %2155 = vmatmul.bf16.gmra.mxu0 %v2035
  %v2156 = vpop.f32.mrf.mxu0
  %v2157 = vadd.f32 0.0, %v2156
  %v2158 = vpop.f32.mrf.mxu0
  %v2159 = vadd.f32 0.0, %v2158
  %2160 = vmatmul.bf16.gmra.mxu0 %v2038
  %v2161 = vpop.f32.mrf.mxu0
  %v2162 = vadd.f32 0.0, %v2161
  %v2163 = vpop.f32.mrf.mxu0
  %v2164 = vadd.f32 0.0, %v2163
  %2165 = vmatmul.bf16.gmra.mxu0 %v2041
  %v2166 = vpop.f32.mrf.mxu0
  %v2167 = vadd.f32 0.0, %v2166
  %v2168 = vpop.f32.mrf.mxu0
  %v2169 = vadd.f32 0.0, %v2168
  %2170 = vmatmul.bf16.gmra.mxu0 %v2044
  %v2171 = vpop.f32.mrf.mxu0
  %v2172 = vadd.f32 0.0, %v2171
  %v2173 = vpop.f32.mrf.mxu0
  %v2174 = vadd.f32 0.0, %v2173
  %2175 = vmatmul.bf16.gmra.mxu0 %v2047
  %v2176 = vpop.f32.mrf.mxu0
  %v2177 = vadd.f32 0.0, %v2176
  %v2178 = vpop.f32.mrf.mxu0
  %v2179 = vadd.f32 0.0, %v2178
  %2180 = vmatmul.bf16.gmra.mxu0 %v2050
  %v2181 = vpop.f32.mrf.mxu0
  %v2182 = vadd.f32 0.0, %v2181
  %v2183 = vpop.f32.mrf.mxu0
  %v2184 = vadd.f32 0.0, %v2183
  %2185 = vmatmul.bf16.gmra.mxu0 %v2053
  %v2186 = vpop.f32.mrf.mxu0
  %v2187 = vadd.f32 0.0, %v2186
  %v2188 = vpop.f32.mrf.mxu0
  %v2189 = vadd.f32 0.0, %v2188
  %2190 = vmatmul.bf16.gmra.mxu0 %v2056
  %v2191 = vpop.f32.mrf.mxu0
  %v2192 = vadd.f32 0.0, %v2191
  %v2193 = vpop.f32.mrf.mxu0
  %v2194 = vadd.f32 0.0, %v2193
  %2195 = vmatmul.bf16.gmra.mxu0 %v2059
  %v2196 = vpop.f32.mrf.mxu0
  %v2197 = vadd.f32 0.0, %v2196
  %v2198 = vpop.f32.mrf.mxu0
  %v2199 = vadd.f32 0.0, %v2198
  %2200 = vmatmul.bf16.gmra.mxu0 %v2062
  %v2201 = vpop.f32.mrf.mxu0
  %v2202 = vadd.f32 0.0, %v2201
  %v2203 = vpop.f32.mrf.mxu0
  %v2204 = vadd.f32 0.0, %v2203
  %2205 = vmatmul.bf16.gmra.mxu0 %v2065
  %v2206 = vpop.f32.mrf.mxu0
  %v2207 = vadd.f32 0.0, %v2206
  %v2208 = vpop.f32.mrf.mxu0
  %v2209 = vadd.f32 0.0, %v2208
  %2210 = vmatmul.bf16.gmra.mxu0 %v2068
  %v2211 = vpop.f32.mrf.mxu0
  %v2212 = vadd.f32 0.0, %v2211
  %v2213 = vpop.f32.mrf.mxu0
  %v2214 = vadd.f32 0.0, %v2213
  %2215 = vmatmul.bf16.gmra.mxu0 %v2071
  %v2216 = vpop.f32.mrf.mxu0
  %v2217 = vadd.f32 0.0, %v2216
  %v2218 = vpop.f32.mrf.mxu0
  %v2219 = vadd.f32 0.0, %v2218
  %2220 = vmatmul.bf16.gmra.mxu0 %v2074
  %v2221 = vpop.f32.mrf.mxu0
  %v2222 = vadd.f32 0.0, %v2221
  %v2223 = vpop.f32.mrf.mxu0
  %v2224 = vadd.f32 0.0, %v2223
  %2225 = vmatmul.bf16.gmra.mxu0 %v2077
  %v2226 = vpop.f32.mrf.mxu0
  %v2227 = vadd.f32 0.0, %v2226
  %v2228 = vpop.f32.mrf.mxu0
  %v2229 = vadd.f32 0.0, %v2228
  %2230 = vmatmul.bf16.gmra.mxu0 %v2080
  %v2231 = vpop.f32.mrf.mxu0
  %v2232 = vadd.f32 0.0, %v2231
  %v2233 = vpop.f32.mrf.mxu0
  %v2234 = vadd.f32 0.0, %v2233
  %2235 = vmatmul.bf16.gmra.mxu0 %v2083
  %v2236 = vpop.f32.mrf.mxu0
  %v2237 = vadd.f32 0.0, %v2236
  %v2238 = vpop.f32.mrf.mxu0
  %v2239 = vadd.f32 0.0, %v2238
  %2240 = vmatmul.bf16.gmra.mxu0 %v2086
  %v2241 = vpop.f32.mrf.mxu0
  %v2242 = vadd.f32 0.0, %v2241
  %v2243 = vpop.f32.mrf.mxu0
  %v2244 = vadd.f32 0.0, %v2243
  %2245 = vmatmul.bf16.gmra.mxu0 %v2089
  %v2246 = vpop.f32.mrf.mxu0
  %v2247 = vadd.f32 0.0, %v2246
  %v2248 = vpop.f32.mrf.mxu0
  %v2249 = vadd.f32 0.0, %v2248
  %2250 = vmatmul.bf16.gmra.mxu0 %v2092
  %v2251 = vpop.f32.mrf.mxu0
  %v2252 = vadd.f32 0.0, %v2251
  %v2253 = vpop.f32.mrf.mxu0
  %v2254 = vadd.f32 0.0, %v2253
  %2255 = vmatmul.bf16.gmra.mxu0 %v2095
  %v2256 = vpop.f32.mrf.mxu0
  %v2257 = vadd.f32 0.0, %v2256
  %v2258 = vpop.f32.mrf.mxu0
  %v2259 = vadd.f32 0.0, %v2258
  %2260 = vmatmul.bf16.gmra.mxu0 %v2098
  %v2261 = vpop.f32.mrf.mxu0
  %v2262 = vadd.f32 0.0, %v2261
  %v2263 = vpop.f32.mrf.mxu0
  %v2264 = vadd.f32 0.0, %v2263
  %2265 = vmatmul.bf16.gmra.mxu0 %v2101
  %v2266 = vpop.f32.mrf.mxu0
  %v2267 = vadd.f32 0.0, %v2266
  %v2268 = vpop.f32.mrf.mxu0
  %v2269 = vadd.f32 0.0, %v2268
  %2270 = vmatmul.bf16.gmra.mxu0 %v2104
  %v2271 = vpop.f32.mrf.mxu0
  %v2272 = vadd.f32 0.0, %v2271
  %v2273 = vpop.f32.mrf.mxu0
  %v2274 = vadd.f32 0.0, %v2273
  %2275 = vmatmul.bf16.gmra.mxu0 %v2107
  %v2276 = vpop.f32.mrf.mxu0
  %v2277 = vadd.f32 0.0, %v2276
  %v2278 = vpop.f32.mrf.mxu0
  %v2279 = vadd.f32 0.0, %v2278
  %2280 = vdwg.mxu0
  %v2281 = vadd.f32 %v1851, %v2122
  %v2282 = vadd.f32 %v1852, %v2124
  %v2283 = vadd.f32 %v1853, %v2127
  %v2284 = vadd.f32 %v1854, %v2129
  %v2285 = vadd.f32 %v1855, %v2132
  %v2286 = vadd.f32 %v1856, %v2134
  %v2287 = vadd.f32 %v1857, %v2137
  %v2288 = vadd.f32 %v1858, %v2139
  %v2289 = vadd.f32 %v1859, %v2142
  %v2290 = vadd.f32 %v1860, %v2144
  %v2291 = vadd.f32 %v1861, %v2147
  %v2292 = vadd.f32 %v1862, %v2149
  %v2293 = vadd.f32 %v1863, %v2152
  %v2294 = vadd.f32 %v1864, %v2154
  %v2295 = vadd.f32 %v1865, %v2157
  %v2296 = vadd.f32 %v1866, %v2159
  %v2297 = vadd.f32 %v1867, %v2162
  %v2298 = vadd.f32 %v1868, %v2164
  %v2299 = vadd.f32 %v1869, %v2167
  %v2300 = vadd.f32 %v1870, %v2169
  %v2301 = vadd.f32 %v1871, %v2172
  %v2302 = vadd.f32 %v1872, %v2174
  %v2303 = vadd.f32 %v1873, %v2177
  %v2304 = vadd.f32 %v1874, %v2179
  %v2305 = vadd.f32 %v1875, %v2182
  %v2306 = vadd.f32 %v1876, %v2184
  %v2307 = vadd.f32 %v1877, %v2187
  %v2308 = vadd.f32 %v1878, %v2189
  %v2309 = vadd.f32 %v1879, %v2192
  %v2310 = vadd.f32 %v1880, %v2194
  %v2311 = vadd.f32 %v1881, %v2197
  %v2312 = vadd.f32 %v1882, %v2199
  %v2313 = vadd.f32 %v1883, %v2202
  %v2314 = vadd.f32 %v1884, %v2204
  %v2315 = vadd.f32 %v1885, %v2207
  %v2316 = vadd.f32 %v1886, %v2209
  %v2317 = vadd.f32 %v1887, %v2212
  %v2318 = vadd.f32 %v1888, %v2214
  %v2319 = vadd.f32 %v1889, %v2217
  %v2320 = vadd.f32 %v1890, %v2219
  %v2321 = vadd.f32 %v1891, %v2222
  %v2322 = vadd.f32 %v1892, %v2224
  %v2323 = vadd.f32 %v1893, %v2227
  %v2324 = vadd.f32 %v1894, %v2229
  %v2325 = vadd.f32 %v1895, %v2232
  %v2326 = vadd.f32 %v1896, %v2234
  %v2327 = vadd.f32 %v1897, %v2237
  %v2328 = vadd.f32 %v1898, %v2239
  %v2329 = vadd.f32 %v1899, %v2242
  %v2330 = vadd.f32 %v1900, %v2244
  %v2331 = vadd.f32 %v1901, %v2247
  %v2332 = vadd.f32 %v1902, %v2249
  %v2333 = vadd.f32 %v1903, %v2252
  %v2334 = vadd.f32 %v1904, %v2254
  %v2335 = vadd.f32 %v1905, %v2257
  %v2336 = vadd.f32 %v1906, %v2259
  %v2337 = vadd.f32 %v1907, %v2262
  %v2338 = vadd.f32 %v1908, %v2264
  %v2339 = vadd.f32 %v1909, %v2267
  %v2340 = vadd.f32 %v1910, %v2269
  %v2341 = vadd.f32 %v1911, %v2272
  %v2342 = vadd.f32 %v1912, %v2274
  %v2343 = vadd.f32 %v1913, %v2277
  %v2344 = vadd.f32 %v1914, %v2279
  %v2345 = vld [vmem:[%s258 + $0x2] sm:$0xff]
  %v2346 = vld [vmem:[%s258 + $0xa] sm:$0xff]
  %v2347 = vld [vmem:[%s258 + $0x1a] sm:$0xff]
  %v2348 = vld [vmem:[%s258 + $0x22] sm:$0xff]
  %v2349 = vld [vmem:[%s258 + $0x32] sm:$0xff]
  %v2350 = vld [vmem:[%s258 + $0x3a] sm:$0xff]
  %v2351 = vld [vmem:[%s258 + $0x4a] sm:$0xff]
  %v2352 = vld [vmem:[%s258 + $0x52] sm:$0xff]
  %v2353 = vld [vmem:[%s258 + $0x62] sm:$0xff]
  %v2354 = vld [vmem:[%s258 + $0x6a] sm:$0xff]
  %v2355 = vld [vmem:[%s258 + $0x7a] sm:$0xff]
  %v2356 = vld [vmem:[%s258 + $0x82] sm:$0xff]
  %v2357 = vld [vmem:[%s258 + $0x92] sm:$0xff]
  %v2358 = vld [vmem:[%s258 + $0x9a] sm:$0xff]
  %v2359 = vld [vmem:[%s258 + $0xaa] sm:$0xff]
  %v2360 = vld [vmem:[%s258 + $0xb2] sm:$0xff]
  %v2361 = vld [vmem:[%s258 + $0xc2] sm:$0xff]
  %v2362 = vld [vmem:[%s258 + $0xca] sm:$0xff]
  %v2363 = vld [vmem:[%s258 + $0xda] sm:$0xff]
  %v2364 = vld [vmem:[%s258 + $0xe2] sm:$0xff]
  %v2365 = vld [vmem:[%s258 + $0xf2] sm:$0xff]
  %v2366 = vld [vmem:[%s258 + $0xfa] sm:$0xff]
  %v2367 = vld [vmem:[%s258 + $0x10a] sm:$0xff]
  %v2368 = vld [vmem:[%s258 + $0x112] sm:$0xff]
  %v2369 = vld [vmem:[%s258 + $0x122] sm:$0xff]
  %v2370 = vld [vmem:[%s258 + $0x12a] sm:$0xff]
  %v2371 = vld [vmem:[%s258 + $0x13a] sm:$0xff]
  %v2372 = vld [vmem:[%s258 + $0x142] sm:$0xff]
  %v2373 = vld [vmem:[%s258 + $0x152] sm:$0xff]
  %v2374 = vld [vmem:[%s258 + $0x15a] sm:$0xff]
  %v2375 = vld [vmem:[%s258 + $0x16a] sm:$0xff]
  %v2376 = vld [vmem:[%s258 + $0x172] sm:$0xff]
  %v2377 = vld [vmem:[%s258 + $0x1b2] sm:$0xff]
  %v2378 = vld [vmem:[%s258 + $0x1ba] sm:$0xff]
  %v2379 = vld [vmem:[%s258 + $0x1ca] sm:$0xff]
  %v2380 = vld [vmem:[%s258 + $0x1d2] sm:$0xff]
  %v2381 = vld [vmem:[%s258 + $0x1e2] sm:$0xff]
  %v2382 = vld [vmem:[%s258 + $0x1ea] sm:$0xff]
  %v2383 = vld [vmem:[%s258 + $0x1fa] sm:$0xff]
  %v2384 = vld [vmem:[%s258 + $0x202] sm:$0xff]
  %v2385 = vld [vmem:[%s258 + $0x212] sm:$0xff]
  %v2386 = vld [vmem:[%s258 + $0x21a] sm:$0xff]
  %v2387 = vld [vmem:[%s258 + $0x22a] sm:$0xff]
  %v2388 = vld [vmem:[%s258 + $0x232] sm:$0xff]
  %v2389 = vld [vmem:[%s258 + $0x242] sm:$0xff]
  %v2390 = vld [vmem:[%s258 + $0x24a] sm:$0xff]
  %v2391 = vld [vmem:[%s258 + $0x25a] sm:$0xff]
  %v2392 = vld [vmem:[%s258 + $0x262] sm:$0xff]
  %v2393 = vld [vmem:[%s258 + $0x272] sm:$0xff]
  %v2394 = vld [vmem:[%s258 + $0x27a] sm:$0xff]
  %v2395 = vld [vmem:[%s258 + $0x28a] sm:$0xff]
  %v2396 = vld [vmem:[%s258 + $0x292] sm:$0xff]
  %v2397 = vld [vmem:[%s258 + $0x2a2] sm:$0xff]
  %v2398 = vld [vmem:[%s258 + $0x2aa] sm:$0xff]
  %v2399 = vld [vmem:[%s258 + $0x2ba] sm:$0xff]
  %v2400 = vld [vmem:[%s258 + $0x2c2] sm:$0xff]
  %v2401 = vld [vmem:[%s258 + $0x2d2] sm:$0xff]
  %v2402 = vld [vmem:[%s258 + $0x2da] sm:$0xff]
  %v2403 = vld [vmem:[%s258 + $0x2ea] sm:$0xff]
  %v2404 = vld [vmem:[%s258 + $0x2f2] sm:$0xff]
  %v2405 = vld [vmem:[%s258 + $0x302] sm:$0xff]
  %v2406 = vld [vmem:[%s258 + $0x30a] sm:$0xff]
  %v2407 = vld [vmem:[%s258 + $0x31a] sm:$0xff]
  %v2408 = vld [vmem:[%s258 + $0x322] sm:$0xff]
  %v2409 = vpack.c.bf16 %v2346, %v2345
  %v2410 = vpack.c.bf16 %v2348, %v2347
  %v2411 = vpack.c.bf16 %v2350, %v2349
  %v2412 = vpack.c.bf16 %v2352, %v2351
  %v2413 = vpack.c.bf16 %v2354, %v2353
  %v2414 = vpack.c.bf16 %v2356, %v2355
  %v2415 = vpack.c.bf16 %v2358, %v2357
  %v2416 = vpack.c.bf16 %v2360, %v2359
  %v2417 = vpack.c.bf16 %v2362, %v2361
  %v2418 = vpack.c.bf16 %v2364, %v2363
  %v2419 = vpack.c.bf16 %v2366, %v2365
  %v2420 = vpack.c.bf16 %v2368, %v2367
  %v2421 = vpack.c.bf16 %v2370, %v2369
  %v2422 = vpack.c.bf16 %v2372, %v2371
  %v2423 = vpack.c.bf16 %v2374, %v2373
  %v2424 = vpack.c.bf16 %v2376, %v2375
  %v2425 = vpack.c.bf16 %v2378, %v2377
  %v2426 = vpack.c.bf16 %v2380, %v2379
  %v2427 = vpack.c.bf16 %v2382, %v2381
  %v2428 = vpack.c.bf16 %v2384, %v2383
  %v2429 = vpack.c.bf16 %v2386, %v2385
  %v2430 = vpack.c.bf16 %v2388, %v2387
  %v2431 = vpack.c.bf16 %v2390, %v2389
  %v2432 = vpack.c.bf16 %v2392, %v2391
  %v2433 = vpack.c.bf16 %v2394, %v2393
  %v2434 = vpack.c.bf16 %v2396, %v2395
  %v2435 = vpack.c.bf16 %v2398, %v2397
  %v2436 = vpack.c.bf16 %v2400, %v2399
  %v2437 = vpack.c.bf16 %v2402, %v2401
  %v2438 = vpack.c.bf16 %v2404, %v2403
  %v2439 = vpack.c.bf16 %v2406, %v2405
  %v2440 = vpack.c.bf16 %v2408, %v2407
  %s2441 = scalar_lea.vmem %s3, 10
  %v2442 = vld [vmem:[%s2441] sm:$0x3]
  %v2444 = vsel %vm20, %v2409, 0
  %v2447 = vsel %vm20, %v2410, 0
  %v2450 = vsel %vm20, %v2411, 0
  %v2453 = vsel %vm20, %v2412, 0
  %v2456 = vsel %vm20, %v2413, 0
  %v2459 = vsel %vm20, %v2414, 0
  %v2462 = vsel %vm20, %v2415, 0
  %v2465 = vsel %vm20, %v2416, 0
  %v2468 = vsel %vm20, %v2417, 0
  %v2471 = vsel %vm20, %v2418, 0
  %v2474 = vsel %vm20, %v2419, 0
  %v2477 = vsel %vm20, %v2420, 0
  %v2480 = vsel %vm20, %v2421, 0
  %v2483 = vsel %vm20, %v2422, 0
  %v2486 = vsel %vm20, %v2423, 0
  %v2489 = vsel %vm20, %v2424, 0
  %v2492 = vsel %vm20, %v2425, 0
  %v2495 = vsel %vm20, %v2426, 0
  %v2498 = vsel %vm20, %v2427, 0
  %v2501 = vsel %vm20, %v2428, 0
  %v2504 = vsel %vm20, %v2429, 0
  %v2507 = vsel %vm20, %v2430, 0
  %v2510 = vsel %vm20, %v2431, 0
  %v2513 = vsel %vm20, %v2432, 0
  %v2516 = vsel %vm20, %v2433, 0
  %v2519 = vsel %vm20, %v2434, 0
  %v2522 = vsel %vm20, %v2435, 0
  %v2525 = vsel %vm20, %v2436, 0
  %v2528 = vsel %vm20, %v2437, 0
  %v2531 = vsel %vm20, %v2438, 0
  %v2534 = vsel %vm20, %v2439, 0
  %v2537 = vsel %vm20, %v2440, 0
  %v2540 = vsel %vm614, %v2442, 0
  %2542 = vmatpush.bf16.msra.mxu0 0
  %2543 = vmatpush.bf16.msra.mxu0 0
  %2544 = vmatpush.bf16.msra.mxu0 0
  %2545 = vmatpush.bf16.msra.mxu0 0
  %2546 = vmatpush.bf16.msra.mxu0 0
  %2547 = vmatpush.bf16.msra.mxu0 0
  %2548 = vmatpush.bf16.msra.mxu0 0
  %2549 = vmatpush.bf16.msra.mxu0 %v2540
  %2550 = vmatmul.bf16.gmra.mxu0 %v2444
  %v2551 = vpop.f32.mrf.mxu0
  %v2552 = vadd.f32 0.0, %v2551
  %v2553 = vpop.f32.mrf.mxu0
  %v2554 = vadd.f32 0.0, %v2553
  %2555 = vmatmul.bf16.gmra.mxu0 %v2447
  %v2556 = vpop.f32.mrf.mxu0
  %v2557 = vadd.f32 0.0, %v2556
  %v2558 = vpop.f32.mrf.mxu0
  %v2559 = vadd.f32 0.0, %v2558
  %2560 = vmatmul.bf16.gmra.mxu0 %v2450
  %v2561 = vpop.f32.mrf.mxu0
  %v2562 = vadd.f32 0.0, %v2561
  %v2563 = vpop.f32.mrf.mxu0
  %v2564 = vadd.f32 0.0, %v2563
  %2565 = vmatmul.bf16.gmra.mxu0 %v2453
  %v2566 = vpop.f32.mrf.mxu0
  %v2567 = vadd.f32 0.0, %v2566
  %v2568 = vpop.f32.mrf.mxu0
  %v2569 = vadd.f32 0.0, %v2568
  %2570 = vmatmul.bf16.gmra.mxu0 %v2456
  %v2571 = vpop.f32.mrf.mxu0
  %v2572 = vadd.f32 0.0, %v2571
  %v2573 = vpop.f32.mrf.mxu0
  %v2574 = vadd.f32 0.0, %v2573
  %2575 = vmatmul.bf16.gmra.mxu0 %v2459
  %v2576 = vpop.f32.mrf.mxu0
  %v2577 = vadd.f32 0.0, %v2576
  %v2578 = vpop.f32.mrf.mxu0
  %v2579 = vadd.f32 0.0, %v2578
  %2580 = vmatmul.bf16.gmra.mxu0 %v2462
  %v2581 = vpop.f32.mrf.mxu0
  %v2582 = vadd.f32 0.0, %v2581
  %v2583 = vpop.f32.mrf.mxu0
  %v2584 = vadd.f32 0.0, %v2583
  %2585 = vmatmul.bf16.gmra.mxu0 %v2465
  %v2586 = vpop.f32.mrf.mxu0
  %v2587 = vadd.f32 0.0, %v2586
  %v2588 = vpop.f32.mrf.mxu0
  %v2589 = vadd.f32 0.0, %v2588
  %2590 = vmatmul.bf16.gmra.mxu0 %v2468
  %v2591 = vpop.f32.mrf.mxu0
  %v2592 = vadd.f32 0.0, %v2591
  %v2593 = vpop.f32.mrf.mxu0
  %v2594 = vadd.f32 0.0, %v2593
  %2595 = vmatmul.bf16.gmra.mxu0 %v2471
  %v2596 = vpop.f32.mrf.mxu0
  %v2597 = vadd.f32 0.0, %v2596
  %v2598 = vpop.f32.mrf.mxu0
  %v2599 = vadd.f32 0.0, %v2598
  %2600 = vmatmul.bf16.gmra.mxu0 %v2474
  %v2601 = vpop.f32.mrf.mxu0
  %v2602 = vadd.f32 0.0, %v2601
  %v2603 = vpop.f32.mrf.mxu0
  %v2604 = vadd.f32 0.0, %v2603
  %2605 = vmatmul.bf16.gmra.mxu0 %v2477
  %v2606 = vpop.f32.mrf.mxu0
  %v2607 = vadd.f32 0.0, %v2606
  %v2608 = vpop.f32.mrf.mxu0
  %v2609 = vadd.f32 0.0, %v2608
  %2610 = vmatmul.bf16.gmra.mxu0 %v2480
  %v2611 = vpop.f32.mrf.mxu0
  %v2612 = vadd.f32 0.0, %v2611
  %v2613 = vpop.f32.mrf.mxu0
  %v2614 = vadd.f32 0.0, %v2613
  %2615 = vmatmul.bf16.gmra.mxu0 %v2483
  %v2616 = vpop.f32.mrf.mxu0
  %v2617 = vadd.f32 0.0, %v2616
  %v2618 = vpop.f32.mrf.mxu0
  %v2619 = vadd.f32 0.0, %v2618
  %2620 = vmatmul.bf16.gmra.mxu0 %v2486
  %v2621 = vpop.f32.mrf.mxu0
  %v2622 = vadd.f32 0.0, %v2621
  %v2623 = vpop.f32.mrf.mxu0
  %v2624 = vadd.f32 0.0, %v2623
  %2625 = vmatmul.bf16.gmra.mxu0 %v2489
  %v2626 = vpop.f32.mrf.mxu0
  %v2627 = vadd.f32 0.0, %v2626
  %v2628 = vpop.f32.mrf.mxu0
  %v2629 = vadd.f32 0.0, %v2628
  %2630 = vmatmul.bf16.gmra.mxu0 %v2492
  %v2631 = vpop.f32.mrf.mxu0
  %v2632 = vadd.f32 0.0, %v2631
  %v2633 = vpop.f32.mrf.mxu0
  %v2634 = vadd.f32 0.0, %v2633
  %2635 = vmatmul.bf16.gmra.mxu0 %v2495
  %v2636 = vpop.f32.mrf.mxu0
  %v2637 = vadd.f32 0.0, %v2636
  %v2638 = vpop.f32.mrf.mxu0
  %v2639 = vadd.f32 0.0, %v2638
  %2640 = vmatmul.bf16.gmra.mxu0 %v2498
  %v2641 = vpop.f32.mrf.mxu0
  %v2642 = vadd.f32 0.0, %v2641
  %v2643 = vpop.f32.mrf.mxu0
  %v2644 = vadd.f32 0.0, %v2643
  %2645 = vmatmul.bf16.gmra.mxu0 %v2501
  %v2646 = vpop.f32.mrf.mxu0
  %v2647 = vadd.f32 0.0, %v2646
  %v2648 = vpop.f32.mrf.mxu0
  %v2649 = vadd.f32 0.0, %v2648
  %2650 = vmatmul.bf16.gmra.mxu0 %v2504
  %v2651 = vpop.f32.mrf.mxu0
  %v2652 = vadd.f32 0.0, %v2651
  %v2653 = vpop.f32.mrf.mxu0
  %v2654 = vadd.f32 0.0, %v2653
  %2655 = vmatmul.bf16.gmra.mxu0 %v2507
  %v2656 = vpop.f32.mrf.mxu0
  %v2657 = vadd.f32 0.0, %v2656
  %v2658 = vpop.f32.mrf.mxu0
  %v2659 = vadd.f32 0.0, %v2658
  %2660 = vmatmul.bf16.gmra.mxu0 %v2510
  %v2661 = vpop.f32.mrf.mxu0
  %v2662 = vadd.f32 0.0, %v2661
  %v2663 = vpop.f32.mrf.mxu0
  %v2664 = vadd.f32 0.0, %v2663
  %2665 = vmatmul.bf16.gmra.mxu0 %v2513
  %v2666 = vpop.f32.mrf.mxu0
  %v2667 = vadd.f32 0.0, %v2666
  %v2668 = vpop.f32.mrf.mxu0
  %v2669 = vadd.f32 0.0, %v2668
  %2670 = vmatmul.bf16.gmra.mxu0 %v2516
  %v2671 = vpop.f32.mrf.mxu0
  %v2672 = vadd.f32 0.0, %v2671
  %v2673 = vpop.f32.mrf.mxu0
  %v2674 = vadd.f32 0.0, %v2673
  %2675 = vmatmul.bf16.gmra.mxu0 %v2519
  %v2676 = vpop.f32.mrf.mxu0
  %v2677 = vadd.f32 0.0, %v2676
  %v2678 = vpop.f32.mrf.mxu0
  %v2679 = vadd.f32 0.0, %v2678
  %2680 = vmatmul.bf16.gmra.mxu0 %v2522
  %v2681 = vpop.f32.mrf.mxu0
  %v2682 = vadd.f32 0.0, %v2681
  %v2683 = vpop.f32.mrf.mxu0
  %v2684 = vadd.f32 0.0, %v2683
  %2685 = vmatmul.bf16.gmra.mxu0 %v2525
  %v2686 = vpop.f32.mrf.mxu0
  %v2687 = vadd.f32 0.0, %v2686
  %v2688 = vpop.f32.mrf.mxu0
  %v2689 = vadd.f32 0.0, %v2688
  %2690 = vmatmul.bf16.gmra.mxu0 %v2528
  %v2691 = vpop.f32.mrf.mxu0
  %v2692 = vadd.f32 0.0, %v2691
  %v2693 = vpop.f32.mrf.mxu0
  %v2694 = vadd.f32 0.0, %v2693
  %2695 = vmatmul.bf16.gmra.mxu0 %v2531
  %v2696 = vpop.f32.mrf.mxu0
  %v2697 = vadd.f32 0.0, %v2696
  %v2698 = vpop.f32.mrf.mxu0
  %v2699 = vadd.f32 0.0, %v2698
  %2700 = vmatmul.bf16.gmra.mxu0 %v2534
  %v2701 = vpop.f32.mrf.mxu0
  %v2702 = vadd.f32 0.0, %v2701
  %v2703 = vpop.f32.mrf.mxu0
  %v2704 = vadd.f32 0.0, %v2703
  %2705 = vmatmul.bf16.gmra.mxu0 %v2537
  %v2706 = vpop.f32.mrf.mxu0
  %v2707 = vadd.f32 0.0, %v2706
  %v2708 = vpop.f32.mrf.mxu0
  %v2709 = vadd.f32 0.0, %v2708
  %2710 = vdwg.mxu0
  %v2711 = vadd.f32 %v2281, %v2552
  %v2712 = vadd.f32 %v2282, %v2554
  %v2713 = vadd.f32 %v2283, %v2557
  %v2714 = vadd.f32 %v2284, %v2559
  %v2715 = vadd.f32 %v2285, %v2562
  %v2716 = vadd.f32 %v2286, %v2564
  %v2717 = vadd.f32 %v2287, %v2567
  %v2718 = vadd.f32 %v2288, %v2569
  %v2719 = vadd.f32 %v2289, %v2572
  %v2720 = vadd.f32 %v2290, %v2574
  %v2721 = vadd.f32 %v2291, %v2577
  %v2722 = vadd.f32 %v2292, %v2579
  %v2723 = vadd.f32 %v2293, %v2582
  %v2724 = vadd.f32 %v2294, %v2584
  %v2725 = vadd.f32 %v2295, %v2587
  %v2726 = vadd.f32 %v2296, %v2589
  %v2727 = vadd.f32 %v2297, %v2592
  %v2728 = vadd.f32 %v2298, %v2594
  %v2729 = vadd.f32 %v2299, %v2597
  %v2730 = vadd.f32 %v2300, %v2599
  %v2731 = vadd.f32 %v2301, %v2602
  %v2732 = vadd.f32 %v2302, %v2604
  %v2733 = vadd.f32 %v2303, %v2607
  %v2734 = vadd.f32 %v2304, %v2609
  %v2735 = vadd.f32 %v2305, %v2612
  %v2736 = vadd.f32 %v2306, %v2614
  %v2737 = vadd.f32 %v2307, %v2617
  %v2738 = vadd.f32 %v2308, %v2619
  %v2739 = vadd.f32 %v2309, %v2622
  %v2740 = vadd.f32 %v2310, %v2624
  %v2741 = vadd.f32 %v2311, %v2627
  %v2742 = vadd.f32 %v2312, %v2629
  %v2743 = vadd.f32 %v2313, %v2632
  %v2744 = vadd.f32 %v2314, %v2634
  %v2745 = vadd.f32 %v2315, %v2637
  %v2746 = vadd.f32 %v2316, %v2639
  %v2747 = vadd.f32 %v2317, %v2642
  %v2748 = vadd.f32 %v2318, %v2644
  %v2749 = vadd.f32 %v2319, %v2647
  %v2750 = vadd.f32 %v2320, %v2649
  %v2751 = vadd.f32 %v2321, %v2652
  %v2752 = vadd.f32 %v2322, %v2654
  %v2753 = vadd.f32 %v2323, %v2657
  %v2754 = vadd.f32 %v2324, %v2659
  %v2755 = vadd.f32 %v2325, %v2662
  %v2756 = vadd.f32 %v2326, %v2664
  %v2757 = vadd.f32 %v2327, %v2667
  %v2758 = vadd.f32 %v2328, %v2669
  %v2759 = vadd.f32 %v2329, %v2672
  %v2760 = vadd.f32 %v2330, %v2674
  %v2761 = vadd.f32 %v2331, %v2677
  %v2762 = vadd.f32 %v2332, %v2679
  %v2763 = vadd.f32 %v2333, %v2682
  %v2764 = vadd.f32 %v2334, %v2684
  %v2765 = vadd.f32 %v2335, %v2687
  %v2766 = vadd.f32 %v2336, %v2689
  %v2767 = vadd.f32 %v2337, %v2692
  %v2768 = vadd.f32 %v2338, %v2694
  %v2769 = vadd.f32 %v2339, %v2697
  %v2770 = vadd.f32 %v2340, %v2699
  %v2771 = vadd.f32 %v2341, %v2702
  %v2772 = vadd.f32 %v2342, %v2704
  %v2773 = vadd.f32 %v2343, %v2707
  %v2774 = vadd.f32 %v2344, %v2709
  %s2775 = scalar_lea.vmem [#allocation2], 48
  %v2776 = vld [vmem:[%s2775] sm:$0xff]
  %v2777 = vld [vmem:[%s2775 + $0x8] sm:$0xff]
  %v2778 = vld [vmem:[%s2775 + $0x18] sm:$0xff]
  %v2779 = vld [vmem:[%s2775 + $0x20] sm:$0xff]
  %v2780 = vld [vmem:[%s2775 + $0x30] sm:$0xff]
  %v2781 = vld [vmem:[%s2775 + $0x38] sm:$0xff]
  %v2782 = vld [vmem:[%s2775 + $0x48] sm:$0xff]
  %v2783 = vld [vmem:[%s2775 + $0x50] sm:$0xff]
  %v2784 = vld [vmem:[%s2775 + $0x60] sm:$0xff]
  %v2785 = vld [vmem:[%s2775 + $0x68] sm:$0xff]
  %v2786 = vld [vmem:[%s2775 + $0x78] sm:$0xff]
  %v2787 = vld [vmem:[%s2775 + $0x80] sm:$0xff]
  %v2788 = vld [vmem:[%s2775 + $0x90] sm:$0xff]
  %v2789 = vld [vmem:[%s2775 + $0x98] sm:$0xff]
  %v2790 = vld [vmem:[%s2775 + $0xa8] sm:$0xff]
  %v2791 = vld [vmem:[%s2775 + $0xb0] sm:$0xff]
  %v2792 = vld [vmem:[%s2775 + $0xc0] sm:$0xff]
  %v2793 = vld [vmem:[%s2775 + $0xc8] sm:$0xff]
  %v2794 = vld [vmem:[%s2775 + $0xd8] sm:$0xff]
  %v2795 = vld [vmem:[%s2775 + $0xe0] sm:$0xff]
  %v2796 = vld [vmem:[%s2775 + $0xf0] sm:$0xff]
  %v2797 = vld [vmem:[%s2775 + $0xf8] sm:$0xff]
  %v2798 = vld [vmem:[%s2775 + $0x108] sm:$0xff]
  %v2799 = vld [vmem:[%s2775 + $0x110] sm:$0xff]
  %v2800 = vld [vmem:[%s2775 + $0x120] sm:$0xff]
  %v2801 = vld [vmem:[%s2775 + $0x128] sm:$0xff]
  %v2802 = vld [vmem:[%s2775 + $0x138] sm:$0xff]
  %v2803 = vld [vmem:[%s2775 + $0x140] sm:$0xff]
  %v2804 = vld [vmem:[%s2775 + $0x150] sm:$0xff]
  %v2805 = vld [vmem:[%s2775 + $0x158] sm:$0xff]
  %v2806 = vld [vmem:[%s2775 + $0x168] sm:$0xff]
  %v2807 = vld [vmem:[%s2775 + $0x170] sm:$0xff]
  %v2808 = vld [vmem:[%s2775 + $0x1b0] sm:$0xff]
  %v2809 = vld [vmem:[%s2775 + $0x1b8] sm:$0xff]
  %v2810 = vld [vmem:[%s2775 + $0x1c8] sm:$0xff]
  %v2811 = vld [vmem:[%s2775 + $0x1d0] sm:$0xff]
  %v2812 = vld [vmem:[%s2775 + $0x1e0] sm:$0xff]
  %v2813 = vld [vmem:[%s2775 + $0x1e8] sm:$0xff]
  %v2814 = vld [vmem:[%s2775 + $0x1f8] sm:$0xff]
  %v2815 = vld [vmem:[%s2775 + $0x200] sm:$0xff]
  %v2816 = vld [vmem:[%s2775 + $0x210] sm:$0xff]
  %v2817 = vld [vmem:[%s2775 + $0x218] sm:$0xff]
  %v2818 = vld [vmem:[%s2775 + $0x228] sm:$0xff]
  %v2819 = vld [vmem:[%s2775 + $0x230] sm:$0xff]
  %v2820 = vld [vmem:[%s2775 + $0x240] sm:$0xff]
  %v2821 = vld [vmem:[%s2775 + $0x248] sm:$0xff]
  %v2822 = vld [vmem:[%s2775 + $0x258] sm:$0xff]
  %v2823 = vld [vmem:[%s2775 + $0x260] sm:$0xff]
  %v2824 = vld [vmem:[%s2775 + $0x270] sm:$0xff]
  %v2825 = vld [vmem:[%s2775 + $0x278] sm:$0xff]
  %v2826 = vld [vmem:[%s2775 + $0x288] sm:$0xff]
  %v2827 = vld [vmem:[%s2775 + $0x290] sm:$0xff]
  %v2828 = vld [vmem:[%s2775 + $0x2a0] sm:$0xff]
  %v2829 = vld [vmem:[%s2775 + $0x2a8] sm:$0xff]
  %v2830 = vld [vmem:[%s2775 + $0x2b8] sm:$0xff]
  %v2831 = vld [vmem:[%s2775 + $0x2c0] sm:$0xff]
  %v2832 = vld [vmem:[%s2775 + $0x2d0] sm:$0xff]
  %v2833 = vld [vmem:[%s2775 + $0x2d8] sm:$0xff]
  %v2834 = vld [vmem:[%s2775 + $0x2e8] sm:$0xff]
  %v2835 = vld [vmem:[%s2775 + $0x2f0] sm:$0xff]
  %v2836 = vld [vmem:[%s2775 + $0x300] sm:$0xff]
  %v2837 = vld [vmem:[%s2775 + $0x308] sm:$0xff]
  %v2838 = vld [vmem:[%s2775 + $0x318] sm:$0xff]
  %v2839 = vld [vmem:[%s2775 + $0x320] sm:$0xff]
  %v2840 = vpack.c.bf16 %v2777, %v2776
  %v2841 = vpack.c.bf16 %v2779, %v2778
  %v2842 = vpack.c.bf16 %v2781, %v2780
  %v2843 = vpack.c.bf16 %v2783, %v2782
  %v2844 = vpack.c.bf16 %v2785, %v2784
  %v2845 = vpack.c.bf16 %v2787, %v2786
  %v2846 = vpack.c.bf16 %v2789, %v2788
  %v2847 = vpack.c.bf16 %v2791, %v2790
  %v2848 = vpack.c.bf16 %v2793, %v2792
  %v2849 = vpack.c.bf16 %v2795, %v2794
  %v2850 = vpack.c.bf16 %v2797, %v2796
  %v2851 = vpack.c.bf16 %v2799, %v2798
  %v2852 = vpack.c.bf16 %v2801, %v2800
  %v2853 = vpack.c.bf16 %v2803, %v2802
  %v2854 = vpack.c.bf16 %v2805, %v2804
  %v2855 = vpack.c.bf16 %v2807, %v2806
  %v2856 = vpack.c.bf16 %v2809, %v2808
  %v2857 = vpack.c.bf16 %v2811, %v2810
  %v2858 = vpack.c.bf16 %v2813, %v2812
  %v2859 = vpack.c.bf16 %v2815, %v2814
  %v2860 = vpack.c.bf16 %v2817, %v2816
  %v2861 = vpack.c.bf16 %v2819, %v2818
  %v2862 = vpack.c.bf16 %v2821, %v2820
  %v2863 = vpack.c.bf16 %v2823, %v2822
  %v2864 = vpack.c.bf16 %v2825, %v2824
  %v2865 = vpack.c.bf16 %v2827, %v2826
  %v2866 = vpack.c.bf16 %v2829, %v2828
  %v2867 = vpack.c.bf16 %v2831, %v2830
  %v2868 = vpack.c.bf16 %v2833, %v2832
  %v2869 = vpack.c.bf16 %v2835, %v2834
  %v2870 = vpack.c.bf16 %v2837, %v2836
  %v2871 = vpack.c.bf16 %v2839, %v2838
  %s2872 = scalar_lea.vmem %s3, 12
  %v2873 = vld [vmem:[%s2872] sm:$0x3]
  %v2875 = vsel %vm20, %v2840, 0
  %v2878 = vsel %vm20, %v2841, 0
  %v2881 = vsel %vm20, %v2842, 0
  %v2884 = vsel %vm20, %v2843, 0
  %v2887 = vsel %vm20, %v2844, 0
  %v2890 = vsel %vm20, %v2845, 0
  %v2893 = vsel %vm20, %v2846, 0
  %v2896 = vsel %vm20, %v2847, 0
  %v2899 = vsel %vm20, %v2848, 0
  %v2902 = vsel %vm20, %v2849, 0
  %v2905 = vsel %vm20, %v2850, 0
  %v2908 = vsel %vm20, %v2851, 0
  %v2911 = vsel %vm20, %v2852, 0
  %v2914 = vsel %vm20, %v2853, 0
  %v2917 = vsel %vm20, %v2854, 0
  %v2920 = vsel %vm20, %v2855, 0
  %v2923 = vsel %vm20, %v2856, 0
  %v2926 = vsel %vm20, %v2857, 0
  %v2929 = vsel %vm20, %v2858, 0
  %v2932 = vsel %vm20, %v2859, 0
  %v2935 = vsel %vm20, %v2860, 0
  %v2938 = vsel %vm20, %v2861, 0
  %v2941 = vsel %vm20, %v2862, 0
  %v2944 = vsel %vm20, %v2863, 0
  %v2947 = vsel %vm20, %v2864, 0
  %v2950 = vsel %vm20, %v2865, 0
  %v2953 = vsel %vm20, %v2866, 0
  %v2956 = vsel %vm20, %v2867, 0
  %v2959 = vsel %vm20, %v2868, 0
  %v2962 = vsel %vm20, %v2869, 0
  %v2965 = vsel %vm20, %v2870, 0
  %v2968 = vsel %vm20, %v2871, 0
  %v2971 = vsel %vm614, %v2873, 0
  %2973 = vmatpush.bf16.msra.mxu0 0
  %2974 = vmatpush.bf16.msra.mxu0 0
  %2975 = vmatpush.bf16.msra.mxu0 0
  %2976 = vmatpush.bf16.msra.mxu0 0
  %2977 = vmatpush.bf16.msra.mxu0 0
  %2978 = vmatpush.bf16.msra.mxu0 0
  %2979 = vmatpush.bf16.msra.mxu0 0
  %2980 = vmatpush.bf16.msra.mxu0 %v2971
  %2981 = vmatmul.bf16.gmra.mxu0 %v2875
  %v2982 = vpop.f32.mrf.mxu0
  %v2983 = vadd.f32 0.0, %v2982
  %v2984 = vpop.f32.mrf.mxu0
  %v2985 = vadd.f32 0.0, %v2984
  %2986 = vmatmul.bf16.gmra.mxu0 %v2878
  %v2987 = vpop.f32.mrf.mxu0
  %v2988 = vadd.f32 0.0, %v2987
  %v2989 = vpop.f32.mrf.mxu0
  %v2990 = vadd.f32 0.0, %v2989
  %2991 = vmatmul.bf16.gmra.mxu0 %v2881
  %v2992 = vpop.f32.mrf.mxu0
  %v2993 = vadd.f32 0.0, %v2992
  %v2994 = vpop.f32.mrf.mxu0
  %v2995 = vadd.f32 0.0, %v2994
  %2996 = vmatmul.bf16.gmra.mxu0 %v2884
  %v2997 = vpop.f32.mrf.mxu0
  %v2998 = vadd.f32 0.0, %v2997
  %v2999 = vpop.f32.mrf.mxu0
  %v3000 = vadd.f32 0.0, %v2999
  %3001 = vmatmul.bf16.gmra.mxu0 %v2887
  %v3002 = vpop.f32.mrf.mxu0
  %v3003 = vadd.f32 0.0, %v3002
  %v3004 = vpop.f32.mrf.mxu0
  %v3005 = vadd.f32 0.0, %v3004
  %3006 = vmatmul.bf16.gmra.mxu0 %v2890
  %v3007 = vpop.f32.mrf.mxu0
  %v3008 = vadd.f32 0.0, %v3007
  %v3009 = vpop.f32.mrf.mxu0
  %v3010 = vadd.f32 0.0, %v3009
  %3011 = vmatmul.bf16.gmra.mxu0 %v2893
  %v3012 = vpop.f32.mrf.mxu0
  %v3013 = vadd.f32 0.0, %v3012
  %v3014 = vpop.f32.mrf.mxu0
  %v3015 = vadd.f32 0.0, %v3014
  %3016 = vmatmul.bf16.gmra.mxu0 %v2896
  %v3017 = vpop.f32.mrf.mxu0
  %v3018 = vadd.f32 0.0, %v3017
  %v3019 = vpop.f32.mrf.mxu0
  %v3020 = vadd.f32 0.0, %v3019
  %3021 = vmatmul.bf16.gmra.mxu0 %v2899
  %v3022 = vpop.f32.mrf.mxu0
  %v3023 = vadd.f32 0.0, %v3022
  %v3024 = vpop.f32.mrf.mxu0
  %v3025 = vadd.f32 0.0, %v3024
  %3026 = vmatmul.bf16.gmra.mxu0 %v2902
  %v3027 = vpop.f32.mrf.mxu0
  %v3028 = vadd.f32 0.0, %v3027
  %v3029 = vpop.f32.mrf.mxu0
  %v3030 = vadd.f32 0.0, %v3029
  %3031 = vmatmul.bf16.gmra.mxu0 %v2905
  %v3032 = vpop.f32.mrf.mxu0
  %v3033 = vadd.f32 0.0, %v3032
  %v3034 = vpop.f32.mrf.mxu0
  %v3035 = vadd.f32 0.0, %v3034
  %3036 = vmatmul.bf16.gmra.mxu0 %v2908
  %v3037 = vpop.f32.mrf.mxu0
  %v3038 = vadd.f32 0.0, %v3037
  %v3039 = vpop.f32.mrf.mxu0
  %v3040 = vadd.f32 0.0, %v3039
  %3041 = vmatmul.bf16.gmra.mxu0 %v2911
  %v3042 = vpop.f32.mrf.mxu0
  %v3043 = vadd.f32 0.0, %v3042
  %v3044 = vpop.f32.mrf.mxu0
  %v3045 = vadd.f32 0.0, %v3044
  %3046 = vmatmul.bf16.gmra.mxu0 %v2914
  %v3047 = vpop.f32.mrf.mxu0
  %v3048 = vadd.f32 0.0, %v3047
  %v3049 = vpop.f32.mrf.mxu0
  %v3050 = vadd.f32 0.0, %v3049
  %3051 = vmatmul.bf16.gmra.mxu0 %v2917
  %v3052 = vpop.f32.mrf.mxu0
  %v3053 = vadd.f32 0.0, %v3052
  %v3054 = vpop.f32.mrf.mxu0
  %v3055 = vadd.f32 0.0, %v3054
  %3056 = vmatmul.bf16.gmra.mxu0 %v2920
  %v3057 = vpop.f32.mrf.mxu0
  %v3058 = vadd.f32 0.0, %v3057
  %v3059 = vpop.f32.mrf.mxu0
  %v3060 = vadd.f32 0.0, %v3059
  %3061 = vmatmul.bf16.gmra.mxu0 %v2923
  %v3062 = vpop.f32.mrf.mxu0
  %v3063 = vadd.f32 0.0, %v3062
  %v3064 = vpop.f32.mrf.mxu0
  %v3065 = vadd.f32 0.0, %v3064
  %3066 = vmatmul.bf16.gmra.mxu0 %v2926
  %v3067 = vpop.f32.mrf.mxu0
  %v3068 = vadd.f32 0.0, %v3067
  %v3069 = vpop.f32.mrf.mxu0
  %v3070 = vadd.f32 0.0, %v3069
  %3071 = vmatmul.bf16.gmra.mxu0 %v2929
  %v3072 = vpop.f32.mrf.mxu0
  %v3073 = vadd.f32 0.0, %v3072
  %v3074 = vpop.f32.mrf.mxu0
  %v3075 = vadd.f32 0.0, %v3074
  %3076 = vmatmul.bf16.gmra.mxu0 %v2932
  %v3077 = vpop.f32.mrf.mxu0
  %v3078 = vadd.f32 0.0, %v3077
  %v3079 = vpop.f32.mrf.mxu0
  %v3080 = vadd.f32 0.0, %v3079
  %3081 = vmatmul.bf16.gmra.mxu0 %v2935
  %v3082 = vpop.f32.mrf.mxu0
  %v3083 = vadd.f32 0.0, %v3082
  %v3084 = vpop.f32.mrf.mxu0
  %v3085 = vadd.f32 0.0, %v3084
  %3086 = vmatmul.bf16.gmra.mxu0 %v2938
  %v3087 = vpop.f32.mrf.mxu0
  %v3088 = vadd.f32 0.0, %v3087
  %v3089 = vpop.f32.mrf.mxu0
  %v3090 = vadd.f32 0.0, %v3089
  %3091 = vmatmul.bf16.gmra.mxu0 %v2941
  %v3092 = vpop.f32.mrf.mxu0
  %v3093 = vadd.f32 0.0, %v3092
  %v3094 = vpop.f32.mrf.mxu0
  %v3095 = vadd.f32 0.0, %v3094
  %3096 = vmatmul.bf16.gmra.mxu0 %v2944
  %v3097 = vpop.f32.mrf.mxu0
  %v3098 = vadd.f32 0.0, %v3097
  %v3099 = vpop.f32.mrf.mxu0
  %v3100 = vadd.f32 0.0, %v3099
  %3101 = vmatmul.bf16.gmra.mxu0 %v2947
  %v3102 = vpop.f32.mrf.mxu0
  %v3103 = vadd.f32 0.0, %v3102
  %v3104 = vpop.f32.mrf.mxu0
  %v3105 = vadd.f32 0.0, %v3104
  %3106 = vmatmul.bf16.gmra.mxu0 %v2950
  %v3107 = vpop.f32.mrf.mxu0
  %v3108 = vadd.f32 0.0, %v3107
  %v3109 = vpop.f32.mrf.mxu0
  %v3110 = vadd.f32 0.0, %v3109
  %3111 = vmatmul.bf16.gmra.mxu0 %v2953
  %v3112 = vpop.f32.mrf.mxu0
  %v3113 = vadd.f32 0.0, %v3112
  %v3114 = vpop.f32.mrf.mxu0
  %v3115 = vadd.f32 0.0, %v3114
  %3116 = vmatmul.bf16.gmra.mxu0 %v2956
  %v3117 = vpop.f32.mrf.mxu0
  %v3118 = vadd.f32 0.0, %v3117
  %v3119 = vpop.f32.mrf.mxu0
  %v3120 = vadd.f32 0.0, %v3119
  %3121 = vmatmul.bf16.gmra.mxu0 %v2959
  %v3122 = vpop.f32.mrf.mxu0
  %v3123 = vadd.f32 0.0, %v3122
  %v3124 = vpop.f32.mrf.mxu0
  %v3125 = vadd.f32 0.0, %v3124
  %3126 = vmatmul.bf16.gmra.mxu0 %v2962
  %v3127 = vpop.f32.mrf.mxu0
  %v3128 = vadd.f32 0.0, %v3127
  %v3129 = vpop.f32.mrf.mxu0
  %v3130 = vadd.f32 0.0, %v3129
  %3131 = vmatmul.bf16.gmra.mxu0 %v2965
  %v3132 = vpop.f32.mrf.mxu0
  %v3133 = vadd.f32 0.0, %v3132
  %v3134 = vpop.f32.mrf.mxu0
  %v3135 = vadd.f32 0.0, %v3134
  %3136 = vmatmul.bf16.gmra.mxu0 %v2968
  %v3137 = vpop.f32.mrf.mxu0
  %v3138 = vadd.f32 0.0, %v3137
  %v3139 = vpop.f32.mrf.mxu0
  %v3140 = vadd.f32 0.0, %v3139
  %3141 = vdwg.mxu0
  %v3142 = vadd.f32 %v2711, %v2983
  %v3143 = vadd.f32 %v2712, %v2985
  %v3144 = vadd.f32 %v2713, %v2988
  %v3145 = vadd.f32 %v2714, %v2990
  %v3146 = vadd.f32 %v2715, %v2993
  %v3147 = vadd.f32 %v2716, %v2995
  %v3148 = vadd.f32 %v2717, %v2998
  %v3149 = vadd.f32 %v2718, %v3000
  %v3150 = vadd.f32 %v2719, %v3003
  %v3151 = vadd.f32 %v2720, %v3005
  %v3152 = vadd.f32 %v2721, %v3008
  %v3153 = vadd.f32 %v2722, %v3010
  %v3154 = vadd.f32 %v2723, %v3013
  %v3155 = vadd.f32 %v2724, %v3015
  %v3156 = vadd.f32 %v2725, %v3018
  %v3157 = vadd.f32 %v2726, %v3020
  %v3158 = vadd.f32 %v2727, %v3023
  %v3159 = vadd.f32 %v2728, %v3025
  %v3160 = vadd.f32 %v2729, %v3028
  %v3161 = vadd.f32 %v2730, %v3030
  %v3162 = vadd.f32 %v2731, %v3033
  %v3163 = vadd.f32 %v2732, %v3035
  %v3164 = vadd.f32 %v2733, %v3038
  %v3165 = vadd.f32 %v2734, %v3040
  %v3166 = vadd.f32 %v2735, %v3043
  %v3167 = vadd.f32 %v2736, %v3045
  %v3168 = vadd.f32 %v2737, %v3048
  %v3169 = vadd.f32 %v2738, %v3050
  %v3170 = vadd.f32 %v2739, %v3053
  %v3171 = vadd.f32 %v2740, %v3055
  %v3172 = vadd.f32 %v2741, %v3058
  %v3173 = vadd.f32 %v2742, %v3060
  %v3174 = vadd.f32 %v2743, %v3063
  %v3175 = vadd.f32 %v2744, %v3065
  %v3176 = vadd.f32 %v2745, %v3068
  %v3177 = vadd.f32 %v2746, %v3070
  %v3178 = vadd.f32 %v2747, %v3073
  %v3179 = vadd.f32 %v2748, %v3075
  %v3180 = vadd.f32 %v2749, %v3078
  %v3181 = vadd.f32 %v2750, %v3080
  %v3182 = vadd.f32 %v2751, %v3083
  %v3183 = vadd.f32 %v2752, %v3085
  %v3184 = vadd.f32 %v2753, %v3088
  %v3185 = vadd.f32 %v2754, %v3090
  %v3186 = vadd.f32 %v2755, %v3093
  %v3187 = vadd.f32 %v2756, %v3095
  %v3188 = vadd.f32 %v2757, %v3098
  %v3189 = vadd.f32 %v2758, %v3100
  %v3190 = vadd.f32 %v2759, %v3103
  %v3191 = vadd.f32 %v2760, %v3105
  %v3192 = vadd.f32 %v2761, %v3108
  %v3193 = vadd.f32 %v2762, %v3110
  %v3194 = vadd.f32 %v2763, %v3113
  %v3195 = vadd.f32 %v2764, %v3115
  %v3196 = vadd.f32 %v2765, %v3118
  %v3197 = vadd.f32 %v2766, %v3120
  %v3198 = vadd.f32 %v2767, %v3123
  %v3199 = vadd.f32 %v2768, %v3125
  %v3200 = vadd.f32 %v2769, %v3128
  %v3201 = vadd.f32 %v2770, %v3130
  %v3202 = vadd.f32 %v2771, %v3133
  %v3203 = vadd.f32 %v2772, %v3135
  %v3204 = vadd.f32 %v2773, %v3138
  %v3205 = vadd.f32 %v2774, %v3140
  %v3206 = vld [vmem:[%s2775 + $0x1] sm:$0xff]
  %v3207 = vld [vmem:[%s2775 + $0x9] sm:$0xff]
  %v3208 = vld [vmem:[%s2775 + $0x19] sm:$0xff]
  %v3209 = vld [vmem:[%s2775 + $0x21] sm:$0xff]
  %v3210 = vld [vmem:[%s2775 + $0x31] sm:$0xff]
  %v3211 = vld [vmem:[%s2775 + $0x39] sm:$0xff]
  %v3212 = vld [vmem:[%s2775 + $0x49] sm:$0xff]
  %v3213 = vld [vmem:[%s2775 + $0x51] sm:$0xff]
  %v3214 = vld [vmem:[%s2775 + $0x61] sm:$0xff]
  %v3215 = vld [vmem:[%s2775 + $0x69] sm:$0xff]
  %v3216 = vld [vmem:[%s2775 + $0x79] sm:$0xff]
  %v3217 = vld [vmem:[%s2775 + $0x81] sm:$0xff]
  %v3218 = vld [vmem:[%s2775 + $0x91] sm:$0xff]
  %v3219 = vld [vmem:[%s2775 + $0x99] sm:$0xff]
  %v3220 = vld [vmem:[%s2775 + $0xa9] sm:$0xff]
  %v3221 = vld [vmem:[%s2775 + $0xb1] sm:$0xff]
  %v3222 = vld [vmem:[%s2775 + $0xc1] sm:$0xff]
  %v3223 = vld [vmem:[%s2775 + $0xc9] sm:$0xff]
  %v3224 = vld [vmem:[%s2775 + $0xd9] sm:$0xff]
  %v3225 = vld [vmem:[%s2775 + $0xe1] sm:$0xff]
  %v3226 = vld [vmem:[%s2775 + $0xf1] sm:$0xff]
  %v3227 = vld [vmem:[%s2775 + $0xf9] sm:$0xff]
  %v3228 = vld [vmem:[%s2775 + $0x109] sm:$0xff]
  %v3229 = vld [vmem:[%s2775 + $0x111] sm:$0xff]
  %v3230 = vld [vmem:[%s2775 + $0x121] sm:$0xff]
  %v3231 = vld [vmem:[%s2775 + $0x129] sm:$0xff]
  %v3232 = vld [vmem:[%s2775 + $0x139] sm:$0xff]
  %v3233 = vld [vmem:[%s2775 + $0x141] sm:$0xff]
  %v3234 = vld [vmem:[%s2775 + $0x151] sm:$0xff]
  %v3235 = vld [vmem:[%s2775 + $0x159] sm:$0xff]
  %v3236 = vld [vmem:[%s2775 + $0x169] sm:$0xff]
  %v3237 = vld [vmem:[%s2775 + $0x171] sm:$0xff]
  %v3238 = vld [vmem:[%s2775 + $0x1b1] sm:$0xff]
  %v3239 = vld [vmem:[%s2775 + $0x1b9] sm:$0xff]
  %v3240 = vld [vmem:[%s2775 + $0x1c9] sm:$0xff]
  %v3241 = vld [vmem:[%s2775 + $0x1d1] sm:$0xff]
  %v3242 = vld [vmem:[%s2775 + $0x1e1] sm:$0xff]
  %v3243 = vld [vmem:[%s2775 + $0x1e9] sm:$0xff]
  %v3244 = vld [vmem:[%s2775 + $0x1f9] sm:$0xff]
  %v3245 = vld [vmem:[%s2775 + $0x201] sm:$0xff]
  %v3246 = vld [vmem:[%s2775 + $0x211] sm:$0xff]
  %v3247 = vld [vmem:[%s2775 + $0x219] sm:$0xff]
  %v3248 = vld [vmem:[%s2775 + $0x229] sm:$0xff]
  %v3249 = vld [vmem:[%s2775 + $0x231] sm:$0xff]
  %v3250 = vld [vmem:[%s2775 + $0x241] sm:$0xff]
  %v3251 = vld [vmem:[%s2775 + $0x249] sm:$0xff]
  %v3252 = vld [vmem:[%s2775 + $0x259] sm:$0xff]
  %v3253 = vld [vmem:[%s2775 + $0x261] sm:$0xff]
  %v3254 = vld [vmem:[%s2775 + $0x271] sm:$0xff]
  %v3255 = vld [vmem:[%s2775 + $0x279] sm:$0xff]
  %v3256 = vld [vmem:[%s2775 + $0x289] sm:$0xff]
  %v3257 = vld [vmem:[%s2775 + $0x291] sm:$0xff]
  %v3258 = vld [vmem:[%s2775 + $0x2a1] sm:$0xff]
  %v3259 = vld [vmem:[%s2775 + $0x2a9] sm:$0xff]
  %v3260 = vld [vmem:[%s2775 + $0x2b9] sm:$0xff]
  %v3261 = vld [vmem:[%s2775 + $0x2c1] sm:$0xff]
  %v3262 = vld [vmem:[%s2775 + $0x2d1] sm:$0xff]
  %v3263 = vld [vmem:[%s2775 + $0x2d9] sm:$0xff]
  %v3264 = vld [vmem:[%s2775 + $0x2e9] sm:$0xff]
  %v3265 = vld [vmem:[%s2775 + $0x2f1] sm:$0xff]
  %v3266 = vld [vmem:[%s2775 + $0x301] sm:$0xff]
  %v3267 = vld [vmem:[%s2775 + $0x309] sm:$0xff]
  %v3268 = vld [vmem:[%s2775 + $0x319] sm:$0xff]
  %v3269 = vld [vmem:[%s2775 + $0x321] sm:$0xff]
  %v3270 = vpack.c.bf16 %v3207, %v3206
  %v3271 = vpack.c.bf16 %v3209, %v3208
  %v3272 = vpack.c.bf16 %v3211, %v3210
  %v3273 = vpack.c.bf16 %v3213, %v3212
  %v3274 = vpack.c.bf16 %v3215, %v3214
  %v3275 = vpack.c.bf16 %v3217, %v3216
  %v3276 = vpack.c.bf16 %v3219, %v3218
  %v3277 = vpack.c.bf16 %v3221, %v3220
  %v3278 = vpack.c.bf16 %v3223, %v3222
  %v3279 = vpack.c.bf16 %v3225, %v3224
  %v3280 = vpack.c.bf16 %v3227, %v3226
  %v3281 = vpack.c.bf16 %v3229, %v3228
  %v3282 = vpack.c.bf16 %v3231, %v3230
  %v3283 = vpack.c.bf16 %v3233, %v3232
  %v3284 = vpack.c.bf16 %v3235, %v3234
  %v3285 = vpack.c.bf16 %v3237, %v3236
  %v3286 = vpack.c.bf16 %v3239, %v3238
  %v3287 = vpack.c.bf16 %v3241, %v3240
  %v3288 = vpack.c.bf16 %v3243, %v3242
  %v3289 = vpack.c.bf16 %v3245, %v3244
  %v3290 = vpack.c.bf16 %v3247, %v3246
  %v3291 = vpack.c.bf16 %v3249, %v3248
  %v3292 = vpack.c.bf16 %v3251, %v3250
  %v3293 = vpack.c.bf16 %v3253, %v3252
  %v3294 = vpack.c.bf16 %v3255, %v3254
  %v3295 = vpack.c.bf16 %v3257, %v3256
  %v3296 = vpack.c.bf16 %v3259, %v3258
  %v3297 = vpack.c.bf16 %v3261, %v3260
  %v3298 = vpack.c.bf16 %v3263, %v3262
  %v3299 = vpack.c.bf16 %v3265, %v3264
  %v3300 = vpack.c.bf16 %v3267, %v3266
  %v3301 = vpack.c.bf16 %v3269, %v3268
  %s3302 = scalar_lea.vmem %s3, 14
  %v3303 = vld [vmem:[%s3302] sm:$0x3]
  %v3305 = vsel %vm20, %v3270, 0
  %v3308 = vsel %vm20, %v3271, 0
  %v3311 = vsel %vm20, %v3272, 0
  %v3314 = vsel %vm20, %v3273, 0
  %v3317 = vsel %vm20, %v3274, 0
  %v3320 = vsel %vm20, %v3275, 0
  %v3323 = vsel %vm20, %v3276, 0
  %v3326 = vsel %vm20, %v3277, 0
  %v3329 = vsel %vm20, %v3278, 0
  %v3332 = vsel %vm20, %v3279, 0
  %v3335 = vsel %vm20, %v3280, 0
  %v3338 = vsel %vm20, %v3281, 0
  %v3341 = vsel %vm20, %v3282, 0
  %v3344 = vsel %vm20, %v3283, 0
  %v3347 = vsel %vm20, %v3284, 0
  %v3350 = vsel %vm20, %v3285, 0
  %v3353 = vsel %vm20, %v3286, 0
  %v3356 = vsel %vm20, %v3287, 0
  %v3359 = vsel %vm20, %v3288, 0
  %v3362 = vsel %vm20, %v3289, 0
  %v3365 = vsel %vm20, %v3290, 0
  %v3368 = vsel %vm20, %v3291, 0
  %v3371 = vsel %vm20, %v3292, 0
  %v3374 = vsel %vm20, %v3293, 0
  %v3377 = vsel %vm20, %v3294, 0
  %v3380 = vsel %vm20, %v3295, 0
  %v3383 = vsel %vm20, %v3296, 0
  %v3386 = vsel %vm20, %v3297, 0
  %v3389 = vsel %vm20, %v3298, 0
  %v3392 = vsel %vm20, %v3299, 0
  %v3395 = vsel %vm20, %v3300, 0
  %v3398 = vsel %vm20, %v3301, 0
  %v3401 = vsel %vm614, %v3303, 0
  %3403 = vmatpush.bf16.msra.mxu0 0
  %3404 = vmatpush.bf16.msra.mxu0 0
  %3405 = vmatpush.bf16.msra.mxu0 0
  %3406 = vmatpush.bf16.msra.mxu0 0
  %3407 = vmatpush.bf16.msra.mxu0 0
  %3408 = vmatpush.bf16.msra.mxu0 0
  %3409 = vmatpush.bf16.msra.mxu0 0
  %3410 = vmatpush.bf16.msra.mxu0 %v3401
  %3411 = vmatmul.bf16.gmra.mxu0 %v3305
  %v3412 = vpop.f32.mrf.mxu0
  %v3413 = vadd.f32 0.0, %v3412
  %v3414 = vpop.f32.mrf.mxu0
  %v3415 = vadd.f32 0.0, %v3414
  %3416 = vmatmul.bf16.gmra.mxu0 %v3308
  %v3417 = vpop.f32.mrf.mxu0
  %v3418 = vadd.f32 0.0, %v3417
  %v3419 = vpop.f32.mrf.mxu0
  %v3420 = vadd.f32 0.0, %v3419
  %3421 = vmatmul.bf16.gmra.mxu0 %v3311
  %v3422 = vpop.f32.mrf.mxu0
  %v3423 = vadd.f32 0.0, %v3422
  %v3424 = vpop.f32.mrf.mxu0
  %v3425 = vadd.f32 0.0, %v3424
  %3426 = vmatmul.bf16.gmra.mxu0 %v3314
  %v3427 = vpop.f32.mrf.mxu0
  %v3428 = vadd.f32 0.0, %v3427
  %v3429 = vpop.f32.mrf.mxu0
  %v3430 = vadd.f32 0.0, %v3429
  %3431 = vmatmul.bf16.gmra.mxu0 %v3317
  %v3432 = vpop.f32.mrf.mxu0
  %v3433 = vadd.f32 0.0, %v3432
  %v3434 = vpop.f32.mrf.mxu0
  %v3435 = vadd.f32 0.0, %v3434
  %3436 = vmatmul.bf16.gmra.mxu0 %v3320
  %v3437 = vpop.f32.mrf.mxu0
  %v3438 = vadd.f32 0.0, %v3437
  %v3439 = vpop.f32.mrf.mxu0
  %v3440 = vadd.f32 0.0, %v3439
  %3441 = vmatmul.bf16.gmra.mxu0 %v3323
  %v3442 = vpop.f32.mrf.mxu0
  %v3443 = vadd.f32 0.0, %v3442
  %v3444 = vpop.f32.mrf.mxu0
  %v3445 = vadd.f32 0.0, %v3444
  %3446 = vmatmul.bf16.gmra.mxu0 %v3326
  %v3447 = vpop.f32.mrf.mxu0
  %v3448 = vadd.f32 0.0, %v3447
  %v3449 = vpop.f32.mrf.mxu0
  %v3450 = vadd.f32 0.0, %v3449
  %3451 = vmatmul.bf16.gmra.mxu0 %v3329
  %v3452 = vpop.f32.mrf.mxu0
  %v3453 = vadd.f32 0.0, %v3452
  %v3454 = vpop.f32.mrf.mxu0
  %v3455 = vadd.f32 0.0, %v3454
  %3456 = vmatmul.bf16.gmra.mxu0 %v3332
  %v3457 = vpop.f32.mrf.mxu0
  %v3458 = vadd.f32 0.0, %v3457
  %v3459 = vpop.f32.mrf.mxu0
  %v3460 = vadd.f32 0.0, %v3459
  %3461 = vmatmul.bf16.gmra.mxu0 %v3335
  %v3462 = vpop.f32.mrf.mxu0
  %v3463 = vadd.f32 0.0, %v3462
  %v3464 = vpop.f32.mrf.mxu0
  %v3465 = vadd.f32 0.0, %v3464
  %3466 = vmatmul.bf16.gmra.mxu0 %v3338
  %v3467 = vpop.f32.mrf.mxu0
  %v3468 = vadd.f32 0.0, %v3467
  %v3469 = vpop.f32.mrf.mxu0
  %v3470 = vadd.f32 0.0, %v3469
  %3471 = vmatmul.bf16.gmra.mxu0 %v3341
  %v3472 = vpop.f32.mrf.mxu0
  %v3473 = vadd.f32 0.0, %v3472
  %v3474 = vpop.f32.mrf.mxu0
  %v3475 = vadd.f32 0.0, %v3474
  %3476 = vmatmul.bf16.gmra.mxu0 %v3344
  %v3477 = vpop.f32.mrf.mxu0
  %v3478 = vadd.f32 0.0, %v3477
  %v3479 = vpop.f32.mrf.mxu0
  %v3480 = vadd.f32 0.0, %v3479
  %3481 = vmatmul.bf16.gmra.mxu0 %v3347
  %v3482 = vpop.f32.mrf.mxu0
  %v3483 = vadd.f32 0.0, %v3482
  %v3484 = vpop.f32.mrf.mxu0
  %v3485 = vadd.f32 0.0, %v3484
  %3486 = vmatmul.bf16.gmra.mxu0 %v3350
  %v3487 = vpop.f32.mrf.mxu0
  %v3488 = vadd.f32 0.0, %v3487
  %v3489 = vpop.f32.mrf.mxu0
  %v3490 = vadd.f32 0.0, %v3489
  %3491 = vmatmul.bf16.gmra.mxu0 %v3353
  %v3492 = vpop.f32.mrf.mxu0
  %v3493 = vadd.f32 0.0, %v3492
  %v3494 = vpop.f32.mrf.mxu0
  %v3495 = vadd.f32 0.0, %v3494
  %3496 = vmatmul.bf16.gmra.mxu0 %v3356
  %v3497 = vpop.f32.mrf.mxu0
  %v3498 = vadd.f32 0.0, %v3497
  %v3499 = vpop.f32.mrf.mxu0
  %v3500 = vadd.f32 0.0, %v3499
  %3501 = vmatmul.bf16.gmra.mxu0 %v3359
  %v3502 = vpop.f32.mrf.mxu0
  %v3503 = vadd.f32 0.0, %v3502
  %v3504 = vpop.f32.mrf.mxu0
  %v3505 = vadd.f32 0.0, %v3504
  %3506 = vmatmul.bf16.gmra.mxu0 %v3362
  %v3507 = vpop.f32.mrf.mxu0
  %v3508 = vadd.f32 0.0, %v3507
  %v3509 = vpop.f32.mrf.mxu0
  %v3510 = vadd.f32 0.0, %v3509
  %3511 = vmatmul.bf16.gmra.mxu0 %v3365
  %v3512 = vpop.f32.mrf.mxu0
  %v3513 = vadd.f32 0.0, %v3512
  %v3514 = vpop.f32.mrf.mxu0
  %v3515 = vadd.f32 0.0, %v3514
  %3516 = vmatmul.bf16.gmra.mxu0 %v3368
  %v3517 = vpop.f32.mrf.mxu0
  %v3518 = vadd.f32 0.0, %v3517
  %v3519 = vpop.f32.mrf.mxu0
  %v3520 = vadd.f32 0.0, %v3519
  %3521 = vmatmul.bf16.gmra.mxu0 %v3371
  %v3522 = vpop.f32.mrf.mxu0
  %v3523 = vadd.f32 0.0, %v3522
  %v3524 = vpop.f32.mrf.mxu0
  %v3525 = vadd.f32 0.0, %v3524
  %3526 = vmatmul.bf16.gmra.mxu0 %v3374
  %v3527 = vpop.f32.mrf.mxu0
  %v3528 = vadd.f32 0.0, %v3527
  %v3529 = vpop.f32.mrf.mxu0
  %v3530 = vadd.f32 0.0, %v3529
  %3531 = vmatmul.bf16.gmra.mxu0 %v3377
  %v3532 = vpop.f32.mrf.mxu0
  %v3533 = vadd.f32 0.0, %v3532
  %v3534 = vpop.f32.mrf.mxu0
  %v3535 = vadd.f32 0.0, %v3534
  %3536 = vmatmul.bf16.gmra.mxu0 %v3380
  %v3537 = vpop.f32.mrf.mxu0
  %v3538 = vadd.f32 0.0, %v3537
  %v3539 = vpop.f32.mrf.mxu0
  %v3540 = vadd.f32 0.0, %v3539
  %3541 = vmatmul.bf16.gmra.mxu0 %v3383
  %v3542 = vpop.f32.mrf.mxu0
  %v3543 = vadd.f32 0.0, %v3542
  %v3544 = vpop.f32.mrf.mxu0
  %v3545 = vadd.f32 0.0, %v3544
  %3546 = vmatmul.bf16.gmra.mxu0 %v3386
  %v3547 = vpop.f32.mrf.mxu0
  %v3548 = vadd.f32 0.0, %v3547
  %v3549 = vpop.f32.mrf.mxu0
  %v3550 = vadd.f32 0.0, %v3549
  %3551 = vmatmul.bf16.gmra.mxu0 %v3389
  %v3552 = vpop.f32.mrf.mxu0
  %v3553 = vadd.f32 0.0, %v3552
  %v3554 = vpop.f32.mrf.mxu0
  %v3555 = vadd.f32 0.0, %v3554
  %3556 = vmatmul.bf16.gmra.mxu0 %v3392
  %v3557 = vpop.f32.mrf.mxu0
  %v3558 = vadd.f32 0.0, %v3557
  %v3559 = vpop.f32.mrf.mxu0
  %v3560 = vadd.f32 0.0, %v3559
  %3561 = vmatmul.bf16.gmra.mxu0 %v3395
  %v3562 = vpop.f32.mrf.mxu0
  %v3563 = vadd.f32 0.0, %v3562
  %v3564 = vpop.f32.mrf.mxu0
  %v3565 = vadd.f32 0.0, %v3564
  %3566 = vmatmul.bf16.gmra.mxu0 %v3398
  %v3567 = vpop.f32.mrf.mxu0
  %v3568 = vadd.f32 0.0, %v3567
  %v3569 = vpop.f32.mrf.mxu0
  %v3570 = vadd.f32 0.0, %v3569
  %3571 = vdwg.mxu0
  %v3572 = vadd.f32 %v3142, %v3413
  %v3573 = vadd.f32 %v3143, %v3415
  %v3574 = vadd.f32 %v3144, %v3418
  %v3575 = vadd.f32 %v3145, %v3420
  %v3576 = vadd.f32 %v3146, %v3423
  %v3577 = vadd.f32 %v3147, %v3425
  %v3578 = vadd.f32 %v3148, %v3428
  %v3579 = vadd.f32 %v3149, %v3430
  %v3580 = vadd.f32 %v3150, %v3433
  %v3581 = vadd.f32 %v3151, %v3435
  %v3582 = vadd.f32 %v3152, %v3438
  %v3583 = vadd.f32 %v3153, %v3440
  %v3584 = vadd.f32 %v3154, %v3443
  %v3585 = vadd.f32 %v3155, %v3445
  %v3586 = vadd.f32 %v3156, %v3448
  %v3587 = vadd.f32 %v3157, %v3450
  %v3588 = vadd.f32 %v3158, %v3453
  %v3589 = vadd.f32 %v3159, %v3455
  %v3590 = vadd.f32 %v3160, %v3458
  %v3591 = vadd.f32 %v3161, %v3460
  %v3592 = vadd.f32 %v3162, %v3463
  %v3593 = vadd.f32 %v3163, %v3465
  %v3594 = vadd.f32 %v3164, %v3468
  %v3595 = vadd.f32 %v3165, %v3470
  %v3596 = vadd.f32 %v3166, %v3473
  %v3597 = vadd.f32 %v3167, %v3475
  %v3598 = vadd.f32 %v3168, %v3478
  %v3599 = vadd.f32 %v3169, %v3480
  %v3600 = vadd.f32 %v3170, %v3483
  %v3601 = vadd.f32 %v3171, %v3485
  %v3602 = vadd.f32 %v3172, %v3488
  %v3603 = vadd.f32 %v3173, %v3490
  %v3604 = vadd.f32 %v3174, %v3493
  %v3605 = vadd.f32 %v3175, %v3495
  %v3606 = vadd.f32 %v3176, %v3498
  %v3607 = vadd.f32 %v3177, %v3500
  %v3608 = vadd.f32 %v3178, %v3503
  %v3609 = vadd.f32 %v3179, %v3505
  %v3610 = vadd.f32 %v3180, %v3508
  %v3611 = vadd.f32 %v3181, %v3510
  %v3612 = vadd.f32 %v3182, %v3513
  %v3613 = vadd.f32 %v3183, %v3515
  %v3614 = vadd.f32 %v3184, %v3518
  %v3615 = vadd.f32 %v3185, %v3520
  %v3616 = vadd.f32 %v3186, %v3523
  %v3617 = vadd.f32 %v3187, %v3525
  %v3618 = vadd.f32 %v3188, %v3528
  %v3619 = vadd.f32 %v3189, %v3530
  %v3620 = vadd.f32 %v3190, %v3533
  %v3621 = vadd.f32 %v3191, %v3535
  %v3622 = vadd.f32 %v3192, %v3538
  %v3623 = vadd.f32 %v3193, %v3540
  %v3624 = vadd.f32 %v3194, %v3543
  %v3625 = vadd.f32 %v3195, %v3545
  %v3626 = vadd.f32 %v3196, %v3548
  %v3627 = vadd.f32 %v3197, %v3550
  %v3628 = vadd.f32 %v3198, %v3553
  %v3629 = vadd.f32 %v3199, %v3555
  %v3630 = vadd.f32 %v3200, %v3558
  %v3631 = vadd.f32 %v3201, %v3560
  %v3632 = vadd.f32 %v3202, %v3563
  %v3633 = vadd.f32 %v3203, %v3565
  %v3634 = vadd.f32 %v3204, %v3568
  %v3635 = vadd.f32 %v3205, %v3570
  %v3636 = vld [vmem:[%s2775 + $0x2] sm:$0xff]
  %v3637 = vld [vmem:[%s2775 + $0xa] sm:$0xff]
  %v3638 = vld [vmem:[%s2775 + $0x1a] sm:$0xff]
  %v3639 = vld [vmem:[%s2775 + $0x22] sm:$0xff]
  %v3640 = vld [vmem:[%s2775 + $0x32] sm:$0xff]
  %v3641 = vld [vmem:[%s2775 + $0x3a] sm:$0xff]
  %v3642 = vld [vmem:[%s2775 + $0x4a] sm:$0xff]
  %v3643 = vld [vmem:[%s2775 + $0x52] sm:$0xff]
  %v3644 = vld [vmem:[%s2775 + $0x62] sm:$0xff]
  %v3645 = vld [vmem:[%s2775 + $0x6a] sm:$0xff]
  %v3646 = vld [vmem:[%s2775 + $0x7a] sm:$0xff]
  %v3647 = vld [vmem:[%s2775 + $0x82] sm:$0xff]
  %v3648 = vld [vmem:[%s2775 + $0x92] sm:$0xff]
  %v3649 = vld [vmem:[%s2775 + $0x9a] sm:$0xff]
  %v3650 = vld [vmem:[%s2775 + $0xaa] sm:$0xff]
  %v3651 = vld [vmem:[%s2775 + $0xb2] sm:$0xff]
  %v3652 = vld [vmem:[%s2775 + $0xc2] sm:$0xff]
  %v3653 = vld [vmem:[%s2775 + $0xca] sm:$0xff]
  %v3654 = vld [vmem:[%s2775 + $0xda] sm:$0xff]
  %v3655 = vld [vmem:[%s2775 + $0xe2] sm:$0xff]
  %v3656 = vld [vmem:[%s2775 + $0xf2] sm:$0xff]
  %v3657 = vld [vmem:[%s2775 + $0xfa] sm:$0xff]
  %v3658 = vld [vmem:[%s2775 + $0x10a] sm:$0xff]
  %v3659 = vld [vmem:[%s2775 + $0x112] sm:$0xff]
  %v3660 = vld [vmem:[%s2775 + $0x122] sm:$0xff]
  %v3661 = vld [vmem:[%s2775 + $0x12a] sm:$0xff]
  %v3662 = vld [vmem:[%s2775 + $0x13a] sm:$0xff]
  %v3663 = vld [vmem:[%s2775 + $0x142] sm:$0xff]
  %v3664 = vld [vmem:[%s2775 + $0x152] sm:$0xff]
  %v3665 = vld [vmem:[%s2775 + $0x15a] sm:$0xff]
  %v3666 = vld [vmem:[%s2775 + $0x16a] sm:$0xff]
  %v3667 = vld [vmem:[%s2775 + $0x172] sm:$0xff]
  %v3668 = vld [vmem:[%s2775 + $0x1b2] sm:$0xff]
  %v3669 = vld [vmem:[%s2775 + $0x1ba] sm:$0xff]
  %v3670 = vld [vmem:[%s2775 + $0x1ca] sm:$0xff]
  %v3671 = vld [vmem:[%s2775 + $0x1d2] sm:$0xff]
  %v3672 = vld [vmem:[%s2775 + $0x1e2] sm:$0xff]
  %v3673 = vld [vmem:[%s2775 + $0x1ea] sm:$0xff]
  %v3674 = vld [vmem:[%s2775 + $0x1fa] sm:$0xff]
  %v3675 = vld [vmem:[%s2775 + $0x202] sm:$0xff]
  %v3676 = vld [vmem:[%s2775 + $0x212] sm:$0xff]
  %v3677 = vld [vmem:[%s2775 + $0x21a] sm:$0xff]
  %v3678 = vld [vmem:[%s2775 + $0x22a] sm:$0xff]
  %v3679 = vld [vmem:[%s2775 + $0x232] sm:$0xff]
  %v3680 = vld [vmem:[%s2775 + $0x242] sm:$0xff]
  %v3681 = vld [vmem:[%s2775 + $0x24a] sm:$0xff]
  %v3682 = vld [vmem:[%s2775 + $0x25a] sm:$0xff]
  %v3683 = vld [vmem:[%s2775 + $0x262] sm:$0xff]
  %v3684 = vld [vmem:[%s2775 + $0x272] sm:$0xff]
  %v3685 = vld [vmem:[%s2775 + $0x27a] sm:$0xff]
  %v3686 = vld [vmem:[%s2775 + $0x28a] sm:$0xff]
  %v3687 = vld [vmem:[%s2775 + $0x292] sm:$0xff]
  %v3688 = vld [vmem:[%s2775 + $0x2a2] sm:$0xff]
  %v3689 = vld [vmem:[%s2775 + $0x2aa] sm:$0xff]
  %v3690 = vld [vmem:[%s2775 + $0x2ba] sm:$0xff]
  %v3691 = vld [vmem:[%s2775 + $0x2c2] sm:$0xff]
  %v3692 = vld [vmem:[%s2775 + $0x2d2] sm:$0xff]
  %v3693 = vld [vmem:[%s2775 + $0x2da] sm:$0xff]
  %v3694 = vld [vmem:[%s2775 + $0x2ea] sm:$0xff]
  %v3695 = vld [vmem:[%s2775 + $0x2f2] sm:$0xff]
  %v3696 = vld [vmem:[%s2775 + $0x302] sm:$0xff]
  %v3697 = vld [vmem:[%s2775 + $0x30a] sm:$0xff]
  %v3698 = vld [vmem:[%s2775 + $0x31a] sm:$0xff]
  %v3699 = vld [vmem:[%s2775 + $0x322] sm:$0xff]
  %v3700 = vpack.c.bf16 %v3637, %v3636
  %v3701 = vpack.c.bf16 %v3639, %v3638
  %v3702 = vpack.c.bf16 %v3641, %v3640
  %v3703 = vpack.c.bf16 %v3643, %v3642
  %v3704 = vpack.c.bf16 %v3645, %v3644
  %v3705 = vpack.c.bf16 %v3647, %v3646
  %v3706 = vpack.c.bf16 %v3649, %v3648
  %v3707 = vpack.c.bf16 %v3651, %v3650
  %v3708 = vpack.c.bf16 %v3653, %v3652
  %v3709 = vpack.c.bf16 %v3655, %v3654
  %v3710 = vpack.c.bf16 %v3657, %v3656
  %v3711 = vpack.c.bf16 %v3659, %v3658
  %v3712 = vpack.c.bf16 %v3661, %v3660
  %v3713 = vpack.c.bf16 %v3663, %v3662
  %v3714 = vpack.c.bf16 %v3665, %v3664
  %v3715 = vpack.c.bf16 %v3667, %v3666
  %v3716 = vpack.c.bf16 %v3669, %v3668
  %v3717 = vpack.c.bf16 %v3671, %v3670
  %v3718 = vpack.c.bf16 %v3673, %v3672
  %v3719 = vpack.c.bf16 %v3675, %v3674
  %v3720 = vpack.c.bf16 %v3677, %v3676
  %v3721 = vpack.c.bf16 %v3679, %v3678
  %v3722 = vpack.c.bf16 %v3681, %v3680
  %v3723 = vpack.c.bf16 %v3683, %v3682
  %v3724 = vpack.c.bf16 %v3685, %v3684
  %v3725 = vpack.c.bf16 %v3687, %v3686
  %v3726 = vpack.c.bf16 %v3689, %v3688
  %v3727 = vpack.c.bf16 %v3691, %v3690
  %v3728 = vpack.c.bf16 %v3693, %v3692
  %v3729 = vpack.c.bf16 %v3695, %v3694
  %v3730 = vpack.c.bf16 %v3697, %v3696
  %v3731 = vpack.c.bf16 %v3699, %v3698
  %s3732 = scalar_lea.vmem %s3, 16
  %v3733 = vld [vmem:[%s3732] sm:$0x3]
  %v3735 = vsel %vm20, %v3700, 0
  %v3738 = vsel %vm20, %v3701, 0
  %v3741 = vsel %vm20, %v3702, 0
  %v3744 = vsel %vm20, %v3703, 0
  %v3747 = vsel %vm20, %v3704, 0
  %v3750 = vsel %vm20, %v3705, 0
  %v3753 = vsel %vm20, %v3706, 0
  %v3756 = vsel %vm20, %v3707, 0
  %v3759 = vsel %vm20, %v3708, 0
  %v3762 = vsel %vm20, %v3709, 0
  %v3765 = vsel %vm20, %v3710, 0
  %v3768 = vsel %vm20, %v3711, 0
  %v3771 = vsel %vm20, %v3712, 0
  %v3774 = vsel %vm20, %v3713, 0
  %v3777 = vsel %vm20, %v3714, 0
  %v3780 = vsel %vm20, %v3715, 0
  %v3783 = vsel %vm20, %v3716, 0
  %v3786 = vsel %vm20, %v3717, 0
  %v3789 = vsel %vm20, %v3718, 0
  %v3792 = vsel %vm20, %v3719, 0
  %v3795 = vsel %vm20, %v3720, 0
  %v3798 = vsel %vm20, %v3721, 0
  %v3801 = vsel %vm20, %v3722, 0
  %v3804 = vsel %vm20, %v3723, 0
  %v3807 = vsel %vm20, %v3724, 0
  %v3810 = vsel %vm20, %v3725, 0
  %v3813 = vsel %vm20, %v3726, 0
  %v3816 = vsel %vm20, %v3727, 0
  %v3819 = vsel %vm20, %v3728, 0
  %v3822 = vsel %vm20, %v3729, 0
  %v3825 = vsel %vm20, %v3730, 0
  %v3828 = vsel %vm20, %v3731, 0
  %v3831 = vsel %vm614, %v3733, 0
  %3833 = vmatpush.bf16.msra.mxu0 0
  %3834 = vmatpush.bf16.msra.mxu0 0
  %3835 = vmatpush.bf16.msra.mxu0 0
  %3836 = vmatpush.bf16.msra.mxu0 0
  %3837 = vmatpush.bf16.msra.mxu0 0
  %3838 = vmatpush.bf16.msra.mxu0 0
  %3839 = vmatpush.bf16.msra.mxu0 0
  %3840 = vmatpush.bf16.msra.mxu0 %v3831
  %3841 = vmatmul.bf16.gmra.mxu0 %v3735
  %v3842 = vpop.f32.mrf.mxu0
  %v3843 = vadd.f32 0.0, %v3842
  %v3844 = vpop.f32.mrf.mxu0
  %v3845 = vadd.f32 0.0, %v3844
  %3846 = vmatmul.bf16.gmra.mxu0 %v3738
  %v3847 = vpop.f32.mrf.mxu0
  %v3848 = vadd.f32 0.0, %v3847
  %v3849 = vpop.f32.mrf.mxu0
  %v3850 = vadd.f32 0.0, %v3849
  %3851 = vmatmul.bf16.gmra.mxu0 %v3741
  %v3852 = vpop.f32.mrf.mxu0
  %v3853 = vadd.f32 0.0, %v3852
  %v3854 = vpop.f32.mrf.mxu0
  %v3855 = vadd.f32 0.0, %v3854
  %3856 = vmatmul.bf16.gmra.mxu0 %v3744
  %v3857 = vpop.f32.mrf.mxu0
  %v3858 = vadd.f32 0.0, %v3857
  %v3859 = vpop.f32.mrf.mxu0
  %v3860 = vadd.f32 0.0, %v3859
  %3861 = vmatmul.bf16.gmra.mxu0 %v3747
  %v3862 = vpop.f32.mrf.mxu0
  %v3863 = vadd.f32 0.0, %v3862
  %v3864 = vpop.f32.mrf.mxu0
  %v3865 = vadd.f32 0.0, %v3864
  %3866 = vmatmul.bf16.gmra.mxu0 %v3750
  %v3867 = vpop.f32.mrf.mxu0
  %v3868 = vadd.f32 0.0, %v3867
  %v3869 = vpop.f32.mrf.mxu0
  %v3870 = vadd.f32 0.0, %v3869
  %3871 = vmatmul.bf16.gmra.mxu0 %v3753
  %v3872 = vpop.f32.mrf.mxu0
  %v3873 = vadd.f32 0.0, %v3872
  %v3874 = vpop.f32.mrf.mxu0
  %v3875 = vadd.f32 0.0, %v3874
  %3876 = vmatmul.bf16.gmra.mxu0 %v3756
  %v3877 = vpop.f32.mrf.mxu0
  %v3878 = vadd.f32 0.0, %v3877
  %v3879 = vpop.f32.mrf.mxu0
  %v3880 = vadd.f32 0.0, %v3879
  %3881 = vmatmul.bf16.gmra.mxu0 %v3759
  %v3882 = vpop.f32.mrf.mxu0
  %v3883 = vadd.f32 0.0, %v3882
  %v3884 = vpop.f32.mrf.mxu0
  %v3885 = vadd.f32 0.0, %v3884
  %3886 = vmatmul.bf16.gmra.mxu0 %v3762
  %v3887 = vpop.f32.mrf.mxu0
  %v3888 = vadd.f32 0.0, %v3887
  %v3889 = vpop.f32.mrf.mxu0
  %v3890 = vadd.f32 0.0, %v3889
  %3891 = vmatmul.bf16.gmra.mxu0 %v3765
  %v3892 = vpop.f32.mrf.mxu0
  %v3893 = vadd.f32 0.0, %v3892
  %v3894 = vpop.f32.mrf.mxu0
  %v3895 = vadd.f32 0.0, %v3894
  %3896 = vmatmul.bf16.gmra.mxu0 %v3768
  %v3897 = vpop.f32.mrf.mxu0
  %v3898 = vadd.f32 0.0, %v3897
  %v3899 = vpop.f32.mrf.mxu0
  %v3900 = vadd.f32 0.0, %v3899
  %3901 = vmatmul.bf16.gmra.mxu0 %v3771
  %v3902 = vpop.f32.mrf.mxu0
  %v3903 = vadd.f32 0.0, %v3902
  %v3904 = vpop.f32.mrf.mxu0
  %v3905 = vadd.f32 0.0, %v3904
  %3906 = vmatmul.bf16.gmra.mxu0 %v3774
  %v3907 = vpop.f32.mrf.mxu0
  %v3908 = vadd.f32 0.0, %v3907
  %v3909 = vpop.f32.mrf.mxu0
  %v3910 = vadd.f32 0.0, %v3909
  %3911 = vmatmul.bf16.gmra.mxu0 %v3777
  %v3912 = vpop.f32.mrf.mxu0
  %v3913 = vadd.f32 0.0, %v3912
  %v3914 = vpop.f32.mrf.mxu0
  %v3915 = vadd.f32 0.0, %v3914
  %3916 = vmatmul.bf16.gmra.mxu0 %v3780
  %v3917 = vpop.f32.mrf.mxu0
  %v3918 = vadd.f32 0.0, %v3917
  %v3919 = vpop.f32.mrf.mxu0
  %v3920 = vadd.f32 0.0, %v3919
  %3921 = vmatmul.bf16.gmra.mxu0 %v3783
  %v3922 = vpop.f32.mrf.mxu0
  %v3923 = vadd.f32 0.0, %v3922
  %v3924 = vpop.f32.mrf.mxu0
  %v3925 = vadd.f32 0.0, %v3924
  %3926 = vmatmul.bf16.gmra.mxu0 %v3786
  %v3927 = vpop.f32.mrf.mxu0
  %v3928 = vadd.f32 0.0, %v3927
  %v3929 = vpop.f32.mrf.mxu0
  %v3930 = vadd.f32 0.0, %v3929
  %3931 = vmatmul.bf16.gmra.mxu0 %v3789
  %v3932 = vpop.f32.mrf.mxu0
  %v3933 = vadd.f32 0.0, %v3932
  %v3934 = vpop.f32.mrf.mxu0
  %v3935 = vadd.f32 0.0, %v3934
  %3936 = vmatmul.bf16.gmra.mxu0 %v3792
  %v3937 = vpop.f32.mrf.mxu0
  %v3938 = vadd.f32 0.0, %v3937
  %v3939 = vpop.f32.mrf.mxu0
  %v3940 = vadd.f32 0.0, %v3939
  %3941 = vmatmul.bf16.gmra.mxu0 %v3795
  %v3942 = vpop.f32.mrf.mxu0
  %v3943 = vadd.f32 0.0, %v3942
  %v3944 = vpop.f32.mrf.mxu0
  %v3945 = vadd.f32 0.0, %v3944
  %3946 = vmatmul.bf16.gmra.mxu0 %v3798
  %v3947 = vpop.f32.mrf.mxu0
  %v3948 = vadd.f32 0.0, %v3947
  %v3949 = vpop.f32.mrf.mxu0
  %v3950 = vadd.f32 0.0, %v3949
  %3951 = vmatmul.bf16.gmra.mxu0 %v3801
  %v3952 = vpop.f32.mrf.mxu0
  %v3953 = vadd.f32 0.0, %v3952
  %v3954 = vpop.f32.mrf.mxu0
  %v3955 = vadd.f32 0.0, %v3954
  %3956 = vmatmul.bf16.gmra.mxu0 %v3804
  %v3957 = vpop.f32.mrf.mxu0
  %v3958 = vadd.f32 0.0, %v3957
  %v3959 = vpop.f32.mrf.mxu0
  %v3960 = vadd.f32 0.0, %v3959
  %3961 = vmatmul.bf16.gmra.mxu0 %v3807
  %v3962 = vpop.f32.mrf.mxu0
  %v3963 = vadd.f32 0.0, %v3962
  %v3964 = vpop.f32.mrf.mxu0
  %v3965 = vadd.f32 0.0, %v3964
  %3966 = vmatmul.bf16.gmra.mxu0 %v3810
  %v3967 = vpop.f32.mrf.mxu0
  %v3968 = vadd.f32 0.0, %v3967
  %v3969 = vpop.f32.mrf.mxu0
  %v3970 = vadd.f32 0.0, %v3969
  %3971 = vmatmul.bf16.gmra.mxu0 %v3813
  %v3972 = vpop.f32.mrf.mxu0
  %v3973 = vadd.f32 0.0, %v3972
  %v3974 = vpop.f32.mrf.mxu0
  %v3975 = vadd.f32 0.0, %v3974
  %3976 = vmatmul.bf16.gmra.mxu0 %v3816
  %v3977 = vpop.f32.mrf.mxu0
  %v3978 = vadd.f32 0.0, %v3977
  %v3979 = vpop.f32.mrf.mxu0
  %v3980 = vadd.f32 0.0, %v3979
  %3981 = vmatmul.bf16.gmra.mxu0 %v3819
  %v3982 = vpop.f32.mrf.mxu0
  %v3983 = vadd.f32 0.0, %v3982
  %v3984 = vpop.f32.mrf.mxu0
  %v3985 = vadd.f32 0.0, %v3984
  %3986 = vmatmul.bf16.gmra.mxu0 %v3822
  %v3987 = vpop.f32.mrf.mxu0
  %v3988 = vadd.f32 0.0, %v3987
  %v3989 = vpop.f32.mrf.mxu0
  %v3990 = vadd.f32 0.0, %v3989
  %3991 = vmatmul.bf16.gmra.mxu0 %v3825
  %v3992 = vpop.f32.mrf.mxu0
  %v3993 = vadd.f32 0.0, %v3992
  %v3994 = vpop.f32.mrf.mxu0
  %v3995 = vadd.f32 0.0, %v3994
  %3996 = vmatmul.bf16.gmra.mxu0 %v3828
  %v3997 = vpop.f32.mrf.mxu0
  %v3998 = vadd.f32 0.0, %v3997
  %v3999 = vpop.f32.mrf.mxu0
  %v4000 = vadd.f32 0.0, %v3999
  %4001 = vdwg.mxu0
  %v4002 = vadd.f32 %v3572, %v3843
  %v4003 = vadd.f32 %v3573, %v3845
  %v4004 = vadd.f32 %v3574, %v3848
  %v4005 = vadd.f32 %v3575, %v3850
  %v4006 = vadd.f32 %v3576, %v3853
  %v4007 = vadd.f32 %v3577, %v3855
  %v4008 = vadd.f32 %v3578, %v3858
  %v4009 = vadd.f32 %v3579, %v3860
  %v4010 = vadd.f32 %v3580, %v3863
  %v4011 = vadd.f32 %v3581, %v3865
  %v4012 = vadd.f32 %v3582, %v3868
  %v4013 = vadd.f32 %v3583, %v3870
  %v4014 = vadd.f32 %v3584, %v3873
  %v4015 = vadd.f32 %v3585, %v3875
  %v4016 = vadd.f32 %v3586, %v3878
  %v4017 = vadd.f32 %v3587, %v3880
  %v4018 = vadd.f32 %v3588, %v3883
  %v4019 = vadd.f32 %v3589, %v3885
  %v4020 = vadd.f32 %v3590, %v3888
  %v4021 = vadd.f32 %v3591, %v3890
  %v4022 = vadd.f32 %v3592, %v3893
  %v4023 = vadd.f32 %v3593, %v3895
  %v4024 = vadd.f32 %v3594, %v3898
  %v4025 = vadd.f32 %v3595, %v3900
  %v4026 = vadd.f32 %v3596, %v3903
  %v4027 = vadd.f32 %v3597, %v3905
  %v4028 = vadd.f32 %v3598, %v3908
  %v4029 = vadd.f32 %v3599, %v3910
  %v4030 = vadd.f32 %v3600, %v3913
  %v4031 = vadd.f32 %v3601, %v3915
  %v4032 = vadd.f32 %v3602, %v3918
  %v4033 = vadd.f32 %v3603, %v3920
  %v4034 = vadd.f32 %v3604, %v3923
  %v4035 = vadd.f32 %v3605, %v3925
  %v4036 = vadd.f32 %v3606, %v3928
  %v4037 = vadd.f32 %v3607, %v3930
  %v4038 = vadd.f32 %v3608, %v3933
  %v4039 = vadd.f32 %v3609, %v3935
  %v4040 = vadd.f32 %v3610, %v3938
  %v4041 = vadd.f32 %v3611, %v3940
  %v4042 = vadd.f32 %v3612, %v3943
  %v4043 = vadd.f32 %v3613, %v3945
  %v4044 = vadd.f32 %v3614, %v3948
  %v4045 = vadd.f32 %v3615, %v3950
  %v4046 = vadd.f32 %v3616, %v3953
  %v4047 = vadd.f32 %v3617, %v3955
  %v4048 = vadd.f32 %v3618, %v3958
  %v4049 = vadd.f32 %v3619, %v3960
  %v4050 = vadd.f32 %v3620, %v3963
  %v4051 = vadd.f32 %v3621, %v3965
  %v4052 = vadd.f32 %v3622, %v3968
  %v4053 = vadd.f32 %v3623, %v3970
  %v4054 = vadd.f32 %v3624, %v3973
  %v4055 = vadd.f32 %v3625, %v3975
  %v4056 = vadd.f32 %v3626, %v3978
  %v4057 = vadd.f32 %v3627, %v3980
  %v4058 = vadd.f32 %v3628, %v3983
  %v4059 = vadd.f32 %v3629, %v3985
  %v4060 = vadd.f32 %v3630, %v3988
  %v4061 = vadd.f32 %v3631, %v3990
  %v4062 = vadd.f32 %v3632, %v3993
  %v4063 = vadd.f32 %v3633, %v3995
  %v4064 = vadd.f32 %v3634, %v3998
  %v4065 = vadd.f32 %v3635, %v4000
  %v4066 = vpack.c.bf16 %v4002, %v4002
  %v4067 = vpack.c.bf16 %v4003, %v4003
  %v4068 = vpack.c.bf16 %v4004, %v4004
  %v4069 = vpack.c.bf16 %v4005, %v4005
  %v4070 = vpack.c.bf16 %v4006, %v4006
  %v4071 = vpack.c.bf16 %v4007, %v4007
  %v4072 = vpack.c.bf16 %v4008, %v4008
  %v4073 = vpack.c.bf16 %v4009, %v4009
  %v4074 = vpack.c.bf16 %v4010, %v4010
  %v4075 = vpack.c.bf16 %v4011, %v4011
  %v4076 = vpack.c.bf16 %v4012, %v4012
  %v4077 = vpack.c.bf16 %v4013, %v4013
  %v4078 = vpack.c.bf16 %v4014, %v4014
  %v4079 = vpack.c.bf16 %v4015, %v4015
  %v4080 = vpack.c.bf16 %v4016, %v4016
  %v4081 = vpack.c.bf16 %v4017, %v4017
  %v4082 = vpack.c.bf16 %v4018, %v4018
  %v4083 = vpack.c.bf16 %v4019, %v4019
  %v4084 = vpack.c.bf16 %v4020, %v4020
  %v4085 = vpack.c.bf16 %v4021, %v4021
  %v4086 = vpack.c.bf16 %v4022, %v4022
  %v4087 = vpack.c.bf16 %v4023, %v4023
  %v4088 = vpack.c.bf16 %v4024, %v4024
  %v4089 = vpack.c.bf16 %v4025, %v4025
  %v4090 = vpack.c.bf16 %v4026, %v4026
  %v4091 = vpack.c.bf16 %v4027, %v4027
  %v4092 = vpack.c.bf16 %v4028, %v4028
  %v4093 = vpack.c.bf16 %v4029, %v4029
  %v4094 = vpack.c.bf16 %v4030, %v4030
  %v4095 = vpack.c.bf16 %v4031, %v4031
  %v4096 = vpack.c.bf16 %v4032, %v4032
  %v4097 = vpack.c.bf16 %v4033, %v4033
  %v4098 = vpack.c.bf16 %v4034, %v4034
  %v4099 = vpack.c.bf16 %v4035, %v4035
  %v4100 = vpack.c.bf16 %v4036, %v4036
  %v4101 = vpack.c.bf16 %v4037, %v4037
  %v4102 = vpack.c.bf16 %v4038, %v4038
  %v4103 = vpack.c.bf16 %v4039, %v4039
  %v4104 = vpack.c.bf16 %v4040, %v4040
  %v4105 = vpack.c.bf16 %v4041, %v4041
  %v4106 = vpack.c.bf16 %v4042, %v4042
  %v4107 = vpack.c.bf16 %v4043, %v4043
  %v4108 = vpack.c.bf16 %v4044, %v4044
  %v4109 = vpack.c.bf16 %v4045, %v4045
  %v4110 = vpack.c.bf16 %v4046, %v4046
  %v4111 = vpack.c.bf16 %v4047, %v4047
  %v4112 = vpack.c.bf16 %v4048, %v4048
  %v4113 = vpack.c.bf16 %v4049, %v4049
  %v4114 = vpack.c.bf16 %v4050, %v4050
  %v4115 = vpack.c.bf16 %v4051, %v4051
  %v4116 = vpack.c.bf16 %v4052, %v4052
  %v4117 = vpack.c.bf16 %v4053, %v4053
  %v4118 = vpack.c.bf16 %v4054, %v4054
  %v4119 = vpack.c.bf16 %v4055, %v4055
  %v4120 = vpack.c.bf16 %v4056, %v4056
  %v4121 = vpack.c.bf16 %v4057, %v4057
  %v4122 = vpack.c.bf16 %v4058, %v4058
  %v4123 = vpack.c.bf16 %v4059, %v4059
  %v4124 = vpack.c.bf16 %v4060, %v4060
  %v4125 = vpack.c.bf16 %v4061, %v4061
  %v4126 = vpack.c.bf16 %v4062, %v4062
  %v4127 = vpack.c.bf16 %v4063, %v4063
  %v4128 = vpack.c.bf16 %v4064, %v4064
  %v4129 = vpack.c.bf16 %v4065, %v4065
  %vm4130 = vcmask 60416
  %4131 = vst.msk [vmem:[%s4] sm:$0xf] %vm4130, %v4066
  %4132 = vst.msk [vmem:[%s4 + $0x4] sm:$0xf] %vm4130, %v4067
  %4133 = vst.msk [vmem:[%s4 + $0x8] sm:$0xf] %vm4130, %v4068
  %4134 = vst.msk [vmem:[%s4 + $0xc] sm:$0xf] %vm4130, %v4069
  %4135 = vst.msk [vmem:[%s4 + $0x10] sm:$0xf] %vm4130, %v4070
  %4136 = vst.msk [vmem:[%s4 + $0x14] sm:$0xf] %vm4130, %v4071
  %4137 = vst.msk [vmem:[%s4 + $0x18] sm:$0xf] %vm4130, %v4072
  %4138 = vst.msk [vmem:[%s4 + $0x1c] sm:$0xf] %vm4130, %v4073
  %4139 = vst.msk [vmem:[%s4 + $0x20] sm:$0xf] %vm4130, %v4074
  %4140 = vst.msk [vmem:[%s4 + $0x24] sm:$0xf] %vm4130, %v4075
  %4141 = vst.msk [vmem:[%s4 + $0x28] sm:$0xf] %vm4130, %v4076
  %4142 = vst.msk [vmem:[%s4 + $0x2c] sm:$0xf] %vm4130, %v4077
  %4143 = vst.msk [vmem:[%s4 + $0x30] sm:$0xf] %vm4130, %v4078
  %4144 = vst.msk [vmem:[%s4 + $0x34] sm:$0xf] %vm4130, %v4079
  %4145 = vst.msk [vmem:[%s4 + $0x38] sm:$0xf] %vm4130, %v4080
  %4146 = vst.msk [vmem:[%s4 + $0x3c] sm:$0xf] %vm4130, %v4081
  %4147 = vst.msk [vmem:[%s4 + $0x40] sm:$0xf] %vm4130, %v4082
  %4148 = vst.msk [vmem:[%s4 + $0x44] sm:$0xf] %vm4130, %v4083
  %4149 = vst.msk [vmem:[%s4 + $0x48] sm:$0xf] %vm4130, %v4084
  %4150 = vst.msk [vmem:[%s4 + $0x4c] sm:$0xf] %vm4130, %v4085
  %4151 = vst.msk [vmem:[%s4 + $0x50] sm:$0xf] %vm4130, %v4086
  %4152 = vst.msk [vmem:[%s4 + $0x54] sm:$0xf] %vm4130, %v4087
  %4153 = vst.msk [vmem:[%s4 + $0x58] sm:$0xf] %vm4130, %v4088
  %4154 = vst.msk [vmem:[%s4 + $0x5c] sm:$0xf] %vm4130, %v4089
  %4155 = vst.msk [vmem:[%s4 + $0x60] sm:$0xf] %vm4130, %v4090
  %4156 = vst.msk [vmem:[%s4 + $0x64] sm:$0xf] %vm4130, %v4091
  %4157 = vst.msk [vmem:[%s4 + $0x68] sm:$0xf] %vm4130, %v4092
  %4158 = vst.msk [vmem:[%s4 + $0x6c] sm:$0xf] %vm4130, %v4093
  %4159 = vst.msk [vmem:[%s4 + $0x70] sm:$0xf] %vm4130, %v4094
  %4160 = vst.msk [vmem:[%s4 + $0x74] sm:$0xf] %vm4130, %v4095
  %4161 = vst.msk [vmem:[%s4 + $0x78] sm:$0xf] %vm4130, %v4096
  %4162 = vst.msk [vmem:[%s4 + $0x7c] sm:$0xf] %vm4130, %v4097
  %4163 = vst.msk [vmem:[%s4 + $0x80] sm:$0xf] %vm4130, %v4098
  %4164 = vst.msk [vmem:[%s4 + $0x84] sm:$0xf] %vm4130, %v4099
  %4165 = vst.msk [vmem:[%s4 + $0x88] sm:$0xf] %vm4130, %v4100
  %4166 = vst.msk [vmem:[%s4 + $0x8c] sm:$0xf] %vm4130, %v4101
  %4167 = vst.msk [vmem:[%s4 + $0x90] sm:$0xf] %vm4130, %v4102
  %4168 = vst.msk [vmem:[%s4 + $0x94] sm:$0xf] %vm4130, %v4103
  %4169 = vst.msk [vmem:[%s4 + $0x98] sm:$0xf] %vm4130, %v4104
  %4170 = vst.msk [vmem:[%s4 + $0x9c] sm:$0xf] %vm4130, %v4105
  %4171 = vst.msk [vmem:[%s4 + $0xa0] sm:$0xf] %vm4130, %v4106
  %4172 = vst.msk [vmem:[%s4 + $0xa4] sm:$0xf] %vm4130, %v4107
  %4173 = vst.msk [vmem:[%s4 + $0xa8] sm:$0xf] %vm4130, %v4108
  %4174 = vst.msk [vmem:[%s4 + $0xac] sm:$0xf] %vm4130, %v4109
  %4175 = vst.msk [vmem:[%s4 + $0xb0] sm:$0xf] %vm4130, %v4110
  %4176 = vst.msk [vmem:[%s4 + $0xb4] sm:$0xf] %vm4130, %v4111
  %4177 = vst.msk [vmem:[%s4 + $0xb8] sm:$0xf] %vm4130, %v4112
  %4178 = vst.msk [vmem:[%s4 + $0xbc] sm:$0xf] %vm4130, %v4113
  %4179 = vst.msk [vmem:[%s4 + $0xc0] sm:$0xf] %vm4130, %v4114
  %4180 = vst.msk [vmem:[%s4 + $0xc4] sm:$0xf] %vm4130, %v4115
  %4181 = vst.msk [vmem:[%s4 + $0xc8] sm:$0xf] %vm4130, %v4116
  %4182 = vst.msk [vmem:[%s4 + $0xcc] sm:$0xf] %vm4130, %v4117
  %4183 = vst.msk [vmem:[%s4 + $0xd0] sm:$0xf] %vm4130, %v4118
  %4184 = vst.msk [vmem:[%s4 + $0xd4] sm:$0xf] %vm4130, %v4119
  %4185 = vst.msk [vmem:[%s4 + $0xd8] sm:$0xf] %vm4130, %v4120
  %4186 = vst.msk [vmem:[%s4 + $0xdc] sm:$0xf] %vm4130, %v4121
  %4187 = vst.msk [vmem:[%s4 + $0xe0] sm:$0xf] %vm4130, %v4122
  %4188 = vst.msk [vmem:[%s4 + $0xe4] sm:$0xf] %vm4130, %v4123
  %4189 = vst.msk [vmem:[%s4 + $0xe8] sm:$0xf] %vm4130, %v4124
  %4190 = vst.msk [vmem:[%s4 + $0xec] sm:$0xf] %vm4130, %v4125
  %4191 = vst.msk [vmem:[%s4 + $0xf0] sm:$0xf] %vm4130, %v4126
  %4192 = vst.msk [vmem:[%s4 + $0xf4] sm:$0xf] %vm4130, %v4127
  %4193 = vst.msk [vmem:[%s4 + $0xf8] sm:$0xf] %vm4130, %v4128
  %4194 = vst.msk [vmem:[%s4 + $0xfc] sm:$0xf] %vm4130, %v4129
  %vm4195 = vcmask 64512
  %v4196 = vsel %vm4195, %v4002, 0.0
  %v4197 = vsel %vm4195, %v4003, 0.0
  %v4198 = vadd.f32 %v4196, %v4197
  %v4199 = vsel %vm4195, %v4004, 0.0
  %v4200 = vadd.f32 %v4198, %v4199
  %v4201 = vsel %vm4195, %v4005, 0.0
  %v4202 = vadd.f32 %v4200, %v4201
  %v4203 = vsel %vm4195, %v4006, 0.0
  %v4204 = vadd.f32 %v4202, %v4203
  %v4205 = vsel %vm4195, %v4007, 0.0
  %v4206 = vadd.f32 %v4204, %v4205
  %v4207 = vsel %vm4195, %v4008, 0.0
  %v4208 = vadd.f32 %v4206, %v4207
  %v4209 = vsel %vm4195, %v4009, 0.0
  %v4210 = vadd.f32 %v4208, %v4209
  %v4211 = vsel %vm4195, %v4010, 0.0
  %v4212 = vadd.f32 %v4210, %v4211
  %v4213 = vsel %vm4195, %v4011, 0.0
  %v4214 = vadd.f32 %v4212, %v4213
  %v4215 = vsel %vm4195, %v4012, 0.0
  %v4216 = vadd.f32 %v4214, %v4215
  %v4217 = vsel %vm4195, %v4013, 0.0
  %v4218 = vadd.f32 %v4216, %v4217
  %v4219 = vsel %vm4195, %v4014, 0.0
  %v4220 = vadd.f32 %v4218, %v4219
  %v4221 = vsel %vm4195, %v4015, 0.0
  %v4222 = vadd.f32 %v4220, %v4221
  %v4223 = vsel %vm4195, %v4016, 0.0
  %v4224 = vadd.f32 %v4222, %v4223
  %v4225 = vsel %vm4195, %v4017, 0.0
  %v4226 = vadd.f32 %v4224, %v4225
  %v4227 = vsel %vm4195, %v4018, 0.0
  %v4228 = vadd.f32 %v4226, %v4227
  %v4229 = vsel %vm4195, %v4019, 0.0
  %v4230 = vadd.f32 %v4228, %v4229
  %v4231 = vsel %vm4195, %v4020, 0.0
  %v4232 = vadd.f32 %v4230, %v4231
  %v4233 = vsel %vm4195, %v4021, 0.0
  %v4234 = vadd.f32 %v4232, %v4233
  %v4235 = vsel %vm4195, %v4022, 0.0
  %v4236 = vadd.f32 %v4234, %v4235
  %v4237 = vsel %vm4195, %v4023, 0.0
  %v4238 = vadd.f32 %v4236, %v4237
  %v4239 = vsel %vm4195, %v4024, 0.0
  %v4240 = vadd.f32 %v4238, %v4239
  %v4241 = vsel %vm4195, %v4025, 0.0
  %v4242 = vadd.f32 %v4240, %v4241
  %v4243 = vsel %vm4195, %v4026, 0.0
  %v4244 = vadd.f32 %v4242, %v4243
  %v4245 = vsel %vm4195, %v4027, 0.0
  %v4246 = vadd.f32 %v4244, %v4245
  %v4247 = vsel %vm4195, %v4028, 0.0
  %v4248 = vadd.f32 %v4246, %v4247
  %v4249 = vsel %vm4195, %v4029, 0.0
  %v4250 = vadd.f32 %v4248, %v4249
  %v4251 = vsel %vm4195, %v4030, 0.0
  %v4252 = vadd.f32 %v4250, %v4251
  %v4253 = vsel %vm4195, %v4031, 0.0
  %v4254 = vadd.f32 %v4252, %v4253
  %v4255 = vsel %vm4195, %v4032, 0.0
  %v4256 = vadd.f32 %v4254, %v4255
  %v4257 = vsel %vm4195, %v4033, 0.0
  %v4258 = vadd.f32 %v4256, %v4257
  %v4259 = vsel %vm4195, %v4034, 0.0
  %v4260 = vadd.f32 %v4258, %v4259
  %v4261 = vsel %vm4195, %v4035, 0.0
  %v4262 = vadd.f32 %v4260, %v4261
  %v4263 = vsel %vm4195, %v4036, 0.0
  %v4264 = vadd.f32 %v4262, %v4263
  %v4265 = vsel %vm4195, %v4037, 0.0
  %v4266 = vadd.f32 %v4264, %v4265
  %v4267 = vsel %vm4195, %v4038, 0.0
  %v4268 = vadd.f32 %v4266, %v4267
  %v4269 = vsel %vm4195, %v4039, 0.0
  %v4270 = vadd.f32 %v4268, %v4269
  %v4271 = vsel %vm4195, %v4040, 0.0
  %v4272 = vadd.f32 %v4270, %v4271
  %v4273 = vsel %vm4195, %v4041, 0.0
  %v4274 = vadd.f32 %v4272, %v4273
  %v4275 = vsel %vm4195, %v4042, 0.0
  %v4276 = vadd.f32 %v4274, %v4275
  %v4277 = vsel %vm4195, %v4043, 0.0
  %v4278 = vadd.f32 %v4276, %v4277
  %v4279 = vsel %vm4195, %v4044, 0.0
  %v4280 = vadd.f32 %v4278, %v4279
  %v4281 = vsel %vm4195, %v4045, 0.0
  %v4282 = vadd.f32 %v4280, %v4281
  %v4283 = vsel %vm4195, %v4046, 0.0
  %v4284 = vadd.f32 %v4282, %v4283
  %v4285 = vsel %vm4195, %v4047, 0.0
  %v4286 = vadd.f32 %v4284, %v4285
  %v4287 = vsel %vm4195, %v4048, 0.0
  %v4288 = vadd.f32 %v4286, %v4287
  %v4289 = vsel %vm4195, %v4049, 0.0
  %v4290 = vadd.f32 %v4288, %v4289
  %v4291 = vsel %vm4195, %v4050, 0.0
  %v4292 = vadd.f32 %v4290, %v4291
  %v4293 = vsel %vm4195, %v4051, 0.0
  %v4294 = vadd.f32 %v4292, %v4293
  %v4295 = vsel %vm4195, %v4052, 0.0
  %v4296 = vadd.f32 %v4294, %v4295
  %v4297 = vsel %vm4195, %v4053, 0.0
  %v4298 = vadd.f32 %v4296, %v4297
  %v4299 = vsel %vm4195, %v4054, 0.0
  %v4300 = vadd.f32 %v4298, %v4299
  %v4301 = vsel %vm4195, %v4055, 0.0
  %v4302 = vadd.f32 %v4300, %v4301
  %v4303 = vsel %vm4195, %v4056, 0.0
  %v4304 = vadd.f32 %v4302, %v4303
  %v4305 = vsel %vm4195, %v4057, 0.0
  %v4306 = vadd.f32 %v4304, %v4305
  %v4307 = vsel %vm4195, %v4058, 0.0
  %v4308 = vadd.f32 %v4306, %v4307
  %v4309 = vsel %vm4195, %v4059, 0.0
  %v4310 = vadd.f32 %v4308, %v4309
  %v4311 = vsel %vm4195, %v4060, 0.0
  %v4312 = vadd.f32 %v4310, %v4311
  %v4313 = vsel %vm4195, %v4061, 0.0
  %v4314 = vadd.f32 %v4312, %v4313
  %v4315 = vsel %vm4195, %v4062, 0.0
  %v4316 = vadd.f32 %v4314, %v4315
  %v4317 = vsel %vm4195, %v4063, 0.0
  %v4318 = vadd.f32 %v4316, %v4317
  %v4319 = vsel %vm4195, %v4064, 0.0
  %v4320 = vadd.f32 %v4318, %v4319
  %v4321 = vsel %vm4195, %v4065, 0.0
  %v4322 = vadd.f32 %v4320, %v4321
  %v4323 = vrot.slane %v4322, 4
  %v4324 = vadd.f32 %v4322, %v4323
  %v4325 = vrot.slane %v4324, 2
  %v4326 = vadd.f32 %v4324, %v4325
  %v4327 = vrot.slane %v4326, 1
  %v4328 = vadd.f32 %v4326, %v4327
  %vm4329 = vcmask 57344
  %4330 = vst.msk [vmem:[%s5] sm:$0x1] %vm4329, %v4328
  %v4331 = vmul.f32 %v4002, %v4002
  %v4332 = vmul.f32 %v4003, %v4003
  %v4333 = vmul.f32 %v4004, %v4004
  %v4334 = vmul.f32 %v4005, %v4005
  %v4335 = vmul.f32 %v4006, %v4006
  %v4336 = vmul.f32 %v4007, %v4007
  %v4337 = vmul.f32 %v4008, %v4008
  %v4338 = vmul.f32 %v4009, %v4009
  %v4339 = vmul.f32 %v4010, %v4010
  %v4340 = vmul.f32 %v4011, %v4011
  %v4341 = vmul.f32 %v4012, %v4012
  %v4342 = vmul.f32 %v4013, %v4013
  %v4343 = vmul.f32 %v4014, %v4014
  %v4344 = vmul.f32 %v4015, %v4015
  %v4345 = vmul.f32 %v4016, %v4016
  %v4346 = vmul.f32 %v4017, %v4017
  %v4347 = vmul.f32 %v4018, %v4018
  %v4348 = vmul.f32 %v4019, %v4019
  %v4349 = vmul.f32 %v4020, %v4020
  %v4350 = vmul.f32 %v4021, %v4021
  %v4351 = vmul.f32 %v4022, %v4022
  %v4352 = vmul.f32 %v4023, %v4023
  %v4353 = vmul.f32 %v4024, %v4024
  %v4354 = vmul.f32 %v4025, %v4025
  %v4355 = vmul.f32 %v4026, %v4026
  %v4356 = vmul.f32 %v4027, %v4027
  %v4357 = vmul.f32 %v4028, %v4028
  %v4358 = vmul.f32 %v4029, %v4029
  %v4359 = vmul.f32 %v4030, %v4030
  %v4360 = vmul.f32 %v4031, %v4031
  %v4361 = vmul.f32 %v4032, %v4032
  %v4362 = vmul.f32 %v4033, %v4033
  %v4363 = vmul.f32 %v4034, %v4034
  %v4364 = vmul.f32 %v4035, %v4035
  %v4365 = vmul.f32 %v4036, %v4036
  %v4366 = vmul.f32 %v4037, %v4037
  %v4367 = vmul.f32 %v4038, %v4038
  %v4368 = vmul.f32 %v4039, %v4039
  %v4369 = vmul.f32 %v4040, %v4040
  %v4370 = vmul.f32 %v4041, %v4041
  %v4371 = vmul.f32 %v4042, %v4042
  %v4372 = vmul.f32 %v4043, %v4043
  %v4373 = vmul.f32 %v4044, %v4044
  %v4374 = vmul.f32 %v4045, %v4045
  %v4375 = vmul.f32 %v4046, %v4046
  %v4376 = vmul.f32 %v4047, %v4047
  %v4377 = vmul.f32 %v4048, %v4048
  %v4378 = vmul.f32 %v4049, %v4049
  %v4379 = vmul.f32 %v4050, %v4050
  %v4380 = vmul.f32 %v4051, %v4051
  %v4381 = vmul.f32 %v4052, %v4052
  %v4382 = vmul.f32 %v4053, %v4053
  %v4383 = vmul.f32 %v4054, %v4054
  %v4384 = vmul.f32 %v4055, %v4055
  %v4385 = vmul.f32 %v4056, %v4056
  %v4386 = vmul.f32 %v4057, %v4057
  %v4387 = vmul.f32 %v4058, %v4058
  %v4388 = vmul.f32 %v4059, %v4059
  %v4389 = vmul.f32 %v4060, %v4060
  %v4390 = vmul.f32 %v4061, %v4061
  %v4391 = vmul.f32 %v4062, %v4062
  %v4392 = vmul.f32 %v4063, %v4063
  %v4393 = vmul.f32 %v4064, %v4064
  %v4394 = vmul.f32 %v4065, %v4065
  %v4395 = vsel %vm4195, %v4331, 0.0
  %v4396 = vsel %vm4195, %v4332, 0.0
  %v4397 = vadd.f32 %v4395, %v4396
  %v4398 = vsel %vm4195, %v4333, 0.0
  %v4399 = vadd.f32 %v4397, %v4398
  %v4400 = vsel %vm4195, %v4334, 0.0
  %v4401 = vadd.f32 %v4399, %v4400
  %v4402 = vsel %vm4195, %v4335, 0.0
  %v4403 = vadd.f32 %v4401, %v4402
  %v4404 = vsel %vm4195, %v4336, 0.0
  %v4405 = vadd.f32 %v4403, %v4404
  %v4406 = vsel %vm4195, %v4337, 0.0
  %v4407 = vadd.f32 %v4405, %v4406
  %v4408 = vsel %vm4195, %v4338, 0.0
  %v4409 = vadd.f32 %v4407, %v4408
  %v4410 = vsel %vm4195, %v4339, 0.0
  %v4411 = vadd.f32 %v4409, %v4410
  %v4412 = vsel %vm4195, %v4340, 0.0
  %v4413 = vadd.f32 %v4411, %v4412
  %v4414 = vsel %vm4195, %v4341, 0.0
  %v4415 = vadd.f32 %v4413, %v4414
  %v4416 = vsel %vm4195, %v4342, 0.0
  %v4417 = vadd.f32 %v4415, %v4416
  %v4418 = vsel %vm4195, %v4343, 0.0
  %v4419 = vadd.f32 %v4417, %v4418
  %v4420 = vsel %vm4195, %v4344, 0.0
  %v4421 = vadd.f32 %v4419, %v4420
  %v4422 = vsel %vm4195, %v4345, 0.0
  %v4423 = vadd.f32 %v4421, %v4422
  %v4424 = vsel %vm4195, %v4346, 0.0
  %v4425 = vadd.f32 %v4423, %v4424
  %v4426 = vsel %vm4195, %v4347, 0.0
  %v4427 = vadd.f32 %v4425, %v4426
  %v4428 = vsel %vm4195, %v4348, 0.0
  %v4429 = vadd.f32 %v4427, %v4428
  %v4430 = vsel %vm4195, %v4349, 0.0
  %v4431 = vadd.f32 %v4429, %v4430
  %v4432 = vsel %vm4195, %v4350, 0.0
  %v4433 = vadd.f32 %v4431, %v4432
  %v4434 = vsel %vm4195, %v4351, 0.0
  %v4435 = vadd.f32 %v4433, %v4434
  %v4436 = vsel %vm4195, %v4352, 0.0
  %v4437 = vadd.f32 %v4435, %v4436
  %v4438 = vsel %vm4195, %v4353, 0.0
  %v4439 = vadd.f32 %v4437, %v4438
  %v4440 = vsel %vm4195, %v4354, 0.0
  %v4441 = vadd.f32 %v4439, %v4440
  %v4442 = vsel %vm4195, %v4355, 0.0
  %v4443 = vadd.f32 %v4441, %v4442
  %v4444 = vsel %vm4195, %v4356, 0.0
  %v4445 = vadd.f32 %v4443, %v4444
  %v4446 = vsel %vm4195, %v4357, 0.0
  %v4447 = vadd.f32 %v4445, %v4446
  %v4448 = vsel %vm4195, %v4358, 0.0
  %v4449 = vadd.f32 %v4447, %v4448
  %v4450 = vsel %vm4195, %v4359, 0.0
  %v4451 = vadd.f32 %v4449, %v4450
  %v4452 = vsel %vm4195, %v4360, 0.0
  %v4453 = vadd.f32 %v4451, %v4452
  %v4454 = vsel %vm4195, %v4361, 0.0
  %v4455 = vadd.f32 %v4453, %v4454
  %v4456 = vsel %vm4195, %v4362, 0.0
  %v4457 = vadd.f32 %v4455, %v4456
  %v4458 = vsel %vm4195, %v4363, 0.0
  %v4459 = vadd.f32 %v4457, %v4458
  %v4460 = vsel %vm4195, %v4364, 0.0
  %v4461 = vadd.f32 %v4459, %v4460
  %v4462 = vsel %vm4195, %v4365, 0.0
  %v4463 = vadd.f32 %v4461, %v4462
  %v4464 = vsel %vm4195, %v4366, 0.0
  %v4465 = vadd.f32 %v4463, %v4464
  %v4466 = vsel %vm4195, %v4367, 0.0
  %v4467 = vadd.f32 %v4465, %v4466
  %v4468 = vsel %vm4195, %v4368, 0.0
  %v4469 = vadd.f32 %v4467, %v4468
  %v4470 = vsel %vm4195, %v4369, 0.0
  %v4471 = vadd.f32 %v4469, %v4470
  %v4472 = vsel %vm4195, %v4370, 0.0
  %v4473 = vadd.f32 %v4471, %v4472
  %v4474 = vsel %vm4195, %v4371, 0.0
  %v4475 = vadd.f32 %v4473, %v4474
  %v4476 = vsel %vm4195, %v4372, 0.0
  %v4477 = vadd.f32 %v4475, %v4476
  %v4478 = vsel %vm4195, %v4373, 0.0
  %v4479 = vadd.f32 %v4477, %v4478
  %v4480 = vsel %vm4195, %v4374, 0.0
  %v4481 = vadd.f32 %v4479, %v4480
  %v4482 = vsel %vm4195, %v4375, 0.0
  %v4483 = vadd.f32 %v4481, %v4482
  %v4484 = vsel %vm4195, %v4376, 0.0
  %v4485 = vadd.f32 %v4483, %v4484
  %v4486 = vsel %vm4195, %v4377, 0.0
  %v4487 = vadd.f32 %v4485, %v4486
  %v4488 = vsel %vm4195, %v4378, 0.0
  %v4489 = vadd.f32 %v4487, %v4488
  %v4490 = vsel %vm4195, %v4379, 0.0
  %v4491 = vadd.f32 %v4489, %v4490
  %v4492 = vsel %vm4195, %v4380, 0.0
  %v4493 = vadd.f32 %v4491, %v4492
  %v4494 = vsel %vm4195, %v4381, 0.0
  %v4495 = vadd.f32 %v4493, %v4494
  %v4496 = vsel %vm4195, %v4382, 0.0
  %v4497 = vadd.f32 %v4495, %v4496
  %v4498 = vsel %vm4195, %v4383, 0.0
  %v4499 = vadd.f32 %v4497, %v4498
  %v4500 = vsel %vm4195, %v4384, 0.0
  %v4501 = vadd.f32 %v4499, %v4500
  %v4502 = vsel %vm4195, %v4385, 0.0
  %v4503 = vadd.f32 %v4501, %v4502
  %v4504 = vsel %vm4195, %v4386, 0.0
  %v4505 = vadd.f32 %v4503, %v4504
  %v4506 = vsel %vm4195, %v4387, 0.0
  %v4507 = vadd.f32 %v4505, %v4506
  %v4508 = vsel %vm4195, %v4388, 0.0
  %v4509 = vadd.f32 %v4507, %v4508
  %v4510 = vsel %vm4195, %v4389, 0.0
  %v4511 = vadd.f32 %v4509, %v4510
  %v4512 = vsel %vm4195, %v4390, 0.0
  %v4513 = vadd.f32 %v4511, %v4512
  %v4514 = vsel %vm4195, %v4391, 0.0
  %v4515 = vadd.f32 %v4513, %v4514
  %v4516 = vsel %vm4195, %v4392, 0.0
  %v4517 = vadd.f32 %v4515, %v4516
  %v4518 = vsel %vm4195, %v4393, 0.0
  %v4519 = vadd.f32 %v4517, %v4518
  %v4520 = vsel %vm4195, %v4394, 0.0
  %v4521 = vadd.f32 %v4519, %v4520
  %v4522 = vrot.slane %v4521, 4
  %v4523 = vadd.f32 %v4521, %v4522
  %v4524 = vrot.slane %v4523, 2
  %v4525 = vadd.f32 %v4523, %v4524
  %v4526 = vrot.slane %v4525, 1
  %v4527 = vadd.f32 %v4525, %v4526
  %4528 = vst.msk [vmem:[%s5 + $0x1] sm:$0x1] %vm4329, %v4527
  // Predicated region
  $region18: #{double_conv.3} parent=0 // pred_check
    _
  $region19: #{double_conv.3} parent=0 // pred_check_branch
    %4530 = sbr.rel (0) target = $region21
  $region20: #{double_conv.3} parent=0 // pred_region
    _
  $region21: #{double_conv.3} parent=0 // pred_fallthru
    _
  // Predicated region
  $region22: #{double_conv.3} parent=0 // pred_check
    _
  $region23: #{double_conv.3} parent=0 // pred_check_branch
    %4532 = sbr.rel (0) target = $region25
  $region24: #{double_conv.3} parent=0 // pred_region
    _
  $region25: #{double_conv.3} parent=0 // pred_fallthru
    _
  // Predicated region
  $region26: #{double_conv.3} parent=0 // pred_check
    _
  $region27: #{double_conv.3} parent=0 // pred_check_branch
    %4534 = sbr.rel (0) target = $region29
  $region28: #{double_conv.3} parent=0 // pred_region
    _
  $region29: #{double_conv.3} parent=0 // pred_fallthru
    _
  // Predicated region
  $region30: #{double_conv.3} parent=0 // pred_check
    _
  $region31: #{double_conv.3} parent=0 // pred_check_branch
    %4536 = sbr.rel (0) target = $region33
  $region32: #{double_conv.3} parent=0 // pred_region
    _
  $region33: #{double_conv.3} parent=0 // pred_fallthru
    _

// kernel: double_conv.4
$region0: #{double_conv.4}
  #allocation0 [shape = 'u32[]', space=smem, size = 0x4, offset = 0x4, fixed_abs, tag = 'smem constant byte address 0x4 - core index']
  #allocation1 [shape = 'u32[72,128]{1,0:T(1,128)}', space=vmem, size = 0x9000, scoped, tag = 'internal scratch']
  #allocation2 [shape = 'f32[2,18,18,8]{3,2,1,0:T(8,128)}', space=vmem, size = 0x6c000, scoped, tag = 'scratch operand']
  %s0 = inlined_call_operand.vmem [shape: bf16[2,16,16,8], index: 0, kind: input, shape index: {}]
  %s1 = inlined_call_operand.vmem [shape: f32[1,1,1,8], index: 1, kind: input, shape index: {}]
  %s2 = inlined_call_operand.vmem [shape: f32[1,1,1,8], index: 2, kind: input, shape index: {}]
  %s3 = inlined_call_operand.vmem [shape: bf16[3,3,8,8], index: 3, kind: input, shape index: {}]
  %s4 = inlined_call_operand.vmem [shape: bf16[2,16,16,8], index: 4, kind: output, shape index: {0}]
  %s5 = inlined_call_operand.vmem [shape: f32[1,2,8], index: 5, kind: output, shape index: {1}]
  %6 = xla_tuple %s4, %s5
  %s7 = sld [smem:[#allocation0]]
  $region34: #{double_conv.4} parent=0
    _
  %s9 = ssub.s32 1, %s7
  %s10 = scalar_select 0, %s9, %s7
  // Predicated region
  $region2: #{double_conv.4} parent=0 // pred_check
    _
  $region3: #{double_conv.4} parent=0 // pred_check_branch
    %12 = sbr.rel (0) target = $region5
  $region4: #{double_conv.4} parent=0 // pred_region
    _
  $region5: #{double_conv.4} parent=0 // pred_fallthru
    _
  // Predicated region
  $region6: #{double_conv.4} parent=0 // pred_check
    _
  $region7: #{double_conv.4} parent=0 // pred_check_branch
    %14 = sbr.rel (0) target = $region9
  $region8: #{double_conv.4} parent=0 // pred_region
    _
  $region9: #{double_conv.4} parent=0 // pred_fallthru
    _
  // Predicated region
  $region10: #{double_conv.4} parent=0 // pred_check
    _
  $region11: #{double_conv.4} parent=0 // pred_check_branch
    %16 = sbr.rel (0) target = $region13
  $region12: #{double_conv.4} parent=0 // pred_region
    _
  $region13: #{double_conv.4} parent=0 // pred_fallthru
    _
  // Predicated region
  $region14: #{double_conv.4} parent=0 // pred_check
    _
  $region15: #{double_conv.4} parent=0 // pred_check_branch
    %18 = sbr.rel (0) target = $region17
  $region16: #{double_conv.4} parent=0 // pred_region
    _
  $region17: #{double_conv.4} parent=0 // pred_fallthru
    _
  %vm20 = vcmask 64512
  %21 = vst.msk [vmem:[#allocation2] sm:$0xff] %vm20, 0.0
  %22 = vst.msk [vmem:[#allocation2 + $0x8] sm:$0xff] %vm20, 0.0
  %vm23 = vcmask 58368
  %24 = vst.msk [vmem:[#allocation2 + $0x10] sm:$0x3] %vm23, 0.0
  %25 = vst.msk [vmem:[#allocation2 + $0x18] sm:$0xff] %vm20, 0.0
  %26 = vst.msk [vmem:[#allocation2 + $0x20] sm:$0xff] %vm20, 0.0
  %27 = vst.msk [vmem:[#allocation2 + $0x28] sm:$0x3] %vm23, 0.0
  %28 = vst.msk [vmem:[#allocation2 + $0x30] sm:$0xff] %vm20, 0.0
  %29 = vst.msk [vmem:[#allocation2 + $0x38] sm:$0xff] %vm20, 0.0
  %30 = vst.msk [vmem:[#allocation2 + $0x40] sm:$0x3] %vm23, 0.0
  %31 = vst.msk [vmem:[#allocation2 + $0x48] sm:$0xff] %vm20, 0.0
  %32 = vst.msk [vmem:[#allocation2 + $0x50] sm:$0xff] %vm20, 0.0
  %33 = vst.msk [vmem:[#allocation2 + $0x58] sm:$0x3] %vm23, 0.0
  %34 = vst.msk [vmem:[#allocation2 + $0x60] sm:$0xff] %vm20, 0.0
  %35 = vst.msk [vmem:[#allocation2 + $0x68] sm:$0xff] %vm20, 0.0
  %36 = vst.msk [vmem:[#allocation2 + $0x70] sm:$0x3] %vm23, 0.0
  %37 = vst.msk [vmem:[#allocation2 + $0x78] sm:$0xff] %vm20, 0.0
  %38 = vst.msk [vmem:[#allocation2 + $0x80] sm:$0xff] %vm20, 0.0
  %39 = vst.msk [vmem:[#allocation2 + $0x88] sm:$0x3] %vm23, 0.0
  %40 = vst.msk [vmem:[#allocation2 + $0x90] sm:$0xff] %vm20, 0.0
  %41 = vst.msk [vmem:[#allocation2 + $0x98] sm:$0xff] %vm20, 0.0
  %42 = vst.msk [vmem:[#allocation2 + $0xa0] sm:$0x3] %vm23, 0.0
  %43 = vst.msk [vmem:[#allocation2 + $0xa8] sm:$0xff] %vm20, 0.0
  %44 = vst.msk [vmem:[#allocation2 + $0xb0] sm:$0xff] %vm20, 0.0
  %45 = vst.msk [vmem:[#allocation2 + $0xb8] sm:$0x3] %vm23, 0.0
  %46 = vst.msk [vmem:[#allocation2 + $0xc0] sm:$0xff] %vm20, 0.0
  %47 = vst.msk [vmem:[#allocation2 + $0xc8] sm:$0xff] %vm20, 0.0
  %48 = vst.msk [vmem:[#allocation2 + $0xd0] sm:$0x3] %vm23, 0.0
  %49 = vst.msk [vmem:[#allocation2 + $0xd8] sm:$0xff] %vm20, 0.0
  %50 = vst.msk [vmem:[#allocation2 + $0xe0] sm:$0xff] %vm20, 0.0
  %51 = vst.msk [vmem:[#allocation2 + $0xe8] sm:$0x3] %vm23, 0.0
  %52 = vst.msk [vmem:[#allocation2 + $0xf0] sm:$0xff] %vm20, 0.0
  %53 = vst.msk [vmem:[#allocation2 + $0xf8] sm:$0xff] %vm20, 0.0
  %54 = vst.msk [vmem:[#allocation2 + $0x100] sm:$0x3] %vm23, 0.0
  %55 = vst.msk [vmem:[#allocation2 + $0x108] sm:$0xff] %vm20, 0.0
  %56 = vst.msk [vmem:[#allocation2 + $0x110] sm:$0xff] %vm20, 0.0
  %57 = vst.msk [vmem:[#allocation2 + $0x118] sm:$0x3] %vm23, 0.0
  %58 = vst.msk [vmem:[#allocation2 + $0x120] sm:$0xff] %vm20, 0.0
  %59 = vst.msk [vmem:[#allocation2 + $0x128] sm:$0xff] %vm20, 0.0
  %60 = vst.msk [vmem:[#allocation2 + $0x130] sm:$0x3] %vm23, 0.0
  %61 = vst.msk [vmem:[#allocation2 + $0x138] sm:$0xff] %vm20, 0.0
  %62 = vst.msk [vmem:[#allocation2 + $0x140] sm:$0xff] %vm20, 0.0
  %63 = vst.msk [vmem:[#allocation2 + $0x148] sm:$0x3] %vm23, 0.0
  %64 = vst.msk [vmem:[#allocation2 + $0x150] sm:$0xff] %vm20, 0.0
  %65 = vst.msk [vmem:[#allocation2 + $0x158] sm:$0xff] %vm20, 0.0
  %66 = vst.msk [vmem:[#allocation2 + $0x160] sm:$0x3] %vm23, 0.0
  %67 = vst.msk [vmem:[#allocation2 + $0x168] sm:$0xff] %vm20, 0.0
  %68 = vst.msk [vmem:[#allocation2 + $0x170] sm:$0xff] %vm20, 0.0
  %69 = vst.msk [vmem:[#allocation2 + $0x178] sm:$0x3] %vm23, 0.0
  %70 = vst.msk [vmem:[#allocation2 + $0x180] sm:$0xff] %vm20, 0.0
  %71 = vst.msk [vmem:[#allocation2 + $0x188] sm:$0xff] %vm20, 0.0
  %72 = vst.msk [vmem:[#allocation2 + $0x190] sm:$0x3] %vm23, 0.0
  %73 = vst.msk [vmem:[#allocation2 + $0x198] sm:$0xff] %vm20, 0.0
  %74 = vst.msk [vmem:[#allocation2 + $0x1a0] sm:$0xff] %vm20, 0.0
  %75 = vst.msk [vmem:[#allocation2 + $0x1a8] sm:$0x3] %vm23, 0.0
  %76 = vst.msk [vmem:[#allocation2 + $0x1b0] sm:$0xff] %vm20, 0.0
  %77 = vst.msk [vmem:[#allocation2 + $0x1b8] sm:$0xff] %vm20, 0.0
  %78 = vst.msk [vmem:[#allocation2 + $0x1c0] sm:$0x3] %vm23, 0.0
  %79 = vst.msk [vmem:[#allocation2 + $0x1c8] sm:$0xff] %vm20, 0.0
  %80 = vst.msk [vmem:[#allocation2 + $0x1d0] sm:$0xff] %vm20, 0.0
  %81 = vst.msk [vmem:[#allocation2 + $0x1d8] sm:$0x3] %vm23, 0.0
  %82 = vst.msk [vmem:[#allocation2 + $0x1e0] sm:$0xff] %vm20, 0.0
  %83 = vst.msk [vmem:[#allocation2 + $0x1e8] sm:$0xff] %vm20, 0.0
  %84 = vst.msk [vmem:[#allocation2 + $0x1f0] sm:$0x3] %vm23, 0.0
  %85 = vst.msk [vmem:[#allocation2 + $0x1f8] sm:$0xff] %vm20, 0.0
  %86 = vst.msk [vmem:[#allocation2 + $0x200] sm:$0xff] %vm20, 0.0
  %87 = vst.msk [vmem:[#allocation2 + $0x208] sm:$0x3] %vm23, 0.0
  %88 = vst.msk [vmem:[#allocation2 + $0x210] sm:$0xff] %vm20, 0.0
  %89 = vst.msk [vmem:[#allocation2 + $0x218] sm:$0xff] %vm20, 0.0
  %90 = vst.msk [vmem:[#allocation2 + $0x220] sm:$0x3] %vm23, 0.0
  %91 = vst.msk [vmem:[#allocation2 + $0x228] sm:$0xff] %vm20, 0.0
  %92 = vst.msk [vmem:[#allocation2 + $0x230] sm:$0xff] %vm20, 0.0
  %93 = vst.msk [vmem:[#allocation2 + $0x238] sm:$0x3] %vm23, 0.0
  %94 = vst.msk [vmem:[#allocation2 + $0x240] sm:$0xff] %vm20, 0.0
  %95 = vst.msk [vmem:[#allocation2 + $0x248] sm:$0xff] %vm20, 0.0
  %96 = vst.msk [vmem:[#allocation2 + $0x250] sm:$0x3] %vm23, 0.0
  %97 = vst.msk [vmem:[#allocation2 + $0x258] sm:$0xff] %vm20, 0.0
  %98 = vst.msk [vmem:[#allocation2 + $0x260] sm:$0xff] %vm20, 0.0
  %99 = vst.msk [vmem:[#allocation2 + $0x268] sm:$0x3] %vm23, 0.0
  %100 = vst.msk [vmem:[#allocation2 + $0x270] sm:$0xff] %vm20, 0.0
  %101 = vst.msk [vmem:[#allocation2 + $0x278] sm:$0xff] %vm20, 0.0
  %102 = vst.msk [vmem:[#allocation2 + $0x280] sm:$0x3] %vm23, 0.0
  %103 = vst.msk [vmem:[#allocation2 + $0x288] sm:$0xff] %vm20, 0.0
  %104 = vst.msk [vmem:[#allocation2 + $0x290] sm:$0xff] %vm20, 0.0
  %105 = vst.msk [vmem:[#allocation2 + $0x298] sm:$0x3] %vm23, 0.0
  %106 = vst.msk [vmem:[#allocation2 + $0x2a0] sm:$0xff] %vm20, 0.0
  %107 = vst.msk [vmem:[#allocation2 + $0x2a8] sm:$0xff] %vm20, 0.0
  %108 = vst.msk [vmem:[#allocation2 + $0x2b0] sm:$0x3] %vm23, 0.0
  %109 = vst.msk [vmem:[#allocation2 + $0x2b8] sm:$0xff] %vm20, 0.0
  %110 = vst.msk [vmem:[#allocation2 + $0x2c0] sm:$0xff] %vm20, 0.0
  %111 = vst.msk [vmem:[#allocation2 + $0x2c8] sm:$0x3] %vm23, 0.0
  %112 = vst.msk [vmem:[#allocation2 + $0x2d0] sm:$0xff] %vm20, 0.0
  %113 = vst.msk [vmem:[#allocation2 + $0x2d8] sm:$0xff] %vm20, 0.0
  %114 = vst.msk [vmem:[#allocation2 + $0x2e0] sm:$0x3] %vm23, 0.0
  %115 = vst.msk [vmem:[#allocation2 + $0x2e8] sm:$0xff] %vm20, 0.0
  %116 = vst.msk [vmem:[#allocation2 + $0x2f0] sm:$0xff] %vm20, 0.0
  %117 = vst.msk [vmem:[#allocation2 + $0x2f8] sm:$0x3] %vm23, 0.0
  %118 = vst.msk [vmem:[#allocation2 + $0x300] sm:$0xff] %vm20, 0.0
  %119 = vst.msk [vmem:[#allocation2 + $0x308] sm:$0xff] %vm20, 0.0
  %120 = vst.msk [vmem:[#allocation2 + $0x310] sm:$0x3] %vm23, 0.0
  %121 = vst.msk [vmem:[#allocation2 + $0x318] sm:$0xff] %vm20, 0.0
  %122 = vst.msk [vmem:[#allocation2 + $0x320] sm:$0xff] %vm20, 0.0
  %123 = vst.msk [vmem:[#allocation2 + $0x328] sm:$0x3] %vm23, 0.0
  %124 = vst.msk [vmem:[#allocation2 + $0x330] sm:$0xff] %vm20, 0.0
  %125 = vst.msk [vmem:[#allocation2 + $0x338] sm:$0xff] %vm20, 0.0
  %126 = vst.msk [vmem:[#allocation2 + $0x340] sm:$0x3] %vm23, 0.0
  %127 = vst.msk [vmem:[#allocation2 + $0x348] sm:$0xff] %vm20, 0.0
  %128 = vst.msk [vmem:[#allocation2 + $0x350] sm:$0xff] %vm20, 0.0
  %129 = vst.msk [vmem:[#allocation2 + $0x358] sm:$0x3] %vm23, 0.0
  %v130 = vld [vmem:[%s0] sm:$0xf]
  %v131 = vld [vmem:[%s0 + $0x4] sm:$0xf]
  %v132 = vld [vmem:[%s0 + $0x8] sm:$0xf]
  %v133 = vld [vmem:[%s0 + $0xc] sm:$0xf]
  %v134 = vld [vmem:[%s0 + $0x10] sm:$0xf]
  %v135 = vld [vmem:[%s0 + $0x14] sm:$0xf]
  %v136 = vld [vmem:[%s0 + $0x18] sm:$0xf]
  %v137 = vld [vmem:[%s0 + $0x1c] sm:$0xf]
  %v138 = vld [vmem:[%s0 + $0x20] sm:$0xf]
  %v139 = vld [vmem:[%s0 + $0x24] sm:$0xf]
  %v140 = vld [vmem:[%s0 + $0x28] sm:$0xf]
  %v141 = vld [vmem:[%s0 + $0x2c] sm:$0xf]
  %v142 = vld [vmem:[%s0 + $0x30] sm:$0xf]
  %v143 = vld [vmem:[%s0 + $0x34] sm:$0xf]
  %v144 = vld [vmem:[%s0 + $0x38] sm:$0xf]
  %v145 = vld [vmem:[%s0 + $0x3c] sm:$0xf]
  %v146 = vld [vmem:[%s0 + $0x40] sm:$0xf]
  %v147 = vld [vmem:[%s0 + $0x44] sm:$0xf]
  %v148 = vld [vmem:[%s0 + $0x48] sm:$0xf]
  %v149 = vld [vmem:[%s0 + $0x4c] sm:$0xf]
  %v150 = vld [vmem:[%s0 + $0x50] sm:$0xf]
  %v151 = vld [vmem:[%s0 + $0x54] sm:$0xf]
  %v152 = vld [vmem:[%s0 + $0x58] sm:$0xf]
  %v153 = vld [vmem:[%s0 + $0x5c] sm:$0xf]
  %v154 = vld [vmem:[%s0 + $0x60] sm:$0xf]
  %v155 = vld [vmem:[%s0 + $0x64] sm:$0xf]
  %v156 = vld [vmem:[%s0 + $0x68] sm:$0xf]
  %v157 = vld [vmem:[%s0 + $0x6c] sm:$0xf]
  %v158 = vld [vmem:[%s0 + $0x70] sm:$0xf]
  %v159 = vld [vmem:[%s0 + $0x74] sm:$0xf]
  %v160 = vld [vmem:[%s0 + $0x78] sm:$0xf]
  %v161 = vld [vmem:[%s0 + $0x7c] sm:$0xf]
  %v162 = vld [vmem:[%s0 + $0x80] sm:$0xf]
  %v163 = vld [vmem:[%s0 + $0x84] sm:$0xf]
  %v164 = vld [vmem:[%s0 + $0x88] sm:$0xf]
  %v165 = vld [vmem:[%s0 + $0x8c] sm:$0xf]
  %v166 = vld [vmem:[%s0 + $0x90] sm:$0xf]
  %v167 = vld [vmem:[%s0 + $0x94] sm:$0xf]
  %v168 = vld [vmem:[%s0 + $0x98] sm:$0xf]
  %v169 = vld [vmem:[%s0 + $0x9c] sm:$0xf]
  %v170 = vld [vmem:[%s0 + $0xa0] sm:$0xf]
  %v171 = vld [vmem:[%s0 + $0xa4] sm:$0xf]
  %v172 = vld [vmem:[%s0 + $0xa8] sm:$0xf]
  %v173 = vld [vmem:[%s0 + $0xac] sm:$0xf]
  %v174 = vld [vmem:[%s0 + $0xb0] sm:$0xf]
  %v175 = vld [vmem:[%s0 + $0xb4] sm:$0xf]
  %v176 = vld [vmem:[%s0 + $0xb8] sm:$0xf]
  %v177 = vld [vmem:[%s0 + $0xbc] sm:$0xf]
  %v178 = vld [vmem:[%s0 + $0xc0] sm:$0xf]
  %v179 = vld [vmem:[%s0 + $0xc4] sm:$0xf]
  %v180 = vld [vmem:[%s0 + $0xc8] sm:$0xf]
  %v181 = vld [vmem:[%s0 + $0xcc] sm:$0xf]
  %v182 = vld [vmem:[%s0 + $0xd0] sm:$0xf]
  %v183 = vld [vmem:[%s0 + $0xd4] sm:$0xf]
  %v184 = vld [vmem:[%s0 + $0xd8] sm:$0xf]
  %v185 = vld [vmem:[%s0 + $0xdc] sm:$0xf]
  %v186 = vld [vmem:[%s0 + $0xe0] sm:$0xf]
  %v187 = vld [vmem:[%s0 + $0xe4] sm:$0xf]
  %v188 = vld [vmem:[%s0 + $0xe8] sm:$0xf]
  %v189 = vld [vmem:[%s0 + $0xec] sm:$0xf]
  %v190 = vld [vmem:[%s0 + $0xf0] sm:$0xf]
  %v191 = vld [vmem:[%s0 + $0xf4] sm:$0xf]
  %v192 = vld [vmem:[%s0 + $0xf8] sm:$0xf]
  %v193 = vld [vmem:[%s0 + $0xfc] sm:$0xf]
  %v194 = vunpack.c.l.bf16 %v130
  %v195 = vunpack.c.l.bf16 %v131
  %v196 = vunpack.c.l.bf16 %v132
  %v197 = vunpack.c.l.bf16 %v133
  %v198 = vunpack.c.l.bf16 %v134
  %v199 = vunpack.c.l.bf16 %v135
  %v200 = vunpack.c.l.bf16 %v136
  %v201 = vunpack.c.l.bf16 %v137
  %v202 = vunpack.c.l.bf16 %v138
  %v203 = vunpack.c.l.bf16 %v139
  %v204 = vunpack.c.l.bf16 %v140
  %v205 = vunpack.c.l.bf16 %v141
  %v206 = vunpack.c.l.bf16 %v142
  %v207 = vunpack.c.l.bf16 %v143
  %v208 = vunpack.c.l.bf16 %v144
  %v209 = vunpack.c.l.bf16 %v145
  %v210 = vunpack.c.l.bf16 %v146
  %v211 = vunpack.c.l.bf16 %v147
  %v212 = vunpack.c.l.bf16 %v148
  %v213 = vunpack.c.l.bf16 %v149
  %v214 = vunpack.c.l.bf16 %v150
  %v215 = vunpack.c.l.bf16 %v151
  %v216 = vunpack.c.l.bf16 %v152
  %v217 = vunpack.c.l.bf16 %v153
  %v218 = vunpack.c.l.bf16 %v154
  %v219 = vunpack.c.l.bf16 %v155
  %v220 = vunpack.c.l.bf16 %v156
  %v221 = vunpack.c.l.bf16 %v157
  %v222 = vunpack.c.l.bf16 %v158
  %v223 = vunpack.c.l.bf16 %v159
  %v224 = vunpack.c.l.bf16 %v160
  %v225 = vunpack.c.l.bf16 %v161
  %v226 = vunpack.c.l.bf16 %v162
  %v227 = vunpack.c.l.bf16 %v163
  %v228 = vunpack.c.l.bf16 %v164
  %v229 = vunpack.c.l.bf16 %v165
  %v230 = vunpack.c.l.bf16 %v166
  %v231 = vunpack.c.l.bf16 %v167
  %v232 = vunpack.c.l.bf16 %v168
  %v233 = vunpack.c.l.bf16 %v169
  %v234 = vunpack.c.l.bf16 %v170
  %v235 = vunpack.c.l.bf16 %v171
  %v236 = vunpack.c.l.bf16 %v172
  %v237 = vunpack.c.l.bf16 %v173
  %v238 = vunpack.c.l.bf16 %v174
  %v239 = vunpack.c.l.bf16 %v175
  %v240 = vunpack.c.l.bf16 %v176
  %v241 = vunpack.c.l.bf16 %v177
  %v242 = vunpack.c.l.bf16 %v178
  %v243 = vunpack.c.l.bf16 %v179
  %v244 = vunpack.c.l.bf16 %v180
  %v245 = vunpack.c.l.bf16 %v181
  %v246 = vunpack.c.l.bf16 %v182
  %v247 = vunpack.c.l.bf16 %v183
  %v248 = vunpack.c.l.bf16 %v184
  %v249 = vunpack.c.l.bf16 %v185
  %v250 = vunpack.c.l.bf16 %v186
  %v251 = vunpack.c.l.bf16 %v187
  %v252 = vunpack.c.l.bf16 %v188
  %v253 = vunpack.c.l.bf16 %v189
  %v254 = vunpack.c.l.bf16 %v190
  %v255 = vunpack.c.l.bf16 %v191
  %v256 = vunpack.c.l.bf16 %v192
  %v257 = vunpack.c.l.bf16 %v193
  %v258 = vld [vmem:[%s1] sm:$0x1]
  %v260 = vperm.slane %v258, 0
  %v262 = vmul.f32 %v194, %v260
  %v263 = vmul.f32 %v195, %v260
  %v264 = vmul.f32 %v196, %v260
  %v265 = vmul.f32 %v197, %v260
  %v266 = vmul.f32 %v198, %v260
  %v267 = vmul.f32 %v199, %v260
  %v268 = vmul.f32 %v200, %v260
  %v269 = vmul.f32 %v201, %v260
  %v270 = vmul.f32 %v202, %v260
  %v271 = vmul.f32 %v203, %v260
  %v272 = vmul.f32 %v204, %v260
  %v273 = vmul.f32 %v205, %v260
  %v274 = vmul.f32 %v206, %v260
  %v275 = vmul.f32 %v207, %v260
  %v276 = vmul.f32 %v208, %v260
  %v277 = vmul.f32 %v209, %v260
  %v278 = vmul.f32 %v210, %v260
  %v279 = vmul.f32 %v211, %v260
  %v280 = vmul.f32 %v212, %v260
  %v281 = vmul.f32 %v213, %v260
  %v282 = vmul.f32 %v214, %v260
  %v283 = vmul.f32 %v215, %v260
  %v284 = vmul.f32 %v216, %v260
  %v285 = vmul.f32 %v217, %v260
  %v286 = vmul.f32 %v218, %v260
  %v287 = vmul.f32 %v219, %v260
  %v288 = vmul.f32 %v220, %v260
  %v289 = vmul.f32 %v221, %v260
  %v290 = vmul.f32 %v222, %v260
  %v291 = vmul.f32 %v223, %v260
  %v292 = vmul.f32 %v224, %v260
  %v293 = vmul.f32 %v225, %v260
  %v294 = vmul.f32 %v226, %v260
  %v295 = vmul.f32 %v227, %v260
  %v296 = vmul.f32 %v228, %v260
  %v297 = vmul.f32 %v229, %v260
  %v298 = vmul.f32 %v230, %v260
  %v299 = vmul.f32 %v231, %v260
  %v300 = vmul.f32 %v232, %v260
  %v301 = vmul.f32 %v233, %v260
  %v302 = vmul.f32 %v234, %v260
  %v303 = vmul.f32 %v235, %v260
  %v304 = vmul.f32 %v236, %v260
  %v305 = vmul.f32 %v237, %v260
  %v306 = vmul.f32 %v238, %v260
  %v307 = vmul.f32 %v239, %v260
  %v308 = vmul.f32 %v240, %v260
  %v309 = vmul.f32 %v241, %v260
  %v310 = vmul.f32 %v242, %v260
  %v311 = vmul.f32 %v243, %v260
  %v312 = vmul.f32 %v244, %v260
  %v313 = vmul.f32 %v245, %v260
  %v314 = vmul.f32 %v246, %v260
  %v315 = vmul.f32 %v247, %v260
  %v316 = vmul.f32 %v248, %v260
  %v317 = vmul.f32 %v249, %v260
  %v318 = vmul.f32 %v250, %v260
  %v319 = vmul.f32 %v251, %v260
  %v320 = vmul.f32 %v252, %v260
  %v321 = vmul.f32 %v253, %v260
  %v322 = vmul.f32 %v254, %v260
  %v323 = vmul.f32 %v255, %v260
  %v324 = vmul.f32 %v256, %v260
  %v325 = vmul.f32 %v257, %v260
  %v326 = vld [vmem:[%s2] sm:$0x1]
  %v328 = vperm.slane %v326, 0
  %v330 = vadd.f32 %v262, %v328
  %v331 = vadd.f32 %v263, %v328
  %v332 = vadd.f32 %v264, %v328
  %v333 = vadd.f32 %v265, %v328
  %v334 = vadd.f32 %v266, %v328
  %v335 = vadd.f32 %v267, %v328
  %v336 = vadd.f32 %v268, %v328
  %v337 = vadd.f32 %v269, %v328
  %v338 = vadd.f32 %v270, %v328
  %v339 = vadd.f32 %v271, %v328
  %v340 = vadd.f32 %v272, %v328
  %v341 = vadd.f32 %v273, %v328
  %v342 = vadd.f32 %v274, %v328
  %v343 = vadd.f32 %v275, %v328
  %v344 = vadd.f32 %v276, %v328
  %v345 = vadd.f32 %v277, %v328
  %v346 = vadd.f32 %v278, %v328
  %v347 = vadd.f32 %v279, %v328
  %v348 = vadd.f32 %v280, %v328
  %v349 = vadd.f32 %v281, %v328
  %v350 = vadd.f32 %v282, %v328
  %v351 = vadd.f32 %v283, %v328
  %v352 = vadd.f32 %v284, %v328
  %v353 = vadd.f32 %v285, %v328
  %v354 = vadd.f32 %v286, %v328
  %v355 = vadd.f32 %v287, %v328
  %v356 = vadd.f32 %v288, %v328
  %v357 = vadd.f32 %v289, %v328
  %v358 = vadd.f32 %v290, %v328
  %v359 = vadd.f32 %v291, %v328
  %v360 = vadd.f32 %v292, %v328
  %v361 = vadd.f32 %v293, %v328
  %v362 = vadd.f32 %v294, %v328
  %v363 = vadd.f32 %v295, %v328
  %v364 = vadd.f32 %v296, %v328
  %v365 = vadd.f32 %v297, %v328
  %v366 = vadd.f32 %v298, %v328
  %v367 = vadd.f32 %v299, %v328
  %v368 = vadd.f32 %v300, %v328
  %v369 = vadd.f32 %v301, %v328
  %v370 = vadd.f32 %v302, %v328
  %v371 = vadd.f32 %v303, %v328
  %v372 = vadd.f32 %v304, %v328
  %v373 = vadd.f32 %v305, %v328
  %v374 = vadd.f32 %v306, %v328
  %v375 = vadd.f32 %v307, %v328
  %v376 = vadd.f32 %v308, %v328
  %v377 = vadd.f32 %v309, %v328
  %v378 = vadd.f32 %v310, %v328
  %v379 = vadd.f32 %v311, %v328
  %v380 = vadd.f32 %v312, %v328
  %v381 = vadd.f32 %v313, %v328
  %v382 = vadd.f32 %v314, %v328
  %v383 = vadd.f32 %v315, %v328
  %v384 = vadd.f32 %v316, %v328
  %v385 = vadd.f32 %v317, %v328
  %v386 = vadd.f32 %v318, %v328
  %v387 = vadd.f32 %v319, %v328
  %v388 = vadd.f32 %v320, %v328
  %v389 = vadd.f32 %v321, %v328
  %v390 = vadd.f32 %v322, %v328
  %v391 = vadd.f32 %v323, %v328
  %v392 = vadd.f32 %v324, %v328
  %v393 = vadd.f32 %v325, %v328
  %v394 = vmax.f32 %v330, 0.0
  %v395 = vmax.f32 %v331, 0.0
  %v396 = vmax.f32 %v332, 0.0
  %v397 = vmax.f32 %v333, 0.0
  %v398 = vmax.f32 %v334, 0.0
  %v399 = vmax.f32 %v335, 0.0
  %v400 = vmax.f32 %v336, 0.0
  %v401 = vmax.f32 %v337, 0.0
  %v402 = vmax.f32 %v338, 0.0
  %v403 = vmax.f32 %v339, 0.0
  %v404 = vmax.f32 %v340, 0.0
  %v405 = vmax.f32 %v341, 0.0
  %v406 = vmax.f32 %v342, 0.0
  %v407 = vmax.f32 %v343, 0.0
  %v408 = vmax.f32 %v344, 0.0
  %v409 = vmax.f32 %v345, 0.0
  %v410 = vmax.f32 %v346, 0.0
  %v411 = vmax.f32 %v347, 0.0
  %v412 = vmax.f32 %v348, 0.0
  %v413 = vmax.f32 %v349, 0.0
  %v414 = vmax.f32 %v350, 0.0
  %v415 = vmax.f32 %v351, 0.0
  %v416 = vmax.f32 %v352, 0.0
  %v417 = vmax.f32 %v353, 0.0
  %v418 = vmax.f32 %v354, 0.0
  %v419 = vmax.f32 %v355, 0.0
  %v420 = vmax.f32 %v356, 0.0
  %v421 = vmax.f32 %v357, 0.0
  %v422 = vmax.f32 %v358, 0.0
  %v423 = vmax.f32 %v359, 0.0
  %v424 = vmax.f32 %v360, 0.0
  %v425 = vmax.f32 %v361, 0.0
  %v426 = vmax.f32 %v362, 0.0
  %v427 = vmax.f32 %v363, 0.0
  %v428 = vmax.f32 %v364, 0.0
  %v429 = vmax.f32 %v365, 0.0
  %v430 = vmax.f32 %v366, 0.0
  %v431 = vmax.f32 %v367, 0.0
  %v432 = vmax.f32 %v368, 0.0
  %v433 = vmax.f32 %v369, 0.0
  %v434 = vmax.f32 %v370, 0.0
  %v435 = vmax.f32 %v371, 0.0
  %v436 = vmax.f32 %v372, 0.0
  %v437 = vmax.f32 %v373, 0.0
  %v438 = vmax.f32 %v374, 0.0
  %v439 = vmax.f32 %v375, 0.0
  %v440 = vmax.f32 %v376, 0.0
  %v441 = vmax.f32 %v377, 0.0
  %v442 = vmax.f32 %v378, 0.0
  %v443 = vmax.f32 %v379, 0.0
  %v444 = vmax.f32 %v380, 0.0
  %v445 = vmax.f32 %v381, 0.0
  %v446 = vmax.f32 %v382, 0.0
  %v447 = vmax.f32 %v383, 0.0
  %v448 = vmax.f32 %v384, 0.0
  %v449 = vmax.f32 %v385, 0.0
  %v450 = vmax.f32 %v386, 0.0
  %v451 = vmax.f32 %v387, 0.0
  %v452 = vmax.f32 %v388, 0.0
  %v453 = vmax.f32 %v389, 0.0
  %v454 = vmax.f32 %v390, 0.0
  %v455 = vmax.f32 %v391, 0.0
  %v456 = vmax.f32 %v392, 0.0
  %v457 = vmax.f32 %v393, 0.0
  %s458 = scalar_lea.vmem [#allocation2], 24
  %459 = vst.msk [vmem:[%s458 + $0x1] sm:$0xff] %vm20, %v394
  %460 = vst.msk [vmem:[%s458 + $0x9] sm:$0xff] %vm20, %v395
  %461 = vst.msk [vmem:[%s458 + $0x19] sm:$0xff] %vm20, %v396
  %462 = vst.msk [vmem:[%s458 + $0x21] sm:$0xff] %vm20, %v397
  %463 = vst.msk [vmem:[%s458 + $0x31] sm:$0xff] %vm20, %v398
  %464 = vst.msk [vmem:[%s458 + $0x39] sm:$0xff] %vm20, %v399
  %465 = vst.msk [vmem:[%s458 + $0x49] sm:$0xff] %vm20, %v400
  %466 = vst.msk [vmem:[%s458 + $0x51] sm:$0xff] %vm20, %v401
  %467 = vst.msk [vmem:[%s458 + $0x61] sm:$0xff] %vm20, %v402
  %468 = vst.msk [vmem:[%s458 + $0x69] sm:$0xff] %vm20, %v403
  %469 = vst.msk [vmem:[%s458 + $0x79] sm:$0xff] %vm20, %v404
  %470 = vst.msk [vmem:[%s458 + $0x81] sm:$0xff] %vm20, %v405
  %471 = vst.msk [vmem:[%s458 + $0x91] sm:$0xff] %vm20, %v406
  %472 = vst.msk [vmem:[%s458 + $0x99] sm:$0xff] %vm20, %v407
  %473 = vst.msk [vmem:[%s458 + $0xa9] sm:$0xff] %vm20, %v408
  %474 = vst.msk [vmem:[%s458 + $0xb1] sm:$0xff] %vm20, %v409
  %475 = vst.msk [vmem:[%s458 + $0xc1] sm:$0xff] %vm20, %v410
  %476 = vst.msk [vmem:[%s458 + $0xc9] sm:$0xff] %vm20, %v411
  %477 = vst.msk [vmem:[%s458 + $0xd9] sm:$0xff] %vm20, %v412
  %478 = vst.msk [vmem:[%s458 + $0xe1] sm:$0xff] %vm20, %v413
  %479 = vst.msk [vmem:[%s458 + $0xf1] sm:$0xff] %vm20, %v414
  %480 = vst.msk [vmem:[%s458 + $0xf9] sm:$0xff] %vm20, %v415
  %481 = vst.msk [vmem:[%s458 + $0x109] sm:$0xff] %vm20, %v416
  %482 = vst.msk [vmem:[%s458 + $0x111] sm:$0xff] %vm20, %v417
  %483 = vst.msk [vmem:[%s458 + $0x121] sm:$0xff] %vm20, %v418
  %484 = vst.msk [vmem:[%s458 + $0x129] sm:$0xff] %vm20, %v419
  %485 = vst.msk [vmem:[%s458 + $0x139] sm:$0xff] %vm20, %v420
  %486 = vst.msk [vmem:[%s458 + $0x141] sm:$0xff] %vm20, %v421
  %487 = vst.msk [vmem:[%s458 + $0x151] sm:$0xff] %vm20, %v422
  %488 = vst.msk [vmem:[%s458 + $0x159] sm:$0xff] %vm20, %v423
  %489 = vst.msk [vmem:[%s458 + $0x169] sm:$0xff] %vm20, %v424
  %490 = vst.msk [vmem:[%s458 + $0x171] sm:$0xff] %vm20, %v425
  %491 = vst.msk [vmem:[%s458 + $0x1b1] sm:$0xff] %vm20, %v426
  %492 = vst.msk [vmem:[%s458 + $0x1b9] sm:$0xff] %vm20, %v427
  %493 = vst.msk [vmem:[%s458 + $0x1c9] sm:$0xff] %vm20, %v428
  %494 = vst.msk [vmem:[%s458 + $0x1d1] sm:$0xff] %vm20, %v429
  %495 = vst.msk [vmem:[%s458 + $0x1e1] sm:$0xff] %vm20, %v430
  %496 = vst.msk [vmem:[%s458 + $0x1e9] sm:$0xff] %vm20, %v431
  %497 = vst.msk [vmem:[%s458 + $0x1f9] sm:$0xff] %vm20, %v432
  %498 = vst.msk [vmem:[%s458 + $0x201] sm:$0xff] %vm20, %v433
  %499 = vst.msk [vmem:[%s458 + $0x211] sm:$0xff] %vm20, %v434
  %500 = vst.msk [vmem:[%s458 + $0x219] sm:$0xff] %vm20, %v435
  %501 = vst.msk [vmem:[%s458 + $0x229] sm:$0xff] %vm20, %v436
  %502 = vst.msk [vmem:[%s458 + $0x231] sm:$0xff] %vm20, %v437
  %503 = vst.msk [vmem:[%s458 + $0x241] sm:$0xff] %vm20, %v438
  %504 = vst.msk [vmem:[%s458 + $0x249] sm:$0xff] %vm20, %v439
  %505 = vst.msk [vmem:[%s458 + $0x259] sm:$0xff] %vm20, %v440
  %506 = vst.msk [vmem:[%s458 + $0x261] sm:$0xff] %vm20, %v441
  %507 = vst.msk [vmem:[%s458 + $0x271] sm:$0xff] %vm20, %v442
  %508 = vst.msk [vmem:[%s458 + $0x279] sm:$0xff] %vm20, %v443
  %509 = vst.msk [vmem:[%s458 + $0x289] sm:$0xff] %vm20, %v444
  %510 = vst.msk [vmem:[%s458 + $0x291] sm:$0xff] %vm20, %v445
  %511 = vst.msk [vmem:[%s458 + $0x2a1] sm:$0xff] %vm20, %v446
  %512 = vst.msk [vmem:[%s458 + $0x2a9] sm:$0xff] %vm20, %v447
  %513 = vst.msk [vmem:[%s458 + $0x2b9] sm:$0xff] %vm20, %v448
  %514 = vst.msk [vmem:[%s458 + $0x2c1] sm:$0xff] %vm20, %v449
  %515 = vst.msk [vmem:[%s458 + $0x2d1] sm:$0xff] %vm20, %v450
  %516 = vst.msk [vmem:[%s458 + $0x2d9] sm:$0xff] %vm20, %v451
  %517 = vst.msk [vmem:[%s458 + $0x2e9] sm:$0xff] %vm20, %v452
  %518 = vst.msk [vmem:[%s458 + $0x2f1] sm:$0xff] %vm20, %v453
  %519 = vst.msk [vmem:[%s458 + $0x301] sm:$0xff] %vm20, %v454
  %520 = vst.msk [vmem:[%s458 + $0x309] sm:$0xff] %vm20, %v455
  %521 = vst.msk [vmem:[%s458 + $0x319] sm:$0xff] %vm20, %v456
  %522 = vst.msk [vmem:[%s458 + $0x321] sm:$0xff] %vm20, %v457
  %v523 = vld [vmem:[#allocation2] sm:$0xff]
  %v524 = vld [vmem:[#allocation2 + $0x8] sm:$0xff]
  %v525 = vld [vmem:[#allocation2 + $0x18] sm:$0xff]
  %v526 = vld [vmem:[#allocation2 + $0x20] sm:$0xff]
  %v527 = vld [vmem:[#allocation2 + $0x30] sm:$0xff]
  %v528 = vld [vmem:[#allocation2 + $0x38] sm:$0xff]
  %v529 = vld [vmem:[#allocation2 + $0x48] sm:$0xff]
  %v530 = vld [vmem:[#allocation2 + $0x50] sm:$0xff]
  %v531 = vld [vmem:[#allocation2 + $0x60] sm:$0xff]
  %v532 = vld [vmem:[#allocation2 + $0x68] sm:$0xff]
  %v533 = vld [vmem:[#allocation2 + $0x78] sm:$0xff]
  %v534 = vld [vmem:[#allocation2 + $0x80] sm:$0xff]
  %v535 = vld [vmem:[#allocation2 + $0x90] sm:$0xff]
  %v536 = vld [vmem:[#allocation2 + $0x98] sm:$0xff]
  %v537 = vld [vmem:[#allocation2 + $0xa8] sm:$0xff]
  %v538 = vld [vmem:[#allocation2 + $0xb0] sm:$0xff]
  %v539 = vld [vmem:[#allocation2 + $0xc0] sm:$0xff]
  %v540 = vld [vmem:[#allocation2 + $0xc8] sm:$0xff]
  %v541 = vld [vmem:[#allocation2 + $0xd8] sm:$0xff]
  %v542 = vld [vmem:[#allocation2 + $0xe0] sm:$0xff]
  %v543 = vld [vmem:[#allocation2 + $0xf0] sm:$0xff]
  %v544 = vld [vmem:[#allocation2 + $0xf8] sm:$0xff]
  %v545 = vld [vmem:[#allocation2 + $0x108] sm:$0xff]
  %v546 = vld [vmem:[#allocation2 + $0x110] sm:$0xff]
  %v547 = vld [vmem:[#allocation2 + $0x120] sm:$0xff]
  %v548 = vld [vmem:[#allocation2 + $0x128] sm:$0xff]
  %v549 = vld [vmem:[#allocation2 + $0x138] sm:$0xff]
  %v550 = vld [vmem:[#allocation2 + $0x140] sm:$0xff]
  %v551 = vld [vmem:[#allocation2 + $0x150] sm:$0xff]
  %v552 = vld [vmem:[#allocation2 + $0x158] sm:$0xff]
  %v553 = vld [vmem:[#allocation2 + $0x168] sm:$0xff]
  %v554 = vld [vmem:[#allocation2 + $0x170] sm:$0xff]
  %v555 = vld [vmem:[#allocation2 + $0x1b0] sm:$0xff]
  %v556 = vld [vmem:[#allocation2 + $0x1b8] sm:$0xff]
  %v557 = vld [vmem:[#allocation2 + $0x1c8] sm:$0xff]
  %v558 = vld [vmem:[#allocation2 + $0x1d0] sm:$0xff]
  %v559 = vld [vmem:[#allocation2 + $0x1e0] sm:$0xff]
  %v560 = vld [vmem:[#allocation2 + $0x1e8] sm:$0xff]
  %v561 = vld [vmem:[#allocation2 + $0x1f8] sm:$0xff]
  %v562 = vld [vmem:[#allocation2 + $0x200] sm:$0xff]
  %v563 = vld [vmem:[#allocation2 + $0x210] sm:$0xff]
  %v564 = vld [vmem:[#allocation2 + $0x218] sm:$0xff]
  %v565 = vld [vmem:[#allocation2 + $0x228] sm:$0xff]
  %v566 = vld [vmem:[#allocation2 + $0x230] sm:$0xff]
  %v567 = vld [vmem:[#allocation2 + $0x240] sm:$0xff]
  %v568 = vld [vmem:[#allocation2 + $0x248] sm:$0xff]
  %v569 = vld [vmem:[#allocation2 + $0x258] sm:$0xff]
  %v570 = vld [vmem:[#allocation2 + $0x260] sm:$0xff]
  %v571 = vld [vmem:[#allocation2 + $0x270] sm:$0xff]
  %v572 = vld [vmem:[#allocation2 + $0x278] sm:$0xff]
  %v573 = vld [vmem:[#allocation2 + $0x288] sm:$0xff]
  %v574 = vld [vmem:[#allocation2 + $0x290] sm:$0xff]
  %v575 = vld [vmem:[#allocation2 + $0x2a0] sm:$0xff]
  %v576 = vld [vmem:[#allocation2 + $0x2a8] sm:$0xff]
  %v577 = vld [vmem:[#allocation2 + $0x2b8] sm:$0xff]
  %v578 = vld [vmem:[#allocation2 + $0x2c0] sm:$0xff]
  %v579 = vld [vmem:[#allocation2 + $0x2d0] sm:$0xff]
  %v580 = vld [vmem:[#allocation2 + $0x2d8] sm:$0xff]
  %v581 = vld [vmem:[#allocation2 + $0x2e8] sm:$0xff]
  %v582 = vld [vmem:[#allocation2 + $0x2f0] sm:$0xff]
  %v583 = vld [vmem:[#allocation2 + $0x300] sm:$0xff]
  %v584 = vld [vmem:[#allocation2 + $0x308] sm:$0xff]
  %v585 = vld [vmem:[#allocation2 + $0x318] sm:$0xff]
  %v586 = vld [vmem:[#allocation2 + $0x320] sm:$0xff]
  %v587 = vpack.c.bf16 %v524, %v523
  %v588 = vpack.c.bf16 %v526, %v525
  %v589 = vpack.c.bf16 %v528, %v527
  %v590 = vpack.c.bf16 %v530, %v529
  %v591 = vpack.c.bf16 %v532, %v531
  %v592 = vpack.c.bf16 %v534, %v533
  %v593 = vpack.c.bf16 %v536, %v535
  %v594 = vpack.c.bf16 %v538, %v537
  %v595 = vpack.c.bf16 %v540, %v539
  %v596 = vpack.c.bf16 %v542, %v541
  %v597 = vpack.c.bf16 %v544, %v543
  %v598 = vpack.c.bf16 %v546, %v545
  %v599 = vpack.c.bf16 %v548, %v547
  %v600 = vpack.c.bf16 %v550, %v549
  %v601 = vpack.c.bf16 %v552, %v551
  %v602 = vpack.c.bf16 %v554, %v553
  %v603 = vpack.c.bf16 %v556, %v555
  %v604 = vpack.c.bf16 %v558, %v557
  %v605 = vpack.c.bf16 %v560, %v559
  %v606 = vpack.c.bf16 %v562, %v561
  %v607 = vpack.c.bf16 %v564, %v563
  %v608 = vpack.c.bf16 %v566, %v565
  %v609 = vpack.c.bf16 %v568, %v567
  %v610 = vpack.c.bf16 %v570, %v569
  %v611 = vpack.c.bf16 %v572, %v571
  %v612 = vpack.c.bf16 %v574, %v573
  %v613 = vpack.c.bf16 %v576, %v575
  %v614 = vpack.c.bf16 %v578, %v577
  %v615 = vpack.c.bf16 %v580, %v579
  %v616 = vpack.c.bf16 %v582, %v581
  %v617 = vpack.c.bf16 %v584, %v583
  %v618 = vpack.c.bf16 %v586, %v585
  %v619 = vld [vmem:[%s3] sm:$0xf]
  %v620 = vld [vmem:[#allocation2 + $0x1] sm:$0xff]
  %v621 = vld [vmem:[#allocation2 + $0x9] sm:$0xff]
  %v622 = vld [vmem:[#allocation2 + $0x19] sm:$0xff]
  %v623 = vld [vmem:[#allocation2 + $0x21] sm:$0xff]
  %v624 = vld [vmem:[#allocation2 + $0x31] sm:$0xff]
  %v625 = vld [vmem:[#allocation2 + $0x39] sm:$0xff]
  %v626 = vld [vmem:[#allocation2 + $0x49] sm:$0xff]
  %v627 = vld [vmem:[#allocation2 + $0x51] sm:$0xff]
  %v628 = vld [vmem:[#allocation2 + $0x61] sm:$0xff]
  %v629 = vld [vmem:[#allocation2 + $0x69] sm:$0xff]
  %v630 = vld [vmem:[#allocation2 + $0x79] sm:$0xff]
  %v631 = vld [vmem:[#allocation2 + $0x81] sm:$0xff]
  %v632 = vld [vmem:[#allocation2 + $0x91] sm:$0xff]
  %v633 = vld [vmem:[#allocation2 + $0x99] sm:$0xff]
  %v634 = vld [vmem:[#allocation2 + $0xa9] sm:$0xff]
  %v635 = vld [vmem:[#allocation2 + $0xb1] sm:$0xff]
  %v636 = vld [vmem:[#allocation2 + $0xc1] sm:$0xff]
  %v637 = vld [vmem:[#allocation2 + $0xc9] sm:$0xff]
  %v638 = vld [vmem:[#allocation2 + $0xd9] sm:$0xff]
  %v639 = vld [vmem:[#allocation2 + $0xe1] sm:$0xff]
  %v640 = vld [vmem:[#allocation2 + $0xf1] sm:$0xff]
  %v641 = vld [vmem:[#allocation2 + $0xf9] sm:$0xff]
  %v642 = vld [vmem:[#allocation2 + $0x109] sm:$0xff]
  %v643 = vld [vmem:[#allocation2 + $0x111] sm:$0xff]
  %v644 = vld [vmem:[#allocation2 + $0x121] sm:$0xff]
  %v645 = vld [vmem:[#allocation2 + $0x129] sm:$0xff]
  %v646 = vld [vmem:[#allocation2 + $0x139] sm:$0xff]
  %v647 = vld [vmem:[#allocation2 + $0x141] sm:$0xff]
  %v648 = vld [vmem:[#allocation2 + $0x151] sm:$0xff]
  %v649 = vld [vmem:[#allocation2 + $0x159] sm:$0xff]
  %v650 = vld [vmem:[#allocation2 + $0x169] sm:$0xff]
  %v651 = vld [vmem:[#allocation2 + $0x171] sm:$0xff]
  %v652 = vld [vmem:[#allocation2 + $0x1b1] sm:$0xff]
  %v653 = vld [vmem:[#allocation2 + $0x1b9] sm:$0xff]
  %v654 = vld [vmem:[#allocation2 + $0x1c9] sm:$0xff]
  %v655 = vld [vmem:[#allocation2 + $0x1d1] sm:$0xff]
  %v656 = vld [vmem:[#allocation2 + $0x1e1] sm:$0xff]
  %v657 = vld [vmem:[#allocation2 + $0x1e9] sm:$0xff]
  %v658 = vld [vmem:[#allocation2 + $0x1f9] sm:$0xff]
  %v659 = vld [vmem:[#allocation2 + $0x201] sm:$0xff]
  %v660 = vld [vmem:[#allocation2 + $0x211] sm:$0xff]
  %v661 = vld [vmem:[#allocation2 + $0x219] sm:$0xff]
  %v662 = vld [vmem:[#allocation2 + $0x229] sm:$0xff]
  %v663 = vld [vmem:[#allocation2 + $0x231] sm:$0xff]
  %v664 = vld [vmem:[#allocation2 + $0x241] sm:$0xff]
  %v665 = vld [vmem:[#allocation2 + $0x249] sm:$0xff]
  %v666 = vld [vmem:[#allocation2 + $0x259] sm:$0xff]
  %v667 = vld [vmem:[#allocation2 + $0x261] sm:$0xff]
  %v668 = vld [vmem:[#allocation2 + $0x271] sm:$0xff]
  %v669 = vld [vmem:[#allocation2 + $0x279] sm:$0xff]
  %v670 = vld [vmem:[#allocation2 + $0x289] sm:$0xff]
  %v671 = vld [vmem:[#allocation2 + $0x291] sm:$0xff]
  %v672 = vld [vmem:[#allocation2 + $0x2a1] sm:$0xff]
  %v673 = vld [vmem:[#allocation2 + $0x2a9] sm:$0xff]
  %v674 = vld [vmem:[#allocation2 + $0x2b9] sm:$0xff]
  %v675 = vld [vmem:[#allocation2 + $0x2c1] sm:$0xff]
  %v676 = vld [vmem:[#allocation2 + $0x2d1] sm:$0xff]
  %v677 = vld [vmem:[#allocation2 + $0x2d9] sm:$0xff]
  %v678 = vld [vmem:[#allocation2 + $0x2e9] sm:$0xff]
  %v679 = vld [vmem:[#allocation2 + $0x2f1] sm:$0xff]
  %v680 = vld [vmem:[#allocation2 + $0x301] sm:$0xff]
  %v681 = vld [vmem:[#allocation2 + $0x309] sm:$0xff]
  %v682 = vld [vmem:[#allocation2 + $0x319] sm:$0xff]
  %v683 = vld [vmem:[#allocation2 + $0x321] sm:$0xff]
  %v684 = vpack.c.bf16 %v621, %v620
  %v685 = vpack.c.bf16 %v623, %v622
  %v686 = vpack.c.bf16 %v625, %v624
  %v687 = vpack.c.bf16 %v627, %v626
  %v688 = vpack.c.bf16 %v629, %v628
  %v689 = vpack.c.bf16 %v631, %v630
  %v690 = vpack.c.bf16 %v633, %v632
  %v691 = vpack.c.bf16 %v635, %v634
  %v692 = vpack.c.bf16 %v637, %v636
  %v693 = vpack.c.bf16 %v639, %v638
  %v694 = vpack.c.bf16 %v641, %v640
  %v695 = vpack.c.bf16 %v643, %v642
  %v696 = vpack.c.bf16 %v645, %v644
  %v697 = vpack.c.bf16 %v647, %v646
  %v698 = vpack.c.bf16 %v649, %v648
  %v699 = vpack.c.bf16 %v651, %v650
  %v700 = vpack.c.bf16 %v653, %v652
  %v701 = vpack.c.bf16 %v655, %v654
  %v702 = vpack.c.bf16 %v657, %v656
  %v703 = vpack.c.bf16 %v659, %v658
  %v704 = vpack.c.bf16 %v661, %v660
  %v705 = vpack.c.bf16 %v663, %v662
  %v706 = vpack.c.bf16 %v665, %v664
  %v707 = vpack.c.bf16 %v667, %v666
  %v708 = vpack.c.bf16 %v669, %v668
  %v709 = vpack.c.bf16 %v671, %v670
  %v710 = vpack.c.bf16 %v673, %v672
  %v711 = vpack.c.bf16 %v675, %v674
  %v712 = vpack.c.bf16 %v677, %v676
  %v713 = vpack.c.bf16 %v679, %v678
  %v714 = vpack.c.bf16 %v681, %v680
  %v715 = vpack.c.bf16 %v683, %v682
  %s716 = scalar_lea.vmem %s3, 4
  %v717 = vld [vmem:[%s716] sm:$0xf]
  %v719 = vsel %vm20, %v684, 0
  %v722 = vsel %vm20, %v685, 0
  %v725 = vsel %vm20, %v686, 0
  %v728 = vsel %vm20, %v687, 0
  %v731 = vsel %vm20, %v688, 0
  %v734 = vsel %vm20, %v689, 0
  %v737 = vsel %vm20, %v690, 0
  %v740 = vsel %vm20, %v691, 0
  %v743 = vsel %vm20, %v692, 0
  %v746 = vsel %vm20, %v693, 0
  %v749 = vsel %vm20, %v694, 0
  %v752 = vsel %vm20, %v695, 0
  %v755 = vsel %vm20, %v696, 0
  %v758 = vsel %vm20, %v697, 0
  %v761 = vsel %vm20, %v698, 0
  %v764 = vsel %vm20, %v699, 0
  %v767 = vsel %vm20, %v700, 0
  %v770 = vsel %vm20, %v701, 0
  %v773 = vsel %vm20, %v702, 0
  %v776 = vsel %vm20, %v703, 0
  %v779 = vsel %vm20, %v704, 0
  %v782 = vsel %vm20, %v705, 0
  %v785 = vsel %vm20, %v706, 0
  %v788 = vsel %vm20, %v707, 0
  %v791 = vsel %vm20, %v708, 0
  %v794 = vsel %vm20, %v709, 0
  %v797 = vsel %vm20, %v710, 0
  %v800 = vsel %vm20, %v711, 0
  %v803 = vsel %vm20, %v712, 0
  %v806 = vsel %vm20, %v713, 0
  %v809 = vsel %vm20, %v714, 0
  %v812 = vsel %vm20, %v715, 0
  %vm814 = vcmask 1043456
  %v816 = vsel %vm814, %v717, 0
  %818 = vmatpush.bf16.msra.mxu0 0
  %819 = vmatpush.bf16.msra.mxu0 0
  %820 = vmatpush.bf16.msra.mxu0 0
  %821 = vmatpush.bf16.msra.mxu0 0
  %822 = vmatpush.bf16.msra.mxu0 0
  %823 = vmatpush.bf16.msra.mxu0 0
  %824 = vmatpush.bf16.msra.mxu0 0
  %825 = vmatpush.bf16.msra.mxu0 %v816
  %826 = vmatmul.bf16.gmra.mxu0 %v719
  %v827 = vpop.f32.mrf.mxu0
  %v828 = vadd.f32 0.0, %v827
  %v829 = vpop.f32.mrf.mxu0
  %v830 = vadd.f32 0.0, %v829
  %831 = vmatmul.bf16.gmra.mxu0 %v722
  %v832 = vpop.f32.mrf.mxu0
  %v833 = vadd.f32 0.0, %v832
  %v834 = vpop.f32.mrf.mxu0
  %v835 = vadd.f32 0.0, %v834
  %836 = vmatmul.bf16.gmra.mxu0 %v725
  %v837 = vpop.f32.mrf.mxu0
  %v838 = vadd.f32 0.0, %v837
  %v839 = vpop.f32.mrf.mxu0
  %v840 = vadd.f32 0.0, %v839
  %841 = vmatmul.bf16.gmra.mxu0 %v728
  %v842 = vpop.f32.mrf.mxu0
  %v843 = vadd.f32 0.0, %v842
  %v844 = vpop.f32.mrf.mxu0
  %v845 = vadd.f32 0.0, %v844
  %846 = vmatmul.bf16.gmra.mxu0 %v731
  %v847 = vpop.f32.mrf.mxu0
  %v848 = vadd.f32 0.0, %v847
  %v849 = vpop.f32.mrf.mxu0
  %v850 = vadd.f32 0.0, %v849
  %851 = vmatmul.bf16.gmra.mxu0 %v734
  %v852 = vpop.f32.mrf.mxu0
  %v853 = vadd.f32 0.0, %v852
  %v854 = vpop.f32.mrf.mxu0
  %v855 = vadd.f32 0.0, %v854
  %856 = vmatmul.bf16.gmra.mxu0 %v737
  %v857 = vpop.f32.mrf.mxu0
  %v858 = vadd.f32 0.0, %v857
  %v859 = vpop.f32.mrf.mxu0
  %v860 = vadd.f32 0.0, %v859
  %861 = vmatmul.bf16.gmra.mxu0 %v740
  %v862 = vpop.f32.mrf.mxu0
  %v863 = vadd.f32 0.0, %v862
  %v864 = vpop.f32.mrf.mxu0
  %v865 = vadd.f32 0.0, %v864
  %866 = vmatmul.bf16.gmra.mxu0 %v743
  %v867 = vpop.f32.mrf.mxu0
  %v868 = vadd.f32 0.0, %v867
  %v869 = vpop.f32.mrf.mxu0
  %v870 = vadd.f32 0.0, %v869
  %871 = vmatmul.bf16.gmra.mxu0 %v746
  %v872 = vpop.f32.mrf.mxu0
  %v873 = vadd.f32 0.0, %v872
  %v874 = vpop.f32.mrf.mxu0
  %v875 = vadd.f32 0.0, %v874
  %876 = vmatmul.bf16.gmra.mxu0 %v749
  %v877 = vpop.f32.mrf.mxu0
  %v878 = vadd.f32 0.0, %v877
  %v879 = vpop.f32.mrf.mxu0
  %v880 = vadd.f32 0.0, %v879
  %881 = vmatmul.bf16.gmra.mxu0 %v752
  %v882 = vpop.f32.mrf.mxu0
  %v883 = vadd.f32 0.0, %v882
  %v884 = vpop.f32.mrf.mxu0
  %v885 = vadd.f32 0.0, %v884
  %886 = vmatmul.bf16.gmra.mxu0 %v755
  %v887 = vpop.f32.mrf.mxu0
  %v888 = vadd.f32 0.0, %v887
  %v889 = vpop.f32.mrf.mxu0
  %v890 = vadd.f32 0.0, %v889
  %891 = vmatmul.bf16.gmra.mxu0 %v758
  %v892 = vpop.f32.mrf.mxu0
  %v893 = vadd.f32 0.0, %v892
  %v894 = vpop.f32.mrf.mxu0
  %v895 = vadd.f32 0.0, %v894
  %896 = vmatmul.bf16.gmra.mxu0 %v761
  %v897 = vpop.f32.mrf.mxu0
  %v898 = vadd.f32 0.0, %v897
  %v899 = vpop.f32.mrf.mxu0
  %v900 = vadd.f32 0.0, %v899
  %901 = vmatmul.bf16.gmra.mxu0 %v764
  %v902 = vpop.f32.mrf.mxu0
  %v903 = vadd.f32 0.0, %v902
  %v904 = vpop.f32.mrf.mxu0
  %v905 = vadd.f32 0.0, %v904
  %906 = vmatmul.bf16.gmra.mxu0 %v767
  %v907 = vpop.f32.mrf.mxu0
  %v908 = vadd.f32 0.0, %v907
  %v909 = vpop.f32.mrf.mxu0
  %v910 = vadd.f32 0.0, %v909
  %911 = vmatmul.bf16.gmra.mxu0 %v770
  %v912 = vpop.f32.mrf.mxu0
  %v913 = vadd.f32 0.0, %v912
  %v914 = vpop.f32.mrf.mxu0
  %v915 = vadd.f32 0.0, %v914
  %916 = vmatmul.bf16.gmra.mxu0 %v773
  %v917 = vpop.f32.mrf.mxu0
  %v918 = vadd.f32 0.0, %v917
  %v919 = vpop.f32.mrf.mxu0
  %v920 = vadd.f32 0.0, %v919
  %921 = vmatmul.bf16.gmra.mxu0 %v776
  %v922 = vpop.f32.mrf.mxu0
  %v923 = vadd.f32 0.0, %v922
  %v924 = vpop.f32.mrf.mxu0
  %v925 = vadd.f32 0.0, %v924
  %926 = vmatmul.bf16.gmra.mxu0 %v779
  %v927 = vpop.f32.mrf.mxu0
  %v928 = vadd.f32 0.0, %v927
  %v929 = vpop.f32.mrf.mxu0
  %v930 = vadd.f32 0.0, %v929
  %931 = vmatmul.bf16.gmra.mxu0 %v782
  %v932 = vpop.f32.mrf.mxu0
  %v933 = vadd.f32 0.0, %v932
  %v934 = vpop.f32.mrf.mxu0
  %v935 = vadd.f32 0.0, %v934
  %936 = vmatmul.bf16.gmra.mxu0 %v785
  %v937 = vpop.f32.mrf.mxu0
  %v938 = vadd.f32 0.0, %v937
  %v939 = vpop.f32.mrf.mxu0
  %v940 = vadd.f32 0.0, %v939
  %941 = vmatmul.bf16.gmra.mxu0 %v788
  %v942 = vpop.f32.mrf.mxu0
  %v943 = vadd.f32 0.0, %v942
  %v944 = vpop.f32.mrf.mxu0
  %v945 = vadd.f32 0.0, %v944
  %946 = vmatmul.bf16.gmra.mxu0 %v791
  %v947 = vpop.f32.mrf.mxu0
  %v948 = vadd.f32 0.0, %v947
  %v949 = vpop.f32.mrf.mxu0
  %v950 = vadd.f32 0.0, %v949
  %951 = vmatmul.bf16.gmra.mxu0 %v794
  %v952 = vpop.f32.mrf.mxu0
  %v953 = vadd.f32 0.0, %v952
  %v954 = vpop.f32.mrf.mxu0
  %v955 = vadd.f32 0.0, %v954
  %956 = vmatmul.bf16.gmra.mxu0 %v797
  %v957 = vpop.f32.mrf.mxu0
  %v958 = vadd.f32 0.0, %v957
  %v959 = vpop.f32.mrf.mxu0
  %v960 = vadd.f32 0.0, %v959
  %961 = vmatmul.bf16.gmra.mxu0 %v800
  %v962 = vpop.f32.mrf.mxu0
  %v963 = vadd.f32 0.0, %v962
  %v964 = vpop.f32.mrf.mxu0
  %v965 = vadd.f32 0.0, %v964
  %966 = vmatmul.bf16.gmra.mxu0 %v803
  %v967 = vpop.f32.mrf.mxu0
  %v968 = vadd.f32 0.0, %v967
  %v969 = vpop.f32.mrf.mxu0
  %v970 = vadd.f32 0.0, %v969
  %971 = vmatmul.bf16.gmra.mxu0 %v806
  %v972 = vpop.f32.mrf.mxu0
  %v973 = vadd.f32 0.0, %v972
  %v974 = vpop.f32.mrf.mxu0
  %v975 = vadd.f32 0.0, %v974
  %976 = vmatmul.bf16.gmra.mxu0 %v809
  %v977 = vpop.f32.mrf.mxu0
  %v978 = vadd.f32 0.0, %v977
  %v979 = vpop.f32.mrf.mxu0
  %v980 = vadd.f32 0.0, %v979
  %981 = vmatmul.bf16.gmra.mxu0 %v812
  %v982 = vpop.f32.mrf.mxu0
  %v983 = vadd.f32 0.0, %v982
  %v984 = vpop.f32.mrf.mxu0
  %v985 = vadd.f32 0.0, %v984
  %986 = vdwg.mxu0
  %v988 = vsel %vm20, %v587, 0
  %v991 = vsel %vm20, %v588, 0
  %v994 = vsel %vm20, %v589, 0
  %v997 = vsel %vm20, %v590, 0
  %v1000 = vsel %vm20, %v591, 0
  %v1003 = vsel %vm20, %v592, 0
  %v1006 = vsel %vm20, %v593, 0
  %v1009 = vsel %vm20, %v594, 0
  %v1012 = vsel %vm20, %v595, 0
  %v1015 = vsel %vm20, %v596, 0
  %v1018 = vsel %vm20, %v597, 0
  %v1021 = vsel %vm20, %v598, 0
  %v1024 = vsel %vm20, %v599, 0
  %v1027 = vsel %vm20, %v600, 0
  %v1030 = vsel %vm20, %v601, 0
  %v1033 = vsel %vm20, %v602, 0
  %v1036 = vsel %vm20, %v603, 0
  %v1039 = vsel %vm20, %v604, 0
  %v1042 = vsel %vm20, %v605, 0
  %v1045 = vsel %vm20, %v606, 0
  %v1048 = vsel %vm20, %v607, 0
  %v1051 = vsel %vm20, %v608, 0
  %v1054 = vsel %vm20, %v609, 0
  %v1057 = vsel %vm20, %v610, 0
  %v1060 = vsel %vm20, %v611, 0
  %v1063 = vsel %vm20, %v612, 0
  %v1066 = vsel %vm20, %v613, 0
  %v1069 = vsel %vm20, %v614, 0
  %v1072 = vsel %vm20, %v615, 0
  %v1075 = vsel %vm20, %v616, 0
  %v1078 = vsel %vm20, %v617, 0
  %v1081 = vsel %vm20, %v618, 0
  %v1084 = vsel %vm814, %v619, 0
  %1086 = vmatpush.bf16.msra.mxu0 0
  %1087 = vmatpush.bf16.msra.mxu0 0
  %1088 = vmatpush.bf16.msra.mxu0 0
  %1089 = vmatpush.bf16.msra.mxu0 0
  %1090 = vmatpush.bf16.msra.mxu0 0
  %1091 = vmatpush.bf16.msra.mxu0 0
  %1092 = vmatpush.bf16.msra.mxu0 0
  %1093 = vmatpush.bf16.msra.mxu0 %v1084
  %1094 = vmatmul.bf16.gmra.mxu0 %v988
  %v1095 = vpop.f32.mrf.mxu0
  %v1096 = vadd.f32 %v828, %v1095
  %v1097 = vpop.f32.mrf.mxu0
  %v1098 = vadd.f32 %v830, %v1097
  %1099 = vmatmul.bf16.gmra.mxu0 %v991
  %v1100 = vpop.f32.mrf.mxu0
  %v1101 = vadd.f32 %v833, %v1100
  %v1102 = vpop.f32.mrf.mxu0
  %v1103 = vadd.f32 %v835, %v1102
  %1104 = vmatmul.bf16.gmra.mxu0 %v994
  %v1105 = vpop.f32.mrf.mxu0
  %v1106 = vadd.f32 %v838, %v1105
  %v1107 = vpop.f32.mrf.mxu0
  %v1108 = vadd.f32 %v840, %v1107
  %1109 = vmatmul.bf16.gmra.mxu0 %v997
  %v1110 = vpop.f32.mrf.mxu0
  %v1111 = vadd.f32 %v843, %v1110
  %v1112 = vpop.f32.mrf.mxu0
  %v1113 = vadd.f32 %v845, %v1112
  %1114 = vmatmul.bf16.gmra.mxu0 %v1000
  %v1115 = vpop.f32.mrf.mxu0
  %v1116 = vadd.f32 %v848, %v1115
  %v1117 = vpop.f32.mrf.mxu0
  %v1118 = vadd.f32 %v850, %v1117
  %1119 = vmatmul.bf16.gmra.mxu0 %v1003
  %v1120 = vpop.f32.mrf.mxu0
  %v1121 = vadd.f32 %v853, %v1120
  %v1122 = vpop.f32.mrf.mxu0
  %v1123 = vadd.f32 %v855, %v1122
  %1124 = vmatmul.bf16.gmra.mxu0 %v1006
  %v1125 = vpop.f32.mrf.mxu0
  %v1126 = vadd.f32 %v858, %v1125
  %v1127 = vpop.f32.mrf.mxu0
  %v1128 = vadd.f32 %v860, %v1127
  %1129 = vmatmul.bf16.gmra.mxu0 %v1009
  %v1130 = vpop.f32.mrf.mxu0
  %v1131 = vadd.f32 %v863, %v1130
  %v1132 = vpop.f32.mrf.mxu0
  %v1133 = vadd.f32 %v865, %v1132
  %1134 = vmatmul.bf16.gmra.mxu0 %v1012
  %v1135 = vpop.f32.mrf.mxu0
  %v1136 = vadd.f32 %v868, %v1135
  %v1137 = vpop.f32.mrf.mxu0
  %v1138 = vadd.f32 %v870, %v1137
  %1139 = vmatmul.bf16.gmra.mxu0 %v1015
  %v1140 = vpop.f32.mrf.mxu0
  %v1141 = vadd.f32 %v873, %v1140
  %v1142 = vpop.f32.mrf.mxu0
  %v1143 = vadd.f32 %v875, %v1142
  %1144 = vmatmul.bf16.gmra.mxu0 %v1018
  %v1145 = vpop.f32.mrf.mxu0
  %v1146 = vadd.f32 %v878, %v1145
  %v1147 = vpop.f32.mrf.mxu0
  %v1148 = vadd.f32 %v880, %v1147
  %1149 = vmatmul.bf16.gmra.mxu0 %v1021
  %v1150 = vpop.f32.mrf.mxu0
  %v1151 = vadd.f32 %v883, %v1150
  %v1152 = vpop.f32.mrf.mxu0
  %v1153 = vadd.f32 %v885, %v1152
  %1154 = vmatmul.bf16.gmra.mxu0 %v1024
  %v1155 = vpop.f32.mrf.mxu0
  %v1156 = vadd.f32 %v888, %v1155
  %v1157 = vpop.f32.mrf.mxu0
  %v1158 = vadd.f32 %v890, %v1157
  %1159 = vmatmul.bf16.gmra.mxu0 %v1027
  %v1160 = vpop.f32.mrf.mxu0
  %v1161 = vadd.f32 %v893, %v1160
  %v1162 = vpop.f32.mrf.mxu0
  %v1163 = vadd.f32 %v895, %v1162
  %1164 = vmatmul.bf16.gmra.mxu0 %v1030
  %v1165 = vpop.f32.mrf.mxu0
  %v1166 = vadd.f32 %v898, %v1165
  %v1167 = vpop.f32.mrf.mxu0
  %v1168 = vadd.f32 %v900, %v1167
  %1169 = vmatmul.bf16.gmra.mxu0 %v1033
  %v1170 = vpop.f32.mrf.mxu0
  %v1171 = vadd.f32 %v903, %v1170
  %v1172 = vpop.f32.mrf.mxu0
  %v1173 = vadd.f32 %v905, %v1172
  %1174 = vmatmul.bf16.gmra.mxu0 %v1036
  %v1175 = vpop.f32.mrf.mxu0
  %v1176 = vadd.f32 %v908, %v1175
  %v1177 = vpop.f32.mrf.mxu0
  %v1178 = vadd.f32 %v910, %v1177
  %1179 = vmatmul.bf16.gmra.mxu0 %v1039
  %v1180 = vpop.f32.mrf.mxu0
  %v1181 = vadd.f32 %v913, %v1180
  %v1182 = vpop.f32.mrf.mxu0
  %v1183 = vadd.f32 %v915, %v1182
  %1184 = vmatmul.bf16.gmra.mxu0 %v1042
  %v1185 = vpop.f32.mrf.mxu0
  %v1186 = vadd.f32 %v918, %v1185
  %v1187 = vpop.f32.mrf.mxu0
  %v1188 = vadd.f32 %v920, %v1187
  %1189 = vmatmul.bf16.gmra.mxu0 %v1045
  %v1190 = vpop.f32.mrf.mxu0
  %v1191 = vadd.f32 %v923, %v1190
  %v1192 = vpop.f32.mrf.mxu0
  %v1193 = vadd.f32 %v925, %v1192
  %1194 = vmatmul.bf16.gmra.mxu0 %v1048
  %v1195 = vpop.f32.mrf.mxu0
  %v1196 = vadd.f32 %v928, %v1195
  %v1197 = vpop.f32.mrf.mxu0
  %v1198 = vadd.f32 %v930, %v1197
  %1199 = vmatmul.bf16.gmra.mxu0 %v1051
  %v1200 = vpop.f32.mrf.mxu0
  %v1201 = vadd.f32 %v933, %v1200
  %v1202 = vpop.f32.mrf.mxu0
  %v1203 = vadd.f32 %v935, %v1202
  %1204 = vmatmul.bf16.gmra.mxu0 %v1054
  %v1205 = vpop.f32.mrf.mxu0
  %v1206 = vadd.f32 %v938, %v1205
  %v1207 = vpop.f32.mrf.mxu0
  %v1208 = vadd.f32 %v940, %v1207
  %1209 = vmatmul.bf16.gmra.mxu0 %v1057
  %v1210 = vpop.f32.mrf.mxu0
  %v1211 = vadd.f32 %v943, %v1210
  %v1212 = vpop.f32.mrf.mxu0
  %v1213 = vadd.f32 %v945, %v1212
  %1214 = vmatmul.bf16.gmra.mxu0 %v1060
  %v1215 = vpop.f32.mrf.mxu0
  %v1216 = vadd.f32 %v948, %v1215
  %v1217 = vpop.f32.mrf.mxu0
  %v1218 = vadd.f32 %v950, %v1217
  %1219 = vmatmul.bf16.gmra.mxu0 %v1063
  %v1220 = vpop.f32.mrf.mxu0
  %v1221 = vadd.f32 %v953, %v1220
  %v1222 = vpop.f32.mrf.mxu0
  %v1223 = vadd.f32 %v955, %v1222
  %1224 = vmatmul.bf16.gmra.mxu0 %v1066
  %v1225 = vpop.f32.mrf.mxu0
  %v1226 = vadd.f32 %v958, %v1225
  %v1227 = vpop.f32.mrf.mxu0
  %v1228 = vadd.f32 %v960, %v1227
  %1229 = vmatmul.bf16.gmra.mxu0 %v1069
  %v1230 = vpop.f32.mrf.mxu0
  %v1231 = vadd.f32 %v963, %v1230
  %v1232 = vpop.f32.mrf.mxu0
  %v1233 = vadd.f32 %v965, %v1232
  %1234 = vmatmul.bf16.gmra.mxu0 %v1072
  %v1235 = vpop.f32.mrf.mxu0
  %v1236 = vadd.f32 %v968, %v1235
  %v1237 = vpop.f32.mrf.mxu0
  %v1238 = vadd.f32 %v970, %v1237
  %1239 = vmatmul.bf16.gmra.mxu0 %v1075
  %v1240 = vpop.f32.mrf.mxu0
  %v1241 = vadd.f32 %v973, %v1240
  %v1242 = vpop.f32.mrf.mxu0
  %v1243 = vadd.f32 %v975, %v1242
  %1244 = vmatmul.bf16.gmra.mxu0 %v1078
  %v1245 = vpop.f32.mrf.mxu0
  %v1246 = vadd.f32 %v978, %v1245
  %v1247 = vpop.f32.mrf.mxu0
  %v1248 = vadd.f32 %v980, %v1247
  %1249 = vmatmul.bf16.gmra.mxu0 %v1081
  %v1250 = vpop.f32.mrf.mxu0
  %v1251 = vadd.f32 %v983, %v1250
  %v1252 = vpop.f32.mrf.mxu0
  %v1253 = vadd.f32 %v985, %v1252
  %1254 = vdwg.mxu0
  %v1255 = vld [vmem:[#allocation2 + $0x2] sm:$0xff]
  %v1256 = vld [vmem:[#allocation2 + $0xa] sm:$0xff]
  %v1257 = vld [vmem:[#allocation2 + $0x1a] sm:$0xff]
  %v1258 = vld [vmem:[#allocation2 + $0x22] sm:$0xff]
  %v1259 = vld [vmem:[#allocation2 + $0x32] sm:$0xff]
  %v1260 = vld [vmem:[#allocation2 + $0x3a] sm:$0xff]
  %v1261 = vld [vmem:[#allocation2 + $0x4a] sm:$0xff]
  %v1262 = vld [vmem:[#allocation2 + $0x52] sm:$0xff]
  %v1263 = vld [vmem:[#allocation2 + $0x62] sm:$0xff]
  %v1264 = vld [vmem:[#allocation2 + $0x6a] sm:$0xff]
  %v1265 = vld [vmem:[#allocation2 + $0x7a] sm:$0xff]
  %v1266 = vld [vmem:[#allocation2 + $0x82] sm:$0xff]
  %v1267 = vld [vmem:[#allocation2 + $0x92] sm:$0xff]
  %v1268 = vld [vmem:[#allocation2 + $0x9a] sm:$0xff]
  %v1269 = vld [vmem:[#allocation2 + $0xaa] sm:$0xff]
  %v1270 = vld [vmem:[#allocation2 + $0xb2] sm:$0xff]
  %v1271 = vld [vmem:[#allocation2 + $0xc2] sm:$0xff]
  %v1272 = vld [vmem:[#allocation2 + $0xca] sm:$0xff]
  %v1273 = vld [vmem:[#allocation2 + $0xda] sm:$0xff]
  %v1274 = vld [vmem:[#allocation2 + $0xe2] sm:$0xff]
  %v1275 = vld [vmem:[#allocation2 + $0xf2] sm:$0xff]
  %v1276 = vld [vmem:[#allocation2 + $0xfa] sm:$0xff]
  %v1277 = vld [vmem:[#allocation2 + $0x10a] sm:$0xff]
  %v1278 = vld [vmem:[#allocation2 + $0x112] sm:$0xff]
  %v1279 = vld [vmem:[#allocation2 + $0x122] sm:$0xff]
  %v1280 = vld [vmem:[#allocation2 + $0x12a] sm:$0xff]
  %v1281 = vld [vmem:[#allocation2 + $0x13a] sm:$0xff]
  %v1282 = vld [vmem:[#allocation2 + $0x142] sm:$0xff]
  %v1283 = vld [vmem:[#allocation2 + $0x152] sm:$0xff]
  %v1284 = vld [vmem:[#allocation2 + $0x15a] sm:$0xff]
  %v1285 = vld [vmem:[#allocation2 + $0x16a] sm:$0xff]
  %v1286 = vld [vmem:[#allocation2 + $0x172] sm:$0xff]
  %v1287 = vld [vmem:[#allocation2 + $0x1b2] sm:$0xff]
  %v1288 = vld [vmem:[#allocation2 + $0x1ba] sm:$0xff]
  %v1289 = vld [vmem:[#allocation2 + $0x1ca] sm:$0xff]
  %v1290 = vld [vmem:[#allocation2 + $0x1d2] sm:$0xff]
  %v1291 = vld [vmem:[#allocation2 + $0x1e2] sm:$0xff]
  %v1292 = vld [vmem:[#allocation2 + $0x1ea] sm:$0xff]
  %v1293 = vld [vmem:[#allocation2 + $0x1fa] sm:$0xff]
  %v1294 = vld [vmem:[#allocation2 + $0x202] sm:$0xff]
  %v1295 = vld [vmem:[#allocation2 + $0x212] sm:$0xff]
  %v1296 = vld [vmem:[#allocation2 + $0x21a] sm:$0xff]
  %v1297 = vld [vmem:[#allocation2 + $0x22a] sm:$0xff]
  %v1298 = vld [vmem:[#allocation2 + $0x232] sm:$0xff]
  %v1299 = vld [vmem:[#allocation2 + $0x242] sm:$0xff]
  %v1300 = vld [vmem:[#allocation2 + $0x24a] sm:$0xff]
  %v1301 = vld [vmem:[#allocation2 + $0x25a] sm:$0xff]
  %v1302 = vld [vmem:[#allocation2 + $0x262] sm:$0xff]
  %v1303 = vld [vmem:[#allocation2 + $0x272] sm:$0xff]
  %v1304 = vld [vmem:[#allocation2 + $0x27a] sm:$0xff]
  %v1305 = vld [vmem:[#allocation2 + $0x28a] sm:$0xff]
  %v1306 = vld [vmem:[#allocation2 + $0x292] sm:$0xff]
  %v1307 = vld [vmem:[#allocation2 + $0x2a2] sm:$0xff]
  %v1308 = vld [vmem:[#allocation2 + $0x2aa] sm:$0xff]
  %v1309 = vld [vmem:[#allocation2 + $0x2ba] sm:$0xff]
  %v1310 = vld [vmem:[#allocation2 + $0x2c2] sm:$0xff]
  %v1311 = vld [vmem:[#allocation2 + $0x2d2] sm:$0xff]
  %v1312 = vld [vmem:[#allocation2 + $0x2da] sm:$0xff]
  %v1313 = vld [vmem:[#allocation2 + $0x2ea] sm:$0xff]
  %v1314 = vld [vmem:[#allocation2 + $0x2f2] sm:$0xff]
  %v1315 = vld [vmem:[#allocation2 + $0x302] sm:$0xff]
  %v1316 = vld [vmem:[#allocation2 + $0x30a] sm:$0xff]
  %v1317 = vld [vmem:[#allocation2 + $0x31a] sm:$0xff]
  %v1318 = vld [vmem:[#allocation2 + $0x322] sm:$0xff]
  %v1319 = vpack.c.bf16 %v1256, %v1255
  %v1320 = vpack.c.bf16 %v1258, %v1257
  %v1321 = vpack.c.bf16 %v1260, %v1259
  %v1322 = vpack.c.bf16 %v1262, %v1261
  %v1323 = vpack.c.bf16 %v1264, %v1263
  %v1324 = vpack.c.bf16 %v1266, %v1265
  %v1325 = vpack.c.bf16 %v1268, %v1267
  %v1326 = vpack.c.bf16 %v1270, %v1269
  %v1327 = vpack.c.bf16 %v1272, %v1271
  %v1328 = vpack.c.bf16 %v1274, %v1273
  %v1329 = vpack.c.bf16 %v1276, %v1275
  %v1330 = vpack.c.bf16 %v1278, %v1277
  %v1331 = vpack.c.bf16 %v1280, %v1279
  %v1332 = vpack.c.bf16 %v1282, %v1281
  %v1333 = vpack.c.bf16 %v1284, %v1283
  %v1334 = vpack.c.bf16 %v1286, %v1285
  %v1335 = vpack.c.bf16 %v1288, %v1287
  %v1336 = vpack.c.bf16 %v1290, %v1289
  %v1337 = vpack.c.bf16 %v1292, %v1291
  %v1338 = vpack.c.bf16 %v1294, %v1293
  %v1339 = vpack.c.bf16 %v1296, %v1295
  %v1340 = vpack.c.bf16 %v1298, %v1297
  %v1341 = vpack.c.bf16 %v1300, %v1299
  %v1342 = vpack.c.bf16 %v1302, %v1301
  %v1343 = vpack.c.bf16 %v1304, %v1303
  %v1344 = vpack.c.bf16 %v1306, %v1305
  %v1345 = vpack.c.bf16 %v1308, %v1307
  %v1346 = vpack.c.bf16 %v1310, %v1309
  %v1347 = vpack.c.bf16 %v1312, %v1311
  %v1348 = vpack.c.bf16 %v1314, %v1313
  %v1349 = vpack.c.bf16 %v1316, %v1315
  %v1350 = vpack.c.bf16 %v1318, %v1317
  %s1351 = scalar_lea.vmem %s3, 8
  %v1352 = vld [vmem:[%s1351] sm:$0xf]
  %v1354 = vsel %vm20, %v1319, 0
  %v1357 = vsel %vm20, %v1320, 0
  %v1360 = vsel %vm20, %v1321, 0
  %v1363 = vsel %vm20, %v1322, 0
  %v1366 = vsel %vm20, %v1323, 0
  %v1369 = vsel %vm20, %v1324, 0
  %v1372 = vsel %vm20, %v1325, 0
  %v1375 = vsel %vm20, %v1326, 0
  %v1378 = vsel %vm20, %v1327, 0
  %v1381 = vsel %vm20, %v1328, 0
  %v1384 = vsel %vm20, %v1329, 0
  %v1387 = vsel %vm20, %v1330, 0
  %v1390 = vsel %vm20, %v1331, 0
  %v1393 = vsel %vm20, %v1332, 0
  %v1396 = vsel %vm20, %v1333, 0
  %v1399 = vsel %vm20, %v1334, 0
  %v1402 = vsel %vm20, %v1335, 0
  %v1405 = vsel %vm20, %v1336, 0
  %v1408 = vsel %vm20, %v1337, 0
  %v1411 = vsel %vm20, %v1338, 0
  %v1414 = vsel %vm20, %v1339, 0
  %v1417 = vsel %vm20, %v1340, 0
  %v1420 = vsel %vm20, %v1341, 0
  %v1423 = vsel %vm20, %v1342, 0
  %v1426 = vsel %vm20, %v1343, 0
  %v1429 = vsel %vm20, %v1344, 0
  %v1432 = vsel %vm20, %v1345, 0
  %v1435 = vsel %vm20, %v1346, 0
  %v1438 = vsel %vm20, %v1347, 0
  %v1441 = vsel %vm20, %v1348, 0
  %v1444 = vsel %vm20, %v1349, 0
  %v1447 = vsel %vm20, %v1350, 0
  %v1450 = vsel %vm814, %v1352, 0
  %1452 = vmatpush.bf16.msra.mxu0 0
  %1453 = vmatpush.bf16.msra.mxu0 0
  %1454 = vmatpush.bf16.msra.mxu0 0
  %1455 = vmatpush.bf16.msra.mxu0 0
  %1456 = vmatpush.bf16.msra.mxu0 0
  %1457 = vmatpush.bf16.msra.mxu0 0
  %1458 = vmatpush.bf16.msra.mxu0 0
  %1459 = vmatpush.bf16.msra.mxu0 %v1450
  %1460 = vmatmul.bf16.gmra.mxu0 %v1354
  %v1461 = vpop.f32.mrf.mxu0
  %v1462 = vadd.f32 0.0, %v1461
  %v1463 = vpop.f32.mrf.mxu0
  %v1464 = vadd.f32 0.0, %v1463
  %1465 = vmatmul.bf16.gmra.mxu0 %v1357
  %v1466 = vpop.f32.mrf.mxu0
  %v1467 = vadd.f32 0.0, %v1466
  %v1468 = vpop.f32.mrf.mxu0
  %v1469 = vadd.f32 0.0, %v1468
  %1470 = vmatmul.bf16.gmra.mxu0 %v1360
  %v1471 = vpop.f32.mrf.mxu0
  %v1472 = vadd.f32 0.0, %v1471
  %v1473 = vpop.f32.mrf.mxu0
  %v1474 = vadd.f32 0.0, %v1473
  %1475 = vmatmul.bf16.gmra.mxu0 %v1363
  %v1476 = vpop.f32.mrf.mxu0
  %v1477 = vadd.f32 0.0, %v1476
  %v1478 = vpop.f32.mrf.mxu0
  %v1479 = vadd.f32 0.0, %v1478
  %1480 = vmatmul.bf16.gmra.mxu0 %v1366
  %v1481 = vpop.f32.mrf.mxu0
  %v1482 = vadd.f32 0.0, %v1481
  %v1483 = vpop.f32.mrf.mxu0
  %v1484 = vadd.f32 0.0, %v1483
  %1485 = vmatmul.bf16.gmra.mxu0 %v1369
  %v1486 = vpop.f32.mrf.mxu0
  %v1487 = vadd.f32 0.0, %v1486
  %v1488 = vpop.f32.mrf.mxu0
  %v1489 = vadd.f32 0.0, %v1488
  %1490 = vmatmul.bf16.gmra.mxu0 %v1372
  %v1491 = vpop.f32.mrf.mxu0
  %v1492 = vadd.f32 0.0, %v1491
  %v1493 = vpop.f32.mrf.mxu0
  %v1494 = vadd.f32 0.0, %v1493
  %1495 = vmatmul.bf16.gmra.mxu0 %v1375
  %v1496 = vpop.f32.mrf.mxu0
  %v1497 = vadd.f32 0.0, %v1496
  %v1498 = vpop.f32.mrf.mxu0
  %v1499 = vadd.f32 0.0, %v1498
  %1500 = vmatmul.bf16.gmra.mxu0 %v1378
  %v1501 = vpop.f32.mrf.mxu0
  %v1502 = vadd.f32 0.0, %v1501
  %v1503 = vpop.f32.mrf.mxu0
  %v1504 = vadd.f32 0.0, %v1503
  %1505 = vmatmul.bf16.gmra.mxu0 %v1381
  %v1506 = vpop.f32.mrf.mxu0
  %v1507 = vadd.f32 0.0, %v1506
  %v1508 = vpop.f32.mrf.mxu0
  %v1509 = vadd.f32 0.0, %v1508
  %1510 = vmatmul.bf16.gmra.mxu0 %v1384
  %v1511 = vpop.f32.mrf.mxu0
  %v1512 = vadd.f32 0.0, %v1511
  %v1513 = vpop.f32.mrf.mxu0
  %v1514 = vadd.f32 0.0, %v1513
  %1515 = vmatmul.bf16.gmra.mxu0 %v1387
  %v1516 = vpop.f32.mrf.mxu0
  %v1517 = vadd.f32 0.0, %v1516
  %v1518 = vpop.f32.mrf.mxu0
  %v1519 = vadd.f32 0.0, %v1518
  %1520 = vmatmul.bf16.gmra.mxu0 %v1390
  %v1521 = vpop.f32.mrf.mxu0
  %v1522 = vadd.f32 0.0, %v1521
  %v1523 = vpop.f32.mrf.mxu0
  %v1524 = vadd.f32 0.0, %v1523
  %1525 = vmatmul.bf16.gmra.mxu0 %v1393
  %v1526 = vpop.f32.mrf.mxu0
  %v1527 = vadd.f32 0.0, %v1526
  %v1528 = vpop.f32.mrf.mxu0
  %v1529 = vadd.f32 0.0, %v1528
  %1530 = vmatmul.bf16.gmra.mxu0 %v1396
  %v1531 = vpop.f32.mrf.mxu0
  %v1532 = vadd.f32 0.0, %v1531
  %v1533 = vpop.f32.mrf.mxu0
  %v1534 = vadd.f32 0.0, %v1533
  %1535 = vmatmul.bf16.gmra.mxu0 %v1399
  %v1536 = vpop.f32.mrf.mxu0
  %v1537 = vadd.f32 0.0, %v1536
  %v1538 = vpop.f32.mrf.mxu0
  %v1539 = vadd.f32 0.0, %v1538
  %1540 = vmatmul.bf16.gmra.mxu0 %v1402
  %v1541 = vpop.f32.mrf.mxu0
  %v1542 = vadd.f32 0.0, %v1541
  %v1543 = vpop.f32.mrf.mxu0
  %v1544 = vadd.f32 0.0, %v1543
  %1545 = vmatmul.bf16.gmra.mxu0 %v1405
  %v1546 = vpop.f32.mrf.mxu0
  %v1547 = vadd.f32 0.0, %v1546
  %v1548 = vpop.f32.mrf.mxu0
  %v1549 = vadd.f32 0.0, %v1548
  %1550 = vmatmul.bf16.gmra.mxu0 %v1408
  %v1551 = vpop.f32.mrf.mxu0
  %v1552 = vadd.f32 0.0, %v1551
  %v1553 = vpop.f32.mrf.mxu0
  %v1554 = vadd.f32 0.0, %v1553
  %1555 = vmatmul.bf16.gmra.mxu0 %v1411
  %v1556 = vpop.f32.mrf.mxu0
  %v1557 = vadd.f32 0.0, %v1556
  %v1558 = vpop.f32.mrf.mxu0
  %v1559 = vadd.f32 0.0, %v1558
  %1560 = vmatmul.bf16.gmra.mxu0 %v1414
  %v1561 = vpop.f32.mrf.mxu0
  %v1562 = vadd.f32 0.0, %v1561
  %v1563 = vpop.f32.mrf.mxu0
  %v1564 = vadd.f32 0.0, %v1563
  %1565 = vmatmul.bf16.gmra.mxu0 %v1417
  %v1566 = vpop.f32.mrf.mxu0
  %v1567 = vadd.f32 0.0, %v1566
  %v1568 = vpop.f32.mrf.mxu0
  %v1569 = vadd.f32 0.0, %v1568
  %1570 = vmatmul.bf16.gmra.mxu0 %v1420
  %v1571 = vpop.f32.mrf.mxu0
  %v1572 = vadd.f32 0.0, %v1571
  %v1573 = vpop.f32.mrf.mxu0
  %v1574 = vadd.f32 0.0, %v1573
  %1575 = vmatmul.bf16.gmra.mxu0 %v1423
  %v1576 = vpop.f32.mrf.mxu0
  %v1577 = vadd.f32 0.0, %v1576
  %v1578 = vpop.f32.mrf.mxu0
  %v1579 = vadd.f32 0.0, %v1578
  %1580 = vmatmul.bf16.gmra.mxu0 %v1426
  %v1581 = vpop.f32.mrf.mxu0
  %v1582 = vadd.f32 0.0, %v1581
  %v1583 = vpop.f32.mrf.mxu0
  %v1584 = vadd.f32 0.0, %v1583
  %1585 = vmatmul.bf16.gmra.mxu0 %v1429
  %v1586 = vpop.f32.mrf.mxu0
  %v1587 = vadd.f32 0.0, %v1586
  %v1588 = vpop.f32.mrf.mxu0
  %v1589 = vadd.f32 0.0, %v1588
  %1590 = vmatmul.bf16.gmra.mxu0 %v1432
  %v1591 = vpop.f32.mrf.mxu0
  %v1592 = vadd.f32 0.0, %v1591
  %v1593 = vpop.f32.mrf.mxu0
  %v1594 = vadd.f32 0.0, %v1593
  %1595 = vmatmul.bf16.gmra.mxu0 %v1435
  %v1596 = vpop.f32.mrf.mxu0
  %v1597 = vadd.f32 0.0, %v1596
  %v1598 = vpop.f32.mrf.mxu0
  %v1599 = vadd.f32 0.0, %v1598
  %1600 = vmatmul.bf16.gmra.mxu0 %v1438
  %v1601 = vpop.f32.mrf.mxu0
  %v1602 = vadd.f32 0.0, %v1601
  %v1603 = vpop.f32.mrf.mxu0
  %v1604 = vadd.f32 0.0, %v1603
  %1605 = vmatmul.bf16.gmra.mxu0 %v1441
  %v1606 = vpop.f32.mrf.mxu0
  %v1607 = vadd.f32 0.0, %v1606
  %v1608 = vpop.f32.mrf.mxu0
  %v1609 = vadd.f32 0.0, %v1608
  %1610 = vmatmul.bf16.gmra.mxu0 %v1444
  %v1611 = vpop.f32.mrf.mxu0
  %v1612 = vadd.f32 0.0, %v1611
  %v1613 = vpop.f32.mrf.mxu0
  %v1614 = vadd.f32 0.0, %v1613
  %1615 = vmatmul.bf16.gmra.mxu0 %v1447
  %v1616 = vpop.f32.mrf.mxu0
  %v1617 = vadd.f32 0.0, %v1616
  %v1618 = vpop.f32.mrf.mxu0
  %v1619 = vadd.f32 0.0, %v1618
  %1620 = vdwg.mxu0
  %v1621 = vadd.f32 %v1096, %v1462
  %v1622 = vadd.f32 %v1098, %v1464
  %v1623 = vadd.f32 %v1101, %v1467
  %v1624 = vadd.f32 %v1103, %v1469
  %v1625 = vadd.f32 %v1106, %v1472
  %v1626 = vadd.f32 %v1108, %v1474
  %v1627 = vadd.f32 %v1111, %v1477
  %v1628 = vadd.f32 %v1113, %v1479
  %v1629 = vadd.f32 %v1116, %v1482
  %v1630 = vadd.f32 %v1118, %v1484
  %v1631 = vadd.f32 %v1121, %v1487
  %v1632 = vadd.f32 %v1123, %v1489
  %v1633 = vadd.f32 %v1126, %v1492
  %v1634 = vadd.f32 %v1128, %v1494
  %v1635 = vadd.f32 %v1131, %v1497
  %v1636 = vadd.f32 %v1133, %v1499
  %v1637 = vadd.f32 %v1136, %v1502
  %v1638 = vadd.f32 %v1138, %v1504
  %v1639 = vadd.f32 %v1141, %v1507
  %v1640 = vadd.f32 %v1143, %v1509
  %v1641 = vadd.f32 %v1146, %v1512
  %v1642 = vadd.f32 %v1148, %v1514
  %v1643 = vadd.f32 %v1151, %v1517
  %v1644 = vadd.f32 %v1153, %v1519
  %v1645 = vadd.f32 %v1156, %v1522
  %v1646 = vadd.f32 %v1158, %v1524
  %v1647 = vadd.f32 %v1161, %v1527
  %v1648 = vadd.f32 %v1163, %v1529
  %v1649 = vadd.f32 %v1166, %v1532
  %v1650 = vadd.f32 %v1168, %v1534
  %v1651 = vadd.f32 %v1171, %v1537
  %v1652 = vadd.f32 %v1173, %v1539
  %v1653 = vadd.f32 %v1176, %v1542
  %v1654 = vadd.f32 %v1178, %v1544
  %v1655 = vadd.f32 %v1181, %v1547
  %v1656 = vadd.f32 %v1183, %v1549
  %v1657 = vadd.f32 %v1186, %v1552
  %v1658 = vadd.f32 %v1188, %v1554
  %v1659 = vadd.f32 %v1191, %v1557
  %v1660 = vadd.f32 %v1193, %v1559
  %v1661 = vadd.f32 %v1196, %v1562
  %v1662 = vadd.f32 %v1198, %v1564
  %v1663 = vadd.f32 %v1201, %v1567
  %v1664 = vadd.f32 %v1203, %v1569
  %v1665 = vadd.f32 %v1206, %v1572
  %v1666 = vadd.f32 %v1208, %v1574
  %v1667 = vadd.f32 %v1211, %v1577
  %v1668 = vadd.f32 %v1213, %v1579
  %v1669 = vadd.f32 %v1216, %v1582
  %v1670 = vadd.f32 %v1218, %v1584
  %v1671 = vadd.f32 %v1221, %v1587
  %v1672 = vadd.f32 %v1223, %v1589
  %v1673 = vadd.f32 %v1226, %v1592
  %v1674 = vadd.f32 %v1228, %v1594
  %v1675 = vadd.f32 %v1231, %v1597
  %v1676 = vadd.f32 %v1233, %v1599
  %v1677 = vadd.f32 %v1236, %v1602
  %v1678 = vadd.f32 %v1238, %v1604
  %v1679 = vadd.f32 %v1241, %v1607
  %v1680 = vadd.f32 %v1243, %v1609
  %v1681 = vadd.f32 %v1246, %v1612
  %v1682 = vadd.f32 %v1248, %v1614
  %v1683 = vadd.f32 %v1251, %v1617
  %v1684 = vadd.f32 %v1253, %v1619
  %v1685 = vld [vmem:[%s458] sm:$0xff]
  %v1686 = vld [vmem:[%s458 + $0x8] sm:$0xff]
  %v1687 = vld [vmem:[%s458 + $0x18] sm:$0xff]
  %v1688 = vld [vmem:[%s458 + $0x20] sm:$0xff]
  %v1689 = vld [vmem:[%s458 + $0x30] sm:$0xff]
  %v1690 = vld [vmem:[%s458 + $0x38] sm:$0xff]
  %v1691 = vld [vmem:[%s458 + $0x48] sm:$0xff]
  %v1692 = vld [vmem:[%s458 + $0x50] sm:$0xff]
  %v1693 = vld [vmem:[%s458 + $0x60] sm:$0xff]
  %v1694 = vld [vmem:[%s458 + $0x68] sm:$0xff]
  %v1695 = vld [vmem:[%s458 + $0x78] sm:$0xff]
  %v1696 = vld [vmem:[%s458 + $0x80] sm:$0xff]
  %v1697 = vld [vmem:[%s458 + $0x90] sm:$0xff]
  %v1698 = vld [vmem:[%s458 + $0x98] sm:$0xff]
  %v1699 = vld [vmem:[%s458 + $0xa8] sm:$0xff]
  %v1700 = vld [vmem:[%s458 + $0xb0] sm:$0xff]
  %v1701 = vld [vmem:[%s458 + $0xc0] sm:$0xff]
  %v1702 = vld [vmem:[%s458 + $0xc8] sm:$0xff]
  %v1703 = vld [vmem:[%s458 + $0xd8] sm:$0xff]
  %v1704 = vld [vmem:[%s458 + $0xe0] sm:$0xff]
  %v1705 = vld [vmem:[%s458 + $0xf0] sm:$0xff]
  %v1706 = vld [vmem:[%s458 + $0xf8] sm:$0xff]
  %v1707 = vld [vmem:[%s458 + $0x108] sm:$0xff]
  %v1708 = vld [vmem:[%s458 + $0x110] sm:$0xff]
  %v1709 = vld [vmem:[%s458 + $0x120] sm:$0xff]
  %v1710 = vld [vmem:[%s458 + $0x128] sm:$0xff]
  %v1711 = vld [vmem:[%s458 + $0x138] sm:$0xff]
  %v1712 = vld [vmem:[%s458 + $0x140] sm:$0xff]
  %v1713 = vld [vmem:[%s458 + $0x150] sm:$0xff]
  %v1714 = vld [vmem:[%s458 + $0x158] sm:$0xff]
  %v1715 = vld [vmem:[%s458 + $0x168] sm:$0xff]
  %v1716 = vld [vmem:[%s458 + $0x170] sm:$0xff]
  %v1717 = vld [vmem:[%s458 + $0x1b0] sm:$0xff]
  %v1718 = vld [vmem:[%s458 + $0x1b8] sm:$0xff]
  %v1719 = vld [vmem:[%s458 + $0x1c8] sm:$0xff]
  %v1720 = vld [vmem:[%s458 + $0x1d0] sm:$0xff]
  %v1721 = vld [vmem:[%s458 + $0x1e0] sm:$0xff]
  %v1722 = vld [vmem:[%s458 + $0x1e8] sm:$0xff]
  %v1723 = vld [vmem:[%s458 + $0x1f8] sm:$0xff]
  %v1724 = vld [vmem:[%s458 + $0x200] sm:$0xff]
  %v1725 = vld [vmem:[%s458 + $0x210] sm:$0xff]
  %v1726 = vld [vmem:[%s458 + $0x218] sm:$0xff]
  %v1727 = vld [vmem:[%s458 + $0x228] sm:$0xff]
  %v1728 = vld [vmem:[%s458 + $0x230] sm:$0xff]
  %v1729 = vld [vmem:[%s458 + $0x240] sm:$0xff]
  %v1730 = vld [vmem:[%s458 + $0x248] sm:$0xff]
  %v1731 = vld [vmem:[%s458 + $0x258] sm:$0xff]
  %v1732 = vld [vmem:[%s458 + $0x260] sm:$0xff]
  %v1733 = vld [vmem:[%s458 + $0x270] sm:$0xff]
  %v1734 = vld [vmem:[%s458 + $0x278] sm:$0xff]
  %v1735 = vld [vmem:[%s458 + $0x288] sm:$0xff]
  %v1736 = vld [vmem:[%s458 + $0x290] sm:$0xff]
  %v1737 = vld [vmem:[%s458 + $0x2a0] sm:$0xff]
  %v1738 = vld [vmem:[%s458 + $0x2a8] sm:$0xff]
  %v1739 = vld [vmem:[%s458 + $0x2b8] sm:$0xff]
  %v1740 = vld [vmem:[%s458 + $0x2c0] sm:$0xff]
  %v1741 = vld [vmem:[%s458 + $0x2d0] sm:$0xff]
  %v1742 = vld [vmem:[%s458 + $0x2d8] sm:$0xff]
  %v1743 = vld [vmem:[%s458 + $0x2e8] sm:$0xff]
  %v1744 = vld [vmem:[%s458 + $0x2f0] sm:$0xff]
  %v1745 = vld [vmem:[%s458 + $0x300] sm:$0xff]
  %v1746 = vld [vmem:[%s458 + $0x308] sm:$0xff]
  %v1747 = vld [vmem:[%s458 + $0x318] sm:$0xff]
  %v1748 = vld [vmem:[%s458 + $0x320] sm:$0xff]
  %v1749 = vpack.c.bf16 %v1686, %v1685
  %v1750 = vpack.c.bf16 %v1688, %v1687
  %v1751 = vpack.c.bf16 %v1690, %v1689
  %v1752 = vpack.c.bf16 %v1692, %v1691
  %v1753 = vpack.c.bf16 %v1694, %v1693
  %v1754 = vpack.c.bf16 %v1696, %v1695
  %v1755 = vpack.c.bf16 %v1698, %v1697
  %v1756 = vpack.c.bf16 %v1700, %v1699
  %v1757 = vpack.c.bf16 %v1702, %v1701
  %v1758 = vpack.c.bf16 %v1704, %v1703
  %v1759 = vpack.c.bf16 %v1706, %v1705
  %v1760 = vpack.c.bf16 %v1708, %v1707
  %v1761 = vpack.c.bf16 %v1710, %v1709
  %v1762 = vpack.c.bf16 %v1712, %v1711
  %v1763 = vpack.c.bf16 %v1714, %v1713
  %v1764 = vpack.c.bf16 %v1716, %v1715
  %v1765 = vpack.c.bf16 %v1718, %v1717
  %v1766 = vpack.c.bf16 %v1720, %v1719
  %v1767 = vpack.c.bf16 %v1722, %v1721
  %v1768 = vpack.c.bf16 %v1724, %v1723
  %v1769 = vpack.c.bf16 %v1726, %v1725
  %v1770 = vpack.c.bf16 %v1728, %v1727
  %v1771 = vpack.c.bf16 %v1730, %v1729
  %v1772 = vpack.c.bf16 %v1732, %v1731
  %v1773 = vpack.c.bf16 %v1734, %v1733
  %v1774 = vpack.c.bf16 %v1736, %v1735
  %v1775 = vpack.c.bf16 %v1738, %v1737
  %v1776 = vpack.c.bf16 %v1740, %v1739
  %v1777 = vpack.c.bf16 %v1742, %v1741
  %v1778 = vpack.c.bf16 %v1744, %v1743
  %v1779 = vpack.c.bf16 %v1746, %v1745
  %v1780 = vpack.c.bf16 %v1748, %v1747
  %s1781 = scalar_lea.vmem %s3, 12
  %v1782 = vld [vmem:[%s1781] sm:$0xf]
  %v1784 = vsel %vm20, %v1749, 0
  %v1787 = vsel %vm20, %v1750, 0
  %v1790 = vsel %vm20, %v1751, 0
  %v1793 = vsel %vm20, %v1752, 0
  %v1796 = vsel %vm20, %v1753, 0
  %v1799 = vsel %vm20, %v1754, 0
  %v1802 = vsel %vm20, %v1755, 0
  %v1805 = vsel %vm20, %v1756, 0
  %v1808 = vsel %vm20, %v1757, 0
  %v1811 = vsel %vm20, %v1758, 0
  %v1814 = vsel %vm20, %v1759, 0
  %v1817 = vsel %vm20, %v1760, 0
  %v1820 = vsel %vm20, %v1761, 0
  %v1823 = vsel %vm20, %v1762, 0
  %v1826 = vsel %vm20, %v1763, 0
  %v1829 = vsel %vm20, %v1764, 0
  %v1832 = vsel %vm20, %v1765, 0
  %v1835 = vsel %vm20, %v1766, 0
  %v1838 = vsel %vm20, %v1767, 0
  %v1841 = vsel %vm20, %v1768, 0
  %v1844 = vsel %vm20, %v1769, 0
  %v1847 = vsel %vm20, %v1770, 0
  %v1850 = vsel %vm20, %v1771, 0
  %v1853 = vsel %vm20, %v1772, 0
  %v1856 = vsel %vm20, %v1773, 0
  %v1859 = vsel %vm20, %v1774, 0
  %v1862 = vsel %vm20, %v1775, 0
  %v1865 = vsel %vm20, %v1776, 0
  %v1868 = vsel %vm20, %v1777, 0
  %v1871 = vsel %vm20, %v1778, 0
  %v1874 = vsel %vm20, %v1779, 0
  %v1877 = vsel %vm20, %v1780, 0
  %v1880 = vsel %vm814, %v1782, 0
  %1882 = vmatpush.bf16.msra.mxu0 0
  %1883 = vmatpush.bf16.msra.mxu0 0
  %1884 = vmatpush.bf16.msra.mxu0 0
  %1885 = vmatpush.bf16.msra.mxu0 0
  %1886 = vmatpush.bf16.msra.mxu0 0
  %1887 = vmatpush.bf16.msra.mxu0 0
  %1888 = vmatpush.bf16.msra.mxu0 0
  %1889 = vmatpush.bf16.msra.mxu0 %v1880
  %1890 = vmatmul.bf16.gmra.mxu0 %v1784
  %v1891 = vpop.f32.mrf.mxu0
  %v1892 = vadd.f32 0.0, %v1891
  %v1893 = vpop.f32.mrf.mxu0
  %v1894 = vadd.f32 0.0, %v1893
  %1895 = vmatmul.bf16.gmra.mxu0 %v1787
  %v1896 = vpop.f32.mrf.mxu0
  %v1897 = vadd.f32 0.0, %v1896
  %v1898 = vpop.f32.mrf.mxu0
  %v1899 = vadd.f32 0.0, %v1898
  %1900 = vmatmul.bf16.gmra.mxu0 %v1790
  %v1901 = vpop.f32.mrf.mxu0
  %v1902 = vadd.f32 0.0, %v1901
  %v1903 = vpop.f32.mrf.mxu0
  %v1904 = vadd.f32 0.0, %v1903
  %1905 = vmatmul.bf16.gmra.mxu0 %v1793
  %v1906 = vpop.f32.mrf.mxu0
  %v1907 = vadd.f32 0.0, %v1906
  %v1908 = vpop.f32.mrf.mxu0
  %v1909 = vadd.f32 0.0, %v1908
  %1910 = vmatmul.bf16.gmra.mxu0 %v1796
  %v1911 = vpop.f32.mrf.mxu0
  %v1912 = vadd.f32 0.0, %v1911
  %v1913 = vpop.f32.mrf.mxu0
  %v1914 = vadd.f32 0.0, %v1913
  %1915 = vmatmul.bf16.gmra.mxu0 %v1799
  %v1916 = vpop.f32.mrf.mxu0
  %v1917 = vadd.f32 0.0, %v1916
  %v1918 = vpop.f32.mrf.mxu0
  %v1919 = vadd.f32 0.0, %v1918
  %1920 = vmatmul.bf16.gmra.mxu0 %v1802
  %v1921 = vpop.f32.mrf.mxu0
  %v1922 = vadd.f32 0.0, %v1921
  %v1923 = vpop.f32.mrf.mxu0
  %v1924 = vadd.f32 0.0, %v1923
  %1925 = vmatmul.bf16.gmra.mxu0 %v1805
  %v1926 = vpop.f32.mrf.mxu0
  %v1927 = vadd.f32 0.0, %v1926
  %v1928 = vpop.f32.mrf.mxu0
  %v1929 = vadd.f32 0.0, %v1928
  %1930 = vmatmul.bf16.gmra.mxu0 %v1808
  %v1931 = vpop.f32.mrf.mxu0
  %v1932 = vadd.f32 0.0, %v1931
  %v1933 = vpop.f32.mrf.mxu0
  %v1934 = vadd.f32 0.0, %v1933
  %1935 = vmatmul.bf16.gmra.mxu0 %v1811
  %v1936 = vpop.f32.mrf.mxu0
  %v1937 = vadd.f32 0.0, %v1936
  %v1938 = vpop.f32.mrf.mxu0
  %v1939 = vadd.f32 0.0, %v1938
  %1940 = vmatmul.bf16.gmra.mxu0 %v1814
  %v1941 = vpop.f32.mrf.mxu0
  %v1942 = vadd.f32 0.0, %v1941
  %v1943 = vpop.f32.mrf.mxu0
  %v1944 = vadd.f32 0.0, %v1943
  %1945 = vmatmul.bf16.gmra.mxu0 %v1817
  %v1946 = vpop.f32.mrf.mxu0
  %v1947 = vadd.f32 0.0, %v1946
  %v1948 = vpop.f32.mrf.mxu0
  %v1949 = vadd.f32 0.0, %v1948
  %1950 = vmatmul.bf16.gmra.mxu0 %v1820
  %v1951 = vpop.f32.mrf.mxu0
  %v1952 = vadd.f32 0.0, %v1951
  %v1953 = vpop.f32.mrf.mxu0
  %v1954 = vadd.f32 0.0, %v1953
  %1955 = vmatmul.bf16.gmra.mxu0 %v1823
  %v1956 = vpop.f32.mrf.mxu0
  %v1957 = vadd.f32 0.0, %v1956
  %v1958 = vpop.f32.mrf.mxu0
  %v1959 = vadd.f32 0.0, %v1958
  %1960 = vmatmul.bf16.gmra.mxu0 %v1826
  %v1961 = vpop.f32.mrf.mxu0
  %v1962 = vadd.f32 0.0, %v1961
  %v1963 = vpop.f32.mrf.mxu0
  %v1964 = vadd.f32 0.0, %v1963
  %1965 = vmatmul.bf16.gmra.mxu0 %v1829
  %v1966 = vpop.f32.mrf.mxu0
  %v1967 = vadd.f32 0.0, %v1966
  %v1968 = vpop.f32.mrf.mxu0
  %v1969 = vadd.f32 0.0, %v1968
  %1970 = vmatmul.bf16.gmra.mxu0 %v1832
  %v1971 = vpop.f32.mrf.mxu0
  %v1972 = vadd.f32 0.0, %v1971
  %v1973 = vpop.f32.mrf.mxu0
  %v1974 = vadd.f32 0.0, %v1973
  %1975 = vmatmul.bf16.gmra.mxu0 %v1835
  %v1976 = vpop.f32.mrf.mxu0
  %v1977 = vadd.f32 0.0, %v1976
  %v1978 = vpop.f32.mrf.mxu0
  %v1979 = vadd.f32 0.0, %v1978
  %1980 = vmatmul.bf16.gmra.mxu0 %v1838
  %v1981 = vpop.f32.mrf.mxu0
  %v1982 = vadd.f32 0.0, %v1981
  %v1983 = vpop.f32.mrf.mxu0
  %v1984 = vadd.f32 0.0, %v1983
  %1985 = vmatmul.bf16.gmra.mxu0 %v1841
  %v1986 = vpop.f32.mrf.mxu0
  %v1987 = vadd.f32 0.0, %v1986
  %v1988 = vpop.f32.mrf.mxu0
  %v1989 = vadd.f32 0.0, %v1988
  %1990 = vmatmul.bf16.gmra.mxu0 %v1844
  %v1991 = vpop.f32.mrf.mxu0
  %v1992 = vadd.f32 0.0, %v1991
  %v1993 = vpop.f32.mrf.mxu0
  %v1994 = vadd.f32 0.0, %v1993
  %1995 = vmatmul.bf16.gmra.mxu0 %v1847
  %v1996 = vpop.f32.mrf.mxu0
  %v1997 = vadd.f32 0.0, %v1996
  %v1998 = vpop.f32.mrf.mxu0
  %v1999 = vadd.f32 0.0, %v1998
  %2000 = vmatmul.bf16.gmra.mxu0 %v1850
  %v2001 = vpop.f32.mrf.mxu0
  %v2002 = vadd.f32 0.0, %v2001
  %v2003 = vpop.f32.mrf.mxu0
  %v2004 = vadd.f32 0.0, %v2003
  %2005 = vmatmul.bf16.gmra.mxu0 %v1853
  %v2006 = vpop.f32.mrf.mxu0
  %v2007 = vadd.f32 0.0, %v2006
  %v2008 = vpop.f32.mrf.mxu0
  %v2009 = vadd.f32 0.0, %v2008
  %2010 = vmatmul.bf16.gmra.mxu0 %v1856
  %v2011 = vpop.f32.mrf.mxu0
  %v2012 = vadd.f32 0.0, %v2011
  %v2013 = vpop.f32.mrf.mxu0
  %v2014 = vadd.f32 0.0, %v2013
  %2015 = vmatmul.bf16.gmra.mxu0 %v1859
  %v2016 = vpop.f32.mrf.mxu0
  %v2017 = vadd.f32 0.0, %v2016
  %v2018 = vpop.f32.mrf.mxu0
  %v2019 = vadd.f32 0.0, %v2018
  %2020 = vmatmul.bf16.gmra.mxu0 %v1862
  %v2021 = vpop.f32.mrf.mxu0
  %v2022 = vadd.f32 0.0, %v2021
  %v2023 = vpop.f32.mrf.mxu0
  %v2024 = vadd.f32 0.0, %v2023
  %2025 = vmatmul.bf16.gmra.mxu0 %v1865
  %v2026 = vpop.f32.mrf.mxu0
  %v2027 = vadd.f32 0.0, %v2026
  %v2028 = vpop.f32.mrf.mxu0
  %v2029 = vadd.f32 0.0, %v2028
  %2030 = vmatmul.bf16.gmra.mxu0 %v1868
  %v2031 = vpop.f32.mrf.mxu0
  %v2032 = vadd.f32 0.0, %v2031
  %v2033 = vpop.f32.mrf.mxu0
  %v2034 = vadd.f32 0.0, %v2033
  %2035 = vmatmul.bf16.gmra.mxu0 %v1871
  %v2036 = vpop.f32.mrf.mxu0
  %v2037 = vadd.f32 0.0, %v2036
  %v2038 = vpop.f32.mrf.mxu0
  %v2039 = vadd.f32 0.0, %v2038
  %2040 = vmatmul.bf16.gmra.mxu0 %v1874
  %v2041 = vpop.f32.mrf.mxu0
  %v2042 = vadd.f32 0.0, %v2041
  %v2043 = vpop.f32.mrf.mxu0
  %v2044 = vadd.f32 0.0, %v2043
  %2045 = vmatmul.bf16.gmra.mxu0 %v1877
  %v2046 = vpop.f32.mrf.mxu0
  %v2047 = vadd.f32 0.0, %v2046
  %v2048 = vpop.f32.mrf.mxu0
  %v2049 = vadd.f32 0.0, %v2048
  %2050 = vdwg.mxu0
  %v2051 = vadd.f32 %v1621, %v1892
  %v2052 = vadd.f32 %v1622, %v1894
  %v2053 = vadd.f32 %v1623, %v1897
  %v2054 = vadd.f32 %v1624, %v1899
  %v2055 = vadd.f32 %v1625, %v1902
  %v2056 = vadd.f32 %v1626, %v1904
  %v2057 = vadd.f32 %v1627, %v1907
  %v2058 = vadd.f32 %v1628, %v1909
  %v2059 = vadd.f32 %v1629, %v1912
  %v2060 = vadd.f32 %v1630, %v1914
  %v2061 = vadd.f32 %v1631, %v1917
  %v2062 = vadd.f32 %v1632, %v1919
  %v2063 = vadd.f32 %v1633, %v1922
  %v2064 = vadd.f32 %v1634, %v1924
  %v2065 = vadd.f32 %v1635, %v1927
  %v2066 = vadd.f32 %v1636, %v1929
  %v2067 = vadd.f32 %v1637, %v1932
  %v2068 = vadd.f32 %v1638, %v1934
  %v2069 = vadd.f32 %v1639, %v1937
  %v2070 = vadd.f32 %v1640, %v1939
  %v2071 = vadd.f32 %v1641, %v1942
  %v2072 = vadd.f32 %v1642, %v1944
  %v2073 = vadd.f32 %v1643, %v1947
  %v2074 = vadd.f32 %v1644, %v1949
  %v2075 = vadd.f32 %v1645, %v1952
  %v2076 = vadd.f32 %v1646, %v1954
  %v2077 = vadd.f32 %v1647, %v1957
  %v2078 = vadd.f32 %v1648, %v1959
  %v2079 = vadd.f32 %v1649, %v1962
  %v2080 = vadd.f32 %v1650, %v1964
  %v2081 = vadd.f32 %v1651, %v1967
  %v2082 = vadd.f32 %v1652, %v1969
  %v2083 = vadd.f32 %v1653, %v1972
  %v2084 = vadd.f32 %v1654, %v1974
  %v2085 = vadd.f32 %v1655, %v1977
  %v2086 = vadd.f32 %v1656, %v1979
  %v2087 = vadd.f32 %v1657, %v1982
  %v2088 = vadd.f32 %v1658, %v1984
  %v2089 = vadd.f32 %v1659, %v1987
  %v2090 = vadd.f32 %v1660, %v1989
  %v2091 = vadd.f32 %v1661, %v1992
  %v2092 = vadd.f32 %v1662, %v1994
  %v2093 = vadd.f32 %v1663, %v1997
  %v2094 = vadd.f32 %v1664, %v1999
  %v2095 = vadd.f32 %v1665, %v2002
  %v2096 = vadd.f32 %v1666, %v2004
  %v2097 = vadd.f32 %v1667, %v2007
  %v2098 = vadd.f32 %v1668, %v2009
  %v2099 = vadd.f32 %v1669, %v2012
  %v2100 = vadd.f32 %v1670, %v2014
  %v2101 = vadd.f32 %v1671, %v2017
  %v2102 = vadd.f32 %v1672, %v2019
  %v2103 = vadd.f32 %v1673, %v2022
  %v2104 = vadd.f32 %v1674, %v2024
  %v2105 = vadd.f32 %v1675, %v2027
  %v2106 = vadd.f32 %v1676, %v2029
  %v2107 = vadd.f32 %v1677, %v2032
  %v2108 = vadd.f32 %v1678, %v2034
  %v2109 = vadd.f32 %v1679, %v2037
  %v2110 = vadd.f32 %v1680, %v2039
  %v2111 = vadd.f32 %v1681, %v2042
  %v2112 = vadd.f32 %v1682, %v2044
  %v2113 = vadd.f32 %v1683, %v2047
  %v2114 = vadd.f32 %v1684, %v2049
  %v2115 = vld [vmem:[%s458 + $0x1] sm:$0xff]
  %v2116 = vld [vmem:[%s458 + $0x9] sm:$0xff]
  %v2117 = vld [vmem:[%s458 + $0x19] sm:$0xff]
  %v2118 = vld [vmem:[%s458 + $0x21] sm:$0xff]
  %v2119 = vld [vmem:[%s458 + $0x31] sm:$0xff]
  %v2120 = vld [vmem:[%s458 + $0x39] sm:$0xff]
  %v2121 = vld [vmem:[%s458 + $0x49] sm:$0xff]
  %v2122 = vld [vmem:[%s458 + $0x51] sm:$0xff]
  %v2123 = vld [vmem:[%s458 + $0x61] sm:$0xff]
  %v2124 = vld [vmem:[%s458 + $0x69] sm:$0xff]
  %v2125 = vld [vmem:[%s458 + $0x79] sm:$0xff]
  %v2126 = vld [vmem:[%s458 + $0x81] sm:$0xff]
  %v2127 = vld [vmem:[%s458 + $0x91] sm:$0xff]
  %v2128 = vld [vmem:[%s458 + $0x99] sm:$0xff]
  %v2129 = vld [vmem:[%s458 + $0xa9] sm:$0xff]
  %v2130 = vld [vmem:[%s458 + $0xb1] sm:$0xff]
  %v2131 = vld [vmem:[%s458 + $0xc1] sm:$0xff]
  %v2132 = vld [vmem:[%s458 + $0xc9] sm:$0xff]
  %v2133 = vld [vmem:[%s458 + $0xd9] sm:$0xff]
  %v2134 = vld [vmem:[%s458 + $0xe1] sm:$0xff]
  %v2135 = vld [vmem:[%s458 + $0xf1] sm:$0xff]
  %v2136 = vld [vmem:[%s458 + $0xf9] sm:$0xff]
  %v2137 = vld [vmem:[%s458 + $0x109] sm:$0xff]
  %v2138 = vld [vmem:[%s458 + $0x111] sm:$0xff]
  %v2139 = vld [vmem:[%s458 + $0x121] sm:$0xff]
  %v2140 = vld [vmem:[%s458 + $0x129] sm:$0xff]
  %v2141 = vld [vmem:[%s458 + $0x139] sm:$0xff]
  %v2142 = vld [vmem:[%s458 + $0x141] sm:$0xff]
  %v2143 = vld [vmem:[%s458 + $0x151] sm:$0xff]
  %v2144 = vld [vmem:[%s458 + $0x159] sm:$0xff]
  %v2145 = vld [vmem:[%s458 + $0x169] sm:$0xff]
  %v2146 = vld [vmem:[%s458 + $0x171] sm:$0xff]
  %v2147 = vld [vmem:[%s458 + $0x1b1] sm:$0xff]
  %v2148 = vld [vmem:[%s458 + $0x1b9] sm:$0xff]
  %v2149 = vld [vmem:[%s458 + $0x1c9] sm:$0xff]
  %v2150 = vld [vmem:[%s458 + $0x1d1] sm:$0xff]
  %v2151 = vld [vmem:[%s458 + $0x1e1] sm:$0xff]
  %v2152 = vld [vmem:[%s458 + $0x1e9] sm:$0xff]
  %v2153 = vld [vmem:[%s458 + $0x1f9] sm:$0xff]
  %v2154 = vld [vmem:[%s458 + $0x201] sm:$0xff]
  %v2155 = vld [vmem:[%s458 + $0x211] sm:$0xff]
  %v2156 = vld [vmem:[%s458 + $0x219] sm:$0xff]
  %v2157 = vld [vmem:[%s458 + $0x229] sm:$0xff]
  %v2158 = vld [vmem:[%s458 + $0x231] sm:$0xff]
  %v2159 = vld [vmem:[%s458 + $0x241] sm:$0xff]
  %v2160 = vld [vmem:[%s458 + $0x249] sm:$0xff]
  %v2161 = vld [vmem:[%s458 + $0x259] sm:$0xff]
  %v2162 = vld [vmem:[%s458 + $0x261] sm:$0xff]
  %v2163 = vld [vmem:[%s458 + $0x271] sm:$0xff]
  %v2164 = vld [vmem:[%s458 + $0x279] sm:$0xff]
  %v2165 = vld [vmem:[%s458 + $0x289] sm:$0xff]
  %v2166 = vld [vmem:[%s458 + $0x291] sm:$0xff]
  %v2167 = vld [vmem:[%s458 + $0x2a1] sm:$0xff]
  %v2168 = vld [vmem:[%s458 + $0x2a9] sm:$0xff]
  %v2169 = vld [vmem:[%s458 + $0x2b9] sm:$0xff]
  %v2170 = vld [vmem:[%s458 + $0x2c1] sm:$0xff]
  %v2171 = vld [vmem:[%s458 + $0x2d1] sm:$0xff]
  %v2172 = vld [vmem:[%s458 + $0x2d9] sm:$0xff]
  %v2173 = vld [vmem:[%s458 + $0x2e9] sm:$0xff]
  %v2174 = vld [vmem:[%s458 + $0x2f1] sm:$0xff]
  %v2175 = vld [vmem:[%s458 + $0x301] sm:$0xff]
  %v2176 = vld [vmem:[%s458 + $0x309] sm:$0xff]
  %v2177 = vld [vmem:[%s458 + $0x319] sm:$0xff]
  %v2178 = vld [vmem:[%s458 + $0x321] sm:$0xff]
  %v2179 = vpack.c.bf16 %v2116, %v2115
  %v2180 = vpack.c.bf16 %v2118, %v2117
  %v2181 = vpack.c.bf16 %v2120, %v2119
  %v2182 = vpack.c.bf16 %v2122, %v2121
  %v2183 = vpack.c.bf16 %v2124, %v2123
  %v2184 = vpack.c.bf16 %v2126, %v2125
  %v2185 = vpack.c.bf16 %v2128, %v2127
  %v2186 = vpack.c.bf16 %v2130, %v2129
  %v2187 = vpack.c.bf16 %v2132, %v2131
  %v2188 = vpack.c.bf16 %v2134, %v2133
  %v2189 = vpack.c.bf16 %v2136, %v2135
  %v2190 = vpack.c.bf16 %v2138, %v2137
  %v2191 = vpack.c.bf16 %v2140, %v2139
  %v2192 = vpack.c.bf16 %v2142, %v2141
  %v2193 = vpack.c.bf16 %v2144, %v2143
  %v2194 = vpack.c.bf16 %v2146, %v2145
  %v2195 = vpack.c.bf16 %v2148, %v2147
  %v2196 = vpack.c.bf16 %v2150, %v2149
  %v2197 = vpack.c.bf16 %v2152, %v2151
  %v2198 = vpack.c.bf16 %v2154, %v2153
  %v2199 = vpack.c.bf16 %v2156, %v2155
  %v2200 = vpack.c.bf16 %v2158, %v2157
  %v2201 = vpack.c.bf16 %v2160, %v2159
  %v2202 = vpack.c.bf16 %v2162, %v2161
  %v2203 = vpack.c.bf16 %v2164, %v2163
  %v2204 = vpack.c.bf16 %v2166, %v2165
  %v2205 = vpack.c.bf16 %v2168, %v2167
  %v2206 = vpack.c.bf16 %v2170, %v2169
  %v2207 = vpack.c.bf16 %v2172, %v2171
  %v2208 = vpack.c.bf16 %v2174, %v2173
  %v2209 = vpack.c.bf16 %v2176, %v2175
  %v2210 = vpack.c.bf16 %v2178, %v2177
  %s2211 = scalar_lea.vmem %s3, 16
  %v2212 = vld [vmem:[%s2211] sm:$0xf]
  %v2214 = vsel %vm20, %v2179, 0
  %v2217 = vsel %vm20, %v2180, 0
  %v2220 = vsel %vm20, %v2181, 0
  %v2223 = vsel %vm20, %v2182, 0
  %v2226 = vsel %vm20, %v2183, 0
  %v2229 = vsel %vm20, %v2184, 0
  %v2232 = vsel %vm20, %v2185, 0
  %v2235 = vsel %vm20, %v2186, 0
  %v2238 = vsel %vm20, %v2187, 0
  %v2241 = vsel %vm20, %v2188, 0
  %v2244 = vsel %vm20, %v2189, 0
  %v2247 = vsel %vm20, %v2190, 0
  %v2250 = vsel %vm20, %v2191, 0
  %v2253 = vsel %vm20, %v2192, 0
  %v2256 = vsel %vm20, %v2193, 0
  %v2259 = vsel %vm20, %v2194, 0
  %v2262 = vsel %vm20, %v2195, 0
  %v2265 = vsel %vm20, %v2196, 0
  %v2268 = vsel %vm20, %v2197, 0
  %v2271 = vsel %vm20, %v2198, 0
  %v2274 = vsel %vm20, %v2199, 0
  %v2277 = vsel %vm20, %v2200, 0
  %v2280 = vsel %vm20, %v2201, 0
  %v2283 = vsel %vm20, %v2202, 0
  %v2286 = vsel %vm20, %v2203, 0
  %v2289 = vsel %vm20, %v2204, 0
  %v2292 = vsel %vm20, %v2205, 0
  %v2295 = vsel %vm20, %v2206, 0
  %v2298 = vsel %vm20, %v2207, 0
  %v2301 = vsel %vm20, %v2208, 0
  %v2304 = vsel %vm20, %v2209, 0
  %v2307 = vsel %vm20, %v2210, 0
  %v2310 = vsel %vm814, %v2212, 0
  %2312 = vmatpush.bf16.msra.mxu0 0
  %2313 = vmatpush.bf16.msra.mxu0 0
  %2314 = vmatpush.bf16.msra.mxu0 0
  %2315 = vmatpush.bf16.msra.mxu0 0
  %2316 = vmatpush.bf16.msra.mxu0 0
  %2317 = vmatpush.bf16.msra.mxu0 0
  %2318 = vmatpush.bf16.msra.mxu0 0
  %2319 = vmatpush.bf16.msra.mxu0 %v2310
  %2320 = vmatmul.bf16.gmra.mxu0 %v2214
  %v2321 = vpop.f32.mrf.mxu0
  %v2322 = vadd.f32 0.0, %v2321
  %v2323 = vpop.f32.mrf.mxu0
  %v2324 = vadd.f32 0.0, %v2323
  %2325 = vmatmul.bf16.gmra.mxu0 %v2217
  %v2326 = vpop.f32.mrf.mxu0
  %v2327 = vadd.f32 0.0, %v2326
  %v2328 = vpop.f32.mrf.mxu0
  %v2329 = vadd.f32 0.0, %v2328
  %2330 = vmatmul.bf16.gmra.mxu0 %v2220
  %v2331 = vpop.f32.mrf.mxu0
  %v2332 = vadd.f32 0.0, %v2331
  %v2333 = vpop.f32.mrf.mxu0
  %v2334 = vadd.f32 0.0, %v2333
  %2335 = vmatmul.bf16.gmra.mxu0 %v2223
  %v2336 = vpop.f32.mrf.mxu0
  %v2337 = vadd.f32 0.0, %v2336
  %v2338 = vpop.f32.mrf.mxu0
  %v2339 = vadd.f32 0.0, %v2338
  %2340 = vmatmul.bf16.gmra.mxu0 %v2226
  %v2341 = vpop.f32.mrf.mxu0
  %v2342 = vadd.f32 0.0, %v2341
  %v2343 = vpop.f32.mrf.mxu0
  %v2344 = vadd.f32 0.0, %v2343
  %2345 = vmatmul.bf16.gmra.mxu0 %v2229
  %v2346 = vpop.f32.mrf.mxu0
  %v2347 = vadd.f32 0.0, %v2346
  %v2348 = vpop.f32.mrf.mxu0
  %v2349 = vadd.f32 0.0, %v2348
  %2350 = vmatmul.bf16.gmra.mxu0 %v2232
  %v2351 = vpop.f32.mrf.mxu0
  %v2352 = vadd.f32 0.0, %v2351
  %v2353 = vpop.f32.mrf.mxu0
  %v2354 = vadd.f32 0.0, %v2353
  %2355 = vmatmul.bf16.gmra.mxu0 %v2235
  %v2356 = vpop.f32.mrf.mxu0
  %v2357 = vadd.f32 0.0, %v2356
  %v2358 = vpop.f32.mrf.mxu0
  %v2359 = vadd.f32 0.0, %v2358
  %2360 = vmatmul.bf16.gmra.mxu0 %v2238
  %v2361 = vpop.f32.mrf.mxu0
  %v2362 = vadd.f32 0.0, %v2361
  %v2363 = vpop.f32.mrf.mxu0
  %v2364 = vadd.f32 0.0, %v2363
  %2365 = vmatmul.bf16.gmra.mxu0 %v2241
  %v2366 = vpop.f32.mrf.mxu0
  %v2367 = vadd.f32 0.0, %v2366
  %v2368 = vpop.f32.mrf.mxu0
  %v2369 = vadd.f32 0.0, %v2368
  %2370 = vmatmul.bf16.gmra.mxu0 %v2244
  %v2371 = vpop.f32.mrf.mxu0
  %v2372 = vadd.f32 0.0, %v2371
  %v2373 = vpop.f32.mrf.mxu0
  %v2374 = vadd.f32 0.0, %v2373
  %2375 = vmatmul.bf16.gmra.mxu0 %v2247
  %v2376 = vpop.f32.mrf.mxu0
  %v2377 = vadd.f32 0.0, %v2376
  %v2378 = vpop.f32.mrf.mxu0
  %v2379 = vadd.f32 0.0, %v2378
  %2380 = vmatmul.bf16.gmra.mxu0 %v2250
  %v2381 = vpop.f32.mrf.mxu0
  %v2382 = vadd.f32 0.0, %v2381
  %v2383 = vpop.f32.mrf.mxu0
  %v2384 = vadd.f32 0.0, %v2383
  %2385 = vmatmul.bf16.gmra.mxu0 %v2253
  %v2386 = vpop.f32.mrf.mxu0
  %v2387 = vadd.f32 0.0, %v2386
  %v2388 = vpop.f32.mrf.mxu0
  %v2389 = vadd.f32 0.0, %v2388
  %2390 = vmatmul.bf16.gmra.mxu0 %v2256
  %v2391 = vpop.f32.mrf.mxu0
  %v2392 = vadd.f32 0.0, %v2391
  %v2393 = vpop.f32.mrf.mxu0
  %v2394 = vadd.f32 0.0, %v2393
  %2395 = vmatmul.bf16.gmra.mxu0 %v2259
  %v2396 = vpop.f32.mrf.mxu0
  %v2397 = vadd.f32 0.0, %v2396
  %v2398 = vpop.f32.mrf.mxu0
  %v2399 = vadd.f32 0.0, %v2398
  %2400 = vmatmul.bf16.gmra.mxu0 %v2262
  %v2401 = vpop.f32.mrf.mxu0
  %v2402 = vadd.f32 0.0, %v2401
  %v2403 = vpop.f32.mrf.mxu0
  %v2404 = vadd.f32 0.0, %v2403
  %2405 = vmatmul.bf16.gmra.mxu0 %v2265
  %v2406 = vpop.f32.mrf.mxu0
  %v2407 = vadd.f32 0.0, %v2406
  %v2408 = vpop.f32.mrf.mxu0
  %v2409 = vadd.f32 0.0, %v2408
  %2410 = vmatmul.bf16.gmra.mxu0 %v2268
  %v2411 = vpop.f32.mrf.mxu0
  %v2412 = vadd.f32 0.0, %v2411
  %v2413 = vpop.f32.mrf.mxu0
  %v2414 = vadd.f32 0.0, %v2413
  %2415 = vmatmul.bf16.gmra.mxu0 %v2271
  %v2416 = vpop.f32.mrf.mxu0
  %v2417 = vadd.f32 0.0, %v2416
  %v2418 = vpop.f32.mrf.mxu0
  %v2419 = vadd.f32 0.0, %v2418
  %2420 = vmatmul.bf16.gmra.mxu0 %v2274
  %v2421 = vpop.f32.mrf.mxu0
  %v2422 = vadd.f32 0.0, %v2421
  %v2423 = vpop.f32.mrf.mxu0
  %v2424 = vadd.f32 0.0, %v2423
  %2425 = vmatmul.bf16.gmra.mxu0 %v2277
  %v2426 = vpop.f32.mrf.mxu0
  %v2427 = vadd.f32 0.0, %v2426
  %v2428 = vpop.f32.mrf.mxu0
  %v2429 = vadd.f32 0.0, %v2428
  %2430 = vmatmul.bf16.gmra.mxu0 %v2280
  %v2431 = vpop.f32.mrf.mxu0
  %v2432 = vadd.f32 0.0, %v2431
  %v2433 = vpop.f32.mrf.mxu0
  %v2434 = vadd.f32 0.0, %v2433
  %2435 = vmatmul.bf16.gmra.mxu0 %v2283
  %v2436 = vpop.f32.mrf.mxu0
  %v2437 = vadd.f32 0.0, %v2436
  %v2438 = vpop.f32.mrf.mxu0
  %v2439 = vadd.f32 0.0, %v2438
  %2440 = vmatmul.bf16.gmra.mxu0 %v2286
  %v2441 = vpop.f32.mrf.mxu0
  %v2442 = vadd.f32 0.0, %v2441
  %v2443 = vpop.f32.mrf.mxu0
  %v2444 = vadd.f32 0.0, %v2443
  %2445 = vmatmul.bf16.gmra.mxu0 %v2289
  %v2446 = vpop.f32.mrf.mxu0
  %v2447 = vadd.f32 0.0, %v2446
  %v2448 = vpop.f32.mrf.mxu0
  %v2449 = vadd.f32 0.0, %v2448
  %2450 = vmatmul.bf16.gmra.mxu0 %v2292
  %v2451 = vpop.f32.mrf.mxu0
  %v2452 = vadd.f32 0.0, %v2451
  %v2453 = vpop.f32.mrf.mxu0
  %v2454 = vadd.f32 0.0, %v2453
  %2455 = vmatmul.bf16.gmra.mxu0 %v2295
  %v2456 = vpop.f32.mrf.mxu0
  %v2457 = vadd.f32 0.0, %v2456
  %v2458 = vpop.f32.mrf.mxu0
  %v2459 = vadd.f32 0.0, %v2458
  %2460 = vmatmul.bf16.gmra.mxu0 %v2298
  %v2461 = vpop.f32.mrf.mxu0
  %v2462 = vadd.f32 0.0, %v2461
  %v2463 = vpop.f32.mrf.mxu0
  %v2464 = vadd.f32 0.0, %v2463
  %2465 = vmatmul.bf16.gmra.mxu0 %v2301
  %v2466 = vpop.f32.mrf.mxu0
  %v2467 = vadd.f32 0.0, %v2466
  %v2468 = vpop.f32.mrf.mxu0
  %v2469 = vadd.f32 0.0, %v2468
  %2470 = vmatmul.bf16.gmra.mxu0 %v2304
  %v2471 = vpop.f32.mrf.mxu0
  %v2472 = vadd.f32 0.0, %v2471
  %v2473 = vpop.f32.mrf.mxu0
  %v2474 = vadd.f32 0.0, %v2473
  %2475 = vmatmul.bf16.gmra.mxu0 %v2307
  %v2476 = vpop.f32.mrf.mxu0
  %v2477 = vadd.f32 0.0, %v2476
  %v2478 = vpop.f32.mrf.mxu0
  %v2479 = vadd.f32 0.0, %v2478
  %2480 = vdwg.mxu0
  %v2481 = vadd.f32 %v2051, %v2322
  %v2482 = vadd.f32 %v2052, %v2324
  %v2483 = vadd.f32 %v2053, %v2327
  %v2484 = vadd.f32 %v2054, %v2329
  %v2485 = vadd.f32 %v2055, %v2332
  %v2486 = vadd.f32 %v2056, %v2334
  %v2487 = vadd.f32 %v2057, %v2337
  %v2488 = vadd.f32 %v2058, %v2339
  %v2489 = vadd.f32 %v2059, %v2342
  %v2490 = vadd.f32 %v2060, %v2344
  %v2491 = vadd.f32 %v2061, %v2347
  %v2492 = vadd.f32 %v2062, %v2349
  %v2493 = vadd.f32 %v2063, %v2352
  %v2494 = vadd.f32 %v2064, %v2354
  %v2495 = vadd.f32 %v2065, %v2357
  %v2496 = vadd.f32 %v2066, %v2359
  %v2497 = vadd.f32 %v2067, %v2362
  %v2498 = vadd.f32 %v2068, %v2364
  %v2499 = vadd.f32 %v2069, %v2367
  %v2500 = vadd.f32 %v2070, %v2369
  %v2501 = vadd.f32 %v2071, %v2372
  %v2502 = vadd.f32 %v2072, %v2374
  %v2503 = vadd.f32 %v2073, %v2377
  %v2504 = vadd.f32 %v2074, %v2379
  %v2505 = vadd.f32 %v2075, %v2382
  %v2506 = vadd.f32 %v2076, %v2384
  %v2507 = vadd.f32 %v2077, %v2387
  %v2508 = vadd.f32 %v2078, %v2389
  %v2509 = vadd.f32 %v2079, %v2392
  %v2510 = vadd.f32 %v2080, %v2394
  %v2511 = vadd.f32 %v2081, %v2397
  %v2512 = vadd.f32 %v2082, %v2399
  %v2513 = vadd.f32 %v2083, %v2402
  %v2514 = vadd.f32 %v2084, %v2404
  %v2515 = vadd.f32 %v2085, %v2407
  %v2516 = vadd.f32 %v2086, %v2409
  %v2517 = vadd.f32 %v2087, %v2412
  %v2518 = vadd.f32 %v2088, %v2414
  %v2519 = vadd.f32 %v2089, %v2417
  %v2520 = vadd.f32 %v2090, %v2419
  %v2521 = vadd.f32 %v2091, %v2422
  %v2522 = vadd.f32 %v2092, %v2424
  %v2523 = vadd.f32 %v2093, %v2427
  %v2524 = vadd.f32 %v2094, %v2429
  %v2525 = vadd.f32 %v2095, %v2432
  %v2526 = vadd.f32 %v2096, %v2434
  %v2527 = vadd.f32 %v2097, %v2437
  %v2528 = vadd.f32 %v2098, %v2439
  %v2529 = vadd.f32 %v2099, %v2442
  %v2530 = vadd.f32 %v2100, %v2444
  %v2531 = vadd.f32 %v2101, %v2447
  %v2532 = vadd.f32 %v2102, %v2449
  %v2533 = vadd.f32 %v2103, %v2452
  %v2534 = vadd.f32 %v2104, %v2454
  %v2535 = vadd.f32 %v2105, %v2457
  %v2536 = vadd.f32 %v2106, %v2459
  %v2537 = vadd.f32 %v2107, %v2462
  %v2538 = vadd.f32 %v2108, %v2464
  %v2539 = vadd.f32 %v2109, %v2467
  %v2540 = vadd.f32 %v2110, %v2469
  %v2541 = vadd.f32 %v2111, %v2472
  %v2542 = vadd.f32 %v2112, %v2474
  %v2543 = vadd.f32 %v2113, %v2477
  %v2544 = vadd.f32 %v2114, %v2479
  %v2545 = vld [vmem:[%s458 + $0x2] sm:$0xff]
  %v2546 = vld [vmem:[%s458 + $0xa] sm:$0xff]
  %v2547 = vld [vmem:[%s458 + $0x1a] sm:$0xff]
  %v2548 = vld [vmem:[%s458 + $0x22] sm:$0xff]
  %v2549 = vld [vmem:[%s458 + $0x32] sm:$0xff]
  %v2550 = vld [vmem:[%s458 + $0x3a] sm:$0xff]
  %v2551 = vld [vmem:[%s458 + $0x4a] sm:$0xff]
  %v2552 = vld [vmem:[%s458 + $0x52] sm:$0xff]
  %v2553 = vld [vmem:[%s458 + $0x62] sm:$0xff]
  %v2554 = vld [vmem:[%s458 + $0x6a] sm:$0xff]
  %v2555 = vld [vmem:[%s458 + $0x7a] sm:$0xff]
  %v2556 = vld [vmem:[%s458 + $0x82] sm:$0xff]
  %v2557 = vld [vmem:[%s458 + $0x92] sm:$0xff]
  %v2558 = vld [vmem:[%s458 + $0x9a] sm:$0xff]
  %v2559 = vld [vmem:[%s458 + $0xaa] sm:$0xff]
  %v2560 = vld [vmem:[%s458 + $0xb2] sm:$0xff]
  %v2561 = vld [vmem:[%s458 + $0xc2] sm:$0xff]
  %v2562 = vld [vmem:[%s458 + $0xca] sm:$0xff]
  %v2563 = vld [vmem:[%s458 + $0xda] sm:$0xff]
  %v2564 = vld [vmem:[%s458 + $0xe2] sm:$0xff]
  %v2565 = vld [vmem:[%s458 + $0xf2] sm:$0xff]
  %v2566 = vld [vmem:[%s458 + $0xfa] sm:$0xff]
  %v2567 = vld [vmem:[%s458 + $0x10a] sm:$0xff]
  %v2568 = vld [vmem:[%s458 + $0x112] sm:$0xff]
  %v2569 = vld [vmem:[%s458 + $0x122] sm:$0xff]
  %v2570 = vld [vmem:[%s458 + $0x12a] sm:$0xff]
  %v2571 = vld [vmem:[%s458 + $0x13a] sm:$0xff]
  %v2572 = vld [vmem:[%s458 + $0x142] sm:$0xff]
  %v2573 = vld [vmem:[%s458 + $0x152] sm:$0xff]
  %v2574 = vld [vmem:[%s458 + $0x15a] sm:$0xff]
  %v2575 = vld [vmem:[%s458 + $0x16a] sm:$0xff]
  %v2576 = vld [vmem:[%s458 + $0x172] sm:$0xff]
  %v2577 = vld [vmem:[%s458 + $0x1b2] sm:$0xff]
  %v2578 = vld [vmem:[%s458 + $0x1ba] sm:$0xff]
  %v2579 = vld [vmem:[%s458 + $0x1ca] sm:$0xff]
  %v2580 = vld [vmem:[%s458 + $0x1d2] sm:$0xff]
  %v2581 = vld [vmem:[%s458 + $0x1e2] sm:$0xff]
  %v2582 = vld [vmem:[%s458 + $0x1ea] sm:$0xff]
  %v2583 = vld [vmem:[%s458 + $0x1fa] sm:$0xff]
  %v2584 = vld [vmem:[%s458 + $0x202] sm:$0xff]
  %v2585 = vld [vmem:[%s458 + $0x212] sm:$0xff]
  %v2586 = vld [vmem:[%s458 + $0x21a] sm:$0xff]
  %v2587 = vld [vmem:[%s458 + $0x22a] sm:$0xff]
  %v2588 = vld [vmem:[%s458 + $0x232] sm:$0xff]
  %v2589 = vld [vmem:[%s458 + $0x242] sm:$0xff]
  %v2590 = vld [vmem:[%s458 + $0x24a] sm:$0xff]
  %v2591 = vld [vmem:[%s458 + $0x25a] sm:$0xff]
  %v2592 = vld [vmem:[%s458 + $0x262] sm:$0xff]
  %v2593 = vld [vmem:[%s458 + $0x272] sm:$0xff]
  %v2594 = vld [vmem:[%s458 + $0x27a] sm:$0xff]
  %v2595 = vld [vmem:[%s458 + $0x28a] sm:$0xff]
  %v2596 = vld [vmem:[%s458 + $0x292] sm:$0xff]
  %v2597 = vld [vmem:[%s458 + $0x2a2] sm:$0xff]
  %v2598 = vld [vmem:[%s458 + $0x2aa] sm:$0xff]
  %v2599 = vld [vmem:[%s458 + $0x2ba] sm:$0xff]
  %v2600 = vld [vmem:[%s458 + $0x2c2] sm:$0xff]
  %v2601 = vld [vmem:[%s458 + $0x2d2] sm:$0xff]
  %v2602 = vld [vmem:[%s458 + $0x2da] sm:$0xff]
  %v2603 = vld [vmem:[%s458 + $0x2ea] sm:$0xff]
  %v2604 = vld [vmem:[%s458 + $0x2f2] sm:$0xff]
  %v2605 = vld [vmem:[%s458 + $0x302] sm:$0xff]
  %v2606 = vld [vmem:[%s458 + $0x30a] sm:$0xff]
  %v2607 = vld [vmem:[%s458 + $0x31a] sm:$0xff]
  %v2608 = vld [vmem:[%s458 + $0x322] sm:$0xff]
  %v2609 = vpack.c.bf16 %v2546, %v2545
  %v2610 = vpack.c.bf16 %v2548, %v2547
  %v2611 = vpack.c.bf16 %v2550, %v2549
  %v2612 = vpack.c.bf16 %v2552, %v2551
  %v2613 = vpack.c.bf16 %v2554, %v2553
  %v2614 = vpack.c.bf16 %v2556, %v2555
  %v2615 = vpack.c.bf16 %v2558, %v2557
  %v2616 = vpack.c.bf16 %v2560, %v2559
  %v2617 = vpack.c.bf16 %v2562, %v2561
  %v2618 = vpack.c.bf16 %v2564, %v2563
  %v2619 = vpack.c.bf16 %v2566, %v2565
  %v2620 = vpack.c.bf16 %v2568, %v2567
  %v2621 = vpack.c.bf16 %v2570, %v2569
  %v2622 = vpack.c.bf16 %v2572, %v2571
  %v2623 = vpack.c.bf16 %v2574, %v2573
  %v2624 = vpack.c.bf16 %v2576, %v2575
  %v2625 = vpack.c.bf16 %v2578, %v2577
  %v2626 = vpack.c.bf16 %v2580, %v2579
  %v2627 = vpack.c.bf16 %v2582, %v2581
  %v2628 = vpack.c.bf16 %v2584, %v2583
  %v2629 = vpack.c.bf16 %v2586, %v2585
  %v2630 = vpack.c.bf16 %v2588, %v2587
  %v2631 = vpack.c.bf16 %v2590, %v2589
  %v2632 = vpack.c.bf16 %v2592, %v2591
  %v2633 = vpack.c.bf16 %v2594, %v2593
  %v2634 = vpack.c.bf16 %v2596, %v2595
  %v2635 = vpack.c.bf16 %v2598, %v2597
  %v2636 = vpack.c.bf16 %v2600, %v2599
  %v2637 = vpack.c.bf16 %v2602, %v2601
  %v2638 = vpack.c.bf16 %v2604, %v2603
  %v2639 = vpack.c.bf16 %v2606, %v2605
  %v2640 = vpack.c.bf16 %v2608, %v2607
  %s2641 = scalar_lea.vmem %s3, 20
  %v2642 = vld [vmem:[%s2641] sm:$0xf]
  %v2644 = vsel %vm20, %v2609, 0
  %v2647 = vsel %vm20, %v2610, 0
  %v2650 = vsel %vm20, %v2611, 0
  %v2653 = vsel %vm20, %v2612, 0
  %v2656 = vsel %vm20, %v2613, 0
  %v2659 = vsel %vm20, %v2614, 0
  %v2662 = vsel %vm20, %v2615, 0
  %v2665 = vsel %vm20, %v2616, 0
  %v2668 = vsel %vm20, %v2617, 0
  %v2671 = vsel %vm20, %v2618, 0
  %v2674 = vsel %vm20, %v2619, 0
  %v2677 = vsel %vm20, %v2620, 0
  %v2680 = vsel %vm20, %v2621, 0
  %v2683 = vsel %vm20, %v2622, 0
  %v2686 = vsel %vm20, %v2623, 0
  %v2689 = vsel %vm20, %v2624, 0
  %v2692 = vsel %vm20, %v2625, 0
  %v2695 = vsel %vm20, %v2626, 0
  %v2698 = vsel %vm20, %v2627, 0
  %v2701 = vsel %vm20, %v2628, 0
  %v2704 = vsel %vm20, %v2629, 0
  %v2707 = vsel %vm20, %v2630, 0
  %v2710 = vsel %vm20, %v2631, 0
  %v2713 = vsel %vm20, %v2632, 0
  %v2716 = vsel %vm20, %v2633, 0
  %v2719 = vsel %vm20, %v2634, 0
  %v2722 = vsel %vm20, %v2635, 0
  %v2725 = vsel %vm20, %v2636, 0
  %v2728 = vsel %vm20, %v2637, 0
  %v2731 = vsel %vm20, %v2638, 0
  %v2734 = vsel %vm20, %v2639, 0
  %v2737 = vsel %vm20, %v2640, 0
  %v2740 = vsel %vm814, %v2642, 0
  %2742 = vmatpush.bf16.msra.mxu0 0
  %2743 = vmatpush.bf16.msra.mxu0 0
  %2744 = vmatpush.bf16.msra.mxu0 0
  %2745 = vmatpush.bf16.msra.mxu0 0
  %2746 = vmatpush.bf16.msra.mxu0 0
  %2747 = vmatpush.bf16.msra.mxu0 0
  %2748 = vmatpush.bf16.msra.mxu0 0
  %2749 = vmatpush.bf16.msra.mxu0 %v2740
  %2750 = vmatmul.bf16.gmra.mxu0 %v2644
  %v2751 = vpop.f32.mrf.mxu0
  %v2752 = vadd.f32 0.0, %v2751
  %v2753 = vpop.f32.mrf.mxu0
  %v2754 = vadd.f32 0.0, %v2753
  %2755 = vmatmul.bf16.gmra.mxu0 %v2647
  %v2756 = vpop.f32.mrf.mxu0
  %v2757 = vadd.f32 0.0, %v2756
  %v2758 = vpop.f32.mrf.mxu0
  %v2759 = vadd.f32 0.0, %v2758
  %2760 = vmatmul.bf16.gmra.mxu0 %v2650
  %v2761 = vpop.f32.mrf.mxu0
  %v2762 = vadd.f32 0.0, %v2761
  %v2763 = vpop.f32.mrf.mxu0
  %v2764 = vadd.f32 0.0, %v2763
  %2765 = vmatmul.bf16.gmra.mxu0 %v2653
  %v2766 = vpop.f32.mrf.mxu0
  %v2767 = vadd.f32 0.0, %v2766
  %v2768 = vpop.f32.mrf.mxu0
  %v2769 = vadd.f32 0.0, %v2768
  %2770 = vmatmul.bf16.gmra.mxu0 %v2656
  %v2771 = vpop.f32.mrf.mxu0
  %v2772 = vadd.f32 0.0, %v2771
  %v2773 = vpop.f32.mrf.mxu0
  %v2774 = vadd.f32 0.0, %v2773
  %2775 = vmatmul.bf16.gmra.mxu0 %v2659
  %v2776 = vpop.f32.mrf.mxu0
  %v2777 = vadd.f32 0.0, %v2776
  %v2778 = vpop.f32.mrf.mxu0
  %v2779 = vadd.f32 0.0, %v2778
  %2780 = vmatmul.bf16.gmra.mxu0 %v2662
  %v2781 = vpop.f32.mrf.mxu0
  %v2782 = vadd.f32 0.0, %v2781
  %v2783 = vpop.f32.mrf.mxu0
  %v2784 = vadd.f32 0.0, %v2783
  %2785 = vmatmul.bf16.gmra.mxu0 %v2665
  %v2786 = vpop.f32.mrf.mxu0
  %v2787 = vadd.f32 0.0, %v2786
  %v2788 = vpop.f32.mrf.mxu0
  %v2789 = vadd.f32 0.0, %v2788
  %2790 = vmatmul.bf16.gmra.mxu0 %v2668
  %v2791 = vpop.f32.mrf.mxu0
  %v2792 = vadd.f32 0.0, %v2791
  %v2793 = vpop.f32.mrf.mxu0
  %v2794 = vadd.f32 0.0, %v2793
  %2795 = vmatmul.bf16.gmra.mxu0 %v2671
  %v2796 = vpop.f32.mrf.mxu0
  %v2797 = vadd.f32 0.0, %v2796
  %v2798 = vpop.f32.mrf.mxu0
  %v2799 = vadd.f32 0.0, %v2798
  %2800 = vmatmul.bf16.gmra.mxu0 %v2674
  %v2801 = vpop.f32.mrf.mxu0
  %v2802 = vadd.f32 0.0, %v2801
  %v2803 = vpop.f32.mrf.mxu0
  %v2804 = vadd.f32 0.0, %v2803
  %2805 = vmatmul.bf16.gmra.mxu0 %v2677
  %v2806 = vpop.f32.mrf.mxu0
  %v2807 = vadd.f32 0.0, %v2806
  %v2808 = vpop.f32.mrf.mxu0
  %v2809 = vadd.f32 0.0, %v2808
  %2810 = vmatmul.bf16.gmra.mxu0 %v2680
  %v2811 = vpop.f32.mrf.mxu0
  %v2812 = vadd.f32 0.0, %v2811
  %v2813 = vpop.f32.mrf.mxu0
  %v2814 = vadd.f32 0.0, %v2813
  %2815 = vmatmul.bf16.gmra.mxu0 %v2683
  %v2816 = vpop.f32.mrf.mxu0
  %v2817 = vadd.f32 0.0, %v2816
  %v2818 = vpop.f32.mrf.mxu0
  %v2819 = vadd.f32 0.0, %v2818
  %2820 = vmatmul.bf16.gmra.mxu0 %v2686
  %v2821 = vpop.f32.mrf.mxu0
  %v2822 = vadd.f32 0.0, %v2821
  %v2823 = vpop.f32.mrf.mxu0
  %v2824 = vadd.f32 0.0, %v2823
  %2825 = vmatmul.bf16.gmra.mxu0 %v2689
  %v2826 = vpop.f32.mrf.mxu0
  %v2827 = vadd.f32 0.0, %v2826
  %v2828 = vpop.f32.mrf.mxu0
  %v2829 = vadd.f32 0.0, %v2828
  %2830 = vmatmul.bf16.gmra.mxu0 %v2692
  %v2831 = vpop.f32.mrf.mxu0
  %v2832 = vadd.f32 0.0, %v2831
  %v2833 = vpop.f32.mrf.mxu0
  %v2834 = vadd.f32 0.0, %v2833
  %2835 = vmatmul.bf16.gmra.mxu0 %v2695
  %v2836 = vpop.f32.mrf.mxu0
  %v2837 = vadd.f32 0.0, %v2836
  %v2838 = vpop.f32.mrf.mxu0
  %v2839 = vadd.f32 0.0, %v2838
  %2840 = vmatmul.bf16.gmra.mxu0 %v2698
  %v2841 = vpop.f32.mrf.mxu0
  %v2842 = vadd.f32 0.0, %v2841
  %v2843 = vpop.f32.mrf.mxu0
  %v2844 = vadd.f32 0.0, %v2843
  %2845 = vmatmul.bf16.gmra.mxu0 %v2701
  %v2846 = vpop.f32.mrf.mxu0
  %v2847 = vadd.f32 0.0, %v2846
  %v2848 = vpop.f32.mrf.mxu0
  %v2849 = vadd.f32 0.0, %v2848
  %2850 = vmatmul.bf16.gmra.mxu0 %v2704
  %v2851 = vpop.f32.mrf.mxu0
  %v2852 = vadd.f32 0.0, %v2851
  %v2853 = vpop.f32.mrf.mxu0
  %v2854 = vadd.f32 0.0, %v2853
  %2855 = vmatmul.bf16.gmra.mxu0 %v2707
  %v2856 = vpop.f32.mrf.mxu0
  %v2857 = vadd.f32 0.0, %v2856
  %v2858 = vpop.f32.mrf.mxu0
  %v2859 = vadd.f32 0.0, %v2858
  %2860 = vmatmul.bf16.gmra.mxu0 %v2710
  %v2861 = vpop.f32.mrf.mxu0
  %v2862 = vadd.f32 0.0, %v2861
  %v2863 = vpop.f32.mrf.mxu0
  %v2864 = vadd.f32 0.0, %v2863
  %2865 = vmatmul.bf16.gmra.mxu0 %v2713
  %v2866 = vpop.f32.mrf.mxu0
  %v2867 = vadd.f32 0.0, %v2866
  %v2868 = vpop.f32.mrf.mxu0
  %v2869 = vadd.f32 0.0, %v2868
  %2870 = vmatmul.bf16.gmra.mxu0 %v2716
  %v2871 = vpop.f32.mrf.mxu0
  %v2872 = vadd.f32 0.0, %v2871
  %v2873 = vpop.f32.mrf.mxu0
  %v2874 = vadd.f32 0.0, %v2873
  %2875 = vmatmul.bf16.gmra.mxu0 %v2719
  %v2876 = vpop.f32.mrf.mxu0
  %v2877 = vadd.f32 0.0, %v2876
  %v2878 = vpop.f32.mrf.mxu0
  %v2879 = vadd.f32 0.0, %v2878
  %2880 = vmatmul.bf16.gmra.mxu0 %v2722
  %v2881 = vpop.f32.mrf.mxu0
  %v2882 = vadd.f32 0.0, %v2881
  %v2883 = vpop.f32.mrf.mxu0
  %v2884 = vadd.f32 0.0, %v2883
  %2885 = vmatmul.bf16.gmra.mxu0 %v2725
  %v2886 = vpop.f32.mrf.mxu0
  %v2887 = vadd.f32 0.0, %v2886
  %v2888 = vpop.f32.mrf.mxu0
  %v2889 = vadd.f32 0.0, %v2888
  %2890 = vmatmul.bf16.gmra.mxu0 %v2728
  %v2891 = vpop.f32.mrf.mxu0
  %v2892 = vadd.f32 0.0, %v2891
  %v2893 = vpop.f32.mrf.mxu0
  %v2894 = vadd.f32 0.0, %v2893
  %2895 = vmatmul.bf16.gmra.mxu0 %v2731
  %v2896 = vpop.f32.mrf.mxu0
  %v2897 = vadd.f32 0.0, %v2896
  %v2898 = vpop.f32.mrf.mxu0
  %v2899 = vadd.f32 0.0, %v2898
  %2900 = vmatmul.bf16.gmra.mxu0 %v2734
  %v2901 = vpop.f32.mrf.mxu0
  %v2902 = vadd.f32 0.0, %v2901
  %v2903 = vpop.f32.mrf.mxu0
  %v2904 = vadd.f32 0.0, %v2903
  %2905 = vmatmul.bf16.gmra.mxu0 %v2737
  %v2906 = vpop.f32.mrf.mxu0
  %v2907 = vadd.f32 0.0, %v2906
  %v2908 = vpop.f32.mrf.mxu0
  %v2909 = vadd.f32 0.0, %v2908
  %2910 = vdwg.mxu0
  %v2911 = vadd.f32 %v2481, %v2752
  %v2912 = vadd.f32 %v2482, %v2754
  %v2913 = vadd.f32 %v2483, %v2757
  %v2914 = vadd.f32 %v2484, %v2759
  %v2915 = vadd.f32 %v2485, %v2762
  %v2916 = vadd.f32 %v2486, %v2764
  %v2917 = vadd.f32 %v2487, %v2767
  %v2918 = vadd.f32 %v2488, %v2769
  %v2919 = vadd.f32 %v2489, %v2772
  %v2920 = vadd.f32 %v2490, %v2774
  %v2921 = vadd.f32 %v2491, %v2777
  %v2922 = vadd.f32 %v2492, %v2779
  %v2923 = vadd.f32 %v2493, %v2782
  %v2924 = vadd.f32 %v2494, %v2784
  %v2925 = vadd.f32 %v2495, %v2787
  %v2926 = vadd.f32 %v2496, %v2789
  %v2927 = vadd.f32 %v2497, %v2792
  %v2928 = vadd.f32 %v2498, %v2794
  %v2929 = vadd.f32 %v2499, %v2797
  %v2930 = vadd.f32 %v2500, %v2799
  %v2931 = vadd.f32 %v2501, %v2802
  %v2932 = vadd.f32 %v2502, %v2804
  %v2933 = vadd.f32 %v2503, %v2807
  %v2934 = vadd.f32 %v2504, %v2809
  %v2935 = vadd.f32 %v2505, %v2812
  %v2936 = vadd.f32 %v2506, %v2814
  %v2937 = vadd.f32 %v2507, %v2817
  %v2938 = vadd.f32 %v2508, %v2819
  %v2939 = vadd.f32 %v2509, %v2822
  %v2940 = vadd.f32 %v2510, %v2824
  %v2941 = vadd.f32 %v2511, %v2827
  %v2942 = vadd.f32 %v2512, %v2829
  %v2943 = vadd.f32 %v2513, %v2832
  %v2944 = vadd.f32 %v2514, %v2834
  %v2945 = vadd.f32 %v2515, %v2837
  %v2946 = vadd.f32 %v2516, %v2839
  %v2947 = vadd.f32 %v2517, %v2842
  %v2948 = vadd.f32 %v2518, %v2844
  %v2949 = vadd.f32 %v2519, %v2847
  %v2950 = vadd.f32 %v2520, %v2849
  %v2951 = vadd.f32 %v2521, %v2852
  %v2952 = vadd.f32 %v2522, %v2854
  %v2953 = vadd.f32 %v2523, %v2857
  %v2954 = vadd.f32 %v2524, %v2859
  %v2955 = vadd.f32 %v2525, %v2862
  %v2956 = vadd.f32 %v2526, %v2864
  %v2957 = vadd.f32 %v2527, %v2867
  %v2958 = vadd.f32 %v2528, %v2869
  %v2959 = vadd.f32 %v2529, %v2872
  %v2960 = vadd.f32 %v2530, %v2874
  %v2961 = vadd.f32 %v2531, %v2877
  %v2962 = vadd.f32 %v2532, %v2879
  %v2963 = vadd.f32 %v2533, %v2882
  %v2964 = vadd.f32 %v2534, %v2884
  %v2965 = vadd.f32 %v2535, %v2887
  %v2966 = vadd.f32 %v2536, %v2889
  %v2967 = vadd.f32 %v2537, %v2892
  %v2968 = vadd.f32 %v2538, %v2894
  %v2969 = vadd.f32 %v2539, %v2897
  %v2970 = vadd.f32 %v2540, %v2899
  %v2971 = vadd.f32 %v2541, %v2902
  %v2972 = vadd.f32 %v2542, %v2904
  %v2973 = vadd.f32 %v2543, %v2907
  %v2974 = vadd.f32 %v2544, %v2909
  %s2975 = scalar_lea.vmem [#allocation2], 48
  %v2976 = vld [vmem:[%s2975] sm:$0xff]
  %v2977 = vld [vmem:[%s2975 + $0x8] sm:$0xff]
  %v2978 = vld [vmem:[%s2975 + $0x18] sm:$0xff]
  %v2979 = vld [vmem:[%s2975 + $0x20] sm:$0xff]
  %v2980 = vld [vmem:[%s2975 + $0x30] sm:$0xff]
  %v2981 = vld [vmem:[%s2975 + $0x38] sm:$0xff]
  %v2982 = vld [vmem:[%s2975 + $0x48] sm:$0xff]
  %v2983 = vld [vmem:[%s2975 + $0x50] sm:$0xff]
  %v2984 = vld [vmem:[%s2975 + $0x60] sm:$0xff]
  %v2985 = vld [vmem:[%s2975 + $0x68] sm:$0xff]
  %v2986 = vld [vmem:[%s2975 + $0x78] sm:$0xff]
  %v2987 = vld [vmem:[%s2975 + $0x80] sm:$0xff]
  %v2988 = vld [vmem:[%s2975 + $0x90] sm:$0xff]
  %v2989 = vld [vmem:[%s2975 + $0x98] sm:$0xff]
  %v2990 = vld [vmem:[%s2975 + $0xa8] sm:$0xff]
  %v2991 = vld [vmem:[%s2975 + $0xb0] sm:$0xff]
  %v2992 = vld [vmem:[%s2975 + $0xc0] sm:$0xff]
  %v2993 = vld [vmem:[%s2975 + $0xc8] sm:$0xff]
  %v2994 = vld [vmem:[%s2975 + $0xd8] sm:$0xff]
  %v2995 = vld [vmem:[%s2975 + $0xe0] sm:$0xff]
  %v2996 = vld [vmem:[%s2975 + $0xf0] sm:$0xff]
  %v2997 = vld [vmem:[%s2975 + $0xf8] sm:$0xff]
  %v2998 = vld [vmem:[%s2975 + $0x108] sm:$0xff]
  %v2999 = vld [vmem:[%s2975 + $0x110] sm:$0xff]
  %v3000 = vld [vmem:[%s2975 + $0x120] sm:$0xff]
  %v3001 = vld [vmem:[%s2975 + $0x128] sm:$0xff]
  %v3002 = vld [vmem:[%s2975 + $0x138] sm:$0xff]
  %v3003 = vld [vmem:[%s2975 + $0x140] sm:$0xff]
  %v3004 = vld [vmem:[%s2975 + $0x150] sm:$0xff]
  %v3005 = vld [vmem:[%s2975 + $0x158] sm:$0xff]
  %v3006 = vld [vmem:[%s2975 + $0x168] sm:$0xff]
  %v3007 = vld [vmem:[%s2975 + $0x170] sm:$0xff]
  %v3008 = vld [vmem:[%s2975 + $0x1b0] sm:$0xff]
  %v3009 = vld [vmem:[%s2975 + $0x1b8] sm:$0xff]
  %v3010 = vld [vmem:[%s2975 + $0x1c8] sm:$0xff]
  %v3011 = vld [vmem:[%s2975 + $0x1d0] sm:$0xff]
  %v3012 = vld [vmem:[%s2975 + $0x1e0] sm:$0xff]
  %v3013 = vld [vmem:[%s2975 + $0x1e8] sm:$0xff]
  %v3014 = vld [vmem:[%s2975 + $0x1f8] sm:$0xff]
  %v3015 = vld [vmem:[%s2975 + $0x200] sm:$0xff]
  %v3016 = vld [vmem:[%s2975 + $0x210] sm:$0xff]
  %v3017 = vld [vmem:[%s2975 + $0x218] sm:$0xff]
  %v3018 = vld [vmem:[%s2975 + $0x228] sm:$0xff]
  %v3019 = vld [vmem:[%s2975 + $0x230] sm:$0xff]
  %v3020 = vld [vmem:[%s2975 + $0x240] sm:$0xff]
  %v3021 = vld [vmem:[%s2975 + $0x248] sm:$0xff]
  %v3022 = vld [vmem:[%s2975 + $0x258] sm:$0xff]
  %v3023 = vld [vmem:[%s2975 + $0x260] sm:$0xff]
  %v3024 = vld [vmem:[%s2975 + $0x270] sm:$0xff]
  %v3025 = vld [vmem:[%s2975 + $0x278] sm:$0xff]
  %v3026 = vld [vmem:[%s2975 + $0x288] sm:$0xff]
  %v3027 = vld [vmem:[%s2975 + $0x290] sm:$0xff]
  %v3028 = vld [vmem:[%s2975 + $0x2a0] sm:$0xff]
  %v3029 = vld [vmem:[%s2975 + $0x2a8] sm:$0xff]
  %v3030 = vld [vmem:[%s2975 + $0x2b8] sm:$0xff]
  %v3031 = vld [vmem:[%s2975 + $0x2c0] sm:$0xff]
  %v3032 = vld [vmem:[%s2975 + $0x2d0] sm:$0xff]
  %v3033 = vld [vmem:[%s2975 + $0x2d8] sm:$0xff]
  %v3034 = vld [vmem:[%s2975 + $0x2e8] sm:$0xff]
  %v3035 = vld [vmem:[%s2975 + $0x2f0] sm:$0xff]
  %v3036 = vld [vmem:[%s2975 + $0x300] sm:$0xff]
  %v3037 = vld [vmem:[%s2975 + $0x308] sm:$0xff]
  %v3038 = vld [vmem:[%s2975 + $0x318] sm:$0xff]
  %v3039 = vld [vmem:[%s2975 + $0x320] sm:$0xff]
  %v3040 = vpack.c.bf16 %v2977, %v2976
  %v3041 = vpack.c.bf16 %v2979, %v2978
  %v3042 = vpack.c.bf16 %v2981, %v2980
  %v3043 = vpack.c.bf16 %v2983, %v2982
  %v3044 = vpack.c.bf16 %v2985, %v2984
  %v3045 = vpack.c.bf16 %v2987, %v2986
  %v3046 = vpack.c.bf16 %v2989, %v2988
  %v3047 = vpack.c.bf16 %v2991, %v2990
  %v3048 = vpack.c.bf16 %v2993, %v2992
  %v3049 = vpack.c.bf16 %v2995, %v2994
  %v3050 = vpack.c.bf16 %v2997, %v2996
  %v3051 = vpack.c.bf16 %v2999, %v2998
  %v3052 = vpack.c.bf16 %v3001, %v3000
  %v3053 = vpack.c.bf16 %v3003, %v3002
  %v3054 = vpack.c.bf16 %v3005, %v3004
  %v3055 = vpack.c.bf16 %v3007, %v3006
  %v3056 = vpack.c.bf16 %v3009, %v3008
  %v3057 = vpack.c.bf16 %v3011, %v3010
  %v3058 = vpack.c.bf16 %v3013, %v3012
  %v3059 = vpack.c.bf16 %v3015, %v3014
  %v3060 = vpack.c.bf16 %v3017, %v3016
  %v3061 = vpack.c.bf16 %v3019, %v3018
  %v3062 = vpack.c.bf16 %v3021, %v3020
  %v3063 = vpack.c.bf16 %v3023, %v3022
  %v3064 = vpack.c.bf16 %v3025, %v3024
  %v3065 = vpack.c.bf16 %v3027, %v3026
  %v3066 = vpack.c.bf16 %v3029, %v3028
  %v3067 = vpack.c.bf16 %v3031, %v3030
  %v3068 = vpack.c.bf16 %v3033, %v3032
  %v3069 = vpack.c.bf16 %v3035, %v3034
  %v3070 = vpack.c.bf16 %v3037, %v3036
  %v3071 = vpack.c.bf16 %v3039, %v3038
  %s3072 = scalar_lea.vmem %s3, 24
  %v3073 = vld [vmem:[%s3072] sm:$0xf]
  %v3075 = vsel %vm20, %v3040, 0
  %v3078 = vsel %vm20, %v3041, 0
  %v3081 = vsel %vm20, %v3042, 0
  %v3084 = vsel %vm20, %v3043, 0
  %v3087 = vsel %vm20, %v3044, 0
  %v3090 = vsel %vm20, %v3045, 0
  %v3093 = vsel %vm20, %v3046, 0
  %v3096 = vsel %vm20, %v3047, 0
  %v3099 = vsel %vm20, %v3048, 0
  %v3102 = vsel %vm20, %v3049, 0
  %v3105 = vsel %vm20, %v3050, 0
  %v3108 = vsel %vm20, %v3051, 0
  %v3111 = vsel %vm20, %v3052, 0
  %v3114 = vsel %vm20, %v3053, 0
  %v3117 = vsel %vm20, %v3054, 0
  %v3120 = vsel %vm20, %v3055, 0
  %v3123 = vsel %vm20, %v3056, 0
  %v3126 = vsel %vm20, %v3057, 0
  %v3129 = vsel %vm20, %v3058, 0
  %v3132 = vsel %vm20, %v3059, 0
  %v3135 = vsel %vm20, %v3060, 0
  %v3138 = vsel %vm20, %v3061, 0
  %v3141 = vsel %vm20, %v3062, 0
  %v3144 = vsel %vm20, %v3063, 0
  %v3147 = vsel %vm20, %v3064, 0
  %v3150 = vsel %vm20, %v3065, 0
  %v3153 = vsel %vm20, %v3066, 0
  %v3156 = vsel %vm20, %v3067, 0
  %v3159 = vsel %vm20, %v3068, 0
  %v3162 = vsel %vm20, %v3069, 0
  %v3165 = vsel %vm20, %v3070, 0
  %v3168 = vsel %vm20, %v3071, 0
  %v3171 = vsel %vm814, %v3073, 0
  %3173 = vmatpush.bf16.msra.mxu0 0
  %3174 = vmatpush.bf16.msra.mxu0 0
  %3175 = vmatpush.bf16.msra.mxu0 0
  %3176 = vmatpush.bf16.msra.mxu0 0
  %3177 = vmatpush.bf16.msra.mxu0 0
  %3178 = vmatpush.bf16.msra.mxu0 0
  %3179 = vmatpush.bf16.msra.mxu0 0
  %3180 = vmatpush.bf16.msra.mxu0 %v3171
  %3181 = vmatmul.bf16.gmra.mxu0 %v3075
  %v3182 = vpop.f32.mrf.mxu0
  %v3183 = vadd.f32 0.0, %v3182
  %v3184 = vpop.f32.mrf.mxu0
  %v3185 = vadd.f32 0.0, %v3184
  %3186 = vmatmul.bf16.gmra.mxu0 %v3078
  %v3187 = vpop.f32.mrf.mxu0
  %v3188 = vadd.f32 0.0, %v3187
  %v3189 = vpop.f32.mrf.mxu0
  %v3190 = vadd.f32 0.0, %v3189
  %3191 = vmatmul.bf16.gmra.mxu0 %v3081
  %v3192 = vpop.f32.mrf.mxu0
  %v3193 = vadd.f32 0.0, %v3192
  %v3194 = vpop.f32.mrf.mxu0
  %v3195 = vadd.f32 0.0, %v3194
  %3196 = vmatmul.bf16.gmra.mxu0 %v3084
  %v3197 = vpop.f32.mrf.mxu0
  %v3198 = vadd.f32 0.0, %v3197
  %v3199 = vpop.f32.mrf.mxu0
  %v3200 = vadd.f32 0.0, %v3199
  %3201 = vmatmul.bf16.gmra.mxu0 %v3087
  %v3202 = vpop.f32.mrf.mxu0
  %v3203 = vadd.f32 0.0, %v3202
  %v3204 = vpop.f32.mrf.mxu0
  %v3205 = vadd.f32 0.0, %v3204
  %3206 = vmatmul.bf16.gmra.mxu0 %v3090
  %v3207 = vpop.f32.mrf.mxu0
  %v3208 = vadd.f32 0.0, %v3207
  %v3209 = vpop.f32.mrf.mxu0
  %v3210 = vadd.f32 0.0, %v3209
  %3211 = vmatmul.bf16.gmra.mxu0 %v3093
  %v3212 = vpop.f32.mrf.mxu0
  %v3213 = vadd.f32 0.0, %v3212
  %v3214 = vpop.f32.mrf.mxu0
  %v3215 = vadd.f32 0.0, %v3214
  %3216 = vmatmul.bf16.gmra.mxu0 %v3096
  %v3217 = vpop.f32.mrf.mxu0
  %v3218 = vadd.f32 0.0, %v3217
  %v3219 = vpop.f32.mrf.mxu0
  %v3220 = vadd.f32 0.0, %v3219
  %3221 = vmatmul.bf16.gmra.mxu0 %v3099
  %v3222 = vpop.f32.mrf.mxu0
  %v3223 = vadd.f32 0.0, %v3222
  %v3224 = vpop.f32.mrf.mxu0
  %v3225 = vadd.f32 0.0, %v3224
  %3226 = vmatmul.bf16.gmra.mxu0 %v3102
  %v3227 = vpop.f32.mrf.mxu0
  %v3228 = vadd.f32 0.0, %v3227
  %v3229 = vpop.f32.mrf.mxu0
  %v3230 = vadd.f32 0.0, %v3229
  %3231 = vmatmul.bf16.gmra.mxu0 %v3105
  %v3232 = vpop.f32.mrf.mxu0
  %v3233 = vadd.f32 0.0, %v3232
  %v3234 = vpop.f32.mrf.mxu0
  %v3235 = vadd.f32 0.0, %v3234
  %3236 = vmatmul.bf16.gmra.mxu0 %v3108
  %v3237 = vpop.f32.mrf.mxu0
  %v3238 = vadd.f32 0.0, %v3237
  %v3239 = vpop.f32.mrf.mxu0
  %v3240 = vadd.f32 0.0, %v3239
  %3241 = vmatmul.bf16.gmra.mxu0 %v3111
  %v3242 = vpop.f32.mrf.mxu0
  %v3243 = vadd.f32 0.0, %v3242
  %v3244 = vpop.f32.mrf.mxu0
  %v3245 = vadd.f32 0.0, %v3244
  %3246 = vmatmul.bf16.gmra.mxu0 %v3114
  %v3247 = vpop.f32.mrf.mxu0
  %v3248 = vadd.f32 0.0, %v3247
  %v3249 = vpop.f32.mrf.mxu0
  %v3250 = vadd.f32 0.0, %v3249
  %3251 = vmatmul.bf16.gmra.mxu0 %v3117
  %v3252 = vpop.f32.mrf.mxu0
  %v3253 = vadd.f32 0.0, %v3252
  %v3254 = vpop.f32.mrf.mxu0
  %v3255 = vadd.f32 0.0, %v3254
  %3256 = vmatmul.bf16.gmra.mxu0 %v3120
  %v3257 = vpop.f32.mrf.mxu0
  %v3258 = vadd.f32 0.0, %v3257
  %v3259 = vpop.f32.mrf.mxu0
  %v3260 = vadd.f32 0.0, %v3259
  %3261 = vmatmul.bf16.gmra.mxu0 %v3123
  %v3262 = vpop.f32.mrf.mxu0
  %v3263 = vadd.f32 0.0, %v3262
  %v3264 = vpop.f32.mrf.mxu0
  %v3265 = vadd.f32 0.0, %v3264
  %3266 = vmatmul.bf16.gmra.mxu0 %v3126
  %v3267 = vpop.f32.mrf.mxu0
  %v3268 = vadd.f32 0.0, %v3267
  %v3269 = vpop.f32.mrf.mxu0
  %v3270 = vadd.f32 0.0, %v3269
  %3271 = vmatmul.bf16.gmra.mxu0 %v3129
  %v3272 = vpop.f32.mrf.mxu0
  %v3273 = vadd.f32 0.0, %v3272
  %v3274 = vpop.f32.mrf.mxu0
  %v3275 = vadd.f32 0.0, %v3274
  %3276 = vmatmul.bf16.gmra.mxu0 %v3132
  %v3277 = vpop.f32.mrf.mxu0
  %v3278 = vadd.f32 0.0, %v3277
  %v3279 = vpop.f32.mrf.mxu0
  %v3280 = vadd.f32 0.0, %v3279
  %3281 = vmatmul.bf16.gmra.mxu0 %v3135
  %v3282 = vpop.f32.mrf.mxu0
  %v3283 = vadd.f32 0.0, %v3282
  %v3284 = vpop.f32.mrf.mxu0
  %v3285 = vadd.f32 0.0, %v3284
  %3286 = vmatmul.bf16.gmra.mxu0 %v3138
  %v3287 = vpop.f32.mrf.mxu0
  %v3288 = vadd.f32 0.0, %v3287
  %v3289 = vpop.f32.mrf.mxu0
  %v3290 = vadd.f32 0.0, %v3289
  %3291 = vmatmul.bf16.gmra.mxu0 %v3141
  %v3292 = vpop.f32.mrf.mxu0
  %v3293 = vadd.f32 0.0, %v3292
  %v3294 = vpop.f32.mrf.mxu0
  %v3295 = vadd.f32 0.0, %v3294
  %3296 = vmatmul.bf16.gmra.mxu0 %v3144
  %v3297 = vpop.f32.mrf.mxu0
  %v3298 = vadd.f32 0.0, %v3297
  %v3299 = vpop.f32.mrf.mxu0
  %v3300 = vadd.f32 0.0, %v3299
  %3301 = vmatmul.bf16.gmra.mxu0 %v3147
  %v3302 = vpop.f32.mrf.mxu0
  %v3303 = vadd.f32 0.0, %v3302
  %v3304 = vpop.f32.mrf.mxu0
  %v3305 = vadd.f32 0.0, %v3304
  %3306 = vmatmul.bf16.gmra.mxu0 %v3150
  %v3307 = vpop.f32.mrf.mxu0
  %v3308 = vadd.f32 0.0, %v3307
  %v3309 = vpop.f32.mrf.mxu0
  %v3310 = vadd.f32 0.0, %v3309
  %3311 = vmatmul.bf16.gmra.mxu0 %v3153
  %v3312 = vpop.f32.mrf.mxu0
  %v3313 = vadd.f32 0.0, %v3312
  %v3314 = vpop.f32.mrf.mxu0
  %v3315 = vadd.f32 0.0, %v3314
  %3316 = vmatmul.bf16.gmra.mxu0 %v3156
  %v3317 = vpop.f32.mrf.mxu0
  %v3318 = vadd.f32 0.0, %v3317
  %v3319 = vpop.f32.mrf.mxu0
  %v3320 = vadd.f32 0.0, %v3319
  %3321 = vmatmul.bf16.gmra.mxu0 %v3159
  %v3322 = vpop.f32.mrf.mxu0
  %v3323 = vadd.f32 0.0, %v3322
  %v3324 = vpop.f32.mrf.mxu0
  %v3325 = vadd.f32 0.0, %v3324
  %3326 = vmatmul.bf16.gmra.mxu0 %v3162
  %v3327 = vpop.f32.mrf.mxu0
  %v3328 = vadd.f32 0.0, %v3327
  %v3329 = vpop.f32.mrf.mxu0
  %v3330 = vadd.f32 0.0, %v3329
  %3331 = vmatmul.bf16.gmra.mxu0 %v3165
  %v3332 = vpop.f32.mrf.mxu0
  %v3333 = vadd.f32 0.0, %v3332
  %v3334 = vpop.f32.mrf.mxu0
  %v3335 = vadd.f32 0.0, %v3334
  %3336 = vmatmul.bf16.gmra.mxu0 %v3168
  %v3337 = vpop.f32.mrf.mxu0
  %v3338 = vadd.f32 0.0, %v3337
  %v3339 = vpop.f32.mrf.mxu0
  %v3340 = vadd.f32 0.0, %v3339
  %3341 = vdwg.mxu0
  %v3342 = vadd.f32 %v2911, %v3183
  %v3343 = vadd.f32 %v2912, %v3185
  %v3344 = vadd.f32 %v2913, %v3188
  %v3345 = vadd.f32 %v2914, %v3190
  %v3346 = vadd.f32 %v2915, %v3193
  %v3347 = vadd.f32 %v2916, %v3195
  %v3348 = vadd.f32 %v2917, %v3198
  %v3349 = vadd.f32 %v2918, %v3200
  %v3350 = vadd.f32 %v2919, %v3203
  %v3351 = vadd.f32 %v2920, %v3205
  %v3352 = vadd.f32 %v2921, %v3208
  %v3353 = vadd.f32 %v2922, %v3210
  %v3354 = vadd.f32 %v2923, %v3213
  %v3355 = vadd.f32 %v2924, %v3215
  %v3356 = vadd.f32 %v2925, %v3218
  %v3357 = vadd.f32 %v2926, %v3220
  %v3358 = vadd.f32 %v2927, %v3223
  %v3359 = vadd.f32 %v2928, %v3225
  %v3360 = vadd.f32 %v2929, %v3228
  %v3361 = vadd.f32 %v2930, %v3230
  %v3362 = vadd.f32 %v2931, %v3233
  %v3363 = vadd.f32 %v2932, %v3235
  %v3364 = vadd.f32 %v2933, %v3238
  %v3365 = vadd.f32 %v2934, %v3240
  %v3366 = vadd.f32 %v2935, %v3243
  %v3367 = vadd.f32 %v2936, %v3245
  %v3368 = vadd.f32 %v2937, %v3248
  %v3369 = vadd.f32 %v2938, %v3250
  %v3370 = vadd.f32 %v2939, %v3253
  %v3371 = vadd.f32 %v2940, %v3255
  %v3372 = vadd.f32 %v2941, %v3258
  %v3373 = vadd.f32 %v2942, %v3260
  %v3374 = vadd.f32 %v2943, %v3263
  %v3375 = vadd.f32 %v2944, %v3265
  %v3376 = vadd.f32 %v2945, %v3268
  %v3377 = vadd.f32 %v2946, %v3270
  %v3378 = vadd.f32 %v2947, %v3273
  %v3379 = vadd.f32 %v2948, %v3275
  %v3380 = vadd.f32 %v2949, %v3278
  %v3381 = vadd.f32 %v2950, %v3280
  %v3382 = vadd.f32 %v2951, %v3283
  %v3383 = vadd.f32 %v2952, %v3285
  %v3384 = vadd.f32 %v2953, %v3288
  %v3385 = vadd.f32 %v2954, %v3290
  %v3386 = vadd.f32 %v2955, %v3293
  %v3387 = vadd.f32 %v2956, %v3295
  %v3388 = vadd.f32 %v2957, %v3298
  %v3389 = vadd.f32 %v2958, %v3300
  %v3390 = vadd.f32 %v2959, %v3303
  %v3391 = vadd.f32 %v2960, %v3305
  %v3392 = vadd.f32 %v2961, %v3308
  %v3393 = vadd.f32 %v2962, %v3310
  %v3394 = vadd.f32 %v2963, %v3313
  %v3395 = vadd.f32 %v2964, %v3315
  %v3396 = vadd.f32 %v2965, %v3318
  %v3397 = vadd.f32 %v2966, %v3320
  %v3398 = vadd.f32 %v2967, %v3323
  %v3399 = vadd.f32 %v2968, %v3325
  %v3400 = vadd.f32 %v2969, %v3328
  %v3401 = vadd.f32 %v2970, %v3330
  %v3402 = vadd.f32 %v2971, %v3333
  %v3403 = vadd.f32 %v2972, %v3335
  %v3404 = vadd.f32 %v2973, %v3338
  %v3405 = vadd.f32 %v2974, %v3340
  %v3406 = vld [vmem:[%s2975 + $0x1] sm:$0xff]
  %v3407 = vld [vmem:[%s2975 + $0x9] sm:$0xff]
  %v3408 = vld [vmem:[%s2975 + $0x19] sm:$0xff]
  %v3409 = vld [vmem:[%s2975 + $0x21] sm:$0xff]
  %v3410 = vld [vmem:[%s2975 + $0x31] sm:$0xff]
  %v3411 = vld [vmem:[%s2975 + $0x39] sm:$0xff]
  %v3412 = vld [vmem:[%s2975 + $0x49] sm:$0xff]
  %v3413 = vld [vmem:[%s2975 + $0x51] sm:$0xff]
  %v3414 = vld [vmem:[%s2975 + $0x61] sm:$0xff]
  %v3415 = vld [vmem:[%s2975 + $0x69] sm:$0xff]
  %v3416 = vld [vmem:[%s2975 + $0x79] sm:$0xff]
  %v3417 = vld [vmem:[%s2975 + $0x81] sm:$0xff]
  %v3418 = vld [vmem:[%s2975 + $0x91] sm:$0xff]
  %v3419 = vld [vmem:[%s2975 + $0x99] sm:$0xff]
  %v3420 = vld [vmem:[%s2975 + $0xa9] sm:$0xff]
  %v3421 = vld [vmem:[%s2975 + $0xb1] sm:$0xff]
  %v3422 = vld [vmem:[%s2975 + $0xc1] sm:$0xff]
  %v3423 = vld [vmem:[%s2975 + $0xc9] sm:$0xff]
  %v3424 = vld [vmem:[%s2975 + $0xd9] sm:$0xff]
  %v3425 = vld [vmem:[%s2975 + $0xe1] sm:$0xff]
  %v3426 = vld [vmem:[%s2975 + $0xf1] sm:$0xff]
  %v3427 = vld [vmem:[%s2975 + $0xf9] sm:$0xff]
  %v3428 = vld [vmem:[%s2975 + $0x109] sm:$0xff]
  %v3429 = vld [vmem:[%s2975 + $0x111] sm:$0xff]
  %v3430 = vld [vmem:[%s2975 + $0x121] sm:$0xff]
  %v3431 = vld [vmem:[%s2975 + $0x129] sm:$0xff]
  %v3432 = vld [vmem:[%s2975 + $0x139] sm:$0xff]
  %v3433 = vld [vmem:[%s2975 + $0x141] sm:$0xff]
  %v3434 = vld [vmem:[%s2975 + $0x151] sm:$0xff]
  %v3435 = vld [vmem:[%s2975 + $0x159] sm:$0xff]
  %v3436 = vld [vmem:[%s2975 + $0x169] sm:$0xff]
  %v3437 = vld [vmem:[%s2975 + $0x171] sm:$0xff]
  %v3438 = vld [vmem:[%s2975 + $0x1b1] sm:$0xff]
  %v3439 = vld [vmem:[%s2975 + $0x1b9] sm:$0xff]
  %v3440 = vld [vmem:[%s2975 + $0x1c9] sm:$0xff]
  %v3441 = vld [vmem:[%s2975 + $0x1d1] sm:$0xff]
  %v3442 = vld [vmem:[%s2975 + $0x1e1] sm:$0xff]
  %v3443 = vld [vmem:[%s2975 + $0x1e9] sm:$0xff]
  %v3444 = vld [vmem:[%s2975 + $0x1f9] sm:$0xff]
  %v3445 = vld [vmem:[%s2975 + $0x201] sm:$0xff]
  %v3446 = vld [vmem:[%s2975 + $0x211] sm:$0xff]
  %v3447 = vld [vmem:[%s2975 + $0x219] sm:$0xff]
  %v3448 = vld [vmem:[%s2975 + $0x229] sm:$0xff]
  %v3449 = vld [vmem:[%s2975 + $0x231] sm:$0xff]
  %v3450 = vld [vmem:[%s2975 + $0x241] sm:$0xff]
  %v3451 = vld [vmem:[%s2975 + $0x249] sm:$0xff]
  %v3452 = vld [vmem:[%s2975 + $0x259] sm:$0xff]
  %v3453 = vld [vmem:[%s2975 + $0x261] sm:$0xff]
  %v3454 = vld [vmem:[%s2975 + $0x271] sm:$0xff]
  %v3455 = vld [vmem:[%s2975 + $0x279] sm:$0xff]
  %v3456 = vld [vmem:[%s2975 + $0x289] sm:$0xff]
  %v3457 = vld [vmem:[%s2975 + $0x291] sm:$0xff]
  %v3458 = vld [vmem:[%s2975 + $0x2a1] sm:$0xff]
  %v3459 = vld [vmem:[%s2975 + $0x2a9] sm:$0xff]
  %v3460 = vld [vmem:[%s2975 + $0x2b9] sm:$0xff]
  %v3461 = vld [vmem:[%s2975 + $0x2c1] sm:$0xff]
  %v3462 = vld [vmem:[%s2975 + $0x2d1] sm:$0xff]
  %v3463 = vld [vmem:[%s2975 + $0x2d9] sm:$0xff]
  %v3464 = vld [vmem:[%s2975 + $0x2e9] sm:$0xff]
  %v3465 = vld [vmem:[%s2975 + $0x2f1] sm:$0xff]
  %v3466 = vld [vmem:[%s2975 + $0x301] sm:$0xff]
  %v3467 = vld [vmem:[%s2975 + $0x309] sm:$0xff]
  %v3468 = vld [vmem:[%s2975 + $0x319] sm:$0xff]
  %v3469 = vld [vmem:[%s2975 + $0x321] sm:$0xff]
  %v3470 = vpack.c.bf16 %v3407, %v3406
  %v3471 = vpack.c.bf16 %v3409, %v3408
  %v3472 = vpack.c.bf16 %v3411, %v3410
  %v3473 = vpack.c.bf16 %v3413, %v3412
  %v3474 = vpack.c.bf16 %v3415, %v3414
  %v3475 = vpack.c.bf16 %v3417, %v3416
  %v3476 = vpack.c.bf16 %v3419, %v3418
  %v3477 = vpack.c.bf16 %v3421, %v3420
  %v3478 = vpack.c.bf16 %v3423, %v3422
  %v3479 = vpack.c.bf16 %v3425, %v3424
  %v3480 = vpack.c.bf16 %v3427, %v3426
  %v3481 = vpack.c.bf16 %v3429, %v3428
  %v3482 = vpack.c.bf16 %v3431, %v3430
  %v3483 = vpack.c.bf16 %v3433, %v3432
  %v3484 = vpack.c.bf16 %v3435, %v3434
  %v3485 = vpack.c.bf16 %v3437, %v3436
  %v3486 = vpack.c.bf16 %v3439, %v3438
  %v3487 = vpack.c.bf16 %v3441, %v3440
  %v3488 = vpack.c.bf16 %v3443, %v3442
  %v3489 = vpack.c.bf16 %v3445, %v3444
  %v3490 = vpack.c.bf16 %v3447, %v3446
  %v3491 = vpack.c.bf16 %v3449, %v3448
  %v3492 = vpack.c.bf16 %v3451, %v3450
  %v3493 = vpack.c.bf16 %v3453, %v3452
  %v3494 = vpack.c.bf16 %v3455, %v3454
  %v3495 = vpack.c.bf16 %v3457, %v3456
  %v3496 = vpack.c.bf16 %v3459, %v3458
  %v3497 = vpack.c.bf16 %v3461, %v3460
  %v3498 = vpack.c.bf16 %v3463, %v3462
  %v3499 = vpack.c.bf16 %v3465, %v3464
  %v3500 = vpack.c.bf16 %v3467, %v3466
  %v3501 = vpack.c.bf16 %v3469, %v3468
  %s3502 = scalar_lea.vmem %s3, 28
  %v3503 = vld [vmem:[%s3502] sm:$0xf]
  %v3505 = vsel %vm20, %v3470, 0
  %v3508 = vsel %vm20, %v3471, 0
  %v3511 = vsel %vm20, %v3472, 0
  %v3514 = vsel %vm20, %v3473, 0
  %v3517 = vsel %vm20, %v3474, 0
  %v3520 = vsel %vm20, %v3475, 0
  %v3523 = vsel %vm20, %v3476, 0
  %v3526 = vsel %vm20, %v3477, 0
  %v3529 = vsel %vm20, %v3478, 0
  %v3532 = vsel %vm20, %v3479, 0
  %v3535 = vsel %vm20, %v3480, 0
  %v3538 = vsel %vm20, %v3481, 0
  %v3541 = vsel %vm20, %v3482, 0
  %v3544 = vsel %vm20, %v3483, 0
  %v3547 = vsel %vm20, %v3484, 0
  %v3550 = vsel %vm20, %v3485, 0
  %v3553 = vsel %vm20, %v3486, 0
  %v3556 = vsel %vm20, %v3487, 0
  %v3559 = vsel %vm20, %v3488, 0
  %v3562 = vsel %vm20, %v3489, 0
  %v3565 = vsel %vm20, %v3490, 0
  %v3568 = vsel %vm20, %v3491, 0
  %v3571 = vsel %vm20, %v3492, 0
  %v3574 = vsel %vm20, %v3493, 0
  %v3577 = vsel %vm20, %v3494, 0
  %v3580 = vsel %vm20, %v3495, 0
  %v3583 = vsel %vm20, %v3496, 0
  %v3586 = vsel %vm20, %v3497, 0
  %v3589 = vsel %vm20, %v3498, 0
  %v3592 = vsel %vm20, %v3499, 0
  %v3595 = vsel %vm20, %v3500, 0
  %v3598 = vsel %vm20, %v3501, 0
  %v3601 = vsel %vm814, %v3503, 0
  %3603 = vmatpush.bf16.msra.mxu0 0
  %3604 = vmatpush.bf16.msra.mxu0 0
  %3605 = vmatpush.bf16.msra.mxu0 0
  %3606 = vmatpush.bf16.msra.mxu0 0
  %3607 = vmatpush.bf16.msra.mxu0 0
  %3608 = vmatpush.bf16.msra.mxu0 0
  %3609 = vmatpush.bf16.msra.mxu0 0
  %3610 = vmatpush.bf16.msra.mxu0 %v3601
  %3611 = vmatmul.bf16.gmra.mxu0 %v3505
  %v3612 = vpop.f32.mrf.mxu0
  %v3613 = vadd.f32 0.0, %v3612
  %v3614 = vpop.f32.mrf.mxu0
  %v3615 = vadd.f32 0.0, %v3614
  %3616 = vmatmul.bf16.gmra.mxu0 %v3508
  %v3617 = vpop.f32.mrf.mxu0
  %v3618 = vadd.f32 0.0, %v3617
  %v3619 = vpop.f32.mrf.mxu0
  %v3620 = vadd.f32 0.0, %v3619
  %3621 = vmatmul.bf16.gmra.mxu0 %v3511
  %v3622 = vpop.f32.mrf.mxu0
  %v3623 = vadd.f32 0.0, %v3622
  %v3624 = vpop.f32.mrf.mxu0
  %v3625 = vadd.f32 0.0, %v3624
  %3626 = vmatmul.bf16.gmra.mxu0 %v3514
  %v3627 = vpop.f32.mrf.mxu0
  %v3628 = vadd.f32 0.0, %v3627
  %v3629 = vpop.f32.mrf.mxu0
  %v3630 = vadd.f32 0.0, %v3629
  %3631 = vmatmul.bf16.gmra.mxu0 %v3517
  %v3632 = vpop.f32.mrf.mxu0
  %v3633 = vadd.f32 0.0, %v3632
  %v3634 = vpop.f32.mrf.mxu0
  %v3635 = vadd.f32 0.0, %v3634
  %3636 = vmatmul.bf16.gmra.mxu0 %v3520
  %v3637 = vpop.f32.mrf.mxu0
  %v3638 = vadd.f32 0.0, %v3637
  %v3639 = vpop.f32.mrf.mxu0
  %v3640 = vadd.f32 0.0, %v3639
  %3641 = vmatmul.bf16.gmra.mxu0 %v3523
  %v3642 = vpop.f32.mrf.mxu0
  %v3643 = vadd.f32 0.0, %v3642
  %v3644 = vpop.f32.mrf.mxu0
  %v3645 = vadd.f32 0.0, %v3644
  %3646 = vmatmul.bf16.gmra.mxu0 %v3526
  %v3647 = vpop.f32.mrf.mxu0
  %v3648 = vadd.f32 0.0, %v3647
  %v3649 = vpop.f32.mrf.mxu0
  %v3650 = vadd.f32 0.0, %v3649
  %3651 = vmatmul.bf16.gmra.mxu0 %v3529
  %v3652 = vpop.f32.mrf.mxu0
  %v3653 = vadd.f32 0.0, %v3652
  %v3654 = vpop.f32.mrf.mxu0
  %v3655 = vadd.f32 0.0, %v3654
  %3656 = vmatmul.bf16.gmra.mxu0 %v3532
  %v3657 = vpop.f32.mrf.mxu0
  %v3658 = vadd.f32 0.0, %v3657
  %v3659 = vpop.f32.mrf.mxu0
  %v3660 = vadd.f32 0.0, %v3659
  %3661 = vmatmul.bf16.gmra.mxu0 %v3535
  %v3662 = vpop.f32.mrf.mxu0
  %v3663 = vadd.f32 0.0, %v3662
  %v3664 = vpop.f32.mrf.mxu0
  %v3665 = vadd.f32 0.0, %v3664
  %3666 = vmatmul.bf16.gmra.mxu0 %v3538
  %v3667 = vpop.f32.mrf.mxu0
  %v3668 = vadd.f32 0.0, %v3667
  %v3669 = vpop.f32.mrf.mxu0
  %v3670 = vadd.f32 0.0, %v3669
  %3671 = vmatmul.bf16.gmra.mxu0 %v3541
  %v3672 = vpop.f32.mrf.mxu0
  %v3673 = vadd.f32 0.0, %v3672
  %v3674 = vpop.f32.mrf.mxu0
  %v3675 = vadd.f32 0.0, %v3674
  %3676 = vmatmul.bf16.gmra.mxu0 %v3544
  %v3677 = vpop.f32.mrf.mxu0
  %v3678 = vadd.f32 0.0, %v3677
  %v3679 = vpop.f32.mrf.mxu0
  %v3680 = vadd.f32 0.0, %v3679
  %3681 = vmatmul.bf16.gmra.mxu0 %v3547
  %v3682 = vpop.f32.mrf.mxu0
  %v3683 = vadd.f32 0.0, %v3682
  %v3684 = vpop.f32.mrf.mxu0
  %v3685 = vadd.f32 0.0, %v3684
  %3686 = vmatmul.bf16.gmra.mxu0 %v3550
  %v3687 = vpop.f32.mrf.mxu0
  %v3688 = vadd.f32 0.0, %v3687
  %v3689 = vpop.f32.mrf.mxu0
  %v3690 = vadd.f32 0.0, %v3689
  %3691 = vmatmul.bf16.gmra.mxu0 %v3553
  %v3692 = vpop.f32.mrf.mxu0
  %v3693 = vadd.f32 0.0, %v3692
  %v3694 = vpop.f32.mrf.mxu0
  %v3695 = vadd.f32 0.0, %v3694
  %3696 = vmatmul.bf16.gmra.mxu0 %v3556
  %v3697 = vpop.f32.mrf.mxu0
  %v3698 = vadd.f32 0.0, %v3697
  %v3699 = vpop.f32.mrf.mxu0
  %v3700 = vadd.f32 0.0, %v3699
  %3701 = vmatmul.bf16.gmra.mxu0 %v3559
  %v3702 = vpop.f32.mrf.mxu0
  %v3703 = vadd.f32 0.0, %v3702
  %v3704 = vpop.f32.mrf.mxu0
  %v3705 = vadd.f32 0.0, %v3704
  %3706 = vmatmul.bf16.gmra.mxu0 %v3562
  %v3707 = vpop.f32.mrf.mxu0
  %v3708 = vadd.f32 0.0, %v3707
  %v3709 = vpop.f32.mrf.mxu0
  %v3710 = vadd.f32 0.0, %v3709
  %3711 = vmatmul.bf16.gmra.mxu0 %v3565
  %v3712 = vpop.f32.mrf.mxu0
  %v3713 = vadd.f32 0.0, %v3712
  %v3714 = vpop.f32.mrf.mxu0
  %v3715 = vadd.f32 0.0, %v3714
  %3716 = vmatmul.bf16.gmra.mxu0 %v3568
  %v3717 = vpop.f32.mrf.mxu0
  %v3718 = vadd.f32 0.0, %v3717
  %v3719 = vpop.f32.mrf.mxu0
  %v3720 = vadd.f32 0.0, %v3719
  %3721 = vmatmul.bf16.gmra.mxu0 %v3571
  %v3722 = vpop.f32.mrf.mxu0
  %v3723 = vadd.f32 0.0, %v3722
  %v3724 = vpop.f32.mrf.mxu0
  %v3725 = vadd.f32 0.0, %v3724
  %3726 = vmatmul.bf16.gmra.mxu0 %v3574
  %v3727 = vpop.f32.mrf.mxu0
  %v3728 = vadd.f32 0.0, %v3727
  %v3729 = vpop.f32.mrf.mxu0
  %v3730 = vadd.f32 0.0, %v3729
  %3731 = vmatmul.bf16.gmra.mxu0 %v3577
  %v3732 = vpop.f32.mrf.mxu0
  %v3733 = vadd.f32 0.0, %v3732
  %v3734 = vpop.f32.mrf.mxu0
  %v3735 = vadd.f32 0.0, %v3734
  %3736 = vmatmul.bf16.gmra.mxu0 %v3580
  %v3737 = vpop.f32.mrf.mxu0
  %v3738 = vadd.f32 0.0, %v3737
  %v3739 = vpop.f32.mrf.mxu0
  %v3740 = vadd.f32 0.0, %v3739
  %3741 = vmatmul.bf16.gmra.mxu0 %v3583
  %v3742 = vpop.f32.mrf.mxu0
  %v3743 = vadd.f32 0.0, %v3742
  %v3744 = vpop.f32.mrf.mxu0
  %v3745 = vadd.f32 0.0, %v3744
  %3746 = vmatmul.bf16.gmra.mxu0 %v3586
  %v3747 = vpop.f32.mrf.mxu0
  %v3748 = vadd.f32 0.0, %v3747
  %v3749 = vpop.f32.mrf.mxu0
  %v3750 = vadd.f32 0.0, %v3749
  %3751 = vmatmul.bf16.gmra.mxu0 %v3589
  %v3752 = vpop.f32.mrf.mxu0
  %v3753 = vadd.f32 0.0, %v3752
  %v3754 = vpop.f32.mrf.mxu0
  %v3755 = vadd.f32 0.0, %v3754
  %3756 = vmatmul.bf16.gmra.mxu0 %v3592
  %v3757 = vpop.f32.mrf.mxu0
  %v3758 = vadd.f32 0.0, %v3757
  %v3759 = vpop.f32.mrf.mxu0
  %v3760 = vadd.f32 0.0, %v3759
  %3761 = vmatmul.bf16.gmra.mxu0 %v3595
  %v3762 = vpop.f32.mrf.mxu0
  %v3763 = vadd.f32 0.0, %v3762
  %v3764 = vpop.f32.mrf.mxu0
  %v3765 = vadd.f32 0.0, %v3764
  %3766 = vmatmul.bf16.gmra.mxu0 %v3598
  %v3767 = vpop.f32.mrf.mxu0
  %v3768 = vadd.f32 0.0, %v3767
  %v3769 = vpop.f32.mrf.mxu0
  %v3770 = vadd.f32 0.0, %v3769
  %3771 = vdwg.mxu0
  %v3772 = vadd.f32 %v3342, %v3613
  %v3773 = vadd.f32 %v3343, %v3615
  %v3774 = vadd.f32 %v3344, %v3618
  %v3775 = vadd.f32 %v3345, %v3620
  %v3776 = vadd.f32 %v3346, %v3623
  %v3777 = vadd.f32 %v3347, %v3625
  %v3778 = vadd.f32 %v3348, %v3628
  %v3779 = vadd.f32 %v3349, %v3630
  %v3780 = vadd.f32 %v3350, %v3633
  %v3781 = vadd.f32 %v3351, %v3635
  %v3782 = vadd.f32 %v3352, %v3638
  %v3783 = vadd.f32 %v3353, %v3640
  %v3784 = vadd.f32 %v3354, %v3643
  %v3785 = vadd.f32 %v3355, %v3645
  %v3786 = vadd.f32 %v3356, %v3648
  %v3787 = vadd.f32 %v3357, %v3650
  %v3788 = vadd.f32 %v3358, %v3653
  %v3789 = vadd.f32 %v3359, %v3655
  %v3790 = vadd.f32 %v3360, %v3658
  %v3791 = vadd.f32 %v3361, %v3660
  %v3792 = vadd.f32 %v3362, %v3663
  %v3793 = vadd.f32 %v3363, %v3665
  %v3794 = vadd.f32 %v3364, %v3668
  %v3795 = vadd.f32 %v3365, %v3670
  %v3796 = vadd.f32 %v3366, %v3673
  %v3797 = vadd.f32 %v3367, %v3675
  %v3798 = vadd.f32 %v3368, %v3678
  %v3799 = vadd.f32 %v3369, %v3680
  %v3800 = vadd.f32 %v3370, %v3683
  %v3801 = vadd.f32 %v3371, %v3685
  %v3802 = vadd.f32 %v3372, %v3688
  %v3803 = vadd.f32 %v3373, %v3690
  %v3804 = vadd.f32 %v3374, %v3693
  %v3805 = vadd.f32 %v3375, %v3695
  %v3806 = vadd.f32 %v3376, %v3698
  %v3807 = vadd.f32 %v3377, %v3700
  %v3808 = vadd.f32 %v3378, %v3703
  %v3809 = vadd.f32 %v3379, %v3705
  %v3810 = vadd.f32 %v3380, %v3708
  %v3811 = vadd.f32 %v3381, %v3710
  %v3812 = vadd.f32 %v3382, %v3713
  %v3813 = vadd.f32 %v3383, %v3715
  %v3814 = vadd.f32 %v3384, %v3718
  %v3815 = vadd.f32 %v3385, %v3720
  %v3816 = vadd.f32 %v3386, %v3723
  %v3817 = vadd.f32 %v3387, %v3725
  %v3818 = vadd.f32 %v3388, %v3728
  %v3819 = vadd.f32 %v3389, %v3730
  %v3820 = vadd.f32 %v3390, %v3733
  %v3821 = vadd.f32 %v3391, %v3735
  %v3822 = vadd.f32 %v3392, %v3738
  %v3823 = vadd.f32 %v3393, %v3740
  %v3824 = vadd.f32 %v3394, %v3743
  %v3825 = vadd.f32 %v3395, %v3745
  %v3826 = vadd.f32 %v3396, %v3748
  %v3827 = vadd.f32 %v3397, %v3750
  %v3828 = vadd.f32 %v3398, %v3753
  %v3829 = vadd.f32 %v3399, %v3755
  %v3830 = vadd.f32 %v3400, %v3758
  %v3831 = vadd.f32 %v3401, %v3760
  %v3832 = vadd.f32 %v3402, %v3763
  %v3833 = vadd.f32 %v3403, %v3765
  %v3834 = vadd.f32 %v3404, %v3768
  %v3835 = vadd.f32 %v3405, %v3770
  %v3836 = vld [vmem:[%s2975 + $0x2] sm:$0xff]
  %v3837 = vld [vmem:[%s2975 + $0xa] sm:$0xff]
  %v3838 = vld [vmem:[%s2975 + $0x1a] sm:$0xff]
  %v3839 = vld [vmem:[%s2975 + $0x22] sm:$0xff]
  %v3840 = vld [vmem:[%s2975 + $0x32] sm:$0xff]
  %v3841 = vld [vmem:[%s2975 + $0x3a] sm:$0xff]
  %v3842 = vld [vmem:[%s2975 + $0x4a] sm:$0xff]
  %v3843 = vld [vmem:[%s2975 + $0x52] sm:$0xff]
  %v3844 = vld [vmem:[%s2975 + $0x62] sm:$0xff]
  %v3845 = vld [vmem:[%s2975 + $0x6a] sm:$0xff]
  %v3846 = vld [vmem:[%s2975 + $0x7a] sm:$0xff]
  %v3847 = vld [vmem:[%s2975 + $0x82] sm:$0xff]
  %v3848 = vld [vmem:[%s2975 + $0x92] sm:$0xff]
  %v3849 = vld [vmem:[%s2975 + $0x9a] sm:$0xff]
  %v3850 = vld [vmem:[%s2975 + $0xaa] sm:$0xff]
  %v3851 = vld [vmem:[%s2975 + $0xb2] sm:$0xff]
  %v3852 = vld [vmem:[%s2975 + $0xc2] sm:$0xff]
  %v3853 = vld [vmem:[%s2975 + $0xca] sm:$0xff]
  %v3854 = vld [vmem:[%s2975 + $0xda] sm:$0xff]
  %v3855 = vld [vmem:[%s2975 + $0xe2] sm:$0xff]
  %v3856 = vld [vmem:[%s2975 + $0xf2] sm:$0xff]
  %v3857 = vld [vmem:[%s2975 + $0xfa] sm:$0xff]
  %v3858 = vld [vmem:[%s2975 + $0x10a] sm:$0xff]
  %v3859 = vld [vmem:[%s2975 + $0x112] sm:$0xff]
  %v3860 = vld [vmem:[%s2975 + $0x122] sm:$0xff]
  %v3861 = vld [vmem:[%s2975 + $0x12a] sm:$0xff]
  %v3862 = vld [vmem:[%s2975 + $0x13a] sm:$0xff]
  %v3863 = vld [vmem:[%s2975 + $0x142] sm:$0xff]
  %v3864 = vld [vmem:[%s2975 + $0x152] sm:$0xff]
  %v3865 = vld [vmem:[%s2975 + $0x15a] sm:$0xff]
  %v3866 = vld [vmem:[%s2975 + $0x16a] sm:$0xff]
  %v3867 = vld [vmem:[%s2975 + $0x172] sm:$0xff]
  %v3868 = vld [vmem:[%s2975 + $0x1b2] sm:$0xff]
  %v3869 = vld [vmem:[%s2975 + $0x1ba] sm:$0xff]
  %v3870 = vld [vmem:[%s2975 + $0x1ca] sm:$0xff]
  %v3871 = vld [vmem:[%s2975 + $0x1d2] sm:$0xff]
  %v3872 = vld [vmem:[%s2975 + $0x1e2] sm:$0xff]
  %v3873 = vld [vmem:[%s2975 + $0x1ea] sm:$0xff]
  %v3874 = vld [vmem:[%s2975 + $0x1fa] sm:$0xff]
  %v3875 = vld [vmem:[%s2975 + $0x202] sm:$0xff]
  %v3876 = vld [vmem:[%s2975 + $0x212] sm:$0xff]
  %v3877 = vld [vmem:[%s2975 + $0x21a] sm:$0xff]
  %v3878 = vld [vmem:[%s2975 + $0x22a] sm:$0xff]
  %v3879 = vld [vmem:[%s2975 + $0x232] sm:$0xff]
  %v3880 = vld [vmem:[%s2975 + $0x242] sm:$0xff]
  %v3881 = vld [vmem:[%s2975 + $0x24a] sm:$0xff]
  %v3882 = vld [vmem:[%s2975 + $0x25a] sm:$0xff]
  %v3883 = vld [vmem:[%s2975 + $0x262] sm:$0xff]
  %v3884 = vld [vmem:[%s2975 + $0x272] sm:$0xff]
  %v3885 = vld [vmem:[%s2975 + $0x27a] sm:$0xff]
  %v3886 = vld [vmem:[%s2975 + $0x28a] sm:$0xff]
  %v3887 = vld [vmem:[%s2975 + $0x292] sm:$0xff]
  %v3888 = vld [vmem:[%s2975 + $0x2a2] sm:$0xff]
  %v3889 = vld [vmem:[%s2975 + $0x2aa] sm:$0xff]
  %v3890 = vld [vmem:[%s2975 + $0x2ba] sm:$0xff]
  %v3891 = vld [vmem:[%s2975 + $0x2c2] sm:$0xff]
  %v3892 = vld [vmem:[%s2975 + $0x2d2] sm:$0xff]
  %v3893 = vld [vmem:[%s2975 + $0x2da] sm:$0xff]
  %v3894 = vld [vmem:[%s2975 + $0x2ea] sm:$0xff]
  %v3895 = vld [vmem:[%s2975 + $0x2f2] sm:$0xff]
  %v3896 = vld [vmem:[%s2975 + $0x302] sm:$0xff]
  %v3897 = vld [vmem:[%s2975 + $0x30a] sm:$0xff]
  %v3898 = vld [vmem:[%s2975 + $0x31a] sm:$0xff]
  %v3899 = vld [vmem:[%s2975 + $0x322] sm:$0xff]
  %v3900 = vpack.c.bf16 %v3837, %v3836
  %v3901 = vpack.c.bf16 %v3839, %v3838
  %v3902 = vpack.c.bf16 %v3841, %v3840
  %v3903 = vpack.c.bf16 %v3843, %v3842
  %v3904 = vpack.c.bf16 %v3845, %v3844
  %v3905 = vpack.c.bf16 %v3847, %v3846
  %v3906 = vpack.c.bf16 %v3849, %v3848
  %v3907 = vpack.c.bf16 %v3851, %v3850
  %v3908 = vpack.c.bf16 %v3853, %v3852
  %v3909 = vpack.c.bf16 %v3855, %v3854
  %v3910 = vpack.c.bf16 %v3857, %v3856
  %v3911 = vpack.c.bf16 %v3859, %v3858
  %v3912 = vpack.c.bf16 %v3861, %v3860
  %v3913 = vpack.c.bf16 %v3863, %v3862
  %v3914 = vpack.c.bf16 %v3865, %v3864
  %v3915 = vpack.c.bf16 %v3867, %v3866
  %v3916 = vpack.c.bf16 %v3869, %v3868
  %v3917 = vpack.c.bf16 %v3871, %v3870
  %v3918 = vpack.c.bf16 %v3873, %v3872
  %v3919 = vpack.c.bf16 %v3875, %v3874
  %v3920 = vpack.c.bf16 %v3877, %v3876
  %v3921 = vpack.c.bf16 %v3879, %v3878
  %v3922 = vpack.c.bf16 %v3881, %v3880
  %v3923 = vpack.c.bf16 %v3883, %v3882
  %v3924 = vpack.c.bf16 %v3885, %v3884
  %v3925 = vpack.c.bf16 %v3887, %v3886
  %v3926 = vpack.c.bf16 %v3889, %v3888
  %v3927 = vpack.c.bf16 %v3891, %v3890
  %v3928 = vpack.c.bf16 %v3893, %v3892
  %v3929 = vpack.c.bf16 %v3895, %v3894
  %v3930 = vpack.c.bf16 %v3897, %v3896
  %v3931 = vpack.c.bf16 %v3899, %v3898
  %s3932 = scalar_lea.vmem %s3, 32
  %v3933 = vld [vmem:[%s3932] sm:$0xf]
  %v3935 = vsel %vm20, %v3900, 0
  %v3938 = vsel %vm20, %v3901, 0
  %v3941 = vsel %vm20, %v3902, 0
  %v3944 = vsel %vm20, %v3903, 0
  %v3947 = vsel %vm20, %v3904, 0
  %v3950 = vsel %vm20, %v3905, 0
  %v3953 = vsel %vm20, %v3906, 0
  %v3956 = vsel %vm20, %v3907, 0
  %v3959 = vsel %vm20, %v3908, 0
  %v3962 = vsel %vm20, %v3909, 0
  %v3965 = vsel %vm20, %v3910, 0
  %v3968 = vsel %vm20, %v3911, 0
  %v3971 = vsel %vm20, %v3912, 0
  %v3974 = vsel %vm20, %v3913, 0
  %v3977 = vsel %vm20, %v3914, 0
  %v3980 = vsel %vm20, %v3915, 0
  %v3983 = vsel %vm20, %v3916, 0
  %v3986 = vsel %vm20, %v3917, 0
  %v3989 = vsel %vm20, %v3918, 0
  %v3992 = vsel %vm20, %v3919, 0
  %v3995 = vsel %vm20, %v3920, 0
  %v3998 = vsel %vm20, %v3921, 0
  %v4001 = vsel %vm20, %v3922, 0
  %v4004 = vsel %vm20, %v3923, 0
  %v4007 = vsel %vm20, %v3924, 0
  %v4010 = vsel %vm20, %v3925, 0
  %v4013 = vsel %vm20, %v3926, 0
  %v4016 = vsel %vm20, %v3927, 0
  %v4019 = vsel %vm20, %v3928, 0
  %v4022 = vsel %vm20, %v3929, 0
  %v4025 = vsel %vm20, %v3930, 0
  %v4028 = vsel %vm20, %v3931, 0
  %v4031 = vsel %vm814, %v3933, 0
  %4033 = vmatpush.bf16.msra.mxu0 0
  %4034 = vmatpush.bf16.msra.mxu0 0
  %4035 = vmatpush.bf16.msra.mxu0 0
  %4036 = vmatpush.bf16.msra.mxu0 0
  %4037 = vmatpush.bf16.msra.mxu0 0
  %4038 = vmatpush.bf16.msra.mxu0 0
  %4039 = vmatpush.bf16.msra.mxu0 0
  %4040 = vmatpush.bf16.msra.mxu0 %v4031
  %4041 = vmatmul.bf16.gmra.mxu0 %v3935
  %v4042 = vpop.f32.mrf.mxu0
  %v4043 = vadd.f32 0.0, %v4042
  %v4044 = vpop.f32.mrf.mxu0
  %v4045 = vadd.f32 0.0, %v4044
  %4046 = vmatmul.bf16.gmra.mxu0 %v3938
  %v4047 = vpop.f32.mrf.mxu0
  %v4048 = vadd.f32 0.0, %v4047
  %v4049 = vpop.f32.mrf.mxu0
  %v4050 = vadd.f32 0.0, %v4049
  %4051 = vmatmul.bf16.gmra.mxu0 %v3941
  %v4052 = vpop.f32.mrf.mxu0
  %v4053 = vadd.f32 0.0, %v4052
  %v4054 = vpop.f32.mrf.mxu0
  %v4055 = vadd.f32 0.0, %v4054
  %4056 = vmatmul.bf16.gmra.mxu0 %v3944
  %v4057 = vpop.f32.mrf.mxu0
  %v4058 = vadd.f32 0.0, %v4057
  %v4059 = vpop.f32.mrf.mxu0
  %v4060 = vadd.f32 0.0, %v4059
  %4061 = vmatmul.bf16.gmra.mxu0 %v3947
  %v4062 = vpop.f32.mrf.mxu0
  %v4063 = vadd.f32 0.0, %v4062
  %v4064 = vpop.f32.mrf.mxu0
  %v4065 = vadd.f32 0.0, %v4064
  %4066 = vmatmul.bf16.gmra.mxu0 %v3950
  %v4067 = vpop.f32.mrf.mxu0
  %v4068 = vadd.f32 0.0, %v4067
  %v4069 = vpop.f32.mrf.mxu0
  %v4070 = vadd.f32 0.0, %v4069
  %4071 = vmatmul.bf16.gmra.mxu0 %v3953
  %v4072 = vpop.f32.mrf.mxu0
  %v4073 = vadd.f32 0.0, %v4072
  %v4074 = vpop.f32.mrf.mxu0
  %v4075 = vadd.f32 0.0, %v4074
  %4076 = vmatmul.bf16.gmra.mxu0 %v3956
  %v4077 = vpop.f32.mrf.mxu0
  %v4078 = vadd.f32 0.0, %v4077
  %v4079 = vpop.f32.mrf.mxu0
  %v4080 = vadd.f32 0.0, %v4079
  %4081 = vmatmul.bf16.gmra.mxu0 %v3959
  %v4082 = vpop.f32.mrf.mxu0
  %v4083 = vadd.f32 0.0, %v4082
  %v4084 = vpop.f32.mrf.mxu0
  %v4085 = vadd.f32 0.0, %v4084
  %4086 = vmatmul.bf16.gmra.mxu0 %v3962
  %v4087 = vpop.f32.mrf.mxu0
  %v4088 = vadd.f32 0.0, %v4087
  %v4089 = vpop.f32.mrf.mxu0
  %v4090 = vadd.f32 0.0, %v4089
  %4091 = vmatmul.bf16.gmra.mxu0 %v3965
  %v4092 = vpop.f32.mrf.mxu0
  %v4093 = vadd.f32 0.0, %v4092
  %v4094 = vpop.f32.mrf.mxu0
  %v4095 = vadd.f32 0.0, %v4094
  %4096 = vmatmul.bf16.gmra.mxu0 %v3968
  %v4097 = vpop.f32.mrf.mxu0
  %v4098 = vadd.f32 0.0, %v4097
  %v4099 = vpop.f32.mrf.mxu0
  %v4100 = vadd.f32 0.0, %v4099
  %4101 = vmatmul.bf16.gmra.mxu0 %v3971
  %v4102 = vpop.f32.mrf.mxu0
  %v4103 = vadd.f32 0.0, %v4102
  %v4104 = vpop.f32.mrf.mxu0
  %v4105 = vadd.f32 0.0, %v4104
  %4106 = vmatmul.bf16.gmra.mxu0 %v3974
  %v4107 = vpop.f32.mrf.mxu0
  %v4108 = vadd.f32 0.0, %v4107
  %v4109 = vpop.f32.mrf.mxu0
  %v4110 = vadd.f32 0.0, %v4109
  %4111 = vmatmul.bf16.gmra.mxu0 %v3977
  %v4112 = vpop.f32.mrf.mxu0
  %v4113 = vadd.f32 0.0, %v4112
  %v4114 = vpop.f32.mrf.mxu0
  %v4115 = vadd.f32 0.0, %v4114
  %4116 = vmatmul.bf16.gmra.mxu0 %v3980
  %v4117 = vpop.f32.mrf.mxu0
  %v4118 = vadd.f32 0.0, %v4117
  %v4119 = vpop.f32.mrf.mxu0
  %v4120 = vadd.f32 0.0, %v4119
  %4121 = vmatmul.bf16.gmra.mxu0 %v3983
  %v4122 = vpop.f32.mrf.mxu0
  %v4123 = vadd.f32 0.0, %v4122
  %v4124 = vpop.f32.mrf.mxu0
  %v4125 = vadd.f32 0.0, %v4124
  %4126 = vmatmul.bf16.gmra.mxu0 %v3986
  %v4127 = vpop.f32.mrf.mxu0
  %v4128 = vadd.f32 0.0, %v4127
  %v4129 = vpop.f32.mrf.mxu0
  %v4130 = vadd.f32 0.0, %v4129
  %4131 = vmatmul.bf16.gmra.mxu0 %v3989
  %v4132 = vpop.f32.mrf.mxu0
  %v4133 = vadd.f32 0.0, %v4132
  %v4134 = vpop.f32.mrf.mxu0
  %v4135 = vadd.f32 0.0, %v4134
  %4136 = vmatmul.bf16.gmra.mxu0 %v3992
  %v4137 = vpop.f32.mrf.mxu0
  %v4138 = vadd.f32 0.0, %v4137
  %v4139 = vpop.f32.mrf.mxu0
  %v4140 = vadd.f32 0.0, %v4139
  %4141 = vmatmul.bf16.gmra.mxu0 %v3995
  %v4142 = vpop.f32.mrf.mxu0
  %v4143 = vadd.f32 0.0, %v4142
  %v4144 = vpop.f32.mrf.mxu0
  %v4145 = vadd.f32 0.0, %v4144
  %4146 = vmatmul.bf16.gmra.mxu0 %v3998
  %v4147 = vpop.f32.mrf.mxu0
  %v4148 = vadd.f32 0.0, %v4147
  %v4149 = vpop.f32.mrf.mxu0
  %v4150 = vadd.f32 0.0, %v4149
  %4151 = vmatmul.bf16.gmra.mxu0 %v4001
  %v4152 = vpop.f32.mrf.mxu0
  %v4153 = vadd.f32 0.0, %v4152
  %v4154 = vpop.f32.mrf.mxu0
  %v4155 = vadd.f32 0.0, %v4154
  %4156 = vmatmul.bf16.gmra.mxu0 %v4004
  %v4157 = vpop.f32.mrf.mxu0
  %v4158 = vadd.f32 0.0, %v4157
  %v4159 = vpop.f32.mrf.mxu0
  %v4160 = vadd.f32 0.0, %v4159
  %4161 = vmatmul.bf16.gmra.mxu0 %v4007
  %v4162 = vpop.f32.mrf.mxu0
  %v4163 = vadd.f32 0.0, %v4162
  %v4164 = vpop.f32.mrf.mxu0
  %v4165 = vadd.f32 0.0, %v4164
  %4166 = vmatmul.bf16.gmra.mxu0 %v4010
  %v4167 = vpop.f32.mrf.mxu0
  %v4168 = vadd.f32 0.0, %v4167
  %v4169 = vpop.f32.mrf.mxu0
  %v4170 = vadd.f32 0.0, %v4169
  %4171 = vmatmul.bf16.gmra.mxu0 %v4013
  %v4172 = vpop.f32.mrf.mxu0
  %v4173 = vadd.f32 0.0, %v4172
  %v4174 = vpop.f32.mrf.mxu0
  %v4175 = vadd.f32 0.0, %v4174
  %4176 = vmatmul.bf16.gmra.mxu0 %v4016
  %v4177 = vpop.f32.mrf.mxu0
  %v4178 = vadd.f32 0.0, %v4177
  %v4179 = vpop.f32.mrf.mxu0
  %v4180 = vadd.f32 0.0, %v4179
  %4181 = vmatmul.bf16.gmra.mxu0 %v4019
  %v4182 = vpop.f32.mrf.mxu0
  %v4183 = vadd.f32 0.0, %v4182
  %v4184 = vpop.f32.mrf.mxu0
  %v4185 = vadd.f32 0.0, %v4184
  %4186 = vmatmul.bf16.gmra.mxu0 %v4022
  %v4187 = vpop.f32.mrf.mxu0
  %v4188 = vadd.f32 0.0, %v4187
  %v4189 = vpop.f32.mrf.mxu0
  %v4190 = vadd.f32 0.0, %v4189
  %4191 = vmatmul.bf16.gmra.mxu0 %v4025
  %v4192 = vpop.f32.mrf.mxu0
  %v4193 = vadd.f32 0.0, %v4192
  %v4194 = vpop.f32.mrf.mxu0
  %v4195 = vadd.f32 0.0, %v4194
  %4196 = vmatmul.bf16.gmra.mxu0 %v4028
  %v4197 = vpop.f32.mrf.mxu0
  %v4198 = vadd.f32 0.0, %v4197
  %v4199 = vpop.f32.mrf.mxu0
  %v4200 = vadd.f32 0.0, %v4199
  %4201 = vdwg.mxu0
  %v4202 = vadd.f32 %v3772, %v4043
  %v4203 = vadd.f32 %v3773, %v4045
  %v4204 = vadd.f32 %v3774, %v4048
  %v4205 = vadd.f32 %v3775, %v4050
  %v4206 = vadd.f32 %v3776, %v4053
  %v4207 = vadd.f32 %v3777, %v4055
  %v4208 = vadd.f32 %v3778, %v4058
  %v4209 = vadd.f32 %v3779, %v4060
  %v4210 = vadd.f32 %v3780, %v4063
  %v4211 = vadd.f32 %v3781, %v4065
  %v4212 = vadd.f32 %v3782, %v4068
  %v4213 = vadd.f32 %v3783, %v4070
  %v4214 = vadd.f32 %v3784, %v4073
  %v4215 = vadd.f32 %v3785, %v4075
  %v4216 = vadd.f32 %v3786, %v4078
  %v4217 = vadd.f32 %v3787, %v4080
  %v4218 = vadd.f32 %v3788, %v4083
  %v4219 = vadd.f32 %v3789, %v4085
  %v4220 = vadd.f32 %v3790, %v4088
  %v4221 = vadd.f32 %v3791, %v4090
  %v4222 = vadd.f32 %v3792, %v4093
  %v4223 = vadd.f32 %v3793, %v4095
  %v4224 = vadd.f32 %v3794, %v4098
  %v4225 = vadd.f32 %v3795, %v4100
  %v4226 = vadd.f32 %v3796, %v4103
  %v4227 = vadd.f32 %v3797, %v4105
  %v4228 = vadd.f32 %v3798, %v4108
  %v4229 = vadd.f32 %v3799, %v4110
  %v4230 = vadd.f32 %v3800, %v4113
  %v4231 = vadd.f32 %v3801, %v4115
  %v4232 = vadd.f32 %v3802, %v4118
  %v4233 = vadd.f32 %v3803, %v4120
  %v4234 = vadd.f32 %v3804, %v4123
  %v4235 = vadd.f32 %v3805, %v4125
  %v4236 = vadd.f32 %v3806, %v4128
  %v4237 = vadd.f32 %v3807, %v4130
  %v4238 = vadd.f32 %v3808, %v4133
  %v4239 = vadd.f32 %v3809, %v4135
  %v4240 = vadd.f32 %v3810, %v4138
  %v4241 = vadd.f32 %v3811, %v4140
  %v4242 = vadd.f32 %v3812, %v4143
  %v4243 = vadd.f32 %v3813, %v4145
  %v4244 = vadd.f32 %v3814, %v4148
  %v4245 = vadd.f32 %v3815, %v4150
  %v4246 = vadd.f32 %v3816, %v4153
  %v4247 = vadd.f32 %v3817, %v4155
  %v4248 = vadd.f32 %v3818, %v4158
  %v4249 = vadd.f32 %v3819, %v4160
  %v4250 = vadd.f32 %v3820, %v4163
  %v4251 = vadd.f32 %v3821, %v4165
  %v4252 = vadd.f32 %v3822, %v4168
  %v4253 = vadd.f32 %v3823, %v4170
  %v4254 = vadd.f32 %v3824, %v4173
  %v4255 = vadd.f32 %v3825, %v4175
  %v4256 = vadd.f32 %v3826, %v4178
  %v4257 = vadd.f32 %v3827, %v4180
  %v4258 = vadd.f32 %v3828, %v4183
  %v4259 = vadd.f32 %v3829, %v4185
  %v4260 = vadd.f32 %v3830, %v4188
  %v4261 = vadd.f32 %v3831, %v4190
  %v4262 = vadd.f32 %v3832, %v4193
  %v4263 = vadd.f32 %v3833, %v4195
  %v4264 = vadd.f32 %v3834, %v4198
  %v4265 = vadd.f32 %v3835, %v4200
  %v4266 = vpack.c.bf16 %v4202, %v4202
  %v4267 = vpack.c.bf16 %v4203, %v4203
  %v4268 = vpack.c.bf16 %v4204, %v4204
  %v4269 = vpack.c.bf16 %v4205, %v4205
  %v4270 = vpack.c.bf16 %v4206, %v4206
  %v4271 = vpack.c.bf16 %v4207, %v4207
  %v4272 = vpack.c.bf16 %v4208, %v4208
  %v4273 = vpack.c.bf16 %v4209, %v4209
  %v4274 = vpack.c.bf16 %v4210, %v4210
  %v4275 = vpack.c.bf16 %v4211, %v4211
  %v4276 = vpack.c.bf16 %v4212, %v4212
  %v4277 = vpack.c.bf16 %v4213, %v4213
  %v4278 = vpack.c.bf16 %v4214, %v4214
  %v4279 = vpack.c.bf16 %v4215, %v4215
  %v4280 = vpack.c.bf16 %v4216, %v4216
  %v4281 = vpack.c.bf16 %v4217, %v4217
  %v4282 = vpack.c.bf16 %v4218, %v4218
  %v4283 = vpack.c.bf16 %v4219, %v4219
  %v4284 = vpack.c.bf16 %v4220, %v4220
  %v4285 = vpack.c.bf16 %v4221, %v4221
  %v4286 = vpack.c.bf16 %v4222, %v4222
  %v4287 = vpack.c.bf16 %v4223, %v4223
  %v4288 = vpack.c.bf16 %v4224, %v4224
  %v4289 = vpack.c.bf16 %v4225, %v4225
  %v4290 = vpack.c.bf16 %v4226, %v4226
  %v4291 = vpack.c.bf16 %v4227, %v4227
  %v4292 = vpack.c.bf16 %v4228, %v4228
  %v4293 = vpack.c.bf16 %v4229, %v4229
  %v4294 = vpack.c.bf16 %v4230, %v4230
  %v4295 = vpack.c.bf16 %v4231, %v4231
  %v4296 = vpack.c.bf16 %v4232, %v4232
  %v4297 = vpack.c.bf16 %v4233, %v4233
  %v4298 = vpack.c.bf16 %v4234, %v4234
  %v4299 = vpack.c.bf16 %v4235, %v4235
  %v4300 = vpack.c.bf16 %v4236, %v4236
  %v4301 = vpack.c.bf16 %v4237, %v4237
  %v4302 = vpack.c.bf16 %v4238, %v4238
  %v4303 = vpack.c.bf16 %v4239, %v4239
  %v4304 = vpack.c.bf16 %v4240, %v4240
  %v4305 = vpack.c.bf16 %v4241, %v4241
  %v4306 = vpack.c.bf16 %v4242, %v4242
  %v4307 = vpack.c.bf16 %v4243, %v4243
  %v4308 = vpack.c.bf16 %v4244, %v4244
  %v4309 = vpack.c.bf16 %v4245, %v4245
  %v4310 = vpack.c.bf16 %v4246, %v4246
  %v4311 = vpack.c.bf16 %v4247, %v4247
  %v4312 = vpack.c.bf16 %v4248, %v4248
  %v4313 = vpack.c.bf16 %v4249, %v4249
  %v4314 = vpack.c.bf16 %v4250, %v4250
  %v4315 = vpack.c.bf16 %v4251, %v4251
  %v4316 = vpack.c.bf16 %v4252, %v4252
  %v4317 = vpack.c.bf16 %v4253, %v4253
  %v4318 = vpack.c.bf16 %v4254, %v4254
  %v4319 = vpack.c.bf16 %v4255, %v4255
  %v4320 = vpack.c.bf16 %v4256, %v4256
  %v4321 = vpack.c.bf16 %v4257, %v4257
  %v4322 = vpack.c.bf16 %v4258, %v4258
  %v4323 = vpack.c.bf16 %v4259, %v4259
  %v4324 = vpack.c.bf16 %v4260, %v4260
  %v4325 = vpack.c.bf16 %v4261, %v4261
  %v4326 = vpack.c.bf16 %v4262, %v4262
  %v4327 = vpack.c.bf16 %v4263, %v4263
  %v4328 = vpack.c.bf16 %v4264, %v4264
  %v4329 = vpack.c.bf16 %v4265, %v4265
  %vm4330 = vcmask 60416
  %4331 = vst.msk [vmem:[%s4] sm:$0xf] %vm4330, %v4266
  %4332 = vst.msk [vmem:[%s4 + $0x4] sm:$0xf] %vm4330, %v4267
  %4333 = vst.msk [vmem:[%s4 + $0x8] sm:$0xf] %vm4330, %v4268
  %4334 = vst.msk [vmem:[%s4 + $0xc] sm:$0xf] %vm4330, %v4269
  %4335 = vst.msk [vmem:[%s4 + $0x10] sm:$0xf] %vm4330, %v4270
  %4336 = vst.msk [vmem:[%s4 + $0x14] sm:$0xf] %vm4330, %v4271
  %4337 = vst.msk [vmem:[%s4 + $0x18] sm:$0xf] %vm4330, %v4272
  %4338 = vst.msk [vmem:[%s4 + $0x1c] sm:$0xf] %vm4330, %v4273
  %4339 = vst.msk [vmem:[%s4 + $0x20] sm:$0xf] %vm4330, %v4274
  %4340 = vst.msk [vmem:[%s4 + $0x24] sm:$0xf] %vm4330, %v4275
  %4341 = vst.msk [vmem:[%s4 + $0x28] sm:$0xf] %vm4330, %v4276
  %4342 = vst.msk [vmem:[%s4 + $0x2c] sm:$0xf] %vm4330, %v4277
  %4343 = vst.msk [vmem:[%s4 + $0x30] sm:$0xf] %vm4330, %v4278
  %4344 = vst.msk [vmem:[%s4 + $0x34] sm:$0xf] %vm4330, %v4279
  %4345 = vst.msk [vmem:[%s4 + $0x38] sm:$0xf] %vm4330, %v4280
  %4346 = vst.msk [vmem:[%s4 + $0x3c] sm:$0xf] %vm4330, %v4281
  %4347 = vst.msk [vmem:[%s4 + $0x40] sm:$0xf] %vm4330, %v4282
  %4348 = vst.msk [vmem:[%s4 + $0x44] sm:$0xf] %vm4330, %v4283
  %4349 = vst.msk [vmem:[%s4 + $0x48] sm:$0xf] %vm4330, %v4284
  %4350 = vst.msk [vmem:[%s4 + $0x4c] sm:$0xf] %vm4330, %v4285
  %4351 = vst.msk [vmem:[%s4 + $0x50] sm:$0xf] %vm4330, %v4286
  %4352 = vst.msk [vmem:[%s4 + $0x54] sm:$0xf] %vm4330, %v4287
  %4353 = vst.msk [vmem:[%s4 + $0x58] sm:$0xf] %vm4330, %v4288
  %4354 = vst.msk [vmem:[%s4 + $0x5c] sm:$0xf] %vm4330, %v4289
  %4355 = vst.msk [vmem:[%s4 + $0x60] sm:$0xf] %vm4330, %v4290
  %4356 = vst.msk [vmem:[%s4 + $0x64] sm:$0xf] %vm4330, %v4291
  %4357 = vst.msk [vmem:[%s4 + $0x68] sm:$0xf] %vm4330, %v4292
  %4358 = vst.msk [vmem:[%s4 + $0x6c] sm:$0xf] %vm4330, %v4293
  %4359 = vst.msk [vmem:[%s4 + $0x70] sm:$0xf] %vm4330, %v4294
  %4360 = vst.msk [vmem:[%s4 + $0x74] sm:$0xf] %vm4330, %v4295
  %4361 = vst.msk [vmem:[%s4 + $0x78] sm:$0xf] %vm4330, %v4296
  %4362 = vst.msk [vmem:[%s4 + $0x7c] sm:$0xf] %vm4330, %v4297
  %4363 = vst.msk [vmem:[%s4 + $0x80] sm:$0xf] %vm4330, %v4298
  %4364 = vst.msk [vmem:[%s4 + $0x84] sm:$0xf] %vm4330, %v4299
  %4365 = vst.msk [vmem:[%s4 + $0x88] sm:$0xf] %vm4330, %v4300
  %4366 = vst.msk [vmem:[%s4 + $0x8c] sm:$0xf] %vm4330, %v4301
  %4367 = vst.msk [vmem:[%s4 + $0x90] sm:$0xf] %vm4330, %v4302
  %4368 = vst.msk [vmem:[%s4 + $0x94] sm:$0xf] %vm4330, %v4303
  %4369 = vst.msk [vmem:[%s4 + $0x98] sm:$0xf] %vm4330, %v4304
  %4370 = vst.msk [vmem:[%s4 + $0x9c] sm:$0xf] %vm4330, %v4305
  %4371 = vst.msk [vmem:[%s4 + $0xa0] sm:$0xf] %vm4330, %v4306
  %4372 = vst.msk [vmem:[%s4 + $0xa4] sm:$0xf] %vm4330, %v4307
  %4373 = vst.msk [vmem:[%s4 + $0xa8] sm:$0xf] %vm4330, %v4308
  %4374 = vst.msk [vmem:[%s4 + $0xac] sm:$0xf] %vm4330, %v4309
  %4375 = vst.msk [vmem:[%s4 + $0xb0] sm:$0xf] %vm4330, %v4310
  %4376 = vst.msk [vmem:[%s4 + $0xb4] sm:$0xf] %vm4330, %v4311
  %4377 = vst.msk [vmem:[%s4 + $0xb8] sm:$0xf] %vm4330, %v4312
  %4378 = vst.msk [vmem:[%s4 + $0xbc] sm:$0xf] %vm4330, %v4313
  %4379 = vst.msk [vmem:[%s4 + $0xc0] sm:$0xf] %vm4330, %v4314
  %4380 = vst.msk [vmem:[%s4 + $0xc4] sm:$0xf] %vm4330, %v4315
  %4381 = vst.msk [vmem:[%s4 + $0xc8] sm:$0xf] %vm4330, %v4316
  %4382 = vst.msk [vmem:[%s4 + $0xcc] sm:$0xf] %vm4330, %v4317
  %4383 = vst.msk [vmem:[%s4 + $0xd0] sm:$0xf] %vm4330, %v4318
  %4384 = vst.msk [vmem:[%s4 + $0xd4] sm:$0xf] %vm4330, %v4319
  %4385 = vst.msk [vmem:[%s4 + $0xd8] sm:$0xf] %vm4330, %v4320
  %4386 = vst.msk [vmem:[%s4 + $0xdc] sm:$0xf] %vm4330, %v4321
  %4387 = vst.msk [vmem:[%s4 + $0xe0] sm:$0xf] %vm4330, %v4322
  %4388 = vst.msk [vmem:[%s4 + $0xe4] sm:$0xf] %vm4330, %v4323
  %4389 = vst.msk [vmem:[%s4 + $0xe8] sm:$0xf] %vm4330, %v4324
  %4390 = vst.msk [vmem:[%s4 + $0xec] sm:$0xf] %vm4330, %v4325
  %4391 = vst.msk [vmem:[%s4 + $0xf0] sm:$0xf] %vm4330, %v4326
  %4392 = vst.msk [vmem:[%s4 + $0xf4] sm:$0xf] %vm4330, %v4327
  %4393 = vst.msk [vmem:[%s4 + $0xf8] sm:$0xf] %vm4330, %v4328
  %4394 = vst.msk [vmem:[%s4 + $0xfc] sm:$0xf] %vm4330, %v4329
  %v4395 = vsel %vm20, %v4202, 0.0
  %v4396 = vsel %vm20, %v4203, 0.0
  %v4397 = vadd.f32 %v4395, %v4396
  %v4398 = vsel %vm20, %v4204, 0.0
  %v4399 = vadd.f32 %v4397, %v4398
  %v4400 = vsel %vm20, %v4205, 0.0
  %v4401 = vadd.f32 %v4399, %v4400
  %v4402 = vsel %vm20, %v4206, 0.0
  %v4403 = vadd.f32 %v4401, %v4402
  %v4404 = vsel %vm20, %v4207, 0.0
  %v4405 = vadd.f32 %v4403, %v4404
  %v4406 = vsel %vm20, %v4208, 0.0
  %v4407 = vadd.f32 %v4405, %v4406
  %v4408 = vsel %vm20, %v4209, 0.0
  %v4409 = vadd.f32 %v4407, %v4408
  %v4410 = vsel %vm20, %v4210, 0.0
  %v4411 = vadd.f32 %v4409, %v4410
  %v4412 = vsel %vm20, %v4211, 0.0
  %v4413 = vadd.f32 %v4411, %v4412
  %v4414 = vsel %vm20, %v4212, 0.0
  %v4415 = vadd.f32 %v4413, %v4414
  %v4416 = vsel %vm20, %v4213, 0.0
  %v4417 = vadd.f32 %v4415, %v4416
  %v4418 = vsel %vm20, %v4214, 0.0
  %v4419 = vadd.f32 %v4417, %v4418
  %v4420 = vsel %vm20, %v4215, 0.0
  %v4421 = vadd.f32 %v4419, %v4420
  %v4422 = vsel %vm20, %v4216, 0.0
  %v4423 = vadd.f32 %v4421, %v4422
  %v4424 = vsel %vm20, %v4217, 0.0
  %v4425 = vadd.f32 %v4423, %v4424
  %v4426 = vsel %vm20, %v4218, 0.0
  %v4427 = vadd.f32 %v4425, %v4426
  %v4428 = vsel %vm20, %v4219, 0.0
  %v4429 = vadd.f32 %v4427, %v4428
  %v4430 = vsel %vm20, %v4220, 0.0
  %v4431 = vadd.f32 %v4429, %v4430
  %v4432 = vsel %vm20, %v4221, 0.0
  %v4433 = vadd.f32 %v4431, %v4432
  %v4434 = vsel %vm20, %v4222, 0.0
  %v4435 = vadd.f32 %v4433, %v4434
  %v4436 = vsel %vm20, %v4223, 0.0
  %v4437 = vadd.f32 %v4435, %v4436
  %v4438 = vsel %vm20, %v4224, 0.0
  %v4439 = vadd.f32 %v4437, %v4438
  %v4440 = vsel %vm20, %v4225, 0.0
  %v4441 = vadd.f32 %v4439, %v4440
  %v4442 = vsel %vm20, %v4226, 0.0
  %v4443 = vadd.f32 %v4441, %v4442
  %v4444 = vsel %vm20, %v4227, 0.0
  %v4445 = vadd.f32 %v4443, %v4444
  %v4446 = vsel %vm20, %v4228, 0.0
  %v4447 = vadd.f32 %v4445, %v4446
  %v4448 = vsel %vm20, %v4229, 0.0
  %v4449 = vadd.f32 %v4447, %v4448
  %v4450 = vsel %vm20, %v4230, 0.0
  %v4451 = vadd.f32 %v4449, %v4450
  %v4452 = vsel %vm20, %v4231, 0.0
  %v4453 = vadd.f32 %v4451, %v4452
  %v4454 = vsel %vm20, %v4232, 0.0
  %v4455 = vadd.f32 %v4453, %v4454
  %v4456 = vsel %vm20, %v4233, 0.0
  %v4457 = vadd.f32 %v4455, %v4456
  %v4458 = vsel %vm20, %v4234, 0.0
  %v4459 = vadd.f32 %v4457, %v4458
  %v4460 = vsel %vm20, %v4235, 0.0
  %v4461 = vadd.f32 %v4459, %v4460
  %v4462 = vsel %vm20, %v4236, 0.0
  %v4463 = vadd.f32 %v4461, %v4462
  %v4464 = vsel %vm20, %v4237, 0.0
  %v4465 = vadd.f32 %v4463, %v4464
  %v4466 = vsel %vm20, %v4238, 0.0
  %v4467 = vadd.f32 %v4465, %v4466
  %v4468 = vsel %vm20, %v4239, 0.0
  %v4469 = vadd.f32 %v4467, %v4468
  %v4470 = vsel %vm20, %v4240, 0.0
  %v4471 = vadd.f32 %v4469, %v4470
  %v4472 = vsel %vm20, %v4241, 0.0
  %v4473 = vadd.f32 %v4471, %v4472
  %v4474 = vsel %vm20, %v4242, 0.0
  %v4475 = vadd.f32 %v4473, %v4474
  %v4476 = vsel %vm20, %v4243, 0.0
  %v4477 = vadd.f32 %v4475, %v4476
  %v4478 = vsel %vm20, %v4244, 0.0
  %v4479 = vadd.f32 %v4477, %v4478
  %v4480 = vsel %vm20, %v4245, 0.0
  %v4481 = vadd.f32 %v4479, %v4480
  %v4482 = vsel %vm20, %v4246, 0.0
  %v4483 = vadd.f32 %v4481, %v4482
  %v4484 = vsel %vm20, %v4247, 0.0
  %v4485 = vadd.f32 %v4483, %v4484
  %v4486 = vsel %vm20, %v4248, 0.0
  %v4487 = vadd.f32 %v4485, %v4486
  %v4488 = vsel %vm20, %v4249, 0.0
  %v4489 = vadd.f32 %v4487, %v4488
  %v4490 = vsel %vm20, %v4250, 0.0
  %v4491 = vadd.f32 %v4489, %v4490
  %v4492 = vsel %vm20, %v4251, 0.0
  %v4493 = vadd.f32 %v4491, %v4492
  %v4494 = vsel %vm20, %v4252, 0.0
  %v4495 = vadd.f32 %v4493, %v4494
  %v4496 = vsel %vm20, %v4253, 0.0
  %v4497 = vadd.f32 %v4495, %v4496
  %v4498 = vsel %vm20, %v4254, 0.0
  %v4499 = vadd.f32 %v4497, %v4498
  %v4500 = vsel %vm20, %v4255, 0.0
  %v4501 = vadd.f32 %v4499, %v4500
  %v4502 = vsel %vm20, %v4256, 0.0
  %v4503 = vadd.f32 %v4501, %v4502
  %v4504 = vsel %vm20, %v4257, 0.0
  %v4505 = vadd.f32 %v4503, %v4504
  %v4506 = vsel %vm20, %v4258, 0.0
  %v4507 = vadd.f32 %v4505, %v4506
  %v4508 = vsel %vm20, %v4259, 0.0
  %v4509 = vadd.f32 %v4507, %v4508
  %v4510 = vsel %vm20, %v4260, 0.0
  %v4511 = vadd.f32 %v4509, %v4510
  %v4512 = vsel %vm20, %v4261, 0.0
  %v4513 = vadd.f32 %v4511, %v4512
  %v4514 = vsel %vm20, %v4262, 0.0
  %v4515 = vadd.f32 %v4513, %v4514
  %v4516 = vsel %vm20, %v4263, 0.0
  %v4517 = vadd.f32 %v4515, %v4516
  %v4518 = vsel %vm20, %v4264, 0.0
  %v4519 = vadd.f32 %v4517, %v4518
  %v4520 = vsel %vm20, %v4265, 0.0
  %v4521 = vadd.f32 %v4519, %v4520
  %v4522 = vrot.slane %v4521, 4
  %v4523 = vadd.f32 %v4521, %v4522
  %v4524 = vrot.slane %v4523, 2
  %v4525 = vadd.f32 %v4523, %v4524
  %v4526 = vrot.slane %v4525, 1
  %v4527 = vadd.f32 %v4525, %v4526
  %vm4528 = vcmask 57344
  %4529 = vst.msk [vmem:[%s5] sm:$0x1] %vm4528, %v4527
  %v4530 = vmul.f32 %v4202, %v4202
  %v4531 = vmul.f32 %v4203, %v4203
  %v4532 = vmul.f32 %v4204, %v4204
  %v4533 = vmul.f32 %v4205, %v4205
  %v4534 = vmul.f32 %v4206, %v4206
  %v4535 = vmul.f32 %v4207, %v4207
  %v4536 = vmul.f32 %v4208, %v4208
  %v4537 = vmul.f32 %v4209, %v4209
  %v4538 = vmul.f32 %v4210, %v4210
  %v4539 = vmul.f32 %v4211, %v4211
  %v4540 = vmul.f32 %v4212, %v4212
  %v4541 = vmul.f32 %v4213, %v4213
  %v4542 = vmul.f32 %v4214, %v4214
  %v4543 = vmul.f32 %v4215, %v4215
  %v4544 = vmul.f32 %v4216, %v4216
  %v4545 = vmul.f32 %v4217, %v4217
  %v4546 = vmul.f32 %v4218, %v4218
  %v4547 = vmul.f32 %v4219, %v4219
  %v4548 = vmul.f32 %v4220, %v4220
  %v4549 = vmul.f32 %v4221, %v4221
  %v4550 = vmul.f32 %v4222, %v4222
  %v4551 = vmul.f32 %v4223, %v4223
  %v4552 = vmul.f32 %v4224, %v4224
  %v4553 = vmul.f32 %v4225, %v4225
  %v4554 = vmul.f32 %v4226, %v4226
  %v4555 = vmul.f32 %v4227, %v4227
  %v4556 = vmul.f32 %v4228, %v4228
  %v4557 = vmul.f32 %v4229, %v4229
  %v4558 = vmul.f32 %v4230, %v4230
  %v4559 = vmul.f32 %v4231, %v4231
  %v4560 = vmul.f32 %v4232, %v4232
  %v4561 = vmul.f32 %v4233, %v4233
  %v4562 = vmul.f32 %v4234, %v4234
  %v4563 = vmul.f32 %v4235, %v4235
  %v4564 = vmul.f32 %v4236, %v4236
  %v4565 = vmul.f32 %v4237, %v4237
  %v4566 = vmul.f32 %v4238, %v4238
  %v4567 = vmul.f32 %v4239, %v4239
  %v4568 = vmul.f32 %v4240, %v4240
  %v4569 = vmul.f32 %v4241, %v4241
  %v4570 = vmul.f32 %v4242, %v4242
  %v4571 = vmul.f32 %v4243, %v4243
  %v4572 = vmul.f32 %v4244, %v4244
  %v4573 = vmul.f32 %v4245, %v4245
  %v4574 = vmul.f32 %v4246, %v4246
  %v4575 = vmul.f32 %v4247, %v4247
  %v4576 = vmul.f32 %v4248, %v4248
  %v4577 = vmul.f32 %v4249, %v4249
  %v4578 = vmul.f32 %v4250, %v4250
  %v4579 = vmul.f32 %v4251, %v4251
  %v4580 = vmul.f32 %v4252, %v4252
  %v4581 = vmul.f32 %v4253, %v4253
  %v4582 = vmul.f32 %v4254, %v4254
  %v4583 = vmul.f32 %v4255, %v4255
  %v4584 = vmul.f32 %v4256, %v4256
  %v4585 = vmul.f32 %v4257, %v4257
  %v4586 = vmul.f32 %v4258, %v4258
  %v4587 = vmul.f32 %v4259, %v4259
  %v4588 = vmul.f32 %v4260, %v4260
  %v4589 = vmul.f32 %v4261, %v4261
  %v4590 = vmul.f32 %v4262, %v4262
  %v4591 = vmul.f32 %v4263, %v4263
  %v4592 = vmul.f32 %v4264, %v4264
  %v4593 = vmul.f32 %v4265, %v4265
  %v4594 = vsel %vm20, %v4530, 0.0
  %v4595 = vsel %vm20, %v4531, 0.0
  %v4596 = vadd.f32 %v4594, %v4595
  %v4597 = vsel %vm20, %v4532, 0.0
  %v4598 = vadd.f32 %v4596, %v4597
  %v4599 = vsel %vm20, %v4533, 0.0
  %v4600 = vadd.f32 %v4598, %v4599
  %v4601 = vsel %vm20, %v4534, 0.0
  %v4602 = vadd.f32 %v4600, %v4601
  %v4603 = vsel %vm20, %v4535, 0.0
  %v4604 = vadd.f32 %v4602, %v4603
  %v4605 = vsel %vm20, %v4536, 0.0
  %v4606 = vadd.f32 %v4604, %v4605
  %v4607 = vsel %vm20, %v4537, 0.0
  %v4608 = vadd.f32 %v4606, %v4607
  %v4609 = vsel %vm20, %v4538, 0.0
  %v4610 = vadd.f32 %v4608, %v4609
  %v4611 = vsel %vm20, %v4539, 0.0
  %v4612 = vadd.f32 %v4610, %v4611
  %v4613 = vsel %vm20, %v4540, 0.0
  %v4614 = vadd.f32 %v4612, %v4613
  %v4615 = vsel %vm20, %v4541, 0.0
  %v4616 = vadd.f32 %v4614, %v4615
  %v4617 = vsel %vm20, %v4542, 0.0
  %v4618 = vadd.f32 %v4616, %v4617
  %v4619 = vsel %vm20, %v4543, 0.0
  %v4620 = vadd.f32 %v4618, %v4619
  %v4621 = vsel %vm20, %v4544, 0.0
  %v4622 = vadd.f32 %v4620, %v4621
  %v4623 = vsel %vm20, %v4545, 0.0
  %v4624 = vadd.f32 %v4622, %v4623
  %v4625 = vsel %vm20, %v4546, 0.0
  %v4626 = vadd.f32 %v4624, %v4625
  %v4627 = vsel %vm20, %v4547, 0.0
  %v4628 = vadd.f32 %v4626, %v4627
  %v4629 = vsel %vm20, %v4548, 0.0
  %v4630 = vadd.f32 %v4628, %v4629
  %v4631 = vsel %vm20, %v4549, 0.0
  %v4632 = vadd.f32 %v4630, %v4631
  %v4633 = vsel %vm20, %v4550, 0.0
  %v4634 = vadd.f32 %v4632, %v4633
  %v4635 = vsel %vm20, %v4551, 0.0
  %v4636 = vadd.f32 %v4634, %v4635
  %v4637 = vsel %vm20, %v4552, 0.0
  %v4638 = vadd.f32 %v4636, %v4637
  %v4639 = vsel %vm20, %v4553, 0.0
  %v4640 = vadd.f32 %v4638, %v4639
  %v4641 = vsel %vm20, %v4554, 0.0
  %v4642 = vadd.f32 %v4640, %v4641
  %v4643 = vsel %vm20, %v4555, 0.0
  %v4644 = vadd.f32 %v4642, %v4643
  %v4645 = vsel %vm20, %v4556, 0.0
  %v4646 = vadd.f32 %v4644, %v4645
  %v4647 = vsel %vm20, %v4557, 0.0
  %v4648 = vadd.f32 %v4646, %v4647
  %v4649 = vsel %vm20, %v4558, 0.0
  %v4650 = vadd.f32 %v4648, %v4649
  %v4651 = vsel %vm20, %v4559, 0.0
  %v4652 = vadd.f32 %v4650, %v4651
  %v4653 = vsel %vm20, %v4560, 0.0
  %v4654 = vadd.f32 %v4652, %v4653
  %v4655 = vsel %vm20, %v4561, 0.0
  %v4656 = vadd.f32 %v4654, %v4655
  %v4657 = vsel %vm20, %v4562, 0.0
  %v4658 = vadd.f32 %v4656, %v4657
  %v4659 = vsel %vm20, %v4563, 0.0
  %v4660 = vadd.f32 %v4658, %v4659
  %v4661 = vsel %vm20, %v4564, 0.0
  %v4662 = vadd.f32 %v4660, %v4661
  %v4663 = vsel %vm20, %v4565, 0.0
  %v4664 = vadd.f32 %v4662, %v4663
  %v4665 = vsel %vm20, %v4566, 0.0
  %v4666 = vadd.f32 %v4664, %v4665
  %v4667 = vsel %vm20, %v4567, 0.0
  %v4668 = vadd.f32 %v4666, %v4667
  %v4669 = vsel %vm20, %v4568, 0.0
  %v4670 = vadd.f32 %v4668, %v4669
  %v4671 = vsel %vm20, %v4569, 0.0
  %v4672 = vadd.f32 %v4670, %v4671
  %v4673 = vsel %vm20, %v4570, 0.0
  %v4674 = vadd.f32 %v4672, %v4673
  %v4675 = vsel %vm20, %v4571, 0.0
  %v4676 = vadd.f32 %v4674, %v4675
  %v4677 = vsel %vm20, %v4572, 0.0
  %v4678 = vadd.f32 %v4676, %v4677
  %v4679 = vsel %vm20, %v4573, 0.0
  %v4680 = vadd.f32 %v4678, %v4679
  %v4681 = vsel %vm20, %v4574, 0.0
  %v4682 = vadd.f32 %v4680, %v4681
  %v4683 = vsel %vm20, %v4575, 0.0
  %v4684 = vadd.f32 %v4682, %v4683
  %v4685 = vsel %vm20, %v4576, 0.0
  %v4686 = vadd.f32 %v4684, %v4685
  %v4687 = vsel %vm20, %v4577, 0.0
  %v4688 = vadd.f32 %v4686, %v4687
  %v4689 = vsel %vm20, %v4578, 0.0
  %v4690 = vadd.f32 %v4688, %v4689
  %v4691 = vsel %vm20, %v4579, 0.0
  %v4692 = vadd.f32 %v4690, %v4691
  %v4693 = vsel %vm20, %v4580, 0.0
  %v4694 = vadd.f32 %v4692, %v4693
  %v4695 = vsel %vm20, %v4581, 0.0
  %v4696 = vadd.f32 %v4694, %v4695
  %v4697 = vsel %vm20, %v4582, 0.0
  %v4698 = vadd.f32 %v4696, %v4697
  %v4699 = vsel %vm20, %v4583, 0.0
  %v4700 = vadd.f32 %v4698, %v4699
  %v4701 = vsel %vm20, %v4584, 0.0
  %v4702 = vadd.f32 %v4700, %v4701
  %v4703 = vsel %vm20, %v4585, 0.0
  %v4704 = vadd.f32 %v4702, %v4703
  %v4705 = vsel %vm20, %v4586, 0.0
  %v4706 = vadd.f32 %v4704, %v4705
  %v4707 = vsel %vm20, %v4587, 0.0
  %v4708 = vadd.f32 %v4706, %v4707
  %v4709 = vsel %vm20, %v4588, 0.0
  %v4710 = vadd.f32 %v4708, %v4709
  %v4711 = vsel %vm20, %v4589, 0.0
  %v4712 = vadd.f32 %v4710, %v4711
  %v4713 = vsel %vm20, %v4590, 0.0
  %v4714 = vadd.f32 %v4712, %v4713
  %v4715 = vsel %vm20, %v4591, 0.0
  %v4716 = vadd.f32 %v4714, %v4715
  %v4717 = vsel %vm20, %v4592, 0.0
  %v4718 = vadd.f32 %v4716, %v4717
  %v4719 = vsel %vm20, %v4593, 0.0
  %v4720 = vadd.f32 %v4718, %v4719
  %v4721 = vrot.slane %v4720, 4
  %v4722 = vadd.f32 %v4720, %v4721
  %v4723 = vrot.slane %v4722, 2
  %v4724 = vadd.f32 %v4722, %v4723
  %v4725 = vrot.slane %v4724, 1
  %v4726 = vadd.f32 %v4724, %v4725
  %4727 = vst.msk [vmem:[%s5 + $0x1] sm:$0x1] %vm4528, %v4726
  // Predicated region
  $region18: #{double_conv.4} parent=0 // pred_check
    _
  $region19: #{double_conv.4} parent=0 // pred_check_branch
    %4729 = sbr.rel (0) target = $region21
  $region20: #{double_conv.4} parent=0 // pred_region
    _
  $region21: #{double_conv.4} parent=0 // pred_fallthru
    _
  // Predicated region
  $region22: #{double_conv.4} parent=0 // pred_check
    _
  $region23: #{double_conv.4} parent=0 // pred_check_branch
    %4731 = sbr.rel (0) target = $region25
  $region24: #{double_conv.4} parent=0 // pred_region
    _
  $region25: #{double_conv.4} parent=0 // pred_fallthru
    _
  // Predicated region
  $region26: #{double_conv.4} parent=0 // pred_check
    _
  $region27: #{double_conv.4} parent=0 // pred_check_branch
    %4733 = sbr.rel (0) target = $region29
  $region28: #{double_conv.4} parent=0 // pred_region
    _
  $region29: #{double_conv.4} parent=0 // pred_fallthru
    _
  // Predicated region
  $region30: #{double_conv.4} parent=0 // pred_check
    _
  $region31: #{double_conv.4} parent=0 // pred_check_branch
    %4735 = sbr.rel (0) target = $region33
  $region32: #{double_conv.4} parent=0 // pred_region
    _
  $region33: #{double_conv.4} parent=0 // pred_fallthru
    _

</llo_original>
